<compile_context>
chip_gen: v7x
topology: tpu7x:2x2x1
jax: 0.10.0
libtpu: 0.0.40
codegen_flags: <defaults>
</compile_context>

<pallas_src>
import jax
import jax.numpy as jnp
from jax.experimental import pallas as pl
from jax.experimental.pallas import tpu as pltpu


# ---------------------------------------------------------------------------
# conv1 as GEMM (bf16 im2col rows x packed bf16 weights), M-tiled, lane-dense
# ---------------------------------------------------------------------------
def _conv1_gemm_kernel(x_ref, w_ref, b_ref, o_ref):
    acc = jnp.dot(x_ref[...], w_ref[...], preferred_element_type=jnp.float32)
    o_ref[...] = jnp.maximum(acc + b_ref[...], 0.0).astype(o_ref.dtype)


def pallas_conv1_gemm(cols, w_bf16, b_f32, *, tile_m=1024):
    M, K = cols.shape
    _, N = w_bf16.shape
    assert M % tile_m == 0
    return pl.pallas_call(
        _conv1_gemm_kernel,
        out_shape=jax.ShapeDtypeStruct((M, N), jnp.bfloat16),
        grid=(M // tile_m,),
        in_specs=[
            pl.BlockSpec((tile_m, K), lambda i: (i, 0)),   # im2col rows (streamed)
            pl.BlockSpec((K, N), lambda i: (0, 0)),        # weights (resident)
            pl.BlockSpec((1, N), lambda i: (0, 0)),        # bias (resident)
        ],
        out_specs=pl.BlockSpec((tile_m, N), lambda i: (i, 0)),
        compiler_params=pltpu.CompilerParams(dimension_semantics=("parallel",)),
    )(cols, w_bf16, b_f32)


# ---------------------------------------------------------------------------
# Fused conv2: in-kernel im2col (parity planes, contiguous taps) + GEMM + ReLU
# ---------------------------------------------------------------------------
def _conv2_fused_kernel(y1_ref, w_ref, b_ref, o_ref, xpad_ref):
    # y1_ref : (1, 4, 16, 16, 128) bf16 parity planes of the 128-padded conv1
    #          output for one image; plane index = (h1 % 2) * 2 + (w1 % 2),
    #          spatial index = (h1 // 2, w1 // 2).
    # xpad_ref: (4, 17, 17, 128) f32 scratch; interior at [*, 1:, 1:, :],
    #          index 0 along the two spatial dims is the conv "-1" padding.
    # Zero only the pad borders (done every step -> safe if the batch grid is
    # split across TensorCores).
    xpad_ref[:, 0, :, :] = jnp.zeros((4, 17, 128), jnp.float32)
    xpad_ref[:, :, 0, :] = jnp.zeros((4, 17, 128), jnp.float32)
    # Copy the four parity planes into the padded scratch interiors.
    for plane in range(4):
        xpad_ref[plane, 1:17, 1:17, :] = y1_ref[0, plane].astype(jnp.float32)

    # 3x3 stride-2 conv as 9 tap GEMMs; every tap is a contiguous slice.
    acc = jnp.zeros((256, 32), jnp.float32)
    for kh in range(3):
        hpar = (kh + 1) % 2            # parity plane holding row 2*ho + kh - 1
        hoff = 0 if kh == 0 else 1     # 0 -> use the zero-pad row at index 0
        for kw in range(3):
            wpar = (kw + 1) % 2
            woff = 0 if kw == 0 else 1
            plane = hpar * 2 + wpar
            tap = xpad_ref[plane, hoff:hoff + 16, woff:woff + 16, :]
            tap = tap.reshape(256, 128).astype(jnp.bfloat16)
            acc += jnp.dot(tap, w_ref[kh * 3 + kw],
                           preferred_element_type=jnp.float32)

    feat = jnp.maximum(acc + b_ref[...], 0.0)          # (256, 32), HWC order
    o_ref[0] = feat.astype(o_ref.dtype)


def pallas_conv2_fused(y1_planes, w_taps, b_f32):
    B = y1_planes.shape[0]
    return pl.pallas_call(
        _conv2_fused_kernel,
        out_shape=jax.ShapeDtypeStruct((B, 256, 32), jnp.bfloat16),
        grid=(B,),
        in_specs=[
            pl.BlockSpec((1, 4, 16, 16, 128), lambda b: (b, 0, 0, 0, 0)),
            pl.BlockSpec((9, 128, 32), lambda b: (0, 0, 0)),   # conv2 weights
            pl.BlockSpec((1, 32), lambda b: (0, 0)),           # conv2 bias
        ],
        out_specs=pl.BlockSpec((1, 256, 32), lambda b: (b, 0, 0)),
        scratch_shapes=[pltpu.VMEM((4, 17, 17, 128), jnp.float32)],
        compiler_params=pltpu.CompilerParams(dimension_semantics=("parallel",)),
    )(y1_planes, w_taps, b_f32)


# ---------------------------------------------------------------------------
# Fused head: bbox MLP + fc1 (K-tiled, accumulated) + ReLU + fc2
# ---------------------------------------------------------------------------
def _head_kernel(img_ref, bbox_ref, w1i_ref, w1b_ref, b1_ref,
                 bbw_ref, bbb_ref, w2_ref, b2_ref, o_ref, acc_ref):
    k = pl.program_id(0)

    @pl.when(k == 0)
    def _():
        hb = jnp.dot(bbox_ref[...].astype(jnp.bfloat16), bbw_ref[...],
                     preferred_element_type=jnp.float32)
        hb = jnp.maximum(hb + bbb_ref[...], 0.0)                  # (B, 32)
        acc_ref[...] = (
            jnp.dot(hb.astype(jnp.bfloat16), w1b_ref[...],
                    preferred_element_type=jnp.float32)
            + b1_ref[...]
        )

    acc_ref[...] += jnp.dot(img_ref[...], w1i_ref[...],
                            preferred_element_type=jnp.float32)

    @pl.when(k == pl.num_programs(0) - 1)
    def _():
        h = jnp.maximum(acc_ref[...], 0.0).astype(jnp.bfloat16)   # (B, 128)
        r = jnp.dot(h, w2_ref[...], preferred_element_type=jnp.float32)
        o_ref[...] = (r + b2_ref[...]).astype(o_ref.dtype)


def pallas_reward_head(img_feat, bbox, p, *, tk=4096):
    B, Kimg = img_feat.shape
    assert Kimg == 8192 and Kimg % tk == 0
    grid = (Kimg // tk,)
    out = pl.pallas_call(
        _head_kernel,
        out_shape=jax.ShapeDtypeStruct((B, 128), jnp.float32),
        grid=grid,
        in_specs=[
            pl.BlockSpec((B, tk), lambda k: (0, k)),       # img_feat tiles (K stream)
            pl.BlockSpec((B, 4), lambda k: (0, 0)),        # bbox
            pl.BlockSpec((tk, 128), lambda k: (k, 0)),     # fc1_w image part (K stream)
            pl.BlockSpec((32, 128), lambda k: (0, 0)),     # fc1_w bbox part
            pl.BlockSpec((1, 128), lambda k: (0, 0)),      # fc1_b
            pl.BlockSpec((4, 32), lambda k: (0, 0)),       # bbox_w
            pl.BlockSpec((1, 32), lambda k: (0, 0)),       # bbox_b
            pl.BlockSpec((128, 128), lambda k: (0, 0)),    # fc2_w (lane-padded)
            pl.BlockSpec((1, 128), lambda k: (0, 0)),      # fc2_b (lane-padded)
        ],
        out_specs=pl.BlockSpec((B, 128), lambda k: (0, 0)),
        scratch_shapes=[pltpu.VMEM((B, 128), jnp.float32)],
        compiler_params=pltpu.CompilerParams(dimension_semantics=("arbitrary",)),
    )(img_feat, bbox, p["w1_img"], p["w1_bbox"], p["b1"],
      p["bbox_w"], p["bbox_b"], p["w2"], p["b2"])
    return out[:, :1]


# ---------------------------------------------------------------------------
# conv1 im2col (XLA glue on the small raw image): rows (b,h1,w1),
# cols = (Cin major, (kh,kw) minor) matching PyTorch's weight flatten order.
# ---------------------------------------------------------------------------
def _im2col(x_nhwc, ksize=3, stride=2, pad=1):
    B, H, W, C = x_nhwc.shape
    Hout = (H + 2 * pad - ksize) // stride + 1
    Wout = (W + 2 * pad - ksize) // stride + 1
    xp = jnp.pad(x_nhwc, ((0, 0), (pad, pad), (pad, pad), (0, 0)))
    taps = []
    for kh in range(ksize):
        for kw in range(ksize):
            taps.append(
                xp[:, kh:kh + stride * Hout:stride, kw:kw + stride * Wout:stride, :]
            )
    cols = jnp.stack(taps, axis=-1)                  # (B, Hout, Wout, C, KH*KW)
    return cols.reshape(B * Hout * Wout, C * ksize * ksize), (B, Hout, Wout)


# ---------------------------------------------------------------------------
# Parameters: deterministic torch-layout init + one-time kernel-layout prepare
# ---------------------------------------------------------------------------
def init_params(key):
    ks = jax.random.split(key, 10)

    def u(k, shape, fan_in):
        bound = 1.0 / jnp.sqrt(jnp.float32(fan_in))
        return jax.random.uniform(k, shape, jnp.float32, -bound, bound)

    return {  # PyTorch layouts
        "conv1_w": u(ks[0], (16, 3, 3, 3), 27),
        "conv1_b": u(ks[1], (16,), 27),
        "conv2_w": u(ks[2], (32, 16, 3, 3), 144),
        "conv2_b": u(ks[3], (32,), 144),
        "bbox_w": u(ks[4], (32, 4), 4),
        "bbox_b": u(ks[5], (32,), 4),
        "fc1_w": u(ks[6], (128, 8192 + 32), 8192 + 32),
        "fc1_b": u(ks[7], (128,), 8192 + 32),
        "fc2_w": u(ks[8], (1, 128), 128),
        "fc2_b": u(ks[9], (1,), 128),
    }


def prepare_params(p, compute_dtype=jnp.bfloat16):
    # conv1: (16,3,3,3) -> (27,16) -> pad Cout 16->128 zero cols (lane-dense out)
    c1w = p["conv1_w"].reshape(16, 27).T
    c1w = jnp.pad(c1w, ((0, 0), (0, 112))).astype(compute_dtype)
    c1b = jnp.pad(p["conv1_b"], (0, 112)).reshape(1, 128).astype(jnp.float32)

    # conv2: (32,16,3,3) -> (9 taps, Cin, Cout) with Cin padded 16->128 zeros,
    # matching the 128-lane-padded conv1 activation (padded lanes are exactly 0)
    c2w = p["conv2_w"].transpose(2, 3, 1, 0).reshape(9, 16, 32)
    c2w = jnp.pad(c2w, ((0, 0), (0, 112), (0, 0))).astype(compute_dtype)
    c2b = p["conv2_b"].reshape(1, 32).astype(jnp.float32)

    bbw = p["bbox_w"].T.astype(compute_dtype)                         # (4, 32)
    bbb = p["bbox_b"].reshape(1, 32).astype(jnp.float32)

    fc1 = p["fc1_w"].T                                                # (8224, 128)
    w1_img = fc1[:8192]
    # one-time CHW -> HWC row permutation so the head consumes the kernel's
    # HWC-flat conv2 features (32ch x 16 x 16 geometry is asserted in forward)
    w1_img = w1_img.reshape(32, 16, 16, 128).transpose(1, 2, 0, 3).reshape(8192, 128)
    w1_img = w1_img.astype(compute_dtype)
    w1_bbox = fc1[8192:].astype(compute_dtype)                        # (32, 128)
    b1 = p["fc1_b"].reshape(1, 128).astype(jnp.float32)

    # fc2: (1,128) -> (128,1) -> pad out-dim to 128 zero cols (lane-dense store)
    w2 = jnp.pad(p["fc2_w"].T, ((0, 0), (0, 127))).astype(compute_dtype)
    b2 = jnp.pad(p["fc2_b"], (0, 127)).reshape(1, 128).astype(jnp.float32)

    return {
        "conv1_w": c1w, "conv1_b": c1b,
        "conv2_w": c2w, "conv2_b": c2b,
        "bbox_w": bbw, "bbox_b": bbb,
        "w1_img": w1_img, "w1_bbox": w1_bbox, "b1": b1,
        "w2": w2, "b2": b2,
    }


# ---------------------------------------------------------------------------
# Forward pass (semantics identical to the PyTorch module)
# ---------------------------------------------------------------------------
def reward_network_forward(params, image_nchw, bbox):
    # image_nchw: (B, 3, 64, 64) f32; bbox: (B, 4) f32
    B, C, H, W = image_nchw.shape
    assert (C, H, W) == (3, 64, 64), "RewardNetwork requires 3x64x64 images (flatten=8192)"

    x = jnp.transpose(image_nchw, (0, 2, 3, 1)).astype(jnp.bfloat16)  # NHWC, bf16 cols
    cols1, (_, H1, W1) = _im2col(x)                                   # (B*1024, 27) bf16
    # order conv1 output rows as (b, h%2, w%2, h//2, w//2) parity planes so the
    # fused conv2 kernel only needs contiguous tap slices
    cols1 = (cols1.reshape(B, 16, 2, 16, 2, 27)
                  .transpose(0, 2, 4, 1, 3, 5)
                  .reshape(B * H1 * W1, 27))

    y1 = pallas_conv1_gemm(cols1, params["conv1_w"], params["conv1_b"])  # (B*1024,128) bf16
    y1_planes = y1.reshape(B, 4, 16, 16, 128)                            # free reshape

    feat = pallas_conv2_fused(y1_planes, params["conv2_w"], params["conv2_b"])  # (B,256,32)
    img_feat = feat.reshape(B, 8192)                                     # free reshape (HWC)

    reward = pallas_reward_head(img_feat, bbox, params)                  # (B, 1) f32
    return reward


if __name__ == "__main__":
    key = jax.random.PRNGKey(0)
    kp, ki, kb = jax.random.split(key, 3)
    params = prepare_params(init_params(kp))
    # 64x64 input so the flattened encoder output is 8192, as the module requires.
    image = jax.random.normal(ki, (2, 3, 64, 64), jnp.float32)
    bbox = jax.random.uniform(kb, (2, 4), jnp.float32)

    fwd = jax.jit(reward_network_forward)
    out = jax.block_until_ready(fwd(params, image, bbox))
    assert out.shape == (2, 1) and out.dtype == jnp.float32
    print("KERNEL_OK")
</pallas_src>

<mosaic_0001>
module attributes {stable_mosaic.version = 11 : i64} {
  func.func @_conv1_gemm_kernel(%arg0: i32, %arg1: memref<1024x27xbf16, #tpu.memory_space<vmem>>, %arg2: memref<27x128xbf16, #tpu.memory_space<vmem>>, %arg3: memref<1x128xf32, #tpu.memory_space<vmem>>, %arg4: memref<1024x128xbf16, #tpu.memory_space<vmem>>) attributes {dimension_semantics = [#tpu.dimension_semantics<parallel>], iteration_bounds = array<i64: 2>, scalar_prefetch = 0 : i64, scratch_operands = 0 : i64, tpu.core_type = #tpu.core_type<tc>, window_params = [{transform_indices = @transform_0, window_bounds = array<i64: 1024, 27>}, {pipeline_mode = #tpu.pipeline_mode<synchronous>, transform_indices = @transform_1, window_bounds = array<i64: 27, 128>}, {pipeline_mode = #tpu.pipeline_mode<synchronous>, transform_indices = @transform_2, window_bounds = array<i64: 1, 128>}, {transform_indices = @transform_3, window_bounds = array<i64: 1024, 128>}]} {
    %c0 = arith.constant 0 : index
    %c0_0 = arith.constant 0 : index
    %0 = vector.load %arg1[%c0, %c0_0] : memref<1024x27xbf16, #tpu.memory_space<vmem>>, vector<1024x27xbf16>
    %c0_1 = arith.constant 0 : index
    %c0_2 = arith.constant 0 : index
    %1 = vector.load %arg2[%c0_1, %c0_2] : memref<27x128xbf16, #tpu.memory_space<vmem>>, vector<27x128xbf16>
    %cst = arith.constant dense<0.000000e+00> : vector<1024x128xf32>
    %2 = tpu.matmul %0, %1, %cst {dimension_numbers = #tpu.dot_dimension_numbers<[1], [0], [0], [1], [0, 0, 1, 1], [], []>} : vector<1024x27xbf16>, vector<27x128xbf16>, vector<1024x128xf32> -> vector<1024x128xf32>
    %c0_3 = arith.constant 0 : index
    %c0_4 = arith.constant 0 : index
    %3 = vector.load %arg3[%c0_3, %c0_4] : memref<1x128xf32, #tpu.memory_space<vmem>>, vector<1x128xf32>
    %4 = vector.broadcast %3 : vector<1x128xf32> to vector<1024x128xf32>
    %5 = arith.addf %2, %4 : vector<1024x128xf32>
    %cst_5 = arith.constant 0.000000e+00 : f32
    %6 = vector.broadcast %cst_5 : f32 to vector<1024x128xf32>
    %7 = arith.maximumf %5, %6 : vector<1024x128xf32>
    %8 = arith.truncf %7 : vector<1024x128xf32> to vector<1024x128xbf16>
    %c0_6 = arith.constant 0 : index
    %c0_7 = arith.constant 0 : index
    %9 = vector.load %arg4[%c0_6, %c0_7] : memref<1024x128xbf16, #tpu.memory_space<vmem>>, vector<1024x128xbf16>
    tpu.vector_store %arg4[%c0_6, %c0_7], %8 {strides = array<i32>} : memref<1024x128xbf16, #tpu.memory_space<vmem>>, vector<1024x128xbf16>,
    return
  }
  func.func @transform_0(%arg0: i32) -> (i32, i32) {
    %c0_i32 = arith.constant 0 : i32
    %c0_i32_0 = arith.constant 0 : i32
    return %arg0, %c0_i32 : i32, i32
  }
  func.func @transform_1(%arg0: i32) -> (i32, i32) {
    %c0_i32 = arith.constant 0 : i32
    %c0_i32_0 = arith.constant 0 : i32
    %c0_i32_1 = arith.constant 0 : i32
    return %c0_i32, %c0_i32_0 : i32, i32
  }
  func.func @transform_2(%arg0: i32) -> (i32, i32) {
    %c0_i32 = arith.constant 0 : i32
    %c0_i32_0 = arith.constant 0 : i32
    %c0_i32_1 = arith.constant 0 : i32
    return %c0_i32, %c0_i32_0 : i32, i32
  }
  func.func @transform_3(%arg0: i32) -> (i32, i32) {
    %c0_i32 = arith.constant 0 : i32
    %c0_i32_0 = arith.constant 0 : i32
    return %arg0, %c0_i32 : i32, i32
  }
}

module attributes {stable_mosaic.version = 11 : i64} {
  func.func @_conv2_fused_kernel(%arg0: i32, %arg1: memref<1x4x16x16x128xbf16, #tpu.memory_space<vmem>>, %arg2: memref<9x128x32xbf16, #tpu.memory_space<vmem>>, %arg3: memref<1x32xf32, #tpu.memory_space<vmem>>, %arg4: memref<1x256x32xbf16, #tpu.memory_space<vmem>>, %arg5: memref<4x17x17x128xf32, #tpu.memory_space<vmem>>) attributes {dimension_semantics = [#tpu.dimension_semantics<parallel>], iteration_bounds = array<i64: 2>, scalar_prefetch = 0 : i64, scratch_operands = 1 : i64, tpu.core_type = #tpu.core_type<tc>, window_params = [{transform_indices = @transform_0, window_bounds = array<i64: 1, 4, 16, 16, 128>}, {pipeline_mode = #tpu.pipeline_mode<synchronous>, transform_indices = @transform_1, window_bounds = array<i64: 9, 128, 32>}, {pipeline_mode = #tpu.pipeline_mode<synchronous>, transform_indices = @transform_2, window_bounds = array<i64: 1, 32>}, {transform_indices = @transform_3, window_bounds = array<i64: 1, 256, 32>}]} {
    %cst = arith.constant 0.000000e+00 : f32
    %0 = vector.broadcast %cst : f32 to vector<4x17x128xf32>
    %c0 = arith.constant 0 : index
    %c0_0 = arith.constant 0 : index
    %c0_1 = arith.constant 0 : index
    %c0_2 = arith.constant 0 : index
    %1 = vector.load %arg5[%c0, %c0_0, %c0_1, %c0_2] : memref<4x17x17x128xf32, #tpu.memory_space<vmem>>, vector<4x1x17x128xf32>
    %2 = vector.shape_cast %1 : vector<4x1x17x128xf32> to vector<4x17x128xf32>
    %3 = vector.shape_cast %0 : vector<4x17x128xf32> to vector<4x1x17x128xf32>
    tpu.vector_store %arg5[%c0, %c0_0, %c0_1, %c0_2], %3 {strides = array<i32>} : memref<4x17x17x128xf32, #tpu.memory_space<vmem>>, vector<4x1x17x128xf32>,
    %cst_3 = arith.constant 0.000000e+00 : f32
    %4 = vector.broadcast %cst_3 : f32 to vector<4x17x128xf32>
    %c0_4 = arith.constant 0 : index
    %c0_5 = arith.constant 0 : index
    %c0_6 = arith.constant 0 : index
    %c0_7 = arith.constant 0 : index
    %5 = vector.load %arg5[%c0_4, %c0_5, %c0_6, %c0_7] : memref<4x17x17x128xf32, #tpu.memory_space<vmem>>, vector<4x17x1x128xf32>
    %6 = vector.shape_cast %5 : vector<4x17x1x128xf32> to vector<4x17x128xf32>
    %7 = vector.shape_cast %4 : vector<4x17x128xf32> to vector<4x17x1x128xf32>
    tpu.vector_store %arg5[%c0_4, %c0_5, %c0_6, %c0_7], %7 {strides = array<i32>} : memref<4x17x17x128xf32, #tpu.memory_space<vmem>>, vector<4x17x1x128xf32>,
    %c0_8 = arith.constant 0 : index
    %c0_9 = arith.constant 0 : index
    %c0_10 = arith.constant 0 : index
    %c0_11 = arith.constant 0 : index
    %c0_12 = arith.constant 0 : index
    %8 = vector.load %arg1[%c0_8, %c0_9, %c0_10, %c0_11, %c0_12] : memref<1x4x16x16x128xbf16, #tpu.memory_space<vmem>>, vector<1x1x16x16x128xbf16>
    %9 = vector.shape_cast %8 : vector<1x1x16x16x128xbf16> to vector<16x16x128xbf16>
    %10 = arith.extf %9 : vector<16x16x128xbf16> to vector<16x16x128xf32>
    %c0_13 = arith.constant 0 : index
    %c1 = arith.constant 1 : index
    %c1_14 = arith.constant 1 : index
    %c0_15 = arith.constant 0 : index
    %11 = vector.load %arg5[%c0_13, %c1, %c1_14, %c0_15] : memref<4x17x17x128xf32, #tpu.memory_space<vmem>>, vector<1x16x16x128xf32>
    %12 = vector.shape_cast %11 : vector<1x16x16x128xf32> to vector<16x16x128xf32>
    %13 = vector.shape_cast %10 : vector<16x16x128xf32> to vector<1x16x16x128xf32>
    tpu.vector_store %arg5[%c0_13, %c1, %c1_14, %c0_15], %13 {strides = array<i32>} : memref<4x17x17x128xf32, #tpu.memory_space<vmem>>, vector<1x16x16x128xf32>,
    %c0_16 = arith.constant 0 : index
    %c1_17 = arith.constant 1 : index
    %c0_18 = arith.constant 0 : index
    %c0_19 = arith.constant 0 : index
    %c0_20 = arith.constant 0 : index
    %14 = vector.load %arg1[%c0_16, %c1_17, %c0_18, %c0_19, %c0_20] : memref<1x4x16x16x128xbf16, #tpu.memory_space<vmem>>, vector<1x1x16x16x128xbf16>
    %15 = vector.shape_cast %14 : vector<1x1x16x16x128xbf16> to vector<16x16x128xbf16>
    %16 = arith.extf %15 : vector<16x16x128xbf16> to vector<16x16x128xf32>
    %c1_21 = arith.constant 1 : index
    %c1_22 = arith.constant 1 : index
    %c1_23 = arith.constant 1 : index
    %c0_24 = arith.constant 0 : index
    %17 = vector.load %arg5[%c1_21, %c1_22, %c1_23, %c0_24] : memref<4x17x17x128xf32, #tpu.memory_space<vmem>>, vector<1x16x16x128xf32>
    %18 = vector.shape_cast %17 : vector<1x16x16x128xf32> to vector<16x16x128xf32>
    %19 = vector.shape_cast %16 : vector<16x16x128xf32> to vector<1x16x16x128xf32>
    tpu.vector_store %arg5[%c1_21, %c1_22, %c1_23, %c0_24], %19 {strides = array<i32>} : memref<4x17x17x128xf32, #tpu.memory_space<vmem>>, vector<1x16x16x128xf32>,
    %c0_25 = arith.constant 0 : index
    %c2 = arith.constant 2 : index
    %c0_26 = arith.constant 0 : index
    %c0_27 = arith.constant 0 : index
    %c0_28 = arith.constant 0 : index
    %20 = vector.load %arg1[%c0_25, %c2, %c0_26, %c0_27, %c0_28] : memref<1x4x16x16x128xbf16, #tpu.memory_space<vmem>>, vector<1x1x16x16x128xbf16>
    %21 = vector.shape_cast %20 : vector<1x1x16x16x128xbf16> to vector<16x16x128xbf16>
    %22 = arith.extf %21 : vector<16x16x128xbf16> to vector<16x16x128xf32>
    %c2_29 = arith.constant 2 : index
    %c1_30 = arith.constant 1 : index
    %c1_31 = arith.constant 1 : index
    %c0_32 = arith.constant 0 : index
    %23 = vector.load %arg5[%c2_29, %c1_30, %c1_31, %c0_32] : memref<4x17x17x128xf32, #tpu.memory_space<vmem>>, vector<1x16x16x128xf32>
    %24 = vector.shape_cast %23 : vector<1x16x16x128xf32> to vector<16x16x128xf32>
    %25 = vector.shape_cast %22 : vector<16x16x128xf32> to vector<1x16x16x128xf32>
    tpu.vector_store %arg5[%c2_29, %c1_30, %c1_31, %c0_32], %25 {strides = array<i32>} : memref<4x17x17x128xf32, #tpu.memory_space<vmem>>, vector<1x16x16x128xf32>,
    %c0_33 = arith.constant 0 : index
    %c3 = arith.constant 3 : index
    %c0_34 = arith.constant 0 : index
    %c0_35 = arith.constant 0 : index
    %c0_36 = arith.constant 0 : index
    %26 = vector.load %arg1[%c0_33, %c3, %c0_34, %c0_35, %c0_36] : memref<1x4x16x16x128xbf16, #tpu.memory_space<vmem>>, vector<1x1x16x16x128xbf16>
    %27 = vector.shape_cast %26 : vector<1x1x16x16x128xbf16> to vector<16x16x128xbf16>
    %28 = arith.extf %27 : vector<16x16x128xbf16> to vector<16x16x128xf32>
    %c3_37 = arith.constant 3 : index
    %c1_38 = arith.constant 1 : index
    %c1_39 = arith.constant 1 : index
    %c0_40 = arith.constant 0 : index
    %29 = vector.load %arg5[%c3_37, %c1_38, %c1_39, %c0_40] : memref<4x17x17x128xf32, #tpu.memory_space<vmem>>, vector<1x16x16x128xf32>
    %30 = vector.shape_cast %29 : vector<1x16x16x128xf32> to vector<16x16x128xf32>
    %31 = vector.shape_cast %28 : vector<16x16x128xf32> to vector<1x16x16x128xf32>
    tpu.vector_store %arg5[%c3_37, %c1_38, %c1_39, %c0_40], %31 {strides = array<i32>} : memref<4x17x17x128xf32, #tpu.memory_space<vmem>>, vector<1x16x16x128xf32>,
    %cst_41 = arith.constant 0.000000e+00 : f32
    %32 = vector.broadcast %cst_41 : f32 to vector<256x32xf32>
    %c3_42 = arith.constant 3 : index
    %c0_43 = arith.constant 0 : index
    %c0_44 = arith.constant 0 : index
    %c0_45 = arith.constant 0 : index
    %33 = vector.load %arg5[%c3_42, %c0_43, %c0_44, %c0_45] : memref<4x17x17x128xf32, #tpu.memory_space<vmem>>, vector<1x16x16x128xf32>
    %34 = vector.shape_cast %33 : vector<1x16x16x128xf32> to vector<16x16x128xf32>
    %35 = vector.shape_cast %34 : vector<16x16x128xf32> to vector<256x128xf32>
    %36 = arith.truncf %35 : vector<256x128xf32> to vector<256x128xbf16>
    %c0_46 = arith.constant 0 : index
    %c0_47 = arith.constant 0 : index
    %c0_48 = arith.constant 0 : index
    %37 = vector.load %arg2[%c0_46, %c0_47, %c0_48] : memref<9x128x32xbf16, #tpu.memory_space<vmem>>, vector<1x128x32xbf16>
    %38 = vector.shape_cast %37 : vector<1x128x32xbf16> to vector<128x32xbf16>
    %cst_49 = arith.constant dense<0.000000e+00> : vector<256x32xf32>
    %39 = tpu.matmul %36, %38, %cst_49 {dimension_numbers = #tpu.dot_dimension_numbers<[1], [0], [0], [1], [0, 0, 1, 1], [], []>} : vector<256x128xbf16>, vector<128x32xbf16>, vector<256x32xf32> -> vector<256x32xf32>
    %40 = arith.addf %32, %39 : vector<256x32xf32>
    %c2_50 = arith.constant 2 : index
    %c0_51 = arith.constant 0 : index
    %c1_52 = arith.constant 1 : index
    %c0_53 = arith.constant 0 : index
    %41 = vector.load %arg5[%c2_50, %c0_51, %c1_52, %c0_53] : memref<4x17x17x128xf32, #tpu.memory_space<vmem>>, vector<1x16x16x128xf32>
    %42 = vector.shape_cast %41 : vector<1x16x16x128xf32> to vector<16x16x128xf32>
    %43 = vector.shape_cast %42 : vector<16x16x128xf32> to vector<256x128xf32>
    %44 = arith.truncf %43 : vector<256x128xf32> to vector<256x128xbf16>
    %c1_54 = arith.constant 1 : index
    %c0_55 = arith.constant 0 : index
    %c0_56 = arith.constant 0 : index
    %45 = vector.load %arg2[%c1_54, %c0_55, %c0_56] : memref<9x128x32xbf16, #tpu.memory_space<vmem>>, vector<1x128x32xbf16>
    %46 = vector.shape_cast %45 : vector<1x128x32xbf16> to vector<128x32xbf16>
    %cst_57 = arith.constant dense<0.000000e+00> : vector<256x32xf32>
    %47 = tpu.matmul %44, %46, %cst_57 {dimension_numbers = #tpu.dot_dimension_numbers<[1], [0], [0], [1], [0, 0, 1, 1], [], []>} : vector<256x128xbf16>, vector<128x32xbf16>, vector<256x32xf32> -> vector<256x32xf32>
    %48 = arith.addf %40, %47 : vector<256x32xf32>
    %c3_58 = arith.constant 3 : index
    %c0_59 = arith.constant 0 : index
    %c1_60 = arith.constant 1 : index
    %c0_61 = arith.constant 0 : index
    %49 = vector.load %arg5[%c3_58, %c0_59, %c1_60, %c0_61] : memref<4x17x17x128xf32, #tpu.memory_space<vmem>>, vector<1x16x16x128xf32>
    %50 = vector.shape_cast %49 : vector<1x16x16x128xf32> to vector<16x16x128xf32>
    %51 = vector.shape_cast %50 : vector<16x16x128xf32> to vector<256x128xf32>
    %52 = arith.truncf %51 : vector<256x128xf32> to vector<256x128xbf16>
    %c2_62 = arith.constant 2 : index
    %c0_63 = arith.constant 0 : index
    %c0_64 = arith.constant 0 : index
    %53 = vector.load %arg2[%c2_62, %c0_63, %c0_64] : memref<9x128x32xbf16, #tpu.memory_space<vmem>>, vector<1x128x32xbf16>
    %54 = vector.shape_cast %53 : vector<1x128x32xbf16> to vector<128x32xbf16>
    %cst_65 = arith.constant dense<0.000000e+00> : vector<256x32xf32>
    %55 = tpu.matmul %52, %54, %cst_65 {dimension_numbers = #tpu.dot_dimension_numbers<[1], [0], [0], [1], [0, 0, 1, 1], [], []>} : vector<256x128xbf16>, vector<128x32xbf16>, vector<256x32xf32> -> vector<256x32xf32>
    %56 = arith.addf %48, %55 : vector<256x32xf32>
    %c1_66 = arith.constant 1 : index
    %c1_67 = arith.constant 1 : index
    %c0_68 = arith.constant 0 : index
    %c0_69 = arith.constant 0 : index
    %57 = vector.load %arg5[%c1_66, %c1_67, %c0_68, %c0_69] : memref<4x17x17x128xf32, #tpu.memory_space<vmem>>, vector<1x16x16x128xf32>
    %58 = vector.shape_cast %57 : vector<1x16x16x128xf32> to vector<16x16x128xf32>
    %59 = vector.shape_cast %58 : vector<16x16x128xf32> to vector<256x128xf32>
    %60 = arith.truncf %59 : vector<256x128xf32> to vector<256x128xbf16>
    %c3_70 = arith.constant 3 : index
    %c0_71 = arith.constant 0 : index
    %c0_72 = arith.constant 0 : index
    %61 = vector.load %arg2[%c3_70, %c0_71, %c0_72] : memref<9x128x32xbf16, #tpu.memory_space<vmem>>, vector<1x128x32xbf16>
    %62 = vector.shape_cast %61 : vector<1x128x32xbf16> to vector<128x32xbf16>
    %cst_73 = arith.constant dense<0.000000e+00> : vector<256x32xf32>
    %63 = tpu.matmul %60, %62, %cst_73 {dimension_numbers = #tpu.dot_dimension_numbers<[1], [0], [0], [1], [0, 0, 1, 1], [], []>} : vector<256x128xbf16>, vector<128x32xbf16>, vector<256x32xf32> -> vector<256x32xf32>
    %64 = arith.addf %56, %63 : vector<256x32xf32>
    %c0_74 = arith.constant 0 : index
    %c1_75 = arith.constant 1 : index
    %c1_76 = arith.constant 1 : index
    %c0_77 = arith.constant 0 : index
    %65 = vector.load %arg5[%c0_74, %c1_75, %c1_76, %c0_77] : memref<4x17x17x128xf32, #tpu.memory_space<vmem>>, vector<1x16x16x128xf32>
    %66 = vector.shape_cast %65 : vector<1x16x16x128xf32> to vector<16x16x128xf32>
    %67 = vector.shape_cast %66 : vector<16x16x128xf32> to vector<256x128xf32>
    %68 = arith.truncf %67 : vector<256x128xf32> to vector<256x128xbf16>
    %c4 = arith.constant 4 : index
    %c0_78 = arith.constant 0 : index
    %c0_79 = arith.constant 0 : index
    %69 = vector.load %arg2[%c4, %c0_78, %c0_79] : memref<9x128x32xbf16, #tpu.memory_space<vmem>>, vector<1x128x32xbf16>
    %70 = vector.shape_cast %69 : vector<1x128x32xbf16> to vector<128x32xbf16>
    %cst_80 = arith.constant dense<0.000000e+00> : vector<256x32xf32>
    %71 = tpu.matmul %68, %70, %cst_80 {dimension_numbers = #tpu.dot_dimension_numbers<[1], [0], [0], [1], [0, 0, 1, 1], [], []>} : vector<256x128xbf16>, vector<128x32xbf16>, vector<256x32xf32> -> vector<256x32xf32>
    %72 = arith.addf %64, %71 : vector<256x32xf32>
    %c1_81 = arith.constant 1 : index
    %c1_82 = arith.constant 1 : index
    %c1_83 = arith.constant 1 : index
    %c0_84 = arith.constant 0 : index
    %73 = vector.load %arg5[%c1_81, %c1_82, %c1_83, %c0_84] : memref<4x17x17x128xf32, #tpu.memory_space<vmem>>, vector<1x16x16x128xf32>
    %74 = vector.shape_cast %73 : vector<1x16x16x128xf32> to vector<16x16x128xf32>
    %75 = vector.shape_cast %74 : vector<16x16x128xf32> to vector<256x128xf32>
    %76 = arith.truncf %75 : vector<256x128xf32> to vector<256x128xbf16>
    %c5 = arith.constant 5 : index
    %c0_85 = arith.constant 0 : index
    %c0_86 = arith.constant 0 : index
    %77 = vector.load %arg2[%c5, %c0_85, %c0_86] : memref<9x128x32xbf16, #tpu.memory_space<vmem>>, vector<1x128x32xbf16>
    %78 = vector.shape_cast %77 : vector<1x128x32xbf16> to vector<128x32xbf16>
    %cst_87 = arith.constant dense<0.000000e+00> : vector<256x32xf32>
    %79 = tpu.matmul %76, %78, %cst_87 {dimension_numbers = #tpu.dot_dimension_numbers<[1], [0], [0], [1], [0, 0, 1, 1], [], []>} : vector<256x128xbf16>, vector<128x32xbf16>, vector<256x32xf32> -> vector<256x32xf32>
    %80 = arith.addf %72, %79 : vector<256x32xf32>
    %c3_88 = arith.constant 3 : index
    %c1_89 = arith.constant 1 : index
    %c0_90 = arith.constant 0 : index
    %c0_91 = arith.constant 0 : index
    %81 = vector.load %arg5[%c3_88, %c1_89, %c0_90, %c0_91] : memref<4x17x17x128xf32, #tpu.memory_space<vmem>>, vector<1x16x16x128xf32>
    %82 = vector.shape_cast %81 : vector<1x16x16x128xf32> to vector<16x16x128xf32>
    %83 = vector.shape_cast %82 : vector<16x16x128xf32> to vector<256x128xf32>
    %84 = arith.truncf %83 : vector<256x128xf32> to vector<256x128xbf16>
    %c6 = arith.constant 6 : index
    %c0_92 = arith.constant 0 : index
    %c0_93 = arith.constant 0 : index
    %85 = vector.load %arg2[%c6, %c0_92, %c0_93] : memref<9x128x32xbf16, #tpu.memory_space<vmem>>, vector<1x128x32xbf16>
    %86 = vector.shape_cast %85 : vector<1x128x32xbf16> to vector<128x32xbf16>
    %cst_94 = arith.constant dense<0.000000e+00> : vector<256x32xf32>
    %87 = tpu.matmul %84, %86, %cst_94 {dimension_numbers = #tpu.dot_dimension_numbers<[1], [0], [0], [1], [0, 0, 1, 1], [], []>} : vector<256x128xbf16>, vector<128x32xbf16>, vector<256x32xf32> -> vector<256x32xf32>
    %88 = arith.addf %80, %87 : vector<256x32xf32>
    %c2_95 = arith.constant 2 : index
    %c1_96 = arith.constant 1 : index
    %c1_97 = arith.constant 1 : index
    %c0_98 = arith.constant 0 : index
    %89 = vector.load %arg5[%c2_95, %c1_96, %c1_97, %c0_98] : memref<4x17x17x128xf32, #tpu.memory_space<vmem>>, vector<1x16x16x128xf32>
    %90 = vector.shape_cast %89 : vector<1x16x16x128xf32> to vector<16x16x128xf32>
    %91 = vector.shape_cast %90 : vector<16x16x128xf32> to vector<256x128xf32>
    %92 = arith.truncf %91 : vector<256x128xf32> to vector<256x128xbf16>
    %c7 = arith.constant 7 : index
    %c0_99 = arith.constant 0 : index
    %c0_100 = arith.constant 0 : index
    %93 = vector.load %arg2[%c7, %c0_99, %c0_100] : memref<9x128x32xbf16, #tpu.memory_space<vmem>>, vector<1x128x32xbf16>
    %94 = vector.shape_cast %93 : vector<1x128x32xbf16> to vector<128x32xbf16>
    %cst_101 = arith.constant dense<0.000000e+00> : vector<256x32xf32>
    %95 = tpu.matmul %92, %94, %cst_101 {dimension_numbers = #tpu.dot_dimension_numbers<[1], [0], [0], [1], [0, 0, 1, 1], [], []>} : vector<256x128xbf16>, vector<128x32xbf16>, vector<256x32xf32> -> vector<256x32xf32>
    %96 = arith.addf %88, %95 : vector<256x32xf32>
    %c3_102 = arith.constant 3 : index
    %c1_103 = arith.constant 1 : index
    %c1_104 = arith.constant 1 : index
    %c0_105 = arith.constant 0 : index
    %97 = vector.load %arg5[%c3_102, %c1_103, %c1_104, %c0_105] : memref<4x17x17x128xf32, #tpu.memory_space<vmem>>, vector<1x16x16x128xf32>
    %98 = vector.shape_cast %97 : vector<1x16x16x128xf32> to vector<16x16x128xf32>
    %99 = vector.shape_cast %98 : vector<16x16x128xf32> to vector<256x128xf32>
    %100 = arith.truncf %99 : vector<256x128xf32> to vector<256x128xbf16>
    %c8 = arith.constant 8 : index
    %c0_106 = arith.constant 0 : index
    %c0_107 = arith.constant 0 : index
    %101 = vector.load %arg2[%c8, %c0_106, %c0_107] : memref<9x128x32xbf16, #tpu.memory_space<vmem>>, vector<1x128x32xbf16>
    %102 = vector.shape_cast %101 : vector<1x128x32xbf16> to vector<128x32xbf16>
    %cst_108 = arith.constant dense<0.000000e+00> : vector<256x32xf32>
    %103 = tpu.matmul %100, %102, %cst_108 {dimension_numbers = #tpu.dot_dimension_numbers<[1], [0], [0], [1], [0, 0, 1, 1], [], []>} : vector<256x128xbf16>, vector<128x32xbf16>, vector<256x32xf32> -> vector<256x32xf32>
    %104 = arith.addf %96, %103 : vector<256x32xf32>
    %c0_109 = arith.constant 0 : index
    %c0_110 = arith.constant 0 : index
    %105 = vector.load %arg3[%c0_109, %c0_110] : memref<1x32xf32, #tpu.memory_space<vmem>>, vector<1x32xf32>
    %106 = vector.broadcast %105 : vector<1x32xf32> to vector<256x32xf32>
    %107 = arith.addf %104, %106 : vector<256x32xf32>
    %cst_111 = arith.constant 0.000000e+00 : f32
    %108 = vector.broadcast %cst_111 : f32 to vector<256x32xf32>
    %109 = arith.maximumf %107, %108 : vector<256x32xf32>
    %110 = arith.truncf %109 : vector<256x32xf32> to vector<256x32xbf16>
    %c0_112 = arith.constant 0 : index
    %c0_113 = arith.constant 0 : index
    %c0_114 = arith.constant 0 : index
    %111 = vector.load %arg4[%c0_112, %c0_113, %c0_114] : memref<1x256x32xbf16, #tpu.memory_space<vmem>>, vector<1x256x32xbf16>
    %112 = vector.shape_cast %111 : vector<1x256x32xbf16> to vector<256x32xbf16>
    %113 = vector.shape_cast %110 : vector<256x32xbf16> to vector<1x256x32xbf16>
    tpu.vector_store %arg4[%c0_112, %c0_113, %c0_114], %113 {strides = array<i32>} : memref<1x256x32xbf16, #tpu.memory_space<vmem>>, vector<1x256x32xbf16>,
    return
  }
  func.func @transform_0(%arg0: i32) -> (i32, i32, i32, i32, i32) {
    %c0_i32 = arith.constant 0 : i32
    %c0_i32_0 = arith.constant 0 : i32
    %c0_i32_1 = arith.constant 0 : i32
    %c0_i32_2 = arith.constant 0 : i32
    %c0_i32_3 = arith.constant 0 : i32
    return %arg0, %c0_i32, %c0_i32_0, %c0_i32_1, %c0_i32_2 : i32, i32, i32, i32, i32
  }
  func.func @transform_1(%arg0: i32) -> (i32, i32, i32) {
    %c0_i32 = arith.constant 0 : i32
    %c0_i32_0 = arith.constant 0 : i32
    %c0_i32_1 = arith.constant 0 : i32
    %c0_i32_2 = arith.constant 0 : i32
    return %c0_i32, %c0_i32_0, %c0_i32_1 : i32, i32, i32
  }
  func.func @transform_2(%arg0: i32) -> (i32, i32) {
    %c0_i32 = arith.constant 0 : i32
    %c0_i32_0 = arith.constant 0 : i32
    %c0_i32_1 = arith.constant 0 : i32
    return %c0_i32, %c0_i32_0 : i32, i32
  }
  func.func @transform_3(%arg0: i32) -> (i32, i32, i32) {
    %c0_i32 = arith.constant 0 : i32
    %c0_i32_0 = arith.constant 0 : i32
    %c0_i32_1 = arith.constant 0 : i32
    return %arg0, %c0_i32, %c0_i32_0 : i32, i32, i32
  }
}

module attributes {stable_mosaic.version = 11 : i64} {
  func.func @_head_kernel(%arg0: i32, %arg1: memref<2x4096xbf16, #tpu.memory_space<vmem>>, %arg2: memref<2x4xf32, #tpu.memory_space<vmem>>, %arg3: memref<4096x128xbf16, #tpu.memory_space<vmem>>, %arg4: memref<32x128xbf16, #tpu.memory_space<vmem>>, %arg5: memref<1x128xf32, #tpu.memory_space<vmem>>, %arg6: memref<4x32xbf16, #tpu.memory_space<vmem>>, %arg7: memref<1x32xf32, #tpu.memory_space<vmem>>, %arg8: memref<128x128xbf16, #tpu.memory_space<vmem>>, %arg9: memref<1x128xf32, #tpu.memory_space<vmem>>, %arg10: memref<2x128xf32, #tpu.memory_space<vmem>>, %arg11: memref<2x128xf32, #tpu.memory_space<vmem>>) attributes {dimension_semantics = [#tpu.dimension_semantics<arbitrary>], iteration_bounds = array<i64: 2>, scalar_prefetch = 0 : i64, scratch_operands = 1 : i64, tpu.core_type = #tpu.core_type<tc>, window_params = [{transform_indices = @transform_0, window_bounds = array<i64: 2, 4096>}, {pipeline_mode = #tpu.pipeline_mode<synchronous>, transform_indices = @transform_1, window_bounds = array<i64: 2, 4>}, {transform_indices = @transform_2, window_bounds = array<i64: 4096, 128>}, {pipeline_mode = #tpu.pipeline_mode<synchronous>, transform_indices = @transform_3, window_bounds = array<i64: 32, 128>}, {pipeline_mode = #tpu.pipeline_mode<synchronous>, transform_indices = @transform_4, window_bounds = array<i64: 1, 128>}, {pipeline_mode = #tpu.pipeline_mode<synchronous>, transform_indices = @transform_5, window_bounds = array<i64: 4, 32>}, {pipeline_mode = #tpu.pipeline_mode<synchronous>, transform_indices = @transform_6, window_bounds = array<i64: 1, 32>}, {pipeline_mode = #tpu.pipeline_mode<synchronous>, transform_indices = @transform_7, window_bounds = array<i64: 128, 128>}, {pipeline_mode = #tpu.pipeline_mode<synchronous>, transform_indices = @transform_8, window_bounds = array<i64: 1, 128>}, {pipeline_mode = #tpu.pipeline_mode<synchronous>, transform_indices = @transform_9, window_bounds = array<i64: 2, 128>}]} {
    %c0_i32 = arith.constant 0 : i32
    %0 = arith.cmpi eq, %arg0, %c0_i32 : i32
    %1 = arith.extui %0 : i1 to i32
    %c0_i32_0 = arith.constant 0 : i32
    %2 = arith.cmpi ne, %1, %c0_i32_0 : i32
    scf.if %2 {
      %c0_9 = arith.constant 0 : index
      %c0_10 = arith.constant 0 : index
      %12 = vector.load %arg2[%c0_9, %c0_10] : memref<2x4xf32, #tpu.memory_space<vmem>>, vector<2x4xf32>
      %13 = arith.truncf %12 : vector<2x4xf32> to vector<2x4xbf16>
      %c0_11 = arith.constant 0 : index
      %c0_12 = arith.constant 0 : index
      %14 = vector.load %arg6[%c0_11, %c0_12] : memref<4x32xbf16, #tpu.memory_space<vmem>>, vector<4x32xbf16>
      %cst_13 = arith.constant dense<0.000000e+00> : vector<2x32xf32>
      %15 = tpu.matmul %13, %14, %cst_13 {dimension_numbers = #tpu.dot_dimension_numbers<[1], [0], [0], [1], [0, 0, 1, 1], [], []>} : vector<2x4xbf16>, vector<4x32xbf16>, vector<2x32xf32> -> vector<2x32xf32>
      %c0_14 = arith.constant 0 : index
      %c0_15 = arith.constant 0 : index
      %16 = vector.load %arg7[%c0_14, %c0_15] : memref<1x32xf32, #tpu.memory_space<vmem>>, vector<1x32xf32>
      %17 = vector.broadcast %16 : vector<1x32xf32> to vector<2x32xf32>
      %18 = arith.addf %15, %17 : vector<2x32xf32>
      %cst_16 = arith.constant 0.000000e+00 : f32
      %19 = vector.broadcast %cst_16 : f32 to vector<2x32xf32>
      %20 = arith.maximumf %18, %19 : vector<2x32xf32>
      %21 = arith.truncf %20 : vector<2x32xf32> to vector<2x32xbf16>
      %c0_17 = arith.constant 0 : index
      %c0_18 = arith.constant 0 : index
      %22 = vector.load %arg4[%c0_17, %c0_18] : memref<32x128xbf16, #tpu.memory_space<vmem>>, vector<32x128xbf16>
      %cst_19 = arith.constant dense<0.000000e+00> : vector<2x128xf32>
      %23 = tpu.matmul %21, %22, %cst_19 {dimension_numbers = #tpu.dot_dimension_numbers<[1], [0], [0], [1], [0, 0, 1, 1], [], []>} : vector<2x32xbf16>, vector<32x128xbf16>, vector<2x128xf32> -> vector<2x128xf32>
      %c0_20 = arith.constant 0 : index
      %c0_21 = arith.constant 0 : index
      %24 = vector.load %arg5[%c0_20, %c0_21] : memref<1x128xf32, #tpu.memory_space<vmem>>, vector<1x128xf32>
      %25 = vector.broadcast %24 : vector<1x128xf32> to vector<2x128xf32>
      %26 = arith.addf %23, %25 : vector<2x128xf32>
      %c0_22 = arith.constant 0 : index
      %c0_23 = arith.constant 0 : index
      %27 = vector.load %arg11[%c0_22, %c0_23] : memref<2x128xf32, #tpu.memory_space<vmem>>, vector<2x128xf32>
      tpu.vector_store %arg11[%c0_22, %c0_23], %26 {strides = array<i32>} : memref<2x128xf32, #tpu.memory_space<vmem>>, vector<2x128xf32>,
    } else {
    }
    %c0 = arith.constant 0 : index
    %c0_1 = arith.constant 0 : index
    %3 = vector.load %arg11[%c0, %c0_1] : memref<2x128xf32, #tpu.memory_space<vmem>>, vector<2x128xf32>
    %c0_2 = arith.constant 0 : index
    %c0_3 = arith.constant 0 : index
    %4 = vector.load %arg1[%c0_2, %c0_3] : memref<2x4096xbf16, #tpu.memory_space<vmem>>, vector<2x4096xbf16>
    %c0_4 = arith.constant 0 : index
    %c0_5 = arith.constant 0 : index
    %5 = vector.load %arg3[%c0_4, %c0_5] : memref<4096x128xbf16, #tpu.memory_space<vmem>>, vector<4096x128xbf16>
    %cst = arith.constant dense<0.000000e+00> : vector<2x128xf32>
    %6 = tpu.matmul %4, %5, %cst {dimension_numbers = #tpu.dot_dimension_numbers<[1], [0], [0], [1], [0, 0, 1, 1], [], []>} : vector<2x4096xbf16>, vector<4096x128xbf16>, vector<2x128xf32> -> vector<2x128xf32>
    %7 = arith.addf %3, %6 : vector<2x128xf32>
    %c0_6 = arith.constant 0 : index
    %c0_7 = arith.constant 0 : index
    %8 = vector.load %arg11[%c0_6, %c0_7] : memref<2x128xf32, #tpu.memory_space<vmem>>, vector<2x128xf32>
    tpu.vector_store %arg11[%c0_6, %c0_7], %7 {strides = array<i32>} : memref<2x128xf32, #tpu.memory_space<vmem>>, vector<2x128xf32>,
    %c1_i32 = arith.constant 1 : i32
    %9 = arith.cmpi eq, %arg0, %c1_i32 : i32
    %10 = arith.extui %9 : i1 to i32
    %c0_i32_8 = arith.constant 0 : i32
    %11 = arith.cmpi ne, %10, %c0_i32_8 : i32
    scf.if %11 {
      %c0_9 = arith.constant 0 : index
      %c0_10 = arith.constant 0 : index
      %12 = vector.load %arg11[%c0_9, %c0_10] : memref<2x128xf32, #tpu.memory_space<vmem>>, vector<2x128xf32>
      %cst_11 = arith.constant 0.000000e+00 : f32
      %13 = vector.broadcast %cst_11 : f32 to vector<2x128xf32>
      %14 = arith.maximumf %12, %13 : vector<2x128xf32>
      %15 = arith.truncf %14 : vector<2x128xf32> to vector<2x128xbf16>
      %c0_12 = arith.constant 0 : index
      %c0_13 = arith.constant 0 : index
      %16 = vector.load %arg8[%c0_12, %c0_13] : memref<128x128xbf16, #tpu.memory_space<vmem>>, vector<128x128xbf16>
      %cst_14 = arith.constant dense<0.000000e+00> : vector<2x128xf32>
      %17 = tpu.matmul %15, %16, %cst_14 {dimension_numbers = #tpu.dot_dimension_numbers<[1], [0], [0], [1], [0, 0, 1, 1], [], []>} : vector<2x128xbf16>, vector<128x128xbf16>, vector<2x128xf32> -> vector<2x128xf32>
      %c0_15 = arith.constant 0 : index
      %c0_16 = arith.constant 0 : index
      %18 = vector.load %arg9[%c0_15, %c0_16] : memref<1x128xf32, #tpu.memory_space<vmem>>, vector<1x128xf32>
      %19 = vector.broadcast %18 : vector<1x128xf32> to vector<2x128xf32>
      %20 = arith.addf %17, %19 : vector<2x128xf32>
      %c0_17 = arith.constant 0 : index
      %c0_18 = arith.constant 0 : index
      %21 = vector.load %arg10[%c0_17, %c0_18] : memref<2x128xf32, #tpu.memory_space<vmem>>, vector<2x128xf32>
      tpu.vector_store %arg10[%c0_17, %c0_18], %20 {strides = array<i32>} : memref<2x128xf32, #tpu.memory_space<vmem>>, vector<2x128xf32>,
    } else {
    }
    return
  }
  func.func @transform_0(%arg0: i32) -> (i32, i32) {
    %c0_i32 = arith.constant 0 : i32
    %c0_i32_0 = arith.constant 0 : i32
    return %c0_i32, %arg0 : i32, i32
  }
  func.func @transform_1(%arg0: i32) -> (i32, i32) {
    %c0_i32 = arith.constant 0 : i32
    %c0_i32_0 = arith.constant 0 : i32
    %c0_i32_1 = arith.constant 0 : i32
    return %c0_i32, %c0_i32_0 : i32, i32
  }
  func.func @transform_2(%arg0: i32) -> (i32, i32) {
    %c0_i32 = arith.constant 0 : i32
    %c0_i32_0 = arith.constant 0 : i32
    return %arg0, %c0_i32 : i32, i32
  }
  func.func @transform_3(%arg0: i32) -> (i32, i32) {
    %c0_i32 = arith.constant 0 : i32
    %c0_i32_0 = arith.constant 0 : i32
    %c0_i32_1 = arith.constant 0 : i32
    return %c0_i32, %c0_i32_0 : i32, i32
  }
  func.func @transform_4(%arg0: i32) -> (i32, i32) {
    %c0_i32 = arith.constant 0 : i32
    %c0_i32_0 = arith.constant 0 : i32
    %c0_i32_1 = arith.constant 0 : i32
    return %c0_i32, %c0_i32_0 : i32, i32
  }
  func.func @transform_5(%arg0: i32) -> (i32, i32) {
    %c0_i32 = arith.constant 0 : i32
    %c0_i32_0 = arith.constant 0 : i32
    %c0_i32_1 = arith.constant 0 : i32
    return %c0_i32, %c0_i32_0 : i32, i32
  }
  func.func @transform_6(%arg0: i32) -> (i32, i32) {
    %c0_i32 = arith.constant 0 : i32
    %c0_i32_0 = arith.constant 0 : i32
    %c0_i32_1 = arith.constant 0 : i32
    return %c0_i32, %c0_i32_0 : i32, i32
  }
  func.func @transform_7(%arg0: i32) -> (i32, i32) {
    %c0_i32 = arith.constant 0 : i32
    %c0_i32_0 = arith.constant 0 : i32
    %c0_i32_1 = arith.constant 0 : i32
    return %c0_i32, %c0_i32_0 : i32, i32
  }
  func.func @transform_8(%arg0: i32) -> (i32, i32) {
    %c0_i32 = arith.constant 0 : i32
    %c0_i32_0 = arith.constant 0 : i32
    %c0_i32_1 = arith.constant 0 : i32
    return %c0_i32, %c0_i32_0 : i32, i32
  }
  func.func @transform_9(%arg0: i32) -> (i32, i32) {
    %c0_i32 = arith.constant 0 : i32
    %c0_i32_0 = arith.constant 0 : i32
    %c0_i32_1 = arith.constant 0 : i32
    return %c0_i32, %c0_i32_0 : i32, i32
  }
}

</mosaic_0001>

<llo_original>
// kernel: reward_network_forward.3
$region0: #{reward_network_forward.3}
  #allocation0 [shape = 'u32[]', space=smem, size = 0x4, offset = 0x4, fixed_abs, tag = 'smem constant byte address 0x4 - core index']
  #allocation1 [shape = 'u32[144,128]{1,0:T(1,128)}', space=vmem, size = 0x12000, scoped, tag = 'internal scratch']
  %s0 = inlined_call_operand.vmem [shape: bf16[2048,27], index: 0, kind: input, shape index: {}]
  %s1 = inlined_call_operand.vmem [shape: bf16[27,128], index: 1, kind: input, shape index: {}]
  %s2 = inlined_call_operand.vmem [shape: f32[1,128], index: 2, kind: input, shape index: {}]
  %s3 = inlined_call_operand.vmem [shape: bf16[2048,128], index: 3, kind: output, shape index: {}]
  %s4 = sld [smem:[#allocation0]]
  $region45: #{reward_network_forward.3} parent=0
    _
  %s6 = ssub.s32 1, %s4
  %s7 = scalar_select 0, %s6, %s4
  loop: start=0, step=1, limit=4
  $region2: #{reward_network_forward.3} parent=0 // loop_pre_header
    _
  $region3: #{reward_network_forward.3} parent=0 // loop_header
    %s9 = sphi 0, %s13
    %p10 = scmp.ge.s32.totalorder %s9, 4
    %s19 = sphi 0, %s21
    %s22 = sphi 0, %s19
    %s23 = sphi 0, %s22
    %s39 = sphi 0, %s23
    %s43 = sphi 0, %s43
    %s45 = sphi 0, %s43
    %s46 = sphi 0, %s45
    %s60 = sphi 0, %s46
    %s64 = sphi 0, %s64
    %s66 = sphi 0, %s64
    %s67 = sphi 0, %s66
    %s81 = sphi 0, %s67
    %s87 = sphi 0, %s89
    %s90 = sphi 0, %s87
    %s91 = sphi 0, %s90
    %s107 = sphi 0, %s91
  $region4: #{reward_network_forward.3} parent=0 // loop_header_branch
    %12 = sbr.rel (%p10) target = $region8
  $region5: #{reward_network_forward.3} parent=0 // loop_body
    %s14 = ssub.s32 %s9, 1
    %s15 = ssub.s32 %s9, 2
    %s16 = sadd.s32 %s9, 1
    %s17 = ssub.s32 %s9, %s16
    %p18 = scmp.eq.s32.totalorder %s17, 0
    %s20 = sadd.s32 %s19, 1
    %s21 = scalar_select %p18, %s19, %s20
    %p24 = pneg %p18
    %p25 = scmp.eq.s32.totalorder %s9, 1
    %p26 = por %p24, %p25
    %p27 = scmp.ne.s32.totalorder %s19, %s22
    %p28 = scmp.eq.s32.totalorder %s9, 0
    %p29 = por %p27, %p28
    %p30 = scmp.ne.s32.totalorder %s19, %s22
    %p31 = scmp.eq.s32.totalorder %s14, 1
    %p32 = por %p30, %p31
    %p33 = scmp.ne.s32.totalorder %s22, %s23
    %p34 = scmp.eq.s32.totalorder %s14, 0
    %p35 = por %p33, %p34
    %p36 = scmp.ne.s32.totalorder %s22, %s23
    %p37 = scmp.eq.s32.totalorder %s15, 1
    %p38 = por %p36, %p37
    %p40 = scmp.ne.s32.totalorder %s23, %s39
    %p41 = scmp.eq.s32.totalorder %s15, 0
    %p42 = por %p40, %p41
    %s44 = sadd.s32 %s43, 1
    %p47 = scmp.eq.s32.totalorder %s9, 1
    %p48 = scmp.ne.s32.totalorder %s43, %s45
    %p49 = scmp.eq.s32.totalorder %s9, 0
    %p50 = por %p48, %p49
    %p51 = scmp.ne.s32.totalorder %s43, %s45
    %p52 = scmp.eq.s32.totalorder %s14, 1
    %p53 = por %p51, %p52
    %p54 = scmp.ne.s32.totalorder %s45, %s46
    %p55 = scmp.eq.s32.totalorder %s14, 0
    %p56 = por %p54, %p55
    %p57 = scmp.ne.s32.totalorder %s45, %s46
    %p58 = scmp.eq.s32.totalorder %s15, 1
    %p59 = por %p57, %p58
    %p61 = scmp.ne.s32.totalorder %s46, %s60
    %p62 = scmp.eq.s32.totalorder %s15, 0
    %p63 = por %p61, %p62
    %s65 = sadd.s32 %s64, 1
    %p68 = scmp.eq.s32.totalorder %s9, 1
    %p69 = scmp.ne.s32.totalorder %s64, %s66
    %p70 = scmp.eq.s32.totalorder %s9, 0
    %p71 = por %p69, %p70
    %p72 = scmp.ne.s32.totalorder %s64, %s66
    %p73 = scmp.eq.s32.totalorder %s14, 1
    %p74 = por %p72, %p73
    %p75 = scmp.ne.s32.totalorder %s66, %s67
    %p76 = scmp.eq.s32.totalorder %s14, 0
    %p77 = por %p75, %p76
    %p78 = scmp.ne.s32.totalorder %s66, %s67
    %p79 = scmp.eq.s32.totalorder %s15, 1
    %p80 = por %p78, %p79
    %p82 = scmp.ne.s32.totalorder %s67, %s81
    %p83 = scmp.eq.s32.totalorder %s15, 0
    %p84 = por %p82, %p83
    %s85 = ssub.s32 %s9, %s16
    %p86 = scmp.eq.s32.totalorder %s85, 0
    %s88 = sadd.s32 %s87, 1
    %s89 = scalar_select %p86, %s87, %s88
    %p92 = pneg %p86
    %p93 = scmp.eq.s32.totalorder %s9, 1
    %p94 = por %p92, %p93
    %p95 = scmp.ne.s32.totalorder %s87, %s90
    %p96 = scmp.eq.s32.totalorder %s9, 0
    %p97 = por %p95, %p96
    %p98 = scmp.ne.s32.totalorder %s87, %s90
    %p99 = scmp.eq.s32.totalorder %s14, 1
    %p100 = por %p98, %p99
    %p101 = scmp.ne.s32.totalorder %s90, %s91
    %p102 = scmp.eq.s32.totalorder %s14, 0
    %p103 = por %p101, %p102
    %p104 = scmp.ne.s32.totalorder %s90, %s91
    %p105 = scmp.eq.s32.totalorder %s15, 1
    %p106 = por %p104, %p105
    %p108 = scmp.ne.s32.totalorder %s91, %s107
    %p109 = scmp.eq.s32.totalorder %s15, 0
    %p110 = por %p108, %p109
    %p111 = scmp.le.s32.totalorder 1, %s9
    %p112 = scmp.lt.s32.totalorder %s9, 3
    %p113 = pnand %p111, %p112
    %p114 = pneg %p113
    // Predicated region
    $region9: #{reward_network_forward.3} parent=5 // pred_check
      _
    $region10: #{reward_network_forward.3} parent=5 // pred_check_branch
      %116 = sbr.rel (%p113) target = $region12
    $region11: #{reward_network_forward.3} parent=5 // pred_region
      %s117 = ssub.s32 %s9, 1
      // Predicated region
      $region13: #{reward_network_forward.3} parent=11 // pred_check
        %p118 = pneg %p56
      $region14: #{reward_network_forward.3} parent=11 // pred_check_branch
        %120 = sbr.rel (%p118) target = $region16
      $region15: #{reward_network_forward.3} parent=11 // pred_region
        _
      $region16: #{reward_network_forward.3} parent=11 // pred_fallthru
        _
      // Predicated region
      $region17: #{reward_network_forward.3} parent=11 // pred_check
        %p121 = pneg %p77
      $region18: #{reward_network_forward.3} parent=11 // pred_check_branch
        %123 = sbr.rel (%p121) target = $region20
      $region19: #{reward_network_forward.3} parent=11 // pred_region
        _
      $region20: #{reward_network_forward.3} parent=11 // pred_fallthru
        _
    $region12: #{reward_network_forward.3} parent=5 // pred_fallthru
      _
    %p124 = scmp.lt.s32.totalorder %s9, 2
    // Predicated region
    $region21: #{reward_network_forward.3} parent=5 // pred_check
      %p125 = pneg %p124
    $region22: #{reward_network_forward.3} parent=5 // pred_check_branch
      %127 = sbr.rel (%p125) target = $region24
    $region23: #{reward_network_forward.3} parent=5 // pred_region
      // Predicated region
      $region25: #{reward_network_forward.3} parent=23 // pred_check
        %p128 = pneg %p29
      $region26: #{reward_network_forward.3} parent=23 // pred_check_branch
        %130 = sbr.rel (%p128) target = $region28
      $region27: #{reward_network_forward.3} parent=23 // pred_region
        %s131 = smul.u32 128, %s9
        %p132 = scmp.lt.s32.totalorder %s131, 255
        %s133 = scalar_select %p132, %s131, 255
        %s134 = smul.addr %s133, 4
        %s135 = scalar_lea.vmem %s0, %s134
        %s136 = smul.u32 128, %s9
      $region28: #{reward_network_forward.3} parent=23 // pred_fallthru
        _
    $region24: #{reward_network_forward.3} parent=5 // pred_fallthru
      _
    %p137 = scmp.le.s32.totalorder 1, %s9
    %p138 = scmp.lt.s32.totalorder %s9, 3
    %p139 = pnand %p137, %p138
    %p140 = pneg %p139
    // Predicated region
    $region29: #{reward_network_forward.3} parent=5 // pred_check
      _
    $region30: #{reward_network_forward.3} parent=5 // pred_check_branch
      %142 = sbr.rel (%p139) target = $region32
    $region31: #{reward_network_forward.3} parent=5 // pred_region
      %s143 = ssub.s32 %s9, 1
      %s144 = smul.u32 128, %s14
      %p145 = scmp.lt.s32.totalorder %s144, 255
      %s146 = scalar_select %p145, %s144, 255
      %s147 = smul.addr %s146, 4
      %s148 = scalar_lea.vmem %s0, %s147
      %p149 = pneg %p35
      %p150 = pneg %p32
      %p151 = pneg %p56
      %p152 = pneg %p53
      %p153 = pneg %p77
      %p154 = pneg %p74
      %p155 = pneg %p103
      %p156 = pneg %p100
      %s157 = smul.u32 128, %s14
      %p158 = scmp.lt.s32.totalorder %s157, 255
      %s159 = scalar_select %p158, %s157, 255
      %s160 = smul.addr %s159, 4
      %s161 = scalar_lea.vmem %s3, %s160
      %s162 = smul.u32 128, %s14
      %p163 = scmp.lt.s32.totalorder %s162, 255
      %s164 = scalar_select %p163, %s162, 255
      %s165 = smul.addr %s164, 4
      %s166 = scalar_lea.vmem %s0, %s165
      %s167 = smul.u32 128, %s14
      %s168 = smul.u32 128, %s14
      %p169 = scmp.lt.s32.totalorder %s168, 255
      %s170 = scalar_select %p169, %s168, 255
      %s171 = smul.addr %s170, 4
      %s172 = scalar_lea.vmem %s3, %s171
      %s173 = smul.u32 128, %s14
      %v175 = vld [vmem:[%s166] sm:$0xf]
      %v176 = vld [vmem:[%s166 + $0x4] sm:$0xf]
      %v177 = vld [vmem:[%s166 + $0x8] sm:$0xf]
      %v178 = vld [vmem:[%s166 + $0xc] sm:$0xf]
      %v179 = vld [vmem:[%s166 + $0x10] sm:$0xf]
      %v180 = vld [vmem:[%s166 + $0x14] sm:$0xf]
      %v181 = vld [vmem:[%s166 + $0x18] sm:$0xf]
      %v182 = vld [vmem:[%s166 + $0x1c] sm:$0xf]
      %v183 = vld [vmem:[%s166 + $0x20] sm:$0xf]
      %v184 = vld [vmem:[%s166 + $0x24] sm:$0xf]
      %v185 = vld [vmem:[%s166 + $0x28] sm:$0xf]
      %v186 = vld [vmem:[%s166 + $0x2c] sm:$0xf]
      %v187 = vld [vmem:[%s166 + $0x30] sm:$0xf]
      %v188 = vld [vmem:[%s166 + $0x34] sm:$0xf]
      %v189 = vld [vmem:[%s166 + $0x38] sm:$0xf]
      %v190 = vld [vmem:[%s166 + $0x3c] sm:$0xf]
      %v191 = vld [vmem:[%s166 + $0x40] sm:$0xf]
      %v192 = vld [vmem:[%s166 + $0x44] sm:$0xf]
      %v193 = vld [vmem:[%s166 + $0x48] sm:$0xf]
      %v194 = vld [vmem:[%s166 + $0x4c] sm:$0xf]
      %v195 = vld [vmem:[%s166 + $0x50] sm:$0xf]
      %v196 = vld [vmem:[%s166 + $0x54] sm:$0xf]
      %v197 = vld [vmem:[%s166 + $0x58] sm:$0xf]
      %v198 = vld [vmem:[%s166 + $0x5c] sm:$0xf]
      %v199 = vld [vmem:[%s166 + $0x60] sm:$0xf]
      %v200 = vld [vmem:[%s166 + $0x64] sm:$0xf]
      %v201 = vld [vmem:[%s166 + $0x68] sm:$0xf]
      %v202 = vld [vmem:[%s166 + $0x6c] sm:$0xf]
      %v203 = vld [vmem:[%s166 + $0x70] sm:$0xf]
      %v204 = vld [vmem:[%s166 + $0x74] sm:$0xf]
      %v205 = vld [vmem:[%s166 + $0x78] sm:$0xf]
      %v206 = vld [vmem:[%s166 + $0x7c] sm:$0xf]
      %v207 = vld [vmem:[%s166 + $0x80] sm:$0xf]
      %v208 = vld [vmem:[%s166 + $0x84] sm:$0xf]
      %v209 = vld [vmem:[%s166 + $0x88] sm:$0xf]
      %v210 = vld [vmem:[%s166 + $0x8c] sm:$0xf]
      %v211 = vld [vmem:[%s166 + $0x90] sm:$0xf]
      %v212 = vld [vmem:[%s166 + $0x94] sm:$0xf]
      %v213 = vld [vmem:[%s166 + $0x98] sm:$0xf]
      %v214 = vld [vmem:[%s166 + $0x9c] sm:$0xf]
      %v215 = vld [vmem:[%s166 + $0xa0] sm:$0xf]
      %v216 = vld [vmem:[%s166 + $0xa4] sm:$0xf]
      %v217 = vld [vmem:[%s166 + $0xa8] sm:$0xf]
      %v218 = vld [vmem:[%s166 + $0xac] sm:$0xf]
      %v219 = vld [vmem:[%s166 + $0xb0] sm:$0xf]
      %v220 = vld [vmem:[%s166 + $0xb4] sm:$0xf]
      %v221 = vld [vmem:[%s166 + $0xb8] sm:$0xf]
      %v222 = vld [vmem:[%s166 + $0xbc] sm:$0xf]
      %v223 = vld [vmem:[%s166 + $0xc0] sm:$0xf]
      %v224 = vld [vmem:[%s166 + $0xc4] sm:$0xf]
      %v225 = vld [vmem:[%s166 + $0xc8] sm:$0xf]
      %v226 = vld [vmem:[%s166 + $0xcc] sm:$0xf]
      %v227 = vld [vmem:[%s166 + $0xd0] sm:$0xf]
      %v228 = vld [vmem:[%s166 + $0xd4] sm:$0xf]
      %v229 = vld [vmem:[%s166 + $0xd8] sm:$0xf]
      %v230 = vld [vmem:[%s166 + $0xdc] sm:$0xf]
      %v231 = vld [vmem:[%s166 + $0xe0] sm:$0xf]
      %v232 = vld [vmem:[%s166 + $0xe4] sm:$0xf]
      %v233 = vld [vmem:[%s166 + $0xe8] sm:$0xf]
      %v234 = vld [vmem:[%s166 + $0xec] sm:$0xf]
      %v235 = vld [vmem:[%s166 + $0xf0] sm:$0xf]
      %v236 = vld [vmem:[%s166 + $0xf4] sm:$0xf]
      %v237 = vld [vmem:[%s166 + $0xf8] sm:$0xf]
      %v238 = vld [vmem:[%s166 + $0xfc] sm:$0xf]
      %v239 = vld [vmem:[%s166 + $0x100] sm:$0xf]
      %v240 = vld [vmem:[%s166 + $0x104] sm:$0xf]
      %v241 = vld [vmem:[%s166 + $0x108] sm:$0xf]
      %v242 = vld [vmem:[%s166 + $0x10c] sm:$0xf]
      %v243 = vld [vmem:[%s166 + $0x110] sm:$0xf]
      %v244 = vld [vmem:[%s166 + $0x114] sm:$0xf]
      %v245 = vld [vmem:[%s166 + $0x118] sm:$0xf]
      %v246 = vld [vmem:[%s166 + $0x11c] sm:$0xf]
      %v247 = vld [vmem:[%s166 + $0x120] sm:$0xf]
      %v248 = vld [vmem:[%s166 + $0x124] sm:$0xf]
      %v249 = vld [vmem:[%s166 + $0x128] sm:$0xf]
      %v250 = vld [vmem:[%s166 + $0x12c] sm:$0xf]
      %v251 = vld [vmem:[%s166 + $0x130] sm:$0xf]
      %v252 = vld [vmem:[%s166 + $0x134] sm:$0xf]
      %v253 = vld [vmem:[%s166 + $0x138] sm:$0xf]
      %v254 = vld [vmem:[%s166 + $0x13c] sm:$0xf]
      %v255 = vld [vmem:[%s166 + $0x140] sm:$0xf]
      %v256 = vld [vmem:[%s166 + $0x144] sm:$0xf]
      %v257 = vld [vmem:[%s166 + $0x148] sm:$0xf]
      %v258 = vld [vmem:[%s166 + $0x14c] sm:$0xf]
      %v259 = vld [vmem:[%s166 + $0x150] sm:$0xf]
      %v260 = vld [vmem:[%s166 + $0x154] sm:$0xf]
      %v261 = vld [vmem:[%s166 + $0x158] sm:$0xf]
      %v262 = vld [vmem:[%s166 + $0x15c] sm:$0xf]
      %v263 = vld [vmem:[%s166 + $0x160] sm:$0xf]
      %v264 = vld [vmem:[%s166 + $0x164] sm:$0xf]
      %v265 = vld [vmem:[%s166 + $0x168] sm:$0xf]
      %v266 = vld [vmem:[%s166 + $0x16c] sm:$0xf]
      %v267 = vld [vmem:[%s166 + $0x170] sm:$0xf]
      %v268 = vld [vmem:[%s166 + $0x174] sm:$0xf]
      %v269 = vld [vmem:[%s166 + $0x178] sm:$0xf]
      %v270 = vld [vmem:[%s166 + $0x17c] sm:$0xf]
      %v271 = vld [vmem:[%s166 + $0x180] sm:$0xf]
      %v272 = vld [vmem:[%s166 + $0x184] sm:$0xf]
      %v273 = vld [vmem:[%s166 + $0x188] sm:$0xf]
      %v274 = vld [vmem:[%s166 + $0x18c] sm:$0xf]
      %v275 = vld [vmem:[%s166 + $0x190] sm:$0xf]
      %v276 = vld [vmem:[%s166 + $0x194] sm:$0xf]
      %v277 = vld [vmem:[%s166 + $0x198] sm:$0xf]
      %v278 = vld [vmem:[%s166 + $0x19c] sm:$0xf]
      %v279 = vld [vmem:[%s166 + $0x1a0] sm:$0xf]
      %v280 = vld [vmem:[%s166 + $0x1a4] sm:$0xf]
      %v281 = vld [vmem:[%s166 + $0x1a8] sm:$0xf]
      %v282 = vld [vmem:[%s166 + $0x1ac] sm:$0xf]
      %v283 = vld [vmem:[%s166 + $0x1b0] sm:$0xf]
      %v284 = vld [vmem:[%s166 + $0x1b4] sm:$0xf]
      %v285 = vld [vmem:[%s166 + $0x1b8] sm:$0xf]
      %v286 = vld [vmem:[%s166 + $0x1bc] sm:$0xf]
      %v287 = vld [vmem:[%s166 + $0x1c0] sm:$0xf]
      %v288 = vld [vmem:[%s166 + $0x1c4] sm:$0xf]
      %v289 = vld [vmem:[%s166 + $0x1c8] sm:$0xf]
      %v290 = vld [vmem:[%s166 + $0x1cc] sm:$0xf]
      %v291 = vld [vmem:[%s166 + $0x1d0] sm:$0xf]
      %v292 = vld [vmem:[%s166 + $0x1d4] sm:$0xf]
      %v293 = vld [vmem:[%s166 + $0x1d8] sm:$0xf]
      %v294 = vld [vmem:[%s166 + $0x1dc] sm:$0xf]
      %v295 = vld [vmem:[%s166 + $0x1e0] sm:$0xf]
      %v296 = vld [vmem:[%s166 + $0x1e4] sm:$0xf]
      %v297 = vld [vmem:[%s166 + $0x1e8] sm:$0xf]
      %v298 = vld [vmem:[%s166 + $0x1ec] sm:$0xf]
      %v299 = vld [vmem:[%s166 + $0x1f0] sm:$0xf]
      %v300 = vld [vmem:[%s166 + $0x1f4] sm:$0xf]
      %v301 = vld [vmem:[%s166 + $0x1f8] sm:$0xf]
      %v302 = vld [vmem:[%s166 + $0x1fc] sm:$0xf]
      %v303 = vld [vmem:[%s1] sm:$0xf]
      %v304 = vld [vmem:[%s1 + $0x4] sm:$0xf]
      %v305 = vld [vmem:[%s1 + $0x8] sm:$0xf]
      %v306 = vld [vmem:[%s1 + $0xc] sm:$0x3]
      %v307 = vld [vmem:[%s2] sm:$0x1]
      %v309 = vlaneseq
      %v310 = vshrl.u32 %v309, 7
      %v311 = vsub.s32 0, %v310
      %v312 = vrot.slane %v307, %v311
      %v442 = vunpack.c.l.b16 %v175
      %v443 = vunpack.c.l.b16 %v176
      %v444 = vunpack.c.l.b16 %v177
      %v445 = vunpack.c.l.b16 %v178
      %v446 = vunpack.c.l.b16 %v179
      %v447 = vunpack.c.l.b16 %v180
      %v448 = vunpack.c.l.b16 %v181
      %v449 = vunpack.c.l.b16 %v182
      %v450 = vunpack.c.l.b16 %v183
      %v451 = vunpack.c.l.b16 %v184
      %v452 = vunpack.c.l.b16 %v185
      %v453 = vunpack.c.l.b16 %v186
      %v454 = vunpack.c.l.b16 %v187
      %v455 = vunpack.c.l.b16 %v188
      %v456 = vunpack.c.l.b16 %v189
      %v457 = vunpack.c.l.b16 %v190
      %v458 = vunpack.c.l.b16 %v191
      %v459 = vunpack.c.l.b16 %v192
      %v460 = vunpack.c.l.b16 %v193
      %v461 = vunpack.c.l.b16 %v194
      %v462 = vunpack.c.l.b16 %v195
      %v463 = vunpack.c.l.b16 %v196
      %v464 = vunpack.c.l.b16 %v197
      %v465 = vunpack.c.l.b16 %v198
      %v466 = vunpack.c.l.b16 %v199
      %v467 = vunpack.c.l.b16 %v200
      %v468 = vunpack.c.l.b16 %v201
      %v469 = vunpack.c.l.b16 %v202
      %v470 = vunpack.c.l.b16 %v203
      %v471 = vunpack.c.l.b16 %v204
      %v472 = vunpack.c.l.b16 %v205
      %v473 = vunpack.c.l.b16 %v206
      %v474 = vunpack.c.l.b16 %v207
      %v475 = vunpack.c.l.b16 %v208
      %v476 = vunpack.c.l.b16 %v209
      %v477 = vunpack.c.l.b16 %v210
      %v478 = vunpack.c.l.b16 %v211
      %v479 = vunpack.c.l.b16 %v212
      %v480 = vunpack.c.l.b16 %v213
      %v481 = vunpack.c.l.b16 %v214
      %v482 = vunpack.c.l.b16 %v215
      %v483 = vunpack.c.l.b16 %v216
      %v484 = vunpack.c.l.b16 %v217
      %v485 = vunpack.c.l.b16 %v218
      %v486 = vunpack.c.l.b16 %v219
      %v487 = vunpack.c.l.b16 %v220
      %v488 = vunpack.c.l.b16 %v221
      %v489 = vunpack.c.l.b16 %v222
      %v490 = vunpack.c.l.b16 %v223
      %v491 = vunpack.c.l.b16 %v224
      %v492 = vunpack.c.l.b16 %v225
      %v493 = vunpack.c.l.b16 %v226
      %v494 = vunpack.c.l.b16 %v227
      %v495 = vunpack.c.l.b16 %v228
      %v496 = vunpack.c.l.b16 %v229
      %v497 = vunpack.c.l.b16 %v230
      %v498 = vunpack.c.l.b16 %v231
      %v499 = vunpack.c.l.b16 %v232
      %v500 = vunpack.c.l.b16 %v233
      %v501 = vunpack.c.l.b16 %v234
      %v502 = vunpack.c.l.b16 %v235
      %v503 = vunpack.c.l.b16 %v236
      %v504 = vunpack.c.l.b16 %v237
      %v505 = vunpack.c.l.b16 %v238
      %v506 = vunpack.c.l.b16 %v239
      %v507 = vunpack.c.l.b16 %v240
      %v508 = vunpack.c.l.b16 %v241
      %v509 = vunpack.c.l.b16 %v242
      %v510 = vunpack.c.l.b16 %v243
      %v511 = vunpack.c.l.b16 %v244
      %v512 = vunpack.c.l.b16 %v245
      %v513 = vunpack.c.l.b16 %v246
      %v514 = vunpack.c.l.b16 %v247
      %v515 = vunpack.c.l.b16 %v248
      %v516 = vunpack.c.l.b16 %v249
      %v517 = vunpack.c.l.b16 %v250
      %v518 = vunpack.c.l.b16 %v251
      %v519 = vunpack.c.l.b16 %v252
      %v520 = vunpack.c.l.b16 %v253
      %v521 = vunpack.c.l.b16 %v254
      %v522 = vunpack.c.l.b16 %v255
      %v523 = vunpack.c.l.b16 %v256
      %v524 = vunpack.c.l.b16 %v257
      %v525 = vunpack.c.l.b16 %v258
      %v526 = vunpack.c.l.b16 %v259
      %v527 = vunpack.c.l.b16 %v260
      %v528 = vunpack.c.l.b16 %v261
      %v529 = vunpack.c.l.b16 %v262
      %v530 = vunpack.c.l.b16 %v263
      %v531 = vunpack.c.l.b16 %v264
      %v532 = vunpack.c.l.b16 %v265
      %v533 = vunpack.c.l.b16 %v266
      %v534 = vunpack.c.l.b16 %v267
      %v535 = vunpack.c.l.b16 %v268
      %v536 = vunpack.c.l.b16 %v269
      %v537 = vunpack.c.l.b16 %v270
      %v538 = vunpack.c.l.b16 %v271
      %v539 = vunpack.c.l.b16 %v272
      %v540 = vunpack.c.l.b16 %v273
      %v541 = vunpack.c.l.b16 %v274
      %v542 = vunpack.c.l.b16 %v275
      %v543 = vunpack.c.l.b16 %v276
      %v544 = vunpack.c.l.b16 %v277
      %v545 = vunpack.c.l.b16 %v278
      %v546 = vunpack.c.l.b16 %v279
      %v547 = vunpack.c.l.b16 %v280
      %v548 = vunpack.c.l.b16 %v281
      %v549 = vunpack.c.l.b16 %v282
      %v550 = vunpack.c.l.b16 %v283
      %v551 = vunpack.c.l.b16 %v284
      %v552 = vunpack.c.l.b16 %v285
      %v553 = vunpack.c.l.b16 %v286
      %v554 = vunpack.c.l.b16 %v287
      %v555 = vunpack.c.l.b16 %v288
      %v556 = vunpack.c.l.b16 %v289
      %v557 = vunpack.c.l.b16 %v290
      %v558 = vunpack.c.l.b16 %v291
      %v559 = vunpack.c.l.b16 %v292
      %v560 = vunpack.c.l.b16 %v293
      %v561 = vunpack.c.l.b16 %v294
      %v562 = vunpack.c.l.b16 %v295
      %v563 = vunpack.c.l.b16 %v296
      %v564 = vunpack.c.l.b16 %v297
      %v565 = vunpack.c.l.b16 %v298
      %v566 = vunpack.c.l.b16 %v299
      %v567 = vunpack.c.l.b16 %v300
      %v568 = vunpack.c.l.b16 %v301
      %v569 = vunpack.c.l.b16 %v302
      %v570 = vpack.c.b16 %v443, %v442
      %v571 = vpack.c.b16 %v445, %v444
      %v572 = vpack.c.b16 %v447, %v446
      %v573 = vpack.c.b16 %v449, %v448
      %v574 = vpack.c.b16 %v451, %v450
      %v575 = vpack.c.b16 %v453, %v452
      %v576 = vpack.c.b16 %v455, %v454
      %v577 = vpack.c.b16 %v457, %v456
      %v578 = vpack.c.b16 %v459, %v458
      %v579 = vpack.c.b16 %v461, %v460
      %v580 = vpack.c.b16 %v463, %v462
      %v581 = vpack.c.b16 %v465, %v464
      %v582 = vpack.c.b16 %v467, %v466
      %v583 = vpack.c.b16 %v469, %v468
      %v584 = vpack.c.b16 %v471, %v470
      %v585 = vpack.c.b16 %v473, %v472
      %v586 = vpack.c.b16 %v475, %v474
      %v587 = vpack.c.b16 %v477, %v476
      %v588 = vpack.c.b16 %v479, %v478
      %v589 = vpack.c.b16 %v481, %v480
      %v590 = vpack.c.b16 %v483, %v482
      %v591 = vpack.c.b16 %v485, %v484
      %v592 = vpack.c.b16 %v487, %v486
      %v593 = vpack.c.b16 %v489, %v488
      %v594 = vpack.c.b16 %v491, %v490
      %v595 = vpack.c.b16 %v493, %v492
      %v596 = vpack.c.b16 %v495, %v494
      %v597 = vpack.c.b16 %v497, %v496
      %v598 = vpack.c.b16 %v499, %v498
      %v599 = vpack.c.b16 %v501, %v500
      %v600 = vpack.c.b16 %v503, %v502
      %v601 = vpack.c.b16 %v505, %v504
      %v602 = vpack.c.b16 %v507, %v506
      %v603 = vpack.c.b16 %v509, %v508
      %v604 = vpack.c.b16 %v511, %v510
      %v605 = vpack.c.b16 %v513, %v512
      %v606 = vpack.c.b16 %v515, %v514
      %v607 = vpack.c.b16 %v517, %v516
      %v608 = vpack.c.b16 %v519, %v518
      %v609 = vpack.c.b16 %v521, %v520
      %v610 = vpack.c.b16 %v523, %v522
      %v611 = vpack.c.b16 %v525, %v524
      %v612 = vpack.c.b16 %v527, %v526
      %v613 = vpack.c.b16 %v529, %v528
      %v614 = vpack.c.b16 %v531, %v530
      %v615 = vpack.c.b16 %v533, %v532
      %v616 = vpack.c.b16 %v535, %v534
      %v617 = vpack.c.b16 %v537, %v536
      %v618 = vpack.c.b16 %v539, %v538
      %v619 = vpack.c.b16 %v541, %v540
      %v620 = vpack.c.b16 %v543, %v542
      %v621 = vpack.c.b16 %v545, %v544
      %v622 = vpack.c.b16 %v547, %v546
      %v623 = vpack.c.b16 %v549, %v548
      %v624 = vpack.c.b16 %v551, %v550
      %v625 = vpack.c.b16 %v553, %v552
      %v626 = vpack.c.b16 %v555, %v554
      %v627 = vpack.c.b16 %v557, %v556
      %v628 = vpack.c.b16 %v559, %v558
      %v629 = vpack.c.b16 %v561, %v560
      %v630 = vpack.c.b16 %v563, %v562
      %v631 = vpack.c.b16 %v565, %v564
      %v632 = vpack.c.b16 %v567, %v566
      %v633 = vpack.c.b16 %v569, %v568
      %v638 = vunpack.c.l.b16 %v303
      %v639 = vunpack.c.l.b16 %v304
      %v640 = vunpack.c.l.b16 %v305
      %v641 = vunpack.c.l.b16 %v306
      %v642 = vpack.c.b16 %v639, %v638
      %v643 = vpack.c.b16 %v641, %v640
      %vm645 = vcmask 220160
      %v647 = vsel %vm645, %v570, 0
      %v650 = vsel %vm645, %v571, 0
      %v653 = vsel %vm645, %v572, 0
      %v656 = vsel %vm645, %v573, 0
      %v659 = vsel %vm645, %v574, 0
      %v662 = vsel %vm645, %v575, 0
      %v665 = vsel %vm645, %v576, 0
      %v668 = vsel %vm645, %v577, 0
      %v671 = vsel %vm645, %v578, 0
      %v674 = vsel %vm645, %v579, 0
      %v677 = vsel %vm645, %v580, 0
      %v680 = vsel %vm645, %v581, 0
      %v683 = vsel %vm645, %v582, 0
      %v686 = vsel %vm645, %v583, 0
      %v689 = vsel %vm645, %v584, 0
      %v692 = vsel %vm645, %v585, 0
      %v695 = vsel %vm645, %v586, 0
      %v698 = vsel %vm645, %v587, 0
      %v701 = vsel %vm645, %v588, 0
      %v704 = vsel %vm645, %v589, 0
      %v707 = vsel %vm645, %v590, 0
      %v710 = vsel %vm645, %v591, 0
      %v713 = vsel %vm645, %v592, 0
      %v716 = vsel %vm645, %v593, 0
      %v719 = vsel %vm645, %v594, 0
      %v722 = vsel %vm645, %v595, 0
      %v725 = vsel %vm645, %v596, 0
      %v728 = vsel %vm645, %v597, 0
      %v731 = vsel %vm645, %v598, 0
      %v734 = vsel %vm645, %v599, 0
      %v737 = vsel %vm645, %v600, 0
      %v740 = vsel %vm645, %v601, 0
      %v743 = vsel %vm645, %v602, 0
      %v746 = vsel %vm645, %v603, 0
      %v749 = vsel %vm645, %v604, 0
      %v752 = vsel %vm645, %v605, 0
      %v755 = vsel %vm645, %v606, 0
      %v758 = vsel %vm645, %v607, 0
      %v761 = vsel %vm645, %v608, 0
      %v764 = vsel %vm645, %v609, 0
      %v767 = vsel %vm645, %v610, 0
      %v770 = vsel %vm645, %v611, 0
      %v773 = vsel %vm645, %v612, 0
      %v776 = vsel %vm645, %v613, 0
      %v779 = vsel %vm645, %v614, 0
      %v782 = vsel %vm645, %v615, 0
      %v785 = vsel %vm645, %v616, 0
      %v788 = vsel %vm645, %v617, 0
      %v791 = vsel %vm645, %v618, 0
      %v794 = vsel %vm645, %v619, 0
      %v797 = vsel %vm645, %v620, 0
      %v800 = vsel %vm645, %v621, 0
      %v803 = vsel %vm645, %v622, 0
      %v806 = vsel %vm645, %v623, 0
      %v809 = vsel %vm645, %v624, 0
      %v812 = vsel %vm645, %v625, 0
      %v815 = vsel %vm645, %v626, 0
      %v818 = vsel %vm645, %v627, 0
      %v821 = vsel %vm645, %v628, 0
      %v824 = vsel %vm645, %v629, 0
      %v827 = vsel %vm645, %v630, 0
      %v830 = vsel %vm645, %v631, 0
      %v833 = vsel %vm645, %v632, 0
      %v836 = vsel %vm645, %v633, 0
      %vm838 = vcmask 1044480
      %vm839 = vcmask 1045504
      %v840 = vsel %vm838, 4294967295, 65535
      %v841 = vsel %vm839, %v840, 0
      %v843 = vand.u32 %v643, %v841
      %845 = vmatprep.subr.bf16.mxu0 0
      %846 = vmatpush1.bf16.msra.mxu0 %v642
      %847 = vmatprep.subr.bf16.mxu0 0
      %848 = vmatpush1.bf16.msra.mxu0 %v843
      %849 = vmatprep.subr.bf16.mxu0 0
      %850 = vmatpush1.bf16.msra.mxu0 0
      %851 = vmatprep.subr.bf16.mxu0 0
      %852 = vmatpush1.bf16.msra.mxu0 0
      %853 = vmatprep.subr.bf16.mxu0 0
      %854 = vmatpush1.bf16.msra.mxu0 0
      %855 = vmatprep.subr.bf16.mxu0 0
      %856 = vmatpush1.bf16.msra.mxu0 0
      %857 = vmatprep.subr.bf16.mxu0 0
      %858 = vmatpush1.bf16.msra.mxu0 0
      %859 = vmatprep.subr.bf16.mxu0 0
      %860 = vmatpush1.bf16.msra.mxu0 0
      %861 = vmatprep.subr.bf16.mxu0 0
      %862 = vmatpush1.bf16.msra.mxu0 0
      %863 = vmatprep.subr.bf16.mxu0 0
      %864 = vmatpush1.bf16.msra.mxu0 0
      %865 = vmatprep.subr.bf16.mxu0 0
      %866 = vmatpush1.bf16.msra.mxu0 0
      %867 = vmatprep.subr.bf16.mxu0 0
      %868 = vmatpush1.bf16.msra.mxu0 0
      %869 = vmatprep.subr.bf16.mxu0 0
      %870 = vmatpush1.bf16.msra.mxu0 0
      %871 = vmatprep.subr.bf16.mxu0 0
      %872 = vmatpush1.bf16.msra.mxu0 0
      %873 = vmatprep.subr.bf16.mxu0 0
      %874 = vmatpush1.bf16.msra.mxu0 0
      %875 = vmatprep.subr.bf16.mxu0 0
      %876 = vmatpush1.bf16.msra.mxu0 0
      %877 = vmatprep.mubr.bf16.mxu0 0
      %878 = vmatmul.mubr.bf16.gmra.mrb[0].mxu0 %v647
      %v879 = vpop.f32.mrb[0].mxu0
      %v880 = vadd.f32 %v312, %v879
      %v881 = vpop.f32.mrb[0].mxu0
      %v882 = vpop.f32.mrb[0].mxu0
      %v883 = vadd.f32 %v312, %v882
      %v884 = vpop.f32.mrb[0].mxu0
      %885 = vmatprep.mubr.bf16.mxu0 0
      %886 = vmatmul.mubr.bf16.gmra.mrb[0].mxu0 %v650
      %v887 = vpop.f32.mrb[0].mxu0
      %v888 = vadd.f32 %v312, %v887
      %v889 = vpop.f32.mrb[0].mxu0
      %v890 = vpop.f32.mrb[0].mxu0
      %v891 = vadd.f32 %v312, %v890
      %v892 = vpop.f32.mrb[0].mxu0
      %893 = vmatprep.mubr.bf16.mxu0 0
      %894 = vmatmul.mubr.bf16.gmra.mrb[0].mxu0 %v653
      %v895 = vpop.f32.mrb[0].mxu0
      %v896 = vadd.f32 %v312, %v895
      %v897 = vpop.f32.mrb[0].mxu0
      %v898 = vpop.f32.mrb[0].mxu0
      %v899 = vadd.f32 %v312, %v898
      %v900 = vpop.f32.mrb[0].mxu0
      %901 = vmatprep.mubr.bf16.mxu0 0
      %902 = vmatmul.mubr.bf16.gmra.mrb[0].mxu0 %v656
      %v903 = vpop.f32.mrb[0].mxu0
      %v904 = vadd.f32 %v312, %v903
      %v905 = vpop.f32.mrb[0].mxu0
      %v906 = vpop.f32.mrb[0].mxu0
      %v907 = vadd.f32 %v312, %v906
      %v908 = vpop.f32.mrb[0].mxu0
      %909 = vmatprep.mubr.bf16.mxu0 0
      %910 = vmatmul.mubr.bf16.gmra.mrb[0].mxu0 %v659
      %v911 = vpop.f32.mrb[0].mxu0
      %v912 = vadd.f32 %v312, %v911
      %v913 = vpop.f32.mrb[0].mxu0
      %v914 = vpop.f32.mrb[0].mxu0
      %v915 = vadd.f32 %v312, %v914
      %v916 = vpop.f32.mrb[0].mxu0
      %917 = vmatprep.mubr.bf16.mxu0 0
      %918 = vmatmul.mubr.bf16.gmra.mrb[0].mxu0 %v662
      %v919 = vpop.f32.mrb[0].mxu0
      %v920 = vadd.f32 %v312, %v919
      %v921 = vpop.f32.mrb[0].mxu0
      %v922 = vpop.f32.mrb[0].mxu0
      %v923 = vadd.f32 %v312, %v922
      %v924 = vpop.f32.mrb[0].mxu0
      %925 = vmatprep.mubr.bf16.mxu0 0
      %926 = vmatmul.mubr.bf16.gmra.mrb[0].mxu0 %v665
      %v927 = vpop.f32.mrb[0].mxu0
      %v928 = vadd.f32 %v312, %v927
      %v929 = vpop.f32.mrb[0].mxu0
      %v930 = vpop.f32.mrb[0].mxu0
      %v931 = vadd.f32 %v312, %v930
      %v932 = vpop.f32.mrb[0].mxu0
      %933 = vmatprep.mubr.bf16.mxu0 0
      %934 = vmatmul.mubr.bf16.gmra.mrb[0].mxu0 %v668
      %v935 = vpop.f32.mrb[0].mxu0
      %v936 = vadd.f32 %v312, %v935
      %v937 = vpop.f32.mrb[0].mxu0
      %v938 = vpop.f32.mrb[0].mxu0
      %v939 = vadd.f32 %v312, %v938
      %v940 = vpop.f32.mrb[0].mxu0
      %941 = vmatprep.mubr.bf16.mxu0 0
      %942 = vmatmul.mubr.bf16.gmra.mrb[0].mxu0 %v671
      %v943 = vpop.f32.mrb[0].mxu0
      %v944 = vadd.f32 %v312, %v943
      %v945 = vpop.f32.mrb[0].mxu0
      %v946 = vpop.f32.mrb[0].mxu0
      %v947 = vadd.f32 %v312, %v946
      %v948 = vpop.f32.mrb[0].mxu0
      %949 = vmatprep.mubr.bf16.mxu0 0
      %950 = vmatmul.mubr.bf16.gmra.mrb[0].mxu0 %v674
      %v951 = vpop.f32.mrb[0].mxu0
      %v952 = vadd.f32 %v312, %v951
      %v953 = vpop.f32.mrb[0].mxu0
      %v954 = vpop.f32.mrb[0].mxu0
      %v955 = vadd.f32 %v312, %v954
      %v956 = vpop.f32.mrb[0].mxu0
      %957 = vmatprep.mubr.bf16.mxu0 0
      %958 = vmatmul.mubr.bf16.gmra.mrb[0].mxu0 %v677
      %v959 = vpop.f32.mrb[0].mxu0
      %v960 = vadd.f32 %v312, %v959
      %v961 = vpop.f32.mrb[0].mxu0
      %v962 = vpop.f32.mrb[0].mxu0
      %v963 = vadd.f32 %v312, %v962
      %v964 = vpop.f32.mrb[0].mxu0
      %965 = vmatprep.mubr.bf16.mxu0 0
      %966 = vmatmul.mubr.bf16.gmra.mrb[0].mxu0 %v680
      %v967 = vpop.f32.mrb[0].mxu0
      %v968 = vadd.f32 %v312, %v967
      %v969 = vpop.f32.mrb[0].mxu0
      %v970 = vpop.f32.mrb[0].mxu0
      %v971 = vadd.f32 %v312, %v970
      %v972 = vpop.f32.mrb[0].mxu0
      %973 = vmatprep.mubr.bf16.mxu0 0
      %974 = vmatmul.mubr.bf16.gmra.mrb[0].mxu0 %v683
      %v975 = vpop.f32.mrb[0].mxu0
      %v976 = vadd.f32 %v312, %v975
      %v977 = vpop.f32.mrb[0].mxu0
      %v978 = vpop.f32.mrb[0].mxu0
      %v979 = vadd.f32 %v312, %v978
      %v980 = vpop.f32.mrb[0].mxu0
      %981 = vmatprep.mubr.bf16.mxu0 0
      %982 = vmatmul.mubr.bf16.gmra.mrb[0].mxu0 %v686
      %v983 = vpop.f32.mrb[0].mxu0
      %v984 = vadd.f32 %v312, %v983
      %v985 = vpop.f32.mrb[0].mxu0
      %v986 = vpop.f32.mrb[0].mxu0
      %v987 = vadd.f32 %v312, %v986
      %v988 = vpop.f32.mrb[0].mxu0
      %989 = vmatprep.mubr.bf16.mxu0 0
      %990 = vmatmul.mubr.bf16.gmra.mrb[0].mxu0 %v689
      %v991 = vpop.f32.mrb[0].mxu0
      %v992 = vadd.f32 %v312, %v991
      %v993 = vpop.f32.mrb[0].mxu0
      %v994 = vpop.f32.mrb[0].mxu0
      %v995 = vadd.f32 %v312, %v994
      %v996 = vpop.f32.mrb[0].mxu0
      %997 = vmatprep.mubr.bf16.mxu0 0
      %998 = vmatmul.mubr.bf16.gmra.mrb[0].mxu0 %v692
      %v999 = vpop.f32.mrb[0].mxu0
      %v1000 = vadd.f32 %v312, %v999
      %v1001 = vpop.f32.mrb[0].mxu0
      %v1002 = vpop.f32.mrb[0].mxu0
      %v1003 = vadd.f32 %v312, %v1002
      %v1004 = vpop.f32.mrb[0].mxu0
      %1005 = vmatprep.mubr.bf16.mxu0 0
      %1006 = vmatmul.mubr.bf16.gmra.mrb[0].mxu0 %v695
      %v1007 = vpop.f32.mrb[0].mxu0
      %v1008 = vadd.f32 %v312, %v1007
      %v1009 = vpop.f32.mrb[0].mxu0
      %v1010 = vpop.f32.mrb[0].mxu0
      %v1011 = vadd.f32 %v312, %v1010
      %v1012 = vpop.f32.mrb[0].mxu0
      %1013 = vmatprep.mubr.bf16.mxu0 0
      %1014 = vmatmul.mubr.bf16.gmra.mrb[0].mxu0 %v698
      %v1015 = vpop.f32.mrb[0].mxu0
      %v1016 = vadd.f32 %v312, %v1015
      %v1017 = vpop.f32.mrb[0].mxu0
      %v1018 = vpop.f32.mrb[0].mxu0
      %v1019 = vadd.f32 %v312, %v1018
      %v1020 = vpop.f32.mrb[0].mxu0
      %1021 = vmatprep.mubr.bf16.mxu0 0
      %1022 = vmatmul.mubr.bf16.gmra.mrb[0].mxu0 %v701
      %v1023 = vpop.f32.mrb[0].mxu0
      %v1024 = vadd.f32 %v312, %v1023
      %v1025 = vpop.f32.mrb[0].mxu0
      %v1026 = vpop.f32.mrb[0].mxu0
      %v1027 = vadd.f32 %v312, %v1026
      %v1028 = vpop.f32.mrb[0].mxu0
      %1029 = vmatprep.mubr.bf16.mxu0 0
      %1030 = vmatmul.mubr.bf16.gmra.mrb[0].mxu0 %v704
      %v1031 = vpop.f32.mrb[0].mxu0
      %v1032 = vadd.f32 %v312, %v1031
      %v1033 = vpop.f32.mrb[0].mxu0
      %v1034 = vpop.f32.mrb[0].mxu0
      %v1035 = vadd.f32 %v312, %v1034
      %v1036 = vpop.f32.mrb[0].mxu0
      %1037 = vmatprep.mubr.bf16.mxu0 0
      %1038 = vmatmul.mubr.bf16.gmra.mrb[0].mxu0 %v707
      %v1039 = vpop.f32.mrb[0].mxu0
      %v1040 = vadd.f32 %v312, %v1039
      %v1041 = vpop.f32.mrb[0].mxu0
      %v1042 = vpop.f32.mrb[0].mxu0
      %v1043 = vadd.f32 %v312, %v1042
      %v1044 = vpop.f32.mrb[0].mxu0
      %1045 = vmatprep.mubr.bf16.mxu0 0
      %1046 = vmatmul.mubr.bf16.gmra.mrb[0].mxu0 %v710
      %v1047 = vpop.f32.mrb[0].mxu0
      %v1048 = vadd.f32 %v312, %v1047
      %v1049 = vpop.f32.mrb[0].mxu0
      %v1050 = vpop.f32.mrb[0].mxu0
      %v1051 = vadd.f32 %v312, %v1050
      %v1052 = vpop.f32.mrb[0].mxu0
      %1053 = vmatprep.mubr.bf16.mxu0 0
      %1054 = vmatmul.mubr.bf16.gmra.mrb[0].mxu0 %v713
      %v1055 = vpop.f32.mrb[0].mxu0
      %v1056 = vadd.f32 %v312, %v1055
      %v1057 = vpop.f32.mrb[0].mxu0
      %v1058 = vpop.f32.mrb[0].mxu0
      %v1059 = vadd.f32 %v312, %v1058
      %v1060 = vpop.f32.mrb[0].mxu0
      %1061 = vmatprep.mubr.bf16.mxu0 0
      %1062 = vmatmul.mubr.bf16.gmra.mrb[0].mxu0 %v716
      %v1063 = vpop.f32.mrb[0].mxu0
      %v1064 = vadd.f32 %v312, %v1063
      %v1065 = vpop.f32.mrb[0].mxu0
      %v1066 = vpop.f32.mrb[0].mxu0
      %v1067 = vadd.f32 %v312, %v1066
      %v1068 = vpop.f32.mrb[0].mxu0
      %1069 = vmatprep.mubr.bf16.mxu0 0
      %1070 = vmatmul.mubr.bf16.gmra.mrb[0].mxu0 %v719
      %v1071 = vpop.f32.mrb[0].mxu0
      %v1072 = vadd.f32 %v312, %v1071
      %v1073 = vpop.f32.mrb[0].mxu0
      %v1074 = vpop.f32.mrb[0].mxu0
      %v1075 = vadd.f32 %v312, %v1074
      %v1076 = vpop.f32.mrb[0].mxu0
      %1077 = vmatprep.mubr.bf16.mxu0 0
      %1078 = vmatmul.mubr.bf16.gmra.mrb[0].mxu0 %v722
      %v1079 = vpop.f32.mrb[0].mxu0
      %v1080 = vadd.f32 %v312, %v1079
      %v1081 = vpop.f32.mrb[0].mxu0
      %v1082 = vpop.f32.mrb[0].mxu0
      %v1083 = vadd.f32 %v312, %v1082
      %v1084 = vpop.f32.mrb[0].mxu0
      %1085 = vmatprep.mubr.bf16.mxu0 0
      %1086 = vmatmul.mubr.bf16.gmra.mrb[0].mxu0 %v725
      %v1087 = vpop.f32.mrb[0].mxu0
      %v1088 = vadd.f32 %v312, %v1087
      %v1089 = vpop.f32.mrb[0].mxu0
      %v1090 = vpop.f32.mrb[0].mxu0
      %v1091 = vadd.f32 %v312, %v1090
      %v1092 = vpop.f32.mrb[0].mxu0
      %1093 = vmatprep.mubr.bf16.mxu0 0
      %1094 = vmatmul.mubr.bf16.gmra.mrb[0].mxu0 %v728
      %v1095 = vpop.f32.mrb[0].mxu0
      %v1096 = vadd.f32 %v312, %v1095
      %v1097 = vpop.f32.mrb[0].mxu0
      %v1098 = vpop.f32.mrb[0].mxu0
      %v1099 = vadd.f32 %v312, %v1098
      %v1100 = vpop.f32.mrb[0].mxu0
      %1101 = vmatprep.mubr.bf16.mxu0 0
      %1102 = vmatmul.mubr.bf16.gmra.mrb[0].mxu0 %v731
      %v1103 = vpop.f32.mrb[0].mxu0
      %v1104 = vadd.f32 %v312, %v1103
      %v1105 = vpop.f32.mrb[0].mxu0
      %v1106 = vpop.f32.mrb[0].mxu0
      %v1107 = vadd.f32 %v312, %v1106
      %v1108 = vpop.f32.mrb[0].mxu0
      %1109 = vmatprep.mubr.bf16.mxu0 0
      %1110 = vmatmul.mubr.bf16.gmra.mrb[0].mxu0 %v734
      %v1111 = vpop.f32.mrb[0].mxu0
      %v1112 = vadd.f32 %v312, %v1111
      %v1113 = vpop.f32.mrb[0].mxu0
      %v1114 = vpop.f32.mrb[0].mxu0
      %v1115 = vadd.f32 %v312, %v1114
      %v1116 = vpop.f32.mrb[0].mxu0
      %1117 = vmatprep.mubr.bf16.mxu0 0
      %1118 = vmatmul.mubr.bf16.gmra.mrb[0].mxu0 %v737
      %v1119 = vpop.f32.mrb[0].mxu0
      %v1120 = vadd.f32 %v312, %v1119
      %v1121 = vpop.f32.mrb[0].mxu0
      %v1122 = vpop.f32.mrb[0].mxu0
      %v1123 = vadd.f32 %v312, %v1122
      %v1124 = vpop.f32.mrb[0].mxu0
      %1125 = vmatprep.mubr.bf16.mxu0 0
      %1126 = vmatmul.mubr.bf16.gmra.mrb[0].mxu0 %v740
      %v1127 = vpop.f32.mrb[0].mxu0
      %v1128 = vadd.f32 %v312, %v1127
      %v1129 = vpop.f32.mrb[0].mxu0
      %v1130 = vpop.f32.mrb[0].mxu0
      %v1131 = vadd.f32 %v312, %v1130
      %v1132 = vpop.f32.mrb[0].mxu0
      %1133 = vmatprep.mubr.bf16.mxu0 0
      %1134 = vmatmul.mubr.bf16.gmra.mrb[0].mxu0 %v743
      %v1135 = vpop.f32.mrb[0].mxu0
      %v1136 = vadd.f32 %v312, %v1135
      %v1137 = vpop.f32.mrb[0].mxu0
      %v1138 = vpop.f32.mrb[0].mxu0
      %v1139 = vadd.f32 %v312, %v1138
      %v1140 = vpop.f32.mrb[0].mxu0
      %1141 = vmatprep.mubr.bf16.mxu0 0
      %1142 = vmatmul.mubr.bf16.gmra.mrb[0].mxu0 %v746
      %v1143 = vpop.f32.mrb[0].mxu0
      %v1144 = vadd.f32 %v312, %v1143
      %v1145 = vpop.f32.mrb[0].mxu0
      %v1146 = vpop.f32.mrb[0].mxu0
      %v1147 = vadd.f32 %v312, %v1146
      %v1148 = vpop.f32.mrb[0].mxu0
      %1149 = vmatprep.mubr.bf16.mxu0 0
      %1150 = vmatmul.mubr.bf16.gmra.mrb[0].mxu0 %v749
      %v1151 = vpop.f32.mrb[0].mxu0
      %v1152 = vadd.f32 %v312, %v1151
      %v1153 = vpop.f32.mrb[0].mxu0
      %v1154 = vpop.f32.mrb[0].mxu0
      %v1155 = vadd.f32 %v312, %v1154
      %v1156 = vpop.f32.mrb[0].mxu0
      %1157 = vmatprep.mubr.bf16.mxu0 0
      %1158 = vmatmul.mubr.bf16.gmra.mrb[0].mxu0 %v752
      %v1159 = vpop.f32.mrb[0].mxu0
      %v1160 = vadd.f32 %v312, %v1159
      %v1161 = vpop.f32.mrb[0].mxu0
      %v1162 = vpop.f32.mrb[0].mxu0
      %v1163 = vadd.f32 %v312, %v1162
      %v1164 = vpop.f32.mrb[0].mxu0
      %1165 = vmatprep.mubr.bf16.mxu0 0
      %1166 = vmatmul.mubr.bf16.gmra.mrb[0].mxu0 %v755
      %v1167 = vpop.f32.mrb[0].mxu0
      %v1168 = vadd.f32 %v312, %v1167
      %v1169 = vpop.f32.mrb[0].mxu0
      %v1170 = vpop.f32.mrb[0].mxu0
      %v1171 = vadd.f32 %v312, %v1170
      %v1172 = vpop.f32.mrb[0].mxu0
      %1173 = vmatprep.mubr.bf16.mxu0 0
      %1174 = vmatmul.mubr.bf16.gmra.mrb[0].mxu0 %v758
      %v1175 = vpop.f32.mrb[0].mxu0
      %v1176 = vadd.f32 %v312, %v1175
      %v1177 = vpop.f32.mrb[0].mxu0
      %v1178 = vpop.f32.mrb[0].mxu0
      %v1179 = vadd.f32 %v312, %v1178
      %v1180 = vpop.f32.mrb[0].mxu0
      %1181 = vmatprep.mubr.bf16.mxu0 0
      %1182 = vmatmul.mubr.bf16.gmra.mrb[0].mxu0 %v761
      %v1183 = vpop.f32.mrb[0].mxu0
      %v1184 = vadd.f32 %v312, %v1183
      %v1185 = vpop.f32.mrb[0].mxu0
      %v1186 = vpop.f32.mrb[0].mxu0
      %v1187 = vadd.f32 %v312, %v1186
      %v1188 = vpop.f32.mrb[0].mxu0
      %1189 = vmatprep.mubr.bf16.mxu0 0
      %1190 = vmatmul.mubr.bf16.gmra.mrb[0].mxu0 %v764
      %v1191 = vpop.f32.mrb[0].mxu0
      %v1192 = vadd.f32 %v312, %v1191
      %v1193 = vpop.f32.mrb[0].mxu0
      %v1194 = vpop.f32.mrb[0].mxu0
      %v1195 = vadd.f32 %v312, %v1194
      %v1196 = vpop.f32.mrb[0].mxu0
      %1197 = vmatprep.mubr.bf16.mxu0 0
      %1198 = vmatmul.mubr.bf16.gmra.mrb[0].mxu0 %v767
      %v1199 = vpop.f32.mrb[0].mxu0
      %v1200 = vadd.f32 %v312, %v1199
      %v1201 = vpop.f32.mrb[0].mxu0
      %v1202 = vpop.f32.mrb[0].mxu0
      %v1203 = vadd.f32 %v312, %v1202
      %v1204 = vpop.f32.mrb[0].mxu0
      %1205 = vmatprep.mubr.bf16.mxu0 0
      %1206 = vmatmul.mubr.bf16.gmra.mrb[0].mxu0 %v770
      %v1207 = vpop.f32.mrb[0].mxu0
      %v1208 = vadd.f32 %v312, %v1207
      %v1209 = vpop.f32.mrb[0].mxu0
      %v1210 = vpop.f32.mrb[0].mxu0
      %v1211 = vadd.f32 %v312, %v1210
      %v1212 = vpop.f32.mrb[0].mxu0
      %1213 = vmatprep.mubr.bf16.mxu0 0
      %1214 = vmatmul.mubr.bf16.gmra.mrb[0].mxu0 %v773
      %v1215 = vpop.f32.mrb[0].mxu0
      %v1216 = vadd.f32 %v312, %v1215
      %v1217 = vpop.f32.mrb[0].mxu0
      %v1218 = vpop.f32.mrb[0].mxu0
      %v1219 = vadd.f32 %v312, %v1218
      %v1220 = vpop.f32.mrb[0].mxu0
      %1221 = vmatprep.mubr.bf16.mxu0 0
      %1222 = vmatmul.mubr.bf16.gmra.mrb[0].mxu0 %v776
      %v1223 = vpop.f32.mrb[0].mxu0
      %v1224 = vadd.f32 %v312, %v1223
      %v1225 = vpop.f32.mrb[0].mxu0
      %v1226 = vpop.f32.mrb[0].mxu0
      %v1227 = vadd.f32 %v312, %v1226
      %v1228 = vpop.f32.mrb[0].mxu0
      %1229 = vmatprep.mubr.bf16.mxu0 0
      %1230 = vmatmul.mubr.bf16.gmra.mrb[0].mxu0 %v779
      %v1231 = vpop.f32.mrb[0].mxu0
      %v1232 = vadd.f32 %v312, %v1231
      %v1233 = vpop.f32.mrb[0].mxu0
      %v1234 = vpop.f32.mrb[0].mxu0
      %v1235 = vadd.f32 %v312, %v1234
      %v1236 = vpop.f32.mrb[0].mxu0
      %1237 = vmatprep.mubr.bf16.mxu0 0
      %1238 = vmatmul.mubr.bf16.gmra.mrb[0].mxu0 %v782
      %v1239 = vpop.f32.mrb[0].mxu0
      %v1240 = vadd.f32 %v312, %v1239
      %v1241 = vpop.f32.mrb[0].mxu0
      %v1242 = vpop.f32.mrb[0].mxu0
      %v1243 = vadd.f32 %v312, %v1242
      %v1244 = vpop.f32.mrb[0].mxu0
      %1245 = vmatprep.mubr.bf16.mxu0 0
      %1246 = vmatmul.mubr.bf16.gmra.mrb[0].mxu0 %v785
      %v1247 = vpop.f32.mrb[0].mxu0
      %v1248 = vadd.f32 %v312, %v1247
      %v1249 = vpop.f32.mrb[0].mxu0
      %v1250 = vpop.f32.mrb[0].mxu0
      %v1251 = vadd.f32 %v312, %v1250
      %v1252 = vpop.f32.mrb[0].mxu0
      %1253 = vmatprep.mubr.bf16.mxu0 0
      %1254 = vmatmul.mubr.bf16.gmra.mrb[0].mxu0 %v788
      %v1255 = vpop.f32.mrb[0].mxu0
      %v1256 = vadd.f32 %v312, %v1255
      %v1257 = vpop.f32.mrb[0].mxu0
      %v1258 = vpop.f32.mrb[0].mxu0
      %v1259 = vadd.f32 %v312, %v1258
      %v1260 = vpop.f32.mrb[0].mxu0
      %1261 = vmatprep.mubr.bf16.mxu0 0
      %1262 = vmatmul.mubr.bf16.gmra.mrb[0].mxu0 %v791
      %v1263 = vpop.f32.mrb[0].mxu0
      %v1264 = vadd.f32 %v312, %v1263
      %v1265 = vpop.f32.mrb[0].mxu0
      %v1266 = vpop.f32.mrb[0].mxu0
      %v1267 = vadd.f32 %v312, %v1266
      %v1268 = vpop.f32.mrb[0].mxu0
      %1269 = vmatprep.mubr.bf16.mxu0 0
      %1270 = vmatmul.mubr.bf16.gmra.mrb[0].mxu0 %v794
      %v1271 = vpop.f32.mrb[0].mxu0
      %v1272 = vadd.f32 %v312, %v1271
      %v1273 = vpop.f32.mrb[0].mxu0
      %v1274 = vpop.f32.mrb[0].mxu0
      %v1275 = vadd.f32 %v312, %v1274
      %v1276 = vpop.f32.mrb[0].mxu0
      %1277 = vmatprep.mubr.bf16.mxu0 0
      %1278 = vmatmul.mubr.bf16.gmra.mrb[0].mxu0 %v797
      %v1279 = vpop.f32.mrb[0].mxu0
      %v1280 = vadd.f32 %v312, %v1279
      %v1281 = vpop.f32.mrb[0].mxu0
      %v1282 = vpop.f32.mrb[0].mxu0
      %v1283 = vadd.f32 %v312, %v1282
      %v1284 = vpop.f32.mrb[0].mxu0
      %1285 = vmatprep.mubr.bf16.mxu0 0
      %1286 = vmatmul.mubr.bf16.gmra.mrb[0].mxu0 %v800
      %v1287 = vpop.f32.mrb[0].mxu0
      %v1288 = vadd.f32 %v312, %v1287
      %v1289 = vpop.f32.mrb[0].mxu0
      %v1290 = vpop.f32.mrb[0].mxu0
      %v1291 = vadd.f32 %v312, %v1290
      %v1292 = vpop.f32.mrb[0].mxu0
      %1293 = vmatprep.mubr.bf16.mxu0 0
      %1294 = vmatmul.mubr.bf16.gmra.mrb[0].mxu0 %v803
      %v1295 = vpop.f32.mrb[0].mxu0
      %v1296 = vadd.f32 %v312, %v1295
      %v1297 = vpop.f32.mrb[0].mxu0
      %v1298 = vpop.f32.mrb[0].mxu0
      %v1299 = vadd.f32 %v312, %v1298
      %v1300 = vpop.f32.mrb[0].mxu0
      %1301 = vmatprep.mubr.bf16.mxu0 0
      %1302 = vmatmul.mubr.bf16.gmra.mrb[0].mxu0 %v806
      %v1303 = vpop.f32.mrb[0].mxu0
      %v1304 = vadd.f32 %v312, %v1303
      %v1305 = vpop.f32.mrb[0].mxu0
      %v1306 = vpop.f32.mrb[0].mxu0
      %v1307 = vadd.f32 %v312, %v1306
      %v1308 = vpop.f32.mrb[0].mxu0
      %1309 = vmatprep.mubr.bf16.mxu0 0
      %1310 = vmatmul.mubr.bf16.gmra.mrb[0].mxu0 %v809
      %v1311 = vpop.f32.mrb[0].mxu0
      %v1312 = vadd.f32 %v312, %v1311
      %v1313 = vpop.f32.mrb[0].mxu0
      %v1314 = vpop.f32.mrb[0].mxu0
      %v1315 = vadd.f32 %v312, %v1314
      %v1316 = vpop.f32.mrb[0].mxu0
      %1317 = vmatprep.mubr.bf16.mxu0 0
      %1318 = vmatmul.mubr.bf16.gmra.mrb[0].mxu0 %v812
      %v1319 = vpop.f32.mrb[0].mxu0
      %v1320 = vadd.f32 %v312, %v1319
      %v1321 = vpop.f32.mrb[0].mxu0
      %v1322 = vpop.f32.mrb[0].mxu0
      %v1323 = vadd.f32 %v312, %v1322
      %v1324 = vpop.f32.mrb[0].mxu0
      %1325 = vmatprep.mubr.bf16.mxu0 0
      %1326 = vmatmul.mubr.bf16.gmra.mrb[0].mxu0 %v815
      %v1327 = vpop.f32.mrb[0].mxu0
      %v1328 = vadd.f32 %v312, %v1327
      %v1329 = vpop.f32.mrb[0].mxu0
      %v1330 = vpop.f32.mrb[0].mxu0
      %v1331 = vadd.f32 %v312, %v1330
      %v1332 = vpop.f32.mrb[0].mxu0
      %1333 = vmatprep.mubr.bf16.mxu0 0
      %1334 = vmatmul.mubr.bf16.gmra.mrb[0].mxu0 %v818
      %v1335 = vpop.f32.mrb[0].mxu0
      %v1336 = vadd.f32 %v312, %v1335
      %v1337 = vpop.f32.mrb[0].mxu0
      %v1338 = vpop.f32.mrb[0].mxu0
      %v1339 = vadd.f32 %v312, %v1338
      %v1340 = vpop.f32.mrb[0].mxu0
      %1341 = vmatprep.mubr.bf16.mxu0 0
      %1342 = vmatmul.mubr.bf16.gmra.mrb[0].mxu0 %v821
      %v1343 = vpop.f32.mrb[0].mxu0
      %v1344 = vadd.f32 %v312, %v1343
      %v1345 = vpop.f32.mrb[0].mxu0
      %v1346 = vpop.f32.mrb[0].mxu0
      %v1347 = vadd.f32 %v312, %v1346
      %v1348 = vpop.f32.mrb[0].mxu0
      %1349 = vmatprep.mubr.bf16.mxu0 0
      %1350 = vmatmul.mubr.bf16.gmra.mrb[0].mxu0 %v824
      %v1351 = vpop.f32.mrb[0].mxu0
      %v1352 = vadd.f32 %v312, %v1351
      %v1353 = vpop.f32.mrb[0].mxu0
      %v1354 = vpop.f32.mrb[0].mxu0
      %v1355 = vadd.f32 %v312, %v1354
      %v1356 = vpop.f32.mrb[0].mxu0
      %1357 = vmatprep.mubr.bf16.mxu0 0
      %1358 = vmatmul.mubr.bf16.gmra.mrb[0].mxu0 %v827
      %v1359 = vpop.f32.mrb[0].mxu0
      %v1360 = vadd.f32 %v312, %v1359
      %v1361 = vpop.f32.mrb[0].mxu0
      %v1362 = vpop.f32.mrb[0].mxu0
      %v1363 = vadd.f32 %v312, %v1362
      %v1364 = vpop.f32.mrb[0].mxu0
      %1365 = vmatprep.mubr.bf16.mxu0 0
      %1366 = vmatmul.mubr.bf16.gmra.mrb[0].mxu0 %v830
      %v1367 = vpop.f32.mrb[0].mxu0
      %v1368 = vadd.f32 %v312, %v1367
      %v1369 = vpop.f32.mrb[0].mxu0
      %v1370 = vpop.f32.mrb[0].mxu0
      %v1371 = vadd.f32 %v312, %v1370
      %v1372 = vpop.f32.mrb[0].mxu0
      %1373 = vmatprep.mubr.bf16.mxu0 0
      %1374 = vmatmul.mubr.bf16.gmra.mrb[0].mxu0 %v833
      %v1375 = vpop.f32.mrb[0].mxu0
      %v1376 = vadd.f32 %v312, %v1375
      %v1377 = vpop.f32.mrb[0].mxu0
      %v1378 = vpop.f32.mrb[0].mxu0
      %v1379 = vadd.f32 %v312, %v1378
      %v1380 = vpop.f32.mrb[0].mxu0
      %1381 = vmatprep.mubr.bf16.mxu0 0
      %1382 = vmatmul.mubr.bf16.gmra.mrb[0].mxu0 %v836
      %v1383 = vpop.f32.mrb[0].mxu0
      %v1384 = vadd.f32 %v312, %v1383
      %v1385 = vpop.f32.mrb[0].mxu0
      %v1386 = vpop.f32.mrb[0].mxu0
      %v1387 = vadd.f32 %v312, %v1386
      %v1388 = vpop.f32.mrb[0].mxu0
      %1389 = vdwg.mxu0
      %v1390 = vmax.f32 %v880, 0.0
      %v1391 = vmax.f32 %v883, 0.0
      %v1392 = vmax.f32 %v888, 0.0
      %v1393 = vmax.f32 %v891, 0.0
      %v1394 = vmax.f32 %v896, 0.0
      %v1395 = vmax.f32 %v899, 0.0
      %v1396 = vmax.f32 %v904, 0.0
      %v1397 = vmax.f32 %v907, 0.0
      %v1398 = vmax.f32 %v912, 0.0
      %v1399 = vmax.f32 %v915, 0.0
      %v1400 = vmax.f32 %v920, 0.0
      %v1401 = vmax.f32 %v923, 0.0
      %v1402 = vmax.f32 %v928, 0.0
      %v1403 = vmax.f32 %v931, 0.0
      %v1404 = vmax.f32 %v936, 0.0
      %v1405 = vmax.f32 %v939, 0.0
      %v1406 = vmax.f32 %v944, 0.0
      %v1407 = vmax.f32 %v947, 0.0
      %v1408 = vmax.f32 %v952, 0.0
      %v1409 = vmax.f32 %v955, 0.0
      %v1410 = vmax.f32 %v960, 0.0
      %v1411 = vmax.f32 %v963, 0.0
      %v1412 = vmax.f32 %v968, 0.0
      %v1413 = vmax.f32 %v971, 0.0
      %v1414 = vmax.f32 %v976, 0.0
      %v1415 = vmax.f32 %v979, 0.0
      %v1416 = vmax.f32 %v984, 0.0
      %v1417 = vmax.f32 %v987, 0.0
      %v1418 = vmax.f32 %v992, 0.0
      %v1419 = vmax.f32 %v995, 0.0
      %v1420 = vmax.f32 %v1000, 0.0
      %v1421 = vmax.f32 %v1003, 0.0
      %v1422 = vmax.f32 %v1008, 0.0
      %v1423 = vmax.f32 %v1011, 0.0
      %v1424 = vmax.f32 %v1016, 0.0
      %v1425 = vmax.f32 %v1019, 0.0
      %v1426 = vmax.f32 %v1024, 0.0
      %v1427 = vmax.f32 %v1027, 0.0
      %v1428 = vmax.f32 %v1032, 0.0
      %v1429 = vmax.f32 %v1035, 0.0
      %v1430 = vmax.f32 %v1040, 0.0
      %v1431 = vmax.f32 %v1043, 0.0
      %v1432 = vmax.f32 %v1048, 0.0
      %v1433 = vmax.f32 %v1051, 0.0
      %v1434 = vmax.f32 %v1056, 0.0
      %v1435 = vmax.f32 %v1059, 0.0
      %v1436 = vmax.f32 %v1064, 0.0
      %v1437 = vmax.f32 %v1067, 0.0
      %v1438 = vmax.f32 %v1072, 0.0
      %v1439 = vmax.f32 %v1075, 0.0
      %v1440 = vmax.f32 %v1080, 0.0
      %v1441 = vmax.f32 %v1083, 0.0
      %v1442 = vmax.f32 %v1088, 0.0
      %v1443 = vmax.f32 %v1091, 0.0
      %v1444 = vmax.f32 %v1096, 0.0
      %v1445 = vmax.f32 %v1099, 0.0
      %v1446 = vmax.f32 %v1104, 0.0
      %v1447 = vmax.f32 %v1107, 0.0
      %v1448 = vmax.f32 %v1112, 0.0
      %v1449 = vmax.f32 %v1115, 0.0
      %v1450 = vmax.f32 %v1120, 0.0
      %v1451 = vmax.f32 %v1123, 0.0
      %v1452 = vmax.f32 %v1128, 0.0
      %v1453 = vmax.f32 %v1131, 0.0
      %v1454 = vmax.f32 %v1136, 0.0
      %v1455 = vmax.f32 %v1139, 0.0
      %v1456 = vmax.f32 %v1144, 0.0
      %v1457 = vmax.f32 %v1147, 0.0
      %v1458 = vmax.f32 %v1152, 0.0
      %v1459 = vmax.f32 %v1155, 0.0
      %v1460 = vmax.f32 %v1160, 0.0
      %v1461 = vmax.f32 %v1163, 0.0
      %v1462 = vmax.f32 %v1168, 0.0
      %v1463 = vmax.f32 %v1171, 0.0
      %v1464 = vmax.f32 %v1176, 0.0
      %v1465 = vmax.f32 %v1179, 0.0
      %v1466 = vmax.f32 %v1184, 0.0
      %v1467 = vmax.f32 %v1187, 0.0
      %v1468 = vmax.f32 %v1192, 0.0
      %v1469 = vmax.f32 %v1195, 0.0
      %v1470 = vmax.f32 %v1200, 0.0
      %v1471 = vmax.f32 %v1203, 0.0
      %v1472 = vmax.f32 %v1208, 0.0
      %v1473 = vmax.f32 %v1211, 0.0
      %v1474 = vmax.f32 %v1216, 0.0
      %v1475 = vmax.f32 %v1219, 0.0
      %v1476 = vmax.f32 %v1224, 0.0
      %v1477 = vmax.f32 %v1227, 0.0
      %v1478 = vmax.f32 %v1232, 0.0
      %v1479 = vmax.f32 %v1235, 0.0
      %v1480 = vmax.f32 %v1240, 0.0
      %v1481 = vmax.f32 %v1243, 0.0
      %v1482 = vmax.f32 %v1248, 0.0
      %v1483 = vmax.f32 %v1251, 0.0
      %v1484 = vmax.f32 %v1256, 0.0
      %v1485 = vmax.f32 %v1259, 0.0
      %v1486 = vmax.f32 %v1264, 0.0
      %v1487 = vmax.f32 %v1267, 0.0
      %v1488 = vmax.f32 %v1272, 0.0
      %v1489 = vmax.f32 %v1275, 0.0
      %v1490 = vmax.f32 %v1280, 0.0
      %v1491 = vmax.f32 %v1283, 0.0
      %v1492 = vmax.f32 %v1288, 0.0
      %v1493 = vmax.f32 %v1291, 0.0
      %v1494 = vmax.f32 %v1296, 0.0
      %v1495 = vmax.f32 %v1299, 0.0
      %v1496 = vmax.f32 %v1304, 0.0
      %v1497 = vmax.f32 %v1307, 0.0
      %v1498 = vmax.f32 %v1312, 0.0
      %v1499 = vmax.f32 %v1315, 0.0
      %v1500 = vmax.f32 %v1320, 0.0
      %v1501 = vmax.f32 %v1323, 0.0
      %v1502 = vmax.f32 %v1328, 0.0
      %v1503 = vmax.f32 %v1331, 0.0
      %v1504 = vmax.f32 %v1336, 0.0
      %v1505 = vmax.f32 %v1339, 0.0
      %v1506 = vmax.f32 %v1344, 0.0
      %v1507 = vmax.f32 %v1347, 0.0
      %v1508 = vmax.f32 %v1352, 0.0
      %v1509 = vmax.f32 %v1355, 0.0
      %v1510 = vmax.f32 %v1360, 0.0
      %v1511 = vmax.f32 %v1363, 0.0
      %v1512 = vmax.f32 %v1368, 0.0
      %v1513 = vmax.f32 %v1371, 0.0
      %v1514 = vmax.f32 %v1376, 0.0
      %v1515 = vmax.f32 %v1379, 0.0
      %v1516 = vmax.f32 %v1384, 0.0
      %v1517 = vmax.f32 %v1387, 0.0
      %v1518 = vpack.c.bf16 %v1391, %v1390
      %v1519 = vpack.c.bf16 %v1393, %v1392
      %v1520 = vpack.c.bf16 %v1395, %v1394
      %v1521 = vpack.c.bf16 %v1397, %v1396
      %v1522 = vpack.c.bf16 %v1399, %v1398
      %v1523 = vpack.c.bf16 %v1401, %v1400
      %v1524 = vpack.c.bf16 %v1403, %v1402
      %v1525 = vpack.c.bf16 %v1405, %v1404
      %v1526 = vpack.c.bf16 %v1407, %v1406
      %v1527 = vpack.c.bf16 %v1409, %v1408
      %v1528 = vpack.c.bf16 %v1411, %v1410
      %v1529 = vpack.c.bf16 %v1413, %v1412
      %v1530 = vpack.c.bf16 %v1415, %v1414
      %v1531 = vpack.c.bf16 %v1417, %v1416
      %v1532 = vpack.c.bf16 %v1419, %v1418
      %v1533 = vpack.c.bf16 %v1421, %v1420
      %v1534 = vpack.c.bf16 %v1423, %v1422
      %v1535 = vpack.c.bf16 %v1425, %v1424
      %v1536 = vpack.c.bf16 %v1427, %v1426
      %v1537 = vpack.c.bf16 %v1429, %v1428
      %v1538 = vpack.c.bf16 %v1431, %v1430
      %v1539 = vpack.c.bf16 %v1433, %v1432
      %v1540 = vpack.c.bf16 %v1435, %v1434
      %v1541 = vpack.c.bf16 %v1437, %v1436
      %v1542 = vpack.c.bf16 %v1439, %v1438
      %v1543 = vpack.c.bf16 %v1441, %v1440
      %v1544 = vpack.c.bf16 %v1443, %v1442
      %v1545 = vpack.c.bf16 %v1445, %v1444
      %v1546 = vpack.c.bf16 %v1447, %v1446
      %v1547 = vpack.c.bf16 %v1449, %v1448
      %v1548 = vpack.c.bf16 %v1451, %v1450
      %v1549 = vpack.c.bf16 %v1453, %v1452
      %v1550 = vpack.c.bf16 %v1455, %v1454
      %v1551 = vpack.c.bf16 %v1457, %v1456
      %v1552 = vpack.c.bf16 %v1459, %v1458
      %v1553 = vpack.c.bf16 %v1461, %v1460
      %v1554 = vpack.c.bf16 %v1463, %v1462
      %v1555 = vpack.c.bf16 %v1465, %v1464
      %v1556 = vpack.c.bf16 %v1467, %v1466
      %v1557 = vpack.c.bf16 %v1469, %v1468
      %v1558 = vpack.c.bf16 %v1471, %v1470
      %v1559 = vpack.c.bf16 %v1473, %v1472
      %v1560 = vpack.c.bf16 %v1475, %v1474
      %v1561 = vpack.c.bf16 %v1477, %v1476
      %v1562 = vpack.c.bf16 %v1479, %v1478
      %v1563 = vpack.c.bf16 %v1481, %v1480
      %v1564 = vpack.c.bf16 %v1483, %v1482
      %v1565 = vpack.c.bf16 %v1485, %v1484
      %v1566 = vpack.c.bf16 %v1487, %v1486
      %v1567 = vpack.c.bf16 %v1489, %v1488
      %v1568 = vpack.c.bf16 %v1491, %v1490
      %v1569 = vpack.c.bf16 %v1493, %v1492
      %v1570 = vpack.c.bf16 %v1495, %v1494
      %v1571 = vpack.c.bf16 %v1497, %v1496
      %v1572 = vpack.c.bf16 %v1499, %v1498
      %v1573 = vpack.c.bf16 %v1501, %v1500
      %v1574 = vpack.c.bf16 %v1503, %v1502
      %v1575 = vpack.c.bf16 %v1505, %v1504
      %v1576 = vpack.c.bf16 %v1507, %v1506
      %v1577 = vpack.c.bf16 %v1509, %v1508
      %v1578 = vpack.c.bf16 %v1511, %v1510
      %v1579 = vpack.c.bf16 %v1513, %v1512
      %v1580 = vpack.c.bf16 %v1515, %v1514
      %v1581 = vpack.c.bf16 %v1517, %v1516
      %v1646 = vunpack.c.l.b16 %v1518
      %v1647 = vunpack.c.h.b16 %v1518
      %v1648 = vunpack.c.l.b16 %v1519
      %v1649 = vunpack.c.h.b16 %v1519
      %v1650 = vunpack.c.l.b16 %v1520
      %v1651 = vunpack.c.h.b16 %v1520
      %v1652 = vunpack.c.l.b16 %v1521
      %v1653 = vunpack.c.h.b16 %v1521
      %v1654 = vunpack.c.l.b16 %v1522
      %v1655 = vunpack.c.h.b16 %v1522
      %v1656 = vunpack.c.l.b16 %v1523
      %v1657 = vunpack.c.h.b16 %v1523
      %v1658 = vunpack.c.l.b16 %v1524
      %v1659 = vunpack.c.h.b16 %v1524
      %v1660 = vunpack.c.l.b16 %v1525
      %v1661 = vunpack.c.h.b16 %v1525
      %v1662 = vunpack.c.l.b16 %v1526
      %v1663 = vunpack.c.h.b16 %v1526
      %v1664 = vunpack.c.l.b16 %v1527
      %v1665 = vunpack.c.h.b16 %v1527
      %v1666 = vunpack.c.l.b16 %v1528
      %v1667 = vunpack.c.h.b16 %v1528
      %v1668 = vunpack.c.l.b16 %v1529
      %v1669 = vunpack.c.h.b16 %v1529
      %v1670 = vunpack.c.l.b16 %v1530
      %v1671 = vunpack.c.h.b16 %v1530
      %v1672 = vunpack.c.l.b16 %v1531
      %v1673 = vunpack.c.h.b16 %v1531
      %v1674 = vunpack.c.l.b16 %v1532
      %v1675 = vunpack.c.h.b16 %v1532
      %v1676 = vunpack.c.l.b16 %v1533
      %v1677 = vunpack.c.h.b16 %v1533
      %v1678 = vunpack.c.l.b16 %v1534
      %v1679 = vunpack.c.h.b16 %v1534
      %v1680 = vunpack.c.l.b16 %v1535
      %v1681 = vunpack.c.h.b16 %v1535
      %v1682 = vunpack.c.l.b16 %v1536
      %v1683 = vunpack.c.h.b16 %v1536
      %v1684 = vunpack.c.l.b16 %v1537
      %v1685 = vunpack.c.h.b16 %v1537
      %v1686 = vunpack.c.l.b16 %v1538
      %v1687 = vunpack.c.h.b16 %v1538
      %v1688 = vunpack.c.l.b16 %v1539
      %v1689 = vunpack.c.h.b16 %v1539
      %v1690 = vunpack.c.l.b16 %v1540
      %v1691 = vunpack.c.h.b16 %v1540
      %v1692 = vunpack.c.l.b16 %v1541
      %v1693 = vunpack.c.h.b16 %v1541
      %v1694 = vunpack.c.l.b16 %v1542
      %v1695 = vunpack.c.h.b16 %v1542
      %v1696 = vunpack.c.l.b16 %v1543
      %v1697 = vunpack.c.h.b16 %v1543
      %v1698 = vunpack.c.l.b16 %v1544
      %v1699 = vunpack.c.h.b16 %v1544
      %v1700 = vunpack.c.l.b16 %v1545
      %v1701 = vunpack.c.h.b16 %v1545
      %v1702 = vunpack.c.l.b16 %v1546
      %v1703 = vunpack.c.h.b16 %v1546
      %v1704 = vunpack.c.l.b16 %v1547
      %v1705 = vunpack.c.h.b16 %v1547
      %v1706 = vunpack.c.l.b16 %v1548
      %v1707 = vunpack.c.h.b16 %v1548
      %v1708 = vunpack.c.l.b16 %v1549
      %v1709 = vunpack.c.h.b16 %v1549
      %v1710 = vunpack.c.l.b16 %v1550
      %v1711 = vunpack.c.h.b16 %v1550
      %v1712 = vunpack.c.l.b16 %v1551
      %v1713 = vunpack.c.h.b16 %v1551
      %v1714 = vunpack.c.l.b16 %v1552
      %v1715 = vunpack.c.h.b16 %v1552
      %v1716 = vunpack.c.l.b16 %v1553
      %v1717 = vunpack.c.h.b16 %v1553
      %v1718 = vunpack.c.l.b16 %v1554
      %v1719 = vunpack.c.h.b16 %v1554
      %v1720 = vunpack.c.l.b16 %v1555
      %v1721 = vunpack.c.h.b16 %v1555
      %v1722 = vunpack.c.l.b16 %v1556
      %v1723 = vunpack.c.h.b16 %v1556
      %v1724 = vunpack.c.l.b16 %v1557
      %v1725 = vunpack.c.h.b16 %v1557
      %v1726 = vunpack.c.l.b16 %v1558
      %v1727 = vunpack.c.h.b16 %v1558
      %v1728 = vunpack.c.l.b16 %v1559
      %v1729 = vunpack.c.h.b16 %v1559
      %v1730 = vunpack.c.l.b16 %v1560
      %v1731 = vunpack.c.h.b16 %v1560
      %v1732 = vunpack.c.l.b16 %v1561
      %v1733 = vunpack.c.h.b16 %v1561
      %v1734 = vunpack.c.l.b16 %v1562
      %v1735 = vunpack.c.h.b16 %v1562
      %v1736 = vunpack.c.l.b16 %v1563
      %v1737 = vunpack.c.h.b16 %v1563
      %v1738 = vunpack.c.l.b16 %v1564
      %v1739 = vunpack.c.h.b16 %v1564
      %v1740 = vunpack.c.l.b16 %v1565
      %v1741 = vunpack.c.h.b16 %v1565
      %v1742 = vunpack.c.l.b16 %v1566
      %v1743 = vunpack.c.h.b16 %v1566
      %v1744 = vunpack.c.l.b16 %v1567
      %v1745 = vunpack.c.h.b16 %v1567
      %v1746 = vunpack.c.l.b16 %v1568
      %v1747 = vunpack.c.h.b16 %v1568
      %v1748 = vunpack.c.l.b16 %v1569
      %v1749 = vunpack.c.h.b16 %v1569
      %v1750 = vunpack.c.l.b16 %v1570
      %v1751 = vunpack.c.h.b16 %v1570
      %v1752 = vunpack.c.l.b16 %v1571
      %v1753 = vunpack.c.h.b16 %v1571
      %v1754 = vunpack.c.l.b16 %v1572
      %v1755 = vunpack.c.h.b16 %v1572
      %v1756 = vunpack.c.l.b16 %v1573
      %v1757 = vunpack.c.h.b16 %v1573
      %v1758 = vunpack.c.l.b16 %v1574
      %v1759 = vunpack.c.h.b16 %v1574
      %v1760 = vunpack.c.l.b16 %v1575
      %v1761 = vunpack.c.h.b16 %v1575
      %v1762 = vunpack.c.l.b16 %v1576
      %v1763 = vunpack.c.h.b16 %v1576
      %v1764 = vunpack.c.l.b16 %v1577
      %v1765 = vunpack.c.h.b16 %v1577
      %v1766 = vunpack.c.l.b16 %v1578
      %v1767 = vunpack.c.h.b16 %v1578
      %v1768 = vunpack.c.l.b16 %v1579
      %v1769 = vunpack.c.h.b16 %v1579
      %v1770 = vunpack.c.l.b16 %v1580
      %v1771 = vunpack.c.h.b16 %v1580
      %v1772 = vunpack.c.l.b16 %v1581
      %v1773 = vunpack.c.h.b16 %v1581
      %v1774 = vpack.c.b16 %v1646, %v1646
      %v1775 = vpack.c.b16 %v1647, %v1647
      %v1776 = vpack.c.b16 %v1648, %v1648
      %v1777 = vpack.c.b16 %v1649, %v1649
      %v1778 = vpack.c.b16 %v1650, %v1650
      %v1779 = vpack.c.b16 %v1651, %v1651
      %v1780 = vpack.c.b16 %v1652, %v1652
      %v1781 = vpack.c.b16 %v1653, %v1653
      %v1782 = vpack.c.b16 %v1654, %v1654
      %v1783 = vpack.c.b16 %v1655, %v1655
      %v1784 = vpack.c.b16 %v1656, %v1656
      %v1785 = vpack.c.b16 %v1657, %v1657
      %v1786 = vpack.c.b16 %v1658, %v1658
      %v1787 = vpack.c.b16 %v1659, %v1659
      %v1788 = vpack.c.b16 %v1660, %v1660
      %v1789 = vpack.c.b16 %v1661, %v1661
      %v1790 = vpack.c.b16 %v1662, %v1662
      %v1791 = vpack.c.b16 %v1663, %v1663
      %v1792 = vpack.c.b16 %v1664, %v1664
      %v1793 = vpack.c.b16 %v1665, %v1665
      %v1794 = vpack.c.b16 %v1666, %v1666
      %v1795 = vpack.c.b16 %v1667, %v1667
      %v1796 = vpack.c.b16 %v1668, %v1668
      %v1797 = vpack.c.b16 %v1669, %v1669
      %v1798 = vpack.c.b16 %v1670, %v1670
      %v1799 = vpack.c.b16 %v1671, %v1671
      %v1800 = vpack.c.b16 %v1672, %v1672
      %v1801 = vpack.c.b16 %v1673, %v1673
      %v1802 = vpack.c.b16 %v1674, %v1674
      %v1803 = vpack.c.b16 %v1675, %v1675
      %v1804 = vpack.c.b16 %v1676, %v1676
      %v1805 = vpack.c.b16 %v1677, %v1677
      %v1806 = vpack.c.b16 %v1678, %v1678
      %v1807 = vpack.c.b16 %v1679, %v1679
      %v1808 = vpack.c.b16 %v1680, %v1680
      %v1809 = vpack.c.b16 %v1681, %v1681
      %v1810 = vpack.c.b16 %v1682, %v1682
      %v1811 = vpack.c.b16 %v1683, %v1683
      %v1812 = vpack.c.b16 %v1684, %v1684
      %v1813 = vpack.c.b16 %v1685, %v1685
      %v1814 = vpack.c.b16 %v1686, %v1686
      %v1815 = vpack.c.b16 %v1687, %v1687
      %v1816 = vpack.c.b16 %v1688, %v1688
      %v1817 = vpack.c.b16 %v1689, %v1689
      %v1818 = vpack.c.b16 %v1690, %v1690
      %v1819 = vpack.c.b16 %v1691, %v1691
      %v1820 = vpack.c.b16 %v1692, %v1692
      %v1821 = vpack.c.b16 %v1693, %v1693
      %v1822 = vpack.c.b16 %v1694, %v1694
      %v1823 = vpack.c.b16 %v1695, %v1695
      %v1824 = vpack.c.b16 %v1696, %v1696
      %v1825 = vpack.c.b16 %v1697, %v1697
      %v1826 = vpack.c.b16 %v1698, %v1698
      %v1827 = vpack.c.b16 %v1699, %v1699
      %v1828 = vpack.c.b16 %v1700, %v1700
      %v1829 = vpack.c.b16 %v1701, %v1701
      %v1830 = vpack.c.b16 %v1702, %v1702
      %v1831 = vpack.c.b16 %v1703, %v1703
      %v1832 = vpack.c.b16 %v1704, %v1704
      %v1833 = vpack.c.b16 %v1705, %v1705
      %v1834 = vpack.c.b16 %v1706, %v1706
      %v1835 = vpack.c.b16 %v1707, %v1707
      %v1836 = vpack.c.b16 %v1708, %v1708
      %v1837 = vpack.c.b16 %v1709, %v1709
      %v1838 = vpack.c.b16 %v1710, %v1710
      %v1839 = vpack.c.b16 %v1711, %v1711
      %v1840 = vpack.c.b16 %v1712, %v1712
      %v1841 = vpack.c.b16 %v1713, %v1713
      %v1842 = vpack.c.b16 %v1714, %v1714
      %v1843 = vpack.c.b16 %v1715, %v1715
      %v1844 = vpack.c.b16 %v1716, %v1716
      %v1845 = vpack.c.b16 %v1717, %v1717
      %v1846 = vpack.c.b16 %v1718, %v1718
      %v1847 = vpack.c.b16 %v1719, %v1719
      %v1848 = vpack.c.b16 %v1720, %v1720
      %v1849 = vpack.c.b16 %v1721, %v1721
      %v1850 = vpack.c.b16 %v1722, %v1722
      %v1851 = vpack.c.b16 %v1723, %v1723
      %v1852 = vpack.c.b16 %v1724, %v1724
      %v1853 = vpack.c.b16 %v1725, %v1725
      %v1854 = vpack.c.b16 %v1726, %v1726
      %v1855 = vpack.c.b16 %v1727, %v1727
      %v1856 = vpack.c.b16 %v1728, %v1728
      %v1857 = vpack.c.b16 %v1729, %v1729
      %v1858 = vpack.c.b16 %v1730, %v1730
      %v1859 = vpack.c.b16 %v1731, %v1731
      %v1860 = vpack.c.b16 %v1732, %v1732
      %v1861 = vpack.c.b16 %v1733, %v1733
      %v1862 = vpack.c.b16 %v1734, %v1734
      %v1863 = vpack.c.b16 %v1735, %v1735
      %v1864 = vpack.c.b16 %v1736, %v1736
      %v1865 = vpack.c.b16 %v1737, %v1737
      %v1866 = vpack.c.b16 %v1738, %v1738
      %v1867 = vpack.c.b16 %v1739, %v1739
      %v1868 = vpack.c.b16 %v1740, %v1740
      %v1869 = vpack.c.b16 %v1741, %v1741
      %v1870 = vpack.c.b16 %v1742, %v1742
      %v1871 = vpack.c.b16 %v1743, %v1743
      %v1872 = vpack.c.b16 %v1744, %v1744
      %v1873 = vpack.c.b16 %v1745, %v1745
      %v1874 = vpack.c.b16 %v1746, %v1746
      %v1875 = vpack.c.b16 %v1747, %v1747
      %v1876 = vpack.c.b16 %v1748, %v1748
      %v1877 = vpack.c.b16 %v1749, %v1749
      %v1878 = vpack.c.b16 %v1750, %v1750
      %v1879 = vpack.c.b16 %v1751, %v1751
      %v1880 = vpack.c.b16 %v1752, %v1752
      %v1881 = vpack.c.b16 %v1753, %v1753
      %v1882 = vpack.c.b16 %v1754, %v1754
      %v1883 = vpack.c.b16 %v1755, %v1755
      %v1884 = vpack.c.b16 %v1756, %v1756
      %v1885 = vpack.c.b16 %v1757, %v1757
      %v1886 = vpack.c.b16 %v1758, %v1758
      %v1887 = vpack.c.b16 %v1759, %v1759
      %v1888 = vpack.c.b16 %v1760, %v1760
      %v1889 = vpack.c.b16 %v1761, %v1761
      %v1890 = vpack.c.b16 %v1762, %v1762
      %v1891 = vpack.c.b16 %v1763, %v1763
      %v1892 = vpack.c.b16 %v1764, %v1764
      %v1893 = vpack.c.b16 %v1765, %v1765
      %v1894 = vpack.c.b16 %v1766, %v1766
      %v1895 = vpack.c.b16 %v1767, %v1767
      %v1896 = vpack.c.b16 %v1768, %v1768
      %v1897 = vpack.c.b16 %v1769, %v1769
      %v1898 = vpack.c.b16 %v1770, %v1770
      %v1899 = vpack.c.b16 %v1771, %v1771
      %v1900 = vpack.c.b16 %v1772, %v1772
      %v1901 = vpack.c.b16 %v1773, %v1773
      %2030 = vst [vmem:[%s172] sm:$0xf] %v1774
      %2031 = vst [vmem:[%s172 + $0x4] sm:$0xf] %v1775
      %2032 = vst [vmem:[%s172 + $0x8] sm:$0xf] %v1776
      %2033 = vst [vmem:[%s172 + $0xc] sm:$0xf] %v1777
      %2034 = vst [vmem:[%s172 + $0x10] sm:$0xf] %v1778
      %2035 = vst [vmem:[%s172 + $0x14] sm:$0xf] %v1779
      %2036 = vst [vmem:[%s172 + $0x18] sm:$0xf] %v1780
      %2037 = vst [vmem:[%s172 + $0x1c] sm:$0xf] %v1781
      %2038 = vst [vmem:[%s172 + $0x20] sm:$0xf] %v1782
      %2039 = vst [vmem:[%s172 + $0x24] sm:$0xf] %v1783
      %2040 = vst [vmem:[%s172 + $0x28] sm:$0xf] %v1784
      %2041 = vst [vmem:[%s172 + $0x2c] sm:$0xf] %v1785
      %2042 = vst [vmem:[%s172 + $0x30] sm:$0xf] %v1786
      %2043 = vst [vmem:[%s172 + $0x34] sm:$0xf] %v1787
      %2044 = vst [vmem:[%s172 + $0x38] sm:$0xf] %v1788
      %2045 = vst [vmem:[%s172 + $0x3c] sm:$0xf] %v1789
      %2046 = vst [vmem:[%s172 + $0x40] sm:$0xf] %v1790
      %2047 = vst [vmem:[%s172 + $0x44] sm:$0xf] %v1791
      %2048 = vst [vmem:[%s172 + $0x48] sm:$0xf] %v1792
      %2049 = vst [vmem:[%s172 + $0x4c] sm:$0xf] %v1793
      %2050 = vst [vmem:[%s172 + $0x50] sm:$0xf] %v1794
      %2051 = vst [vmem:[%s172 + $0x54] sm:$0xf] %v1795
      %2052 = vst [vmem:[%s172 + $0x58] sm:$0xf] %v1796
      %2053 = vst [vmem:[%s172 + $0x5c] sm:$0xf] %v1797
      %2054 = vst [vmem:[%s172 + $0x60] sm:$0xf] %v1798
      %2055 = vst [vmem:[%s172 + $0x64] sm:$0xf] %v1799
      %2056 = vst [vmem:[%s172 + $0x68] sm:$0xf] %v1800
      %2057 = vst [vmem:[%s172 + $0x6c] sm:$0xf] %v1801
      %2058 = vst [vmem:[%s172 + $0x70] sm:$0xf] %v1802
      %2059 = vst [vmem:[%s172 + $0x74] sm:$0xf] %v1803
      %2060 = vst [vmem:[%s172 + $0x78] sm:$0xf] %v1804
      %2061 = vst [vmem:[%s172 + $0x7c] sm:$0xf] %v1805
      %2062 = vst [vmem:[%s172 + $0x80] sm:$0xf] %v1806
      %2063 = vst [vmem:[%s172 + $0x84] sm:$0xf] %v1807
      %2064 = vst [vmem:[%s172 + $0x88] sm:$0xf] %v1808
      %2065 = vst [vmem:[%s172 + $0x8c] sm:$0xf] %v1809
      %2066 = vst [vmem:[%s172 + $0x90] sm:$0xf] %v1810
      %2067 = vst [vmem:[%s172 + $0x94] sm:$0xf] %v1811
      %2068 = vst [vmem:[%s172 + $0x98] sm:$0xf] %v1812
      %2069 = vst [vmem:[%s172 + $0x9c] sm:$0xf] %v1813
      %2070 = vst [vmem:[%s172 + $0xa0] sm:$0xf] %v1814
      %2071 = vst [vmem:[%s172 + $0xa4] sm:$0xf] %v1815
      %2072 = vst [vmem:[%s172 + $0xa8] sm:$0xf] %v1816
      %2073 = vst [vmem:[%s172 + $0xac] sm:$0xf] %v1817
      %2074 = vst [vmem:[%s172 + $0xb0] sm:$0xf] %v1818
      %2075 = vst [vmem:[%s172 + $0xb4] sm:$0xf] %v1819
      %2076 = vst [vmem:[%s172 + $0xb8] sm:$0xf] %v1820
      %2077 = vst [vmem:[%s172 + $0xbc] sm:$0xf] %v1821
      %2078 = vst [vmem:[%s172 + $0xc0] sm:$0xf] %v1822
      %2079 = vst [vmem:[%s172 + $0xc4] sm:$0xf] %v1823
      %2080 = vst [vmem:[%s172 + $0xc8] sm:$0xf] %v1824
      %2081 = vst [vmem:[%s172 + $0xcc] sm:$0xf] %v1825
      %2082 = vst [vmem:[%s172 + $0xd0] sm:$0xf] %v1826
      %2083 = vst [vmem:[%s172 + $0xd4] sm:$0xf] %v1827
      %2084 = vst [vmem:[%s172 + $0xd8] sm:$0xf] %v1828
      %2085 = vst [vmem:[%s172 + $0xdc] sm:$0xf] %v1829
      %2086 = vst [vmem:[%s172 + $0xe0] sm:$0xf] %v1830
      %2087 = vst [vmem:[%s172 + $0xe4] sm:$0xf] %v1831
      %2088 = vst [vmem:[%s172 + $0xe8] sm:$0xf] %v1832
      %2089 = vst [vmem:[%s172 + $0xec] sm:$0xf] %v1833
      %2090 = vst [vmem:[%s172 + $0xf0] sm:$0xf] %v1834
      %2091 = vst [vmem:[%s172 + $0xf4] sm:$0xf] %v1835
      %2092 = vst [vmem:[%s172 + $0xf8] sm:$0xf] %v1836
      %2093 = vst [vmem:[%s172 + $0xfc] sm:$0xf] %v1837
      %2094 = vst [vmem:[%s172 + $0x100] sm:$0xf] %v1838
      %2095 = vst [vmem:[%s172 + $0x104] sm:$0xf] %v1839
      %2096 = vst [vmem:[%s172 + $0x108] sm:$0xf] %v1840
      %2097 = vst [vmem:[%s172 + $0x10c] sm:$0xf] %v1841
      %2098 = vst [vmem:[%s172 + $0x110] sm:$0xf] %v1842
      %2099 = vst [vmem:[%s172 + $0x114] sm:$0xf] %v1843
      %2100 = vst [vmem:[%s172 + $0x118] sm:$0xf] %v1844
      %2101 = vst [vmem:[%s172 + $0x11c] sm:$0xf] %v1845
      %2102 = vst [vmem:[%s172 + $0x120] sm:$0xf] %v1846
      %2103 = vst [vmem:[%s172 + $0x124] sm:$0xf] %v1847
      %2104 = vst [vmem:[%s172 + $0x128] sm:$0xf] %v1848
      %2105 = vst [vmem:[%s172 + $0x12c] sm:$0xf] %v1849
      %2106 = vst [vmem:[%s172 + $0x130] sm:$0xf] %v1850
      %2107 = vst [vmem:[%s172 + $0x134] sm:$0xf] %v1851
      %2108 = vst [vmem:[%s172 + $0x138] sm:$0xf] %v1852
      %2109 = vst [vmem:[%s172 + $0x13c] sm:$0xf] %v1853
      %2110 = vst [vmem:[%s172 + $0x140] sm:$0xf] %v1854
      %2111 = vst [vmem:[%s172 + $0x144] sm:$0xf] %v1855
      %2112 = vst [vmem:[%s172 + $0x148] sm:$0xf] %v1856
      %2113 = vst [vmem:[%s172 + $0x14c] sm:$0xf] %v1857
      %2114 = vst [vmem:[%s172 + $0x150] sm:$0xf] %v1858
      %2115 = vst [vmem:[%s172 + $0x154] sm:$0xf] %v1859
      %2116 = vst [vmem:[%s172 + $0x158] sm:$0xf] %v1860
      %2117 = vst [vmem:[%s172 + $0x15c] sm:$0xf] %v1861
      %2118 = vst [vmem:[%s172 + $0x160] sm:$0xf] %v1862
      %2119 = vst [vmem:[%s172 + $0x164] sm:$0xf] %v1863
      %2120 = vst [vmem:[%s172 + $0x168] sm:$0xf] %v1864
      %2121 = vst [vmem:[%s172 + $0x16c] sm:$0xf] %v1865
      %2122 = vst [vmem:[%s172 + $0x170] sm:$0xf] %v1866
      %2123 = vst [vmem:[%s172 + $0x174] sm:$0xf] %v1867
      %2124 = vst [vmem:[%s172 + $0x178] sm:$0xf] %v1868
      %2125 = vst [vmem:[%s172 + $0x17c] sm:$0xf] %v1869
      %2126 = vst [vmem:[%s172 + $0x180] sm:$0xf] %v1870
      %2127 = vst [vmem:[%s172 + $0x184] sm:$0xf] %v1871
      %2128 = vst [vmem:[%s172 + $0x188] sm:$0xf] %v1872
      %2129 = vst [vmem:[%s172 + $0x18c] sm:$0xf] %v1873
      %2130 = vst [vmem:[%s172 + $0x190] sm:$0xf] %v1874
      %2131 = vst [vmem:[%s172 + $0x194] sm:$0xf] %v1875
      %2132 = vst [vmem:[%s172 + $0x198] sm:$0xf] %v1876
      %2133 = vst [vmem:[%s172 + $0x19c] sm:$0xf] %v1877
      %2134 = vst [vmem:[%s172 + $0x1a0] sm:$0xf] %v1878
      %2135 = vst [vmem:[%s172 + $0x1a4] sm:$0xf] %v1879
      %2136 = vst [vmem:[%s172 + $0x1a8] sm:$0xf] %v1880
      %2137 = vst [vmem:[%s172 + $0x1ac] sm:$0xf] %v1881
      %2138 = vst [vmem:[%s172 + $0x1b0] sm:$0xf] %v1882
      %2139 = vst [vmem:[%s172 + $0x1b4] sm:$0xf] %v1883
      %2140 = vst [vmem:[%s172 + $0x1b8] sm:$0xf] %v1884
      %2141 = vst [vmem:[%s172 + $0x1bc] sm:$0xf] %v1885
      %2142 = vst [vmem:[%s172 + $0x1c0] sm:$0xf] %v1886
      %2143 = vst [vmem:[%s172 + $0x1c4] sm:$0xf] %v1887
      %2144 = vst [vmem:[%s172 + $0x1c8] sm:$0xf] %v1888
      %2145 = vst [vmem:[%s172 + $0x1cc] sm:$0xf] %v1889
      %2146 = vst [vmem:[%s172 + $0x1d0] sm:$0xf] %v1890
      %2147 = vst [vmem:[%s172 + $0x1d4] sm:$0xf] %v1891
      %2148 = vst [vmem:[%s172 + $0x1d8] sm:$0xf] %v1892
      %2149 = vst [vmem:[%s172 + $0x1dc] sm:$0xf] %v1893
      %2150 = vst [vmem:[%s172 + $0x1e0] sm:$0xf] %v1894
      %2151 = vst [vmem:[%s172 + $0x1e4] sm:$0xf] %v1895
      %2152 = vst [vmem:[%s172 + $0x1e8] sm:$0xf] %v1896
      %2153 = vst [vmem:[%s172 + $0x1ec] sm:$0xf] %v1897
      %2154 = vst [vmem:[%s172 + $0x1f0] sm:$0xf] %v1898
      %2155 = vst [vmem:[%s172 + $0x1f4] sm:$0xf] %v1899
      %2156 = vst [vmem:[%s172 + $0x1f8] sm:$0xf] %v1900
      %2157 = vst [vmem:[%s172 + $0x1fc] sm:$0xf] %v1901
      %s2158 = smul.u32 128, %s14
      %p2159 = scmp.lt.s32.totalorder %s2158, 255
      %s2160 = scalar_select %p2159, %s2158, 255
      %s2161 = smul.addr %s2160, 4
      %s2162 = scalar_lea.vmem %s3, %s2161
      // Predicated region
      $region33: #{reward_network_forward.3} parent=31 // pred_check
        %p2163 = pneg %p100
      $region34: #{reward_network_forward.3} parent=31 // pred_check_branch
        %2165 = sbr.rel (%p2163) target = $region36
      $region35: #{reward_network_forward.3} parent=31 // pred_region
        %s2166 = smul.u32 128, %s14
      $region36: #{reward_network_forward.3} parent=31 // pred_fallthru
        _
    $region32: #{reward_network_forward.3} parent=5 // pred_fallthru
      _
    %p2167 = scmp.le.s32.totalorder 2, %s9
    // Predicated region
    $region37: #{reward_network_forward.3} parent=5 // pred_check
      %p2168 = pneg %p2167
    $region38: #{reward_network_forward.3} parent=5 // pred_check_branch
      %2170 = sbr.rel (%p2168) target = $region40
    $region39: #{reward_network_forward.3} parent=5 // pred_region
      %s2171 = ssub.s32 %s9, 2
      // Predicated region
      $region41: #{reward_network_forward.3} parent=39 // pred_check
        %p2172 = pneg %p106
      $region42: #{reward_network_forward.3} parent=39 // pred_check_branch
        %2174 = sbr.rel (%p2172) target = $region44
      $region43: #{reward_network_forward.3} parent=39 // pred_region
        %s2175 = smul.u32 128, %s15
        %p2176 = scmp.lt.s32.totalorder %s2175, 255
        %s2177 = scalar_select %p2176, %s2175, 255
        %s2178 = smul.addr %s2177, 4
        %s2179 = scalar_lea.vmem %s3, %s2178
      $region44: #{reward_network_forward.3} parent=39 // pred_fallthru
        _
    $region40: #{reward_network_forward.3} parent=5 // pred_fallthru
      _
  $region6: #{reward_network_forward.3} parent=0 // loop_footer
    %s13 = sadd.s32 1, %s9
  $region7: #{reward_network_forward.3} parent=0 // loop_footer_branch
    %8 = sbr.rel target = $region3
  $region8: #{reward_network_forward.3} parent=0 // loop_exit
    _

// kernel: reward_network_forward.4
$region0: #{reward_network_forward.4}
  #allocation0 [shape = 'u32[]', space=smem, size = 0x4, offset = 0x4, fixed_abs, tag = 'smem constant byte address 0x4 - core index']
  #allocation1 [shape = 'u32[144,128]{1,0:T(1,128)}', space=vmem, size = 0x12000, scoped, tag = 'internal scratch']
  #allocation2 [shape = 'f32[4,17,17,128]{3,2,1,0:T(8,128)}', space=vmem, size = 0xcc000, scoped, tag = 'scratch operand']
  %s0 = inlined_call_operand.vmem [shape: bf16[2,4,16,16,128], index: 0, kind: input, shape index: {}]
  %s1 = inlined_call_operand.vmem [shape: bf16[9,128,32], index: 1, kind: input, shape index: {}]
  %s2 = inlined_call_operand.vmem [shape: f32[1,32], index: 2, kind: input, shape index: {}]
  %s3 = inlined_call_operand.vmem [shape: bf16[2,256,32], index: 3, kind: output, shape index: {}]
  %s4 = sld [smem:[#allocation0]]
  $region45: #{reward_network_forward.4} parent=0
    _
  %s6 = ssub.s32 1, %s4
  %s7 = scalar_select 0, %s6, %s4
  loop: start=0, step=1, limit=4
  $region2: #{reward_network_forward.4} parent=0 // loop_pre_header
    _
  $region3: #{reward_network_forward.4} parent=0 // loop_header
    %s9 = sphi 0, %s13
    %p10 = scmp.ge.s32.totalorder %s9, 4
    %s19 = sphi 0, %s21
    %s22 = sphi 0, %s19
    %s23 = sphi 0, %s22
    %s39 = sphi 0, %s23
    %s43 = sphi 0, %s43
    %s45 = sphi 0, %s43
    %s46 = sphi 0, %s45
    %s60 = sphi 0, %s46
    %s64 = sphi 0, %s64
    %s66 = sphi 0, %s64
    %s67 = sphi 0, %s66
    %s81 = sphi 0, %s67
    %s87 = sphi 0, %s89
    %s90 = sphi 0, %s87
    %s91 = sphi 0, %s90
    %s107 = sphi 0, %s91
  $region4: #{reward_network_forward.4} parent=0 // loop_header_branch
    %12 = sbr.rel (%p10) target = $region8
  $region5: #{reward_network_forward.4} parent=0 // loop_body
    %s14 = ssub.s32 %s9, 1
    %s15 = ssub.s32 %s9, 2
    %s16 = sadd.s32 %s9, 1
    %s17 = ssub.s32 %s9, %s16
    %p18 = scmp.eq.s32.totalorder %s17, 0
    %s20 = sadd.s32 %s19, 1
    %s21 = scalar_select %p18, %s19, %s20
    %p24 = pneg %p18
    %p25 = scmp.eq.s32.totalorder %s9, 1
    %p26 = por %p24, %p25
    %p27 = scmp.ne.s32.totalorder %s19, %s22
    %p28 = scmp.eq.s32.totalorder %s9, 0
    %p29 = por %p27, %p28
    %p30 = scmp.ne.s32.totalorder %s19, %s22
    %p31 = scmp.eq.s32.totalorder %s14, 1
    %p32 = por %p30, %p31
    %p33 = scmp.ne.s32.totalorder %s22, %s23
    %p34 = scmp.eq.s32.totalorder %s14, 0
    %p35 = por %p33, %p34
    %p36 = scmp.ne.s32.totalorder %s22, %s23
    %p37 = scmp.eq.s32.totalorder %s15, 1
    %p38 = por %p36, %p37
    %p40 = scmp.ne.s32.totalorder %s23, %s39
    %p41 = scmp.eq.s32.totalorder %s15, 0
    %p42 = por %p40, %p41
    %s44 = sadd.s32 %s43, 1
    %p47 = scmp.eq.s32.totalorder %s9, 1
    %p48 = scmp.ne.s32.totalorder %s43, %s45
    %p49 = scmp.eq.s32.totalorder %s9, 0
    %p50 = por %p48, %p49
    %p51 = scmp.ne.s32.totalorder %s43, %s45
    %p52 = scmp.eq.s32.totalorder %s14, 1
    %p53 = por %p51, %p52
    %p54 = scmp.ne.s32.totalorder %s45, %s46
    %p55 = scmp.eq.s32.totalorder %s14, 0
    %p56 = por %p54, %p55
    %p57 = scmp.ne.s32.totalorder %s45, %s46
    %p58 = scmp.eq.s32.totalorder %s15, 1
    %p59 = por %p57, %p58
    %p61 = scmp.ne.s32.totalorder %s46, %s60
    %p62 = scmp.eq.s32.totalorder %s15, 0
    %p63 = por %p61, %p62
    %s65 = sadd.s32 %s64, 1
    %p68 = scmp.eq.s32.totalorder %s9, 1
    %p69 = scmp.ne.s32.totalorder %s64, %s66
    %p70 = scmp.eq.s32.totalorder %s9, 0
    %p71 = por %p69, %p70
    %p72 = scmp.ne.s32.totalorder %s64, %s66
    %p73 = scmp.eq.s32.totalorder %s14, 1
    %p74 = por %p72, %p73
    %p75 = scmp.ne.s32.totalorder %s66, %s67
    %p76 = scmp.eq.s32.totalorder %s14, 0
    %p77 = por %p75, %p76
    %p78 = scmp.ne.s32.totalorder %s66, %s67
    %p79 = scmp.eq.s32.totalorder %s15, 1
    %p80 = por %p78, %p79
    %p82 = scmp.ne.s32.totalorder %s67, %s81
    %p83 = scmp.eq.s32.totalorder %s15, 0
    %p84 = por %p82, %p83
    %s85 = ssub.s32 %s9, %s16
    %p86 = scmp.eq.s32.totalorder %s85, 0
    %s88 = sadd.s32 %s87, 1
    %s89 = scalar_select %p86, %s87, %s88
    %p92 = pneg %p86
    %p93 = scmp.eq.s32.totalorder %s9, 1
    %p94 = por %p92, %p93
    %p95 = scmp.ne.s32.totalorder %s87, %s90
    %p96 = scmp.eq.s32.totalorder %s9, 0
    %p97 = por %p95, %p96
    %p98 = scmp.ne.s32.totalorder %s87, %s90
    %p99 = scmp.eq.s32.totalorder %s14, 1
    %p100 = por %p98, %p99
    %p101 = scmp.ne.s32.totalorder %s90, %s91
    %p102 = scmp.eq.s32.totalorder %s14, 0
    %p103 = por %p101, %p102
    %p104 = scmp.ne.s32.totalorder %s90, %s91
    %p105 = scmp.eq.s32.totalorder %s15, 1
    %p106 = por %p104, %p105
    %p108 = scmp.ne.s32.totalorder %s91, %s107
    %p109 = scmp.eq.s32.totalorder %s15, 0
    %p110 = por %p108, %p109
    %p111 = scmp.le.s32.totalorder 1, %s9
    %p112 = scmp.lt.s32.totalorder %s9, 3
    %p113 = pnand %p111, %p112
    %p114 = pneg %p113
    // Predicated region
    $region9: #{reward_network_forward.4} parent=5 // pred_check
      _
    $region10: #{reward_network_forward.4} parent=5 // pred_check_branch
      %116 = sbr.rel (%p113) target = $region12
    $region11: #{reward_network_forward.4} parent=5 // pred_region
      %s117 = ssub.s32 %s9, 1
      // Predicated region
      $region13: #{reward_network_forward.4} parent=11 // pred_check
        %p118 = pneg %p56
      $region14: #{reward_network_forward.4} parent=11 // pred_check_branch
        %120 = sbr.rel (%p118) target = $region16
      $region15: #{reward_network_forward.4} parent=11 // pred_region
        _
      $region16: #{reward_network_forward.4} parent=11 // pred_fallthru
        _
      // Predicated region
      $region17: #{reward_network_forward.4} parent=11 // pred_check
        %p121 = pneg %p77
      $region18: #{reward_network_forward.4} parent=11 // pred_check_branch
        %123 = sbr.rel (%p121) target = $region20
      $region19: #{reward_network_forward.4} parent=11 // pred_region
        _
      $region20: #{reward_network_forward.4} parent=11 // pred_fallthru
        _
    $region12: #{reward_network_forward.4} parent=5 // pred_fallthru
      _
    %p124 = scmp.lt.s32.totalorder %s9, 2
    // Predicated region
    $region21: #{reward_network_forward.4} parent=5 // pred_check
      %p125 = pneg %p124
    $region22: #{reward_network_forward.4} parent=5 // pred_check_branch
      %127 = sbr.rel (%p125) target = $region24
    $region23: #{reward_network_forward.4} parent=5 // pred_region
      // Predicated region
      $region25: #{reward_network_forward.4} parent=23 // pred_check
        %p128 = pneg %p29
      $region26: #{reward_network_forward.4} parent=23 // pred_check_branch
        %130 = sbr.rel (%p128) target = $region28
      $region27: #{reward_network_forward.4} parent=23 // pred_region
        %p131 = scmp.lt.s32.totalorder %s9, 1
        %s132 = scalar_select %p131, %s9, 1
        %s133 = smul.addr %s132, 128
        %s134 = smul.addr %s133, 4
        %s135 = scalar_lea.vmem %s0, %s134
      $region28: #{reward_network_forward.4} parent=23 // pred_fallthru
        _
    $region24: #{reward_network_forward.4} parent=5 // pred_fallthru
      _
    %p136 = scmp.le.s32.totalorder 1, %s9
    %p137 = scmp.lt.s32.totalorder %s9, 3
    %p138 = pnand %p136, %p137
    %p139 = pneg %p138
    // Predicated region
    $region29: #{reward_network_forward.4} parent=5 // pred_check
      _
    $region30: #{reward_network_forward.4} parent=5 // pred_check_branch
      %141 = sbr.rel (%p138) target = $region32
    $region31: #{reward_network_forward.4} parent=5 // pred_region
      %s142 = ssub.s32 %s9, 1
      %p143 = scmp.lt.s32.totalorder %s14, 1
      %s144 = scalar_select %p143, %s14, 1
      %s145 = smul.addr %s144, 128
      %s146 = smul.addr %s145, 4
      %s147 = scalar_lea.vmem %s0, %s146
      %p148 = pneg %p35
      %p149 = pneg %p32
      %p150 = pneg %p56
      %p151 = pneg %p53
      %p152 = pneg %p77
      %p153 = pneg %p74
      %p154 = pneg %p103
      %p155 = pneg %p100
      %p156 = scmp.lt.s32.totalorder %s14, 1
      %s157 = scalar_select %p156, %s14, 1
      %s158 = smul.addr %s157, 32
      %s159 = smul.addr %s158, 4
      %s160 = scalar_lea.vmem %s3, %s159
      %p161 = scmp.lt.s32.totalorder %s14, 1
      %s162 = scalar_select %p161, %s14, 1
      %s163 = smul.addr %s162, 128
      %s164 = smul.addr %s163, 4
      %s165 = scalar_lea.vmem %s0, %s164
      %p166 = scmp.lt.s32.totalorder %s14, 1
      %s167 = scalar_select %p166, %s14, 1
      %s168 = smul.addr %s167, 32
      %s169 = smul.addr %s168, 4
      %s170 = scalar_lea.vmem %s3, %s169
      %172 = vst [vmem:[#allocation2] sm:$0xff] 0.0
      %173 = vst [vmem:[#allocation2 + $0x8] sm:$0xff] 0.0
      %174 = vst [vmem:[#allocation2 + $0x10] sm:$0x1] 0.0
      %175 = vst [vmem:[#allocation2 + $0x198] sm:$0xff] 0.0
      %176 = vst [vmem:[#allocation2 + $0x1a0] sm:$0xff] 0.0
      %177 = vst [vmem:[#allocation2 + $0x1a8] sm:$0x1] 0.0
      %178 = vst [vmem:[#allocation2 + $0x330] sm:$0xff] 0.0
      %179 = vst [vmem:[#allocation2 + $0x338] sm:$0xff] 0.0
      %180 = vst [vmem:[#allocation2 + $0x340] sm:$0x1] 0.0
      %181 = vst [vmem:[#allocation2 + $0x4c8] sm:$0xff] 0.0
      %182 = vst [vmem:[#allocation2 + $0x4d0] sm:$0xff] 0.0
      %183 = vst [vmem:[#allocation2 + $0x4d8] sm:$0x1] 0.0
      %184 = vst [vmem:[#allocation2] sm:$0x1] 0.0
      %185 = vst [vmem:[#allocation2 + $0x18] sm:$0x1] 0.0
      %186 = vst [vmem:[#allocation2 + $0x30] sm:$0x1] 0.0
      %187 = vst [vmem:[#allocation2 + $0x48] sm:$0x1] 0.0
      %188 = vst [vmem:[#allocation2 + $0x60] sm:$0x1] 0.0
      %189 = vst [vmem:[#allocation2 + $0x78] sm:$0x1] 0.0
      %190 = vst [vmem:[#allocation2 + $0x90] sm:$0x1] 0.0
      %191 = vst [vmem:[#allocation2 + $0xa8] sm:$0x1] 0.0
      %192 = vst [vmem:[#allocation2 + $0xc0] sm:$0x1] 0.0
      %193 = vst [vmem:[#allocation2 + $0xd8] sm:$0x1] 0.0
      %194 = vst [vmem:[#allocation2 + $0xf0] sm:$0x1] 0.0
      %195 = vst [vmem:[#allocation2 + $0x108] sm:$0x1] 0.0
      %196 = vst [vmem:[#allocation2 + $0x120] sm:$0x1] 0.0
      %197 = vst [vmem:[#allocation2 + $0x138] sm:$0x1] 0.0
      %198 = vst [vmem:[#allocation2 + $0x150] sm:$0x1] 0.0
      %199 = vst [vmem:[#allocation2 + $0x168] sm:$0x1] 0.0
      %200 = vst [vmem:[#allocation2 + $0x180] sm:$0x1] 0.0
      %201 = vst [vmem:[#allocation2 + $0x198] sm:$0x1] 0.0
      %202 = vst [vmem:[#allocation2 + $0x1b0] sm:$0x1] 0.0
      %203 = vst [vmem:[#allocation2 + $0x1c8] sm:$0x1] 0.0
      %204 = vst [vmem:[#allocation2 + $0x1e0] sm:$0x1] 0.0
      %205 = vst [vmem:[#allocation2 + $0x1f8] sm:$0x1] 0.0
      %206 = vst [vmem:[#allocation2 + $0x210] sm:$0x1] 0.0
      %207 = vst [vmem:[#allocation2 + $0x228] sm:$0x1] 0.0
      %208 = vst [vmem:[#allocation2 + $0x240] sm:$0x1] 0.0
      %209 = vst [vmem:[#allocation2 + $0x258] sm:$0x1] 0.0
      %210 = vst [vmem:[#allocation2 + $0x270] sm:$0x1] 0.0
      %211 = vst [vmem:[#allocation2 + $0x288] sm:$0x1] 0.0
      %212 = vst [vmem:[#allocation2 + $0x2a0] sm:$0x1] 0.0
      %213 = vst [vmem:[#allocation2 + $0x2b8] sm:$0x1] 0.0
      %214 = vst [vmem:[#allocation2 + $0x2d0] sm:$0x1] 0.0
      %215 = vst [vmem:[#allocation2 + $0x2e8] sm:$0x1] 0.0
      %216 = vst [vmem:[#allocation2 + $0x300] sm:$0x1] 0.0
      %217 = vst [vmem:[#allocation2 + $0x318] sm:$0x1] 0.0
      %218 = vst [vmem:[#allocation2 + $0x330] sm:$0x1] 0.0
      %219 = vst [vmem:[#allocation2 + $0x348] sm:$0x1] 0.0
      %220 = vst [vmem:[#allocation2 + $0x360] sm:$0x1] 0.0
      %221 = vst [vmem:[#allocation2 + $0x378] sm:$0x1] 0.0
      %222 = vst [vmem:[#allocation2 + $0x390] sm:$0x1] 0.0
      %223 = vst [vmem:[#allocation2 + $0x3a8] sm:$0x1] 0.0
      %224 = vst [vmem:[#allocation2 + $0x3c0] sm:$0x1] 0.0
      %225 = vst [vmem:[#allocation2 + $0x3d8] sm:$0x1] 0.0
      %226 = vst [vmem:[#allocation2 + $0x3f0] sm:$0x1] 0.0
      %227 = vst [vmem:[#allocation2 + $0x408] sm:$0x1] 0.0
      %228 = vst [vmem:[#allocation2 + $0x420] sm:$0x1] 0.0
      %229 = vst [vmem:[#allocation2 + $0x438] sm:$0x1] 0.0
      %230 = vst [vmem:[#allocation2 + $0x450] sm:$0x1] 0.0
      %231 = vst [vmem:[#allocation2 + $0x468] sm:$0x1] 0.0
      %232 = vst [vmem:[#allocation2 + $0x480] sm:$0x1] 0.0
      %233 = vst [vmem:[#allocation2 + $0x498] sm:$0x1] 0.0
      %234 = vst [vmem:[#allocation2 + $0x4b0] sm:$0x1] 0.0
      %235 = vst [vmem:[#allocation2 + $0x4c8] sm:$0x1] 0.0
      %236 = vst [vmem:[#allocation2 + $0x4e0] sm:$0x1] 0.0
      %237 = vst [vmem:[#allocation2 + $0x4f8] sm:$0x1] 0.0
      %238 = vst [vmem:[#allocation2 + $0x510] sm:$0x1] 0.0
      %239 = vst [vmem:[#allocation2 + $0x528] sm:$0x1] 0.0
      %240 = vst [vmem:[#allocation2 + $0x540] sm:$0x1] 0.0
      %241 = vst [vmem:[#allocation2 + $0x558] sm:$0x1] 0.0
      %242 = vst [vmem:[#allocation2 + $0x570] sm:$0x1] 0.0
      %243 = vst [vmem:[#allocation2 + $0x588] sm:$0x1] 0.0
      %244 = vst [vmem:[#allocation2 + $0x5a0] sm:$0x1] 0.0
      %245 = vst [vmem:[#allocation2 + $0x5b8] sm:$0x1] 0.0
      %246 = vst [vmem:[#allocation2 + $0x5d0] sm:$0x1] 0.0
      %247 = vst [vmem:[#allocation2 + $0x5e8] sm:$0x1] 0.0
      %248 = vst [vmem:[#allocation2 + $0x600] sm:$0x1] 0.0
      %249 = vst [vmem:[#allocation2 + $0x618] sm:$0x1] 0.0
      %250 = vst [vmem:[#allocation2 + $0x630] sm:$0x1] 0.0
      %251 = vst [vmem:[#allocation2 + $0x648] sm:$0x1] 0.0
      %v252 = vld [vmem:[%s165] sm:$0xf]
      %v253 = vld [vmem:[%s165 + $0x4] sm:$0xf]
      %v254 = vld [vmem:[%s165 + $0x8] sm:$0xf]
      %v255 = vld [vmem:[%s165 + $0xc] sm:$0xf]
      %v256 = vld [vmem:[%s165 + $0x10] sm:$0xf]
      %v257 = vld [vmem:[%s165 + $0x14] sm:$0xf]
      %v258 = vld [vmem:[%s165 + $0x18] sm:$0xf]
      %v259 = vld [vmem:[%s165 + $0x1c] sm:$0xf]
      %v260 = vld [vmem:[%s165 + $0x20] sm:$0xf]
      %v261 = vld [vmem:[%s165 + $0x24] sm:$0xf]
      %v262 = vld [vmem:[%s165 + $0x28] sm:$0xf]
      %v263 = vld [vmem:[%s165 + $0x2c] sm:$0xf]
      %v264 = vld [vmem:[%s165 + $0x30] sm:$0xf]
      %v265 = vld [vmem:[%s165 + $0x34] sm:$0xf]
      %v266 = vld [vmem:[%s165 + $0x38] sm:$0xf]
      %v267 = vld [vmem:[%s165 + $0x3c] sm:$0xf]
      %v268 = vld [vmem:[%s165 + $0x40] sm:$0xf]
      %v269 = vld [vmem:[%s165 + $0x44] sm:$0xf]
      %v270 = vld [vmem:[%s165 + $0x48] sm:$0xf]
      %v271 = vld [vmem:[%s165 + $0x4c] sm:$0xf]
      %v272 = vld [vmem:[%s165 + $0x50] sm:$0xf]
      %v273 = vld [vmem:[%s165 + $0x54] sm:$0xf]
      %v274 = vld [vmem:[%s165 + $0x58] sm:$0xf]
      %v275 = vld [vmem:[%s165 + $0x5c] sm:$0xf]
      %v276 = vld [vmem:[%s165 + $0x60] sm:$0xf]
      %v277 = vld [vmem:[%s165 + $0x64] sm:$0xf]
      %v278 = vld [vmem:[%s165 + $0x68] sm:$0xf]
      %v279 = vld [vmem:[%s165 + $0x6c] sm:$0xf]
      %v280 = vld [vmem:[%s165 + $0x70] sm:$0xf]
      %v281 = vld [vmem:[%s165 + $0x74] sm:$0xf]
      %v282 = vld [vmem:[%s165 + $0x78] sm:$0xf]
      %v283 = vld [vmem:[%s165 + $0x7c] sm:$0xf]
      %v284 = vunpack.c.l.bf16 %v252
      %v285 = vunpack.c.l.bf16 %v253
      %v286 = vunpack.c.l.bf16 %v254
      %v287 = vunpack.c.l.bf16 %v255
      %v288 = vunpack.c.l.bf16 %v256
      %v289 = vunpack.c.l.bf16 %v257
      %v290 = vunpack.c.l.bf16 %v258
      %v291 = vunpack.c.l.bf16 %v259
      %v292 = vunpack.c.l.bf16 %v260
      %v293 = vunpack.c.l.bf16 %v261
      %v294 = vunpack.c.l.bf16 %v262
      %v295 = vunpack.c.l.bf16 %v263
      %v296 = vunpack.c.l.bf16 %v264
      %v297 = vunpack.c.l.bf16 %v265
      %v298 = vunpack.c.l.bf16 %v266
      %v299 = vunpack.c.l.bf16 %v267
      %v300 = vunpack.c.l.bf16 %v268
      %v301 = vunpack.c.l.bf16 %v269
      %v302 = vunpack.c.l.bf16 %v270
      %v303 = vunpack.c.l.bf16 %v271
      %v304 = vunpack.c.l.bf16 %v272
      %v305 = vunpack.c.l.bf16 %v273
      %v306 = vunpack.c.l.bf16 %v274
      %v307 = vunpack.c.l.bf16 %v275
      %v308 = vunpack.c.l.bf16 %v276
      %v309 = vunpack.c.l.bf16 %v277
      %v310 = vunpack.c.l.bf16 %v278
      %v311 = vunpack.c.l.bf16 %v279
      %v312 = vunpack.c.l.bf16 %v280
      %v313 = vunpack.c.l.bf16 %v281
      %v314 = vunpack.c.l.bf16 %v282
      %v315 = vunpack.c.l.bf16 %v283
      %s316 = scalar_lea.vmem [#allocation2], 24
      %317 = vst [vmem:[%s316 + $0x1] sm:$0xff] %v284
      %318 = vst [vmem:[%s316 + $0x9] sm:$0xff] %v285
      %319 = vst [vmem:[%s316 + $0x19] sm:$0xff] %v286
      %320 = vst [vmem:[%s316 + $0x21] sm:$0xff] %v287
      %321 = vst [vmem:[%s316 + $0x31] sm:$0xff] %v288
      %322 = vst [vmem:[%s316 + $0x39] sm:$0xff] %v289
      %323 = vst [vmem:[%s316 + $0x49] sm:$0xff] %v290
      %324 = vst [vmem:[%s316 + $0x51] sm:$0xff] %v291
      %325 = vst [vmem:[%s316 + $0x61] sm:$0xff] %v292
      %326 = vst [vmem:[%s316 + $0x69] sm:$0xff] %v293
      %327 = vst [vmem:[%s316 + $0x79] sm:$0xff] %v294
      %328 = vst [vmem:[%s316 + $0x81] sm:$0xff] %v295
      %329 = vst [vmem:[%s316 + $0x91] sm:$0xff] %v296
      %330 = vst [vmem:[%s316 + $0x99] sm:$0xff] %v297
      %331 = vst [vmem:[%s316 + $0xa9] sm:$0xff] %v298
      %332 = vst [vmem:[%s316 + $0xb1] sm:$0xff] %v299
      %333 = vst [vmem:[%s316 + $0xc1] sm:$0xff] %v300
      %334 = vst [vmem:[%s316 + $0xc9] sm:$0xff] %v301
      %335 = vst [vmem:[%s316 + $0xd9] sm:$0xff] %v302
      %336 = vst [vmem:[%s316 + $0xe1] sm:$0xff] %v303
      %337 = vst [vmem:[%s316 + $0xf1] sm:$0xff] %v304
      %338 = vst [vmem:[%s316 + $0xf9] sm:$0xff] %v305
      %339 = vst [vmem:[%s316 + $0x109] sm:$0xff] %v306
      %340 = vst [vmem:[%s316 + $0x111] sm:$0xff] %v307
      %341 = vst [vmem:[%s316 + $0x121] sm:$0xff] %v308
      %342 = vst [vmem:[%s316 + $0x129] sm:$0xff] %v309
      %343 = vst [vmem:[%s316 + $0x139] sm:$0xff] %v310
      %344 = vst [vmem:[%s316 + $0x141] sm:$0xff] %v311
      %345 = vst [vmem:[%s316 + $0x151] sm:$0xff] %v312
      %346 = vst [vmem:[%s316 + $0x159] sm:$0xff] %v313
      %347 = vst [vmem:[%s316 + $0x169] sm:$0xff] %v314
      %348 = vst [vmem:[%s316 + $0x171] sm:$0xff] %v315
      %s349 = scalar_lea.vmem %s165, 128
      %v350 = vld [vmem:[%s349] sm:$0xf]
      %v351 = vld [vmem:[%s349 + $0x4] sm:$0xf]
      %v352 = vld [vmem:[%s349 + $0x8] sm:$0xf]
      %v353 = vld [vmem:[%s349 + $0xc] sm:$0xf]
      %v354 = vld [vmem:[%s349 + $0x10] sm:$0xf]
      %v355 = vld [vmem:[%s349 + $0x14] sm:$0xf]
      %v356 = vld [vmem:[%s349 + $0x18] sm:$0xf]
      %v357 = vld [vmem:[%s349 + $0x1c] sm:$0xf]
      %v358 = vld [vmem:[%s349 + $0x20] sm:$0xf]
      %v359 = vld [vmem:[%s349 + $0x24] sm:$0xf]
      %v360 = vld [vmem:[%s349 + $0x28] sm:$0xf]
      %v361 = vld [vmem:[%s349 + $0x2c] sm:$0xf]
      %v362 = vld [vmem:[%s349 + $0x30] sm:$0xf]
      %v363 = vld [vmem:[%s349 + $0x34] sm:$0xf]
      %v364 = vld [vmem:[%s349 + $0x38] sm:$0xf]
      %v365 = vld [vmem:[%s349 + $0x3c] sm:$0xf]
      %v366 = vld [vmem:[%s349 + $0x40] sm:$0xf]
      %v367 = vld [vmem:[%s349 + $0x44] sm:$0xf]
      %v368 = vld [vmem:[%s349 + $0x48] sm:$0xf]
      %v369 = vld [vmem:[%s349 + $0x4c] sm:$0xf]
      %v370 = vld [vmem:[%s349 + $0x50] sm:$0xf]
      %v371 = vld [vmem:[%s349 + $0x54] sm:$0xf]
      %v372 = vld [vmem:[%s349 + $0x58] sm:$0xf]
      %v373 = vld [vmem:[%s349 + $0x5c] sm:$0xf]
      %v374 = vld [vmem:[%s349 + $0x60] sm:$0xf]
      %v375 = vld [vmem:[%s349 + $0x64] sm:$0xf]
      %v376 = vld [vmem:[%s349 + $0x68] sm:$0xf]
      %v377 = vld [vmem:[%s349 + $0x6c] sm:$0xf]
      %v378 = vld [vmem:[%s349 + $0x70] sm:$0xf]
      %v379 = vld [vmem:[%s349 + $0x74] sm:$0xf]
      %v380 = vld [vmem:[%s349 + $0x78] sm:$0xf]
      %v381 = vld [vmem:[%s349 + $0x7c] sm:$0xf]
      %v382 = vunpack.c.l.bf16 %v350
      %v383 = vunpack.c.l.bf16 %v351
      %v384 = vunpack.c.l.bf16 %v352
      %v385 = vunpack.c.l.bf16 %v353
      %v386 = vunpack.c.l.bf16 %v354
      %v387 = vunpack.c.l.bf16 %v355
      %v388 = vunpack.c.l.bf16 %v356
      %v389 = vunpack.c.l.bf16 %v357
      %v390 = vunpack.c.l.bf16 %v358
      %v391 = vunpack.c.l.bf16 %v359
      %v392 = vunpack.c.l.bf16 %v360
      %v393 = vunpack.c.l.bf16 %v361
      %v394 = vunpack.c.l.bf16 %v362
      %v395 = vunpack.c.l.bf16 %v363
      %v396 = vunpack.c.l.bf16 %v364
      %v397 = vunpack.c.l.bf16 %v365
      %v398 = vunpack.c.l.bf16 %v366
      %v399 = vunpack.c.l.bf16 %v367
      %v400 = vunpack.c.l.bf16 %v368
      %v401 = vunpack.c.l.bf16 %v369
      %v402 = vunpack.c.l.bf16 %v370
      %v403 = vunpack.c.l.bf16 %v371
      %v404 = vunpack.c.l.bf16 %v372
      %v405 = vunpack.c.l.bf16 %v373
      %v406 = vunpack.c.l.bf16 %v374
      %v407 = vunpack.c.l.bf16 %v375
      %v408 = vunpack.c.l.bf16 %v376
      %v409 = vunpack.c.l.bf16 %v377
      %v410 = vunpack.c.l.bf16 %v378
      %v411 = vunpack.c.l.bf16 %v379
      %v412 = vunpack.c.l.bf16 %v380
      %v413 = vunpack.c.l.bf16 %v381
      %s414 = scalar_lea.vmem [#allocation2], 432
      %415 = vst [vmem:[%s414 + $0x1] sm:$0xff] %v382
      %416 = vst [vmem:[%s414 + $0x9] sm:$0xff] %v383
      %417 = vst [vmem:[%s414 + $0x19] sm:$0xff] %v384
      %418 = vst [vmem:[%s414 + $0x21] sm:$0xff] %v385
      %419 = vst [vmem:[%s414 + $0x31] sm:$0xff] %v386
      %420 = vst [vmem:[%s414 + $0x39] sm:$0xff] %v387
      %421 = vst [vmem:[%s414 + $0x49] sm:$0xff] %v388
      %422 = vst [vmem:[%s414 + $0x51] sm:$0xff] %v389
      %423 = vst [vmem:[%s414 + $0x61] sm:$0xff] %v390
      %424 = vst [vmem:[%s414 + $0x69] sm:$0xff] %v391
      %425 = vst [vmem:[%s414 + $0x79] sm:$0xff] %v392
      %426 = vst [vmem:[%s414 + $0x81] sm:$0xff] %v393
      %427 = vst [vmem:[%s414 + $0x91] sm:$0xff] %v394
      %428 = vst [vmem:[%s414 + $0x99] sm:$0xff] %v395
      %429 = vst [vmem:[%s414 + $0xa9] sm:$0xff] %v396
      %430 = vst [vmem:[%s414 + $0xb1] sm:$0xff] %v397
      %431 = vst [vmem:[%s414 + $0xc1] sm:$0xff] %v398
      %432 = vst [vmem:[%s414 + $0xc9] sm:$0xff] %v399
      %433 = vst [vmem:[%s414 + $0xd9] sm:$0xff] %v400
      %434 = vst [vmem:[%s414 + $0xe1] sm:$0xff] %v401
      %435 = vst [vmem:[%s414 + $0xf1] sm:$0xff] %v402
      %436 = vst [vmem:[%s414 + $0xf9] sm:$0xff] %v403
      %437 = vst [vmem:[%s414 + $0x109] sm:$0xff] %v404
      %438 = vst [vmem:[%s414 + $0x111] sm:$0xff] %v405
      %439 = vst [vmem:[%s414 + $0x121] sm:$0xff] %v406
      %440 = vst [vmem:[%s414 + $0x129] sm:$0xff] %v407
      %441 = vst [vmem:[%s414 + $0x139] sm:$0xff] %v408
      %442 = vst [vmem:[%s414 + $0x141] sm:$0xff] %v409
      %443 = vst [vmem:[%s414 + $0x151] sm:$0xff] %v410
      %444 = vst [vmem:[%s414 + $0x159] sm:$0xff] %v411
      %445 = vst [vmem:[%s414 + $0x169] sm:$0xff] %v412
      %446 = vst [vmem:[%s414 + $0x171] sm:$0xff] %v413
      %s447 = scalar_lea.vmem %s165, 256
      %v448 = vld [vmem:[%s447] sm:$0xf]
      %v449 = vld [vmem:[%s447 + $0x4] sm:$0xf]
      %v450 = vld [vmem:[%s447 + $0x8] sm:$0xf]
      %v451 = vld [vmem:[%s447 + $0xc] sm:$0xf]
      %v452 = vld [vmem:[%s447 + $0x10] sm:$0xf]
      %v453 = vld [vmem:[%s447 + $0x14] sm:$0xf]
      %v454 = vld [vmem:[%s447 + $0x18] sm:$0xf]
      %v455 = vld [vmem:[%s447 + $0x1c] sm:$0xf]
      %v456 = vld [vmem:[%s447 + $0x20] sm:$0xf]
      %v457 = vld [vmem:[%s447 + $0x24] sm:$0xf]
      %v458 = vld [vmem:[%s447 + $0x28] sm:$0xf]
      %v459 = vld [vmem:[%s447 + $0x2c] sm:$0xf]
      %v460 = vld [vmem:[%s447 + $0x30] sm:$0xf]
      %v461 = vld [vmem:[%s447 + $0x34] sm:$0xf]
      %v462 = vld [vmem:[%s447 + $0x38] sm:$0xf]
      %v463 = vld [vmem:[%s447 + $0x3c] sm:$0xf]
      %v464 = vld [vmem:[%s447 + $0x40] sm:$0xf]
      %v465 = vld [vmem:[%s447 + $0x44] sm:$0xf]
      %v466 = vld [vmem:[%s447 + $0x48] sm:$0xf]
      %v467 = vld [vmem:[%s447 + $0x4c] sm:$0xf]
      %v468 = vld [vmem:[%s447 + $0x50] sm:$0xf]
      %v469 = vld [vmem:[%s447 + $0x54] sm:$0xf]
      %v470 = vld [vmem:[%s447 + $0x58] sm:$0xf]
      %v471 = vld [vmem:[%s447 + $0x5c] sm:$0xf]
      %v472 = vld [vmem:[%s447 + $0x60] sm:$0xf]
      %v473 = vld [vmem:[%s447 + $0x64] sm:$0xf]
      %v474 = vld [vmem:[%s447 + $0x68] sm:$0xf]
      %v475 = vld [vmem:[%s447 + $0x6c] sm:$0xf]
      %v476 = vld [vmem:[%s447 + $0x70] sm:$0xf]
      %v477 = vld [vmem:[%s447 + $0x74] sm:$0xf]
      %v478 = vld [vmem:[%s447 + $0x78] sm:$0xf]
      %v479 = vld [vmem:[%s447 + $0x7c] sm:$0xf]
      %v480 = vunpack.c.l.bf16 %v448
      %v481 = vunpack.c.l.bf16 %v449
      %v482 = vunpack.c.l.bf16 %v450
      %v483 = vunpack.c.l.bf16 %v451
      %v484 = vunpack.c.l.bf16 %v452
      %v485 = vunpack.c.l.bf16 %v453
      %v486 = vunpack.c.l.bf16 %v454
      %v487 = vunpack.c.l.bf16 %v455
      %v488 = vunpack.c.l.bf16 %v456
      %v489 = vunpack.c.l.bf16 %v457
      %v490 = vunpack.c.l.bf16 %v458
      %v491 = vunpack.c.l.bf16 %v459
      %v492 = vunpack.c.l.bf16 %v460
      %v493 = vunpack.c.l.bf16 %v461
      %v494 = vunpack.c.l.bf16 %v462
      %v495 = vunpack.c.l.bf16 %v463
      %v496 = vunpack.c.l.bf16 %v464
      %v497 = vunpack.c.l.bf16 %v465
      %v498 = vunpack.c.l.bf16 %v466
      %v499 = vunpack.c.l.bf16 %v467
      %v500 = vunpack.c.l.bf16 %v468
      %v501 = vunpack.c.l.bf16 %v469
      %v502 = vunpack.c.l.bf16 %v470
      %v503 = vunpack.c.l.bf16 %v471
      %v504 = vunpack.c.l.bf16 %v472
      %v505 = vunpack.c.l.bf16 %v473
      %v506 = vunpack.c.l.bf16 %v474
      %v507 = vunpack.c.l.bf16 %v475
      %v508 = vunpack.c.l.bf16 %v476
      %v509 = vunpack.c.l.bf16 %v477
      %v510 = vunpack.c.l.bf16 %v478
      %v511 = vunpack.c.l.bf16 %v479
      %s512 = scalar_lea.vmem [#allocation2], 840
      %513 = vst [vmem:[%s512 + $0x1] sm:$0xff] %v480
      %514 = vst [vmem:[%s512 + $0x9] sm:$0xff] %v481
      %515 = vst [vmem:[%s512 + $0x19] sm:$0xff] %v482
      %516 = vst [vmem:[%s512 + $0x21] sm:$0xff] %v483
      %517 = vst [vmem:[%s512 + $0x31] sm:$0xff] %v484
      %518 = vst [vmem:[%s512 + $0x39] sm:$0xff] %v485
      %519 = vst [vmem:[%s512 + $0x49] sm:$0xff] %v486
      %520 = vst [vmem:[%s512 + $0x51] sm:$0xff] %v487
      %521 = vst [vmem:[%s512 + $0x61] sm:$0xff] %v488
      %522 = vst [vmem:[%s512 + $0x69] sm:$0xff] %v489
      %523 = vst [vmem:[%s512 + $0x79] sm:$0xff] %v490
      %524 = vst [vmem:[%s512 + $0x81] sm:$0xff] %v491
      %525 = vst [vmem:[%s512 + $0x91] sm:$0xff] %v492
      %526 = vst [vmem:[%s512 + $0x99] sm:$0xff] %v493
      %527 = vst [vmem:[%s512 + $0xa9] sm:$0xff] %v494
      %528 = vst [vmem:[%s512 + $0xb1] sm:$0xff] %v495
      %529 = vst [vmem:[%s512 + $0xc1] sm:$0xff] %v496
      %530 = vst [vmem:[%s512 + $0xc9] sm:$0xff] %v497
      %531 = vst [vmem:[%s512 + $0xd9] sm:$0xff] %v498
      %532 = vst [vmem:[%s512 + $0xe1] sm:$0xff] %v499
      %533 = vst [vmem:[%s512 + $0xf1] sm:$0xff] %v500
      %534 = vst [vmem:[%s512 + $0xf9] sm:$0xff] %v501
      %535 = vst [vmem:[%s512 + $0x109] sm:$0xff] %v502
      %536 = vst [vmem:[%s512 + $0x111] sm:$0xff] %v503
      %537 = vst [vmem:[%s512 + $0x121] sm:$0xff] %v504
      %538 = vst [vmem:[%s512 + $0x129] sm:$0xff] %v505
      %539 = vst [vmem:[%s512 + $0x139] sm:$0xff] %v506
      %540 = vst [vmem:[%s512 + $0x141] sm:$0xff] %v507
      %541 = vst [vmem:[%s512 + $0x151] sm:$0xff] %v508
      %542 = vst [vmem:[%s512 + $0x159] sm:$0xff] %v509
      %543 = vst [vmem:[%s512 + $0x169] sm:$0xff] %v510
      %544 = vst [vmem:[%s512 + $0x171] sm:$0xff] %v511
      %s545 = scalar_lea.vmem %s165, 384
      %v546 = vld [vmem:[%s545] sm:$0xf]
      %v547 = vld [vmem:[%s545 + $0x4] sm:$0xf]
      %v548 = vld [vmem:[%s545 + $0x8] sm:$0xf]
      %v549 = vld [vmem:[%s545 + $0xc] sm:$0xf]
      %v550 = vld [vmem:[%s545 + $0x10] sm:$0xf]
      %v551 = vld [vmem:[%s545 + $0x14] sm:$0xf]
      %v552 = vld [vmem:[%s545 + $0x18] sm:$0xf]
      %v553 = vld [vmem:[%s545 + $0x1c] sm:$0xf]
      %v554 = vld [vmem:[%s545 + $0x20] sm:$0xf]
      %v555 = vld [vmem:[%s545 + $0x24] sm:$0xf]
      %v556 = vld [vmem:[%s545 + $0x28] sm:$0xf]
      %v557 = vld [vmem:[%s545 + $0x2c] sm:$0xf]
      %v558 = vld [vmem:[%s545 + $0x30] sm:$0xf]
      %v559 = vld [vmem:[%s545 + $0x34] sm:$0xf]
      %v560 = vld [vmem:[%s545 + $0x38] sm:$0xf]
      %v561 = vld [vmem:[%s545 + $0x3c] sm:$0xf]
      %v562 = vld [vmem:[%s545 + $0x40] sm:$0xf]
      %v563 = vld [vmem:[%s545 + $0x44] sm:$0xf]
      %v564 = vld [vmem:[%s545 + $0x48] sm:$0xf]
      %v565 = vld [vmem:[%s545 + $0x4c] sm:$0xf]
      %v566 = vld [vmem:[%s545 + $0x50] sm:$0xf]
      %v567 = vld [vmem:[%s545 + $0x54] sm:$0xf]
      %v568 = vld [vmem:[%s545 + $0x58] sm:$0xf]
      %v569 = vld [vmem:[%s545 + $0x5c] sm:$0xf]
      %v570 = vld [vmem:[%s545 + $0x60] sm:$0xf]
      %v571 = vld [vmem:[%s545 + $0x64] sm:$0xf]
      %v572 = vld [vmem:[%s545 + $0x68] sm:$0xf]
      %v573 = vld [vmem:[%s545 + $0x6c] sm:$0xf]
      %v574 = vld [vmem:[%s545 + $0x70] sm:$0xf]
      %v575 = vld [vmem:[%s545 + $0x74] sm:$0xf]
      %v576 = vld [vmem:[%s545 + $0x78] sm:$0xf]
      %v577 = vld [vmem:[%s545 + $0x7c] sm:$0xf]
      %v578 = vunpack.c.l.bf16 %v546
      %v579 = vunpack.c.l.bf16 %v547
      %v580 = vunpack.c.l.bf16 %v548
      %v581 = vunpack.c.l.bf16 %v549
      %v582 = vunpack.c.l.bf16 %v550
      %v583 = vunpack.c.l.bf16 %v551
      %v584 = vunpack.c.l.bf16 %v552
      %v585 = vunpack.c.l.bf16 %v553
      %v586 = vunpack.c.l.bf16 %v554
      %v587 = vunpack.c.l.bf16 %v555
      %v588 = vunpack.c.l.bf16 %v556
      %v589 = vunpack.c.l.bf16 %v557
      %v590 = vunpack.c.l.bf16 %v558
      %v591 = vunpack.c.l.bf16 %v559
      %v592 = vunpack.c.l.bf16 %v560
      %v593 = vunpack.c.l.bf16 %v561
      %v594 = vunpack.c.l.bf16 %v562
      %v595 = vunpack.c.l.bf16 %v563
      %v596 = vunpack.c.l.bf16 %v564
      %v597 = vunpack.c.l.bf16 %v565
      %v598 = vunpack.c.l.bf16 %v566
      %v599 = vunpack.c.l.bf16 %v567
      %v600 = vunpack.c.l.bf16 %v568
      %v601 = vunpack.c.l.bf16 %v569
      %v602 = vunpack.c.l.bf16 %v570
      %v603 = vunpack.c.l.bf16 %v571
      %v604 = vunpack.c.l.bf16 %v572
      %v605 = vunpack.c.l.bf16 %v573
      %v606 = vunpack.c.l.bf16 %v574
      %v607 = vunpack.c.l.bf16 %v575
      %v608 = vunpack.c.l.bf16 %v576
      %v609 = vunpack.c.l.bf16 %v577
      %s610 = scalar_lea.vmem [#allocation2], 1248
      %611 = vst [vmem:[%s610 + $0x1] sm:$0xff] %v578
      %612 = vst [vmem:[%s610 + $0x9] sm:$0xff] %v579
      %613 = vst [vmem:[%s610 + $0x19] sm:$0xff] %v580
      %614 = vst [vmem:[%s610 + $0x21] sm:$0xff] %v581
      %615 = vst [vmem:[%s610 + $0x31] sm:$0xff] %v582
      %616 = vst [vmem:[%s610 + $0x39] sm:$0xff] %v583
      %617 = vst [vmem:[%s610 + $0x49] sm:$0xff] %v584
      %618 = vst [vmem:[%s610 + $0x51] sm:$0xff] %v585
      %619 = vst [vmem:[%s610 + $0x61] sm:$0xff] %v586
      %620 = vst [vmem:[%s610 + $0x69] sm:$0xff] %v587
      %621 = vst [vmem:[%s610 + $0x79] sm:$0xff] %v588
      %622 = vst [vmem:[%s610 + $0x81] sm:$0xff] %v589
      %623 = vst [vmem:[%s610 + $0x91] sm:$0xff] %v590
      %624 = vst [vmem:[%s610 + $0x99] sm:$0xff] %v591
      %625 = vst [vmem:[%s610 + $0xa9] sm:$0xff] %v592
      %626 = vst [vmem:[%s610 + $0xb1] sm:$0xff] %v593
      %627 = vst [vmem:[%s610 + $0xc1] sm:$0xff] %v594
      %628 = vst [vmem:[%s610 + $0xc9] sm:$0xff] %v595
      %629 = vst [vmem:[%s610 + $0xd9] sm:$0xff] %v596
      %630 = vst [vmem:[%s610 + $0xe1] sm:$0xff] %v597
      %631 = vst [vmem:[%s610 + $0xf1] sm:$0xff] %v598
      %632 = vst [vmem:[%s610 + $0xf9] sm:$0xff] %v599
      %633 = vst [vmem:[%s610 + $0x109] sm:$0xff] %v600
      %634 = vst [vmem:[%s610 + $0x111] sm:$0xff] %v601
      %635 = vst [vmem:[%s610 + $0x121] sm:$0xff] %v602
      %636 = vst [vmem:[%s610 + $0x129] sm:$0xff] %v603
      %637 = vst [vmem:[%s610 + $0x139] sm:$0xff] %v604
      %638 = vst [vmem:[%s610 + $0x141] sm:$0xff] %v605
      %639 = vst [vmem:[%s610 + $0x151] sm:$0xff] %v606
      %640 = vst [vmem:[%s610 + $0x159] sm:$0xff] %v607
      %641 = vst [vmem:[%s610 + $0x169] sm:$0xff] %v608
      %642 = vst [vmem:[%s610 + $0x171] sm:$0xff] %v609
      %s643 = scalar_lea.vmem [#allocation2], 1224
      %v644 = vld [vmem:[%s643] sm:$0xff]
      %v645 = vld [vmem:[%s643 + $0x8] sm:$0xff]
      %v646 = vld [vmem:[%s643 + $0x18] sm:$0xff]
      %v647 = vld [vmem:[%s643 + $0x20] sm:$0xff]
      %v648 = vld [vmem:[%s643 + $0x30] sm:$0xff]
      %v649 = vld [vmem:[%s643 + $0x38] sm:$0xff]
      %v650 = vld [vmem:[%s643 + $0x48] sm:$0xff]
      %v651 = vld [vmem:[%s643 + $0x50] sm:$0xff]
      %v652 = vld [vmem:[%s643 + $0x60] sm:$0xff]
      %v653 = vld [vmem:[%s643 + $0x68] sm:$0xff]
      %v654 = vld [vmem:[%s643 + $0x78] sm:$0xff]
      %v655 = vld [vmem:[%s643 + $0x80] sm:$0xff]
      %v656 = vld [vmem:[%s643 + $0x90] sm:$0xff]
      %v657 = vld [vmem:[%s643 + $0x98] sm:$0xff]
      %v658 = vld [vmem:[%s643 + $0xa8] sm:$0xff]
      %v659 = vld [vmem:[%s643 + $0xb0] sm:$0xff]
      %v660 = vld [vmem:[%s643 + $0xc0] sm:$0xff]
      %v661 = vld [vmem:[%s643 + $0xc8] sm:$0xff]
      %v662 = vld [vmem:[%s643 + $0xd8] sm:$0xff]
      %v663 = vld [vmem:[%s643 + $0xe0] sm:$0xff]
      %v664 = vld [vmem:[%s643 + $0xf0] sm:$0xff]
      %v665 = vld [vmem:[%s643 + $0xf8] sm:$0xff]
      %v666 = vld [vmem:[%s643 + $0x108] sm:$0xff]
      %v667 = vld [vmem:[%s643 + $0x110] sm:$0xff]
      %v668 = vld [vmem:[%s643 + $0x120] sm:$0xff]
      %v669 = vld [vmem:[%s643 + $0x128] sm:$0xff]
      %v670 = vld [vmem:[%s643 + $0x138] sm:$0xff]
      %v671 = vld [vmem:[%s643 + $0x140] sm:$0xff]
      %v672 = vld [vmem:[%s643 + $0x150] sm:$0xff]
      %v673 = vld [vmem:[%s643 + $0x158] sm:$0xff]
      %v674 = vld [vmem:[%s643 + $0x168] sm:$0xff]
      %v675 = vld [vmem:[%s643 + $0x170] sm:$0xff]
      %v676 = vpack.c.bf16 %v645, %v644
      %v677 = vpack.c.bf16 %v647, %v646
      %v678 = vpack.c.bf16 %v649, %v648
      %v679 = vpack.c.bf16 %v651, %v650
      %v680 = vpack.c.bf16 %v653, %v652
      %v681 = vpack.c.bf16 %v655, %v654
      %v682 = vpack.c.bf16 %v657, %v656
      %v683 = vpack.c.bf16 %v659, %v658
      %v684 = vpack.c.bf16 %v661, %v660
      %v685 = vpack.c.bf16 %v663, %v662
      %v686 = vpack.c.bf16 %v665, %v664
      %v687 = vpack.c.bf16 %v667, %v666
      %v688 = vpack.c.bf16 %v669, %v668
      %v689 = vpack.c.bf16 %v671, %v670
      %v690 = vpack.c.bf16 %v673, %v672
      %v691 = vpack.c.bf16 %v675, %v674
      %v692 = vld [vmem:[%s1] sm:$0xf]
      %v693 = vld [vmem:[%s1 + $0x4] sm:$0xf]
      %v694 = vld [vmem:[%s1 + $0x8] sm:$0xf]
      %v695 = vld [vmem:[%s1 + $0xc] sm:$0xf]
      %v696 = vld [vmem:[%s1 + $0x10] sm:$0xf]
      %v697 = vld [vmem:[%s1 + $0x14] sm:$0xf]
      %v698 = vld [vmem:[%s1 + $0x18] sm:$0xf]
      %v699 = vld [vmem:[%s1 + $0x1c] sm:$0xf]
      %v700 = vld [vmem:[%s1 + $0x20] sm:$0xf]
      %v701 = vld [vmem:[%s1 + $0x24] sm:$0xf]
      %v702 = vld [vmem:[%s1 + $0x28] sm:$0xf]
      %v703 = vld [vmem:[%s1 + $0x2c] sm:$0xf]
      %v704 = vld [vmem:[%s1 + $0x30] sm:$0xf]
      %v705 = vld [vmem:[%s1 + $0x34] sm:$0xf]
      %v706 = vld [vmem:[%s1 + $0x38] sm:$0xf]
      %v707 = vld [vmem:[%s1 + $0x3c] sm:$0xf]
      %s708 = scalar_lea.vmem [#allocation2], 816
      %v709 = vld [vmem:[%s708 + $0x1] sm:$0xff]
      %v710 = vld [vmem:[%s708 + $0x9] sm:$0xff]
      %v711 = vld [vmem:[%s708 + $0x19] sm:$0xff]
      %v712 = vld [vmem:[%s708 + $0x21] sm:$0xff]
      %v713 = vld [vmem:[%s708 + $0x31] sm:$0xff]
      %v714 = vld [vmem:[%s708 + $0x39] sm:$0xff]
      %v715 = vld [vmem:[%s708 + $0x49] sm:$0xff]
      %v716 = vld [vmem:[%s708 + $0x51] sm:$0xff]
      %v717 = vld [vmem:[%s708 + $0x61] sm:$0xff]
      %v718 = vld [vmem:[%s708 + $0x69] sm:$0xff]
      %v719 = vld [vmem:[%s708 + $0x79] sm:$0xff]
      %v720 = vld [vmem:[%s708 + $0x81] sm:$0xff]
      %v721 = vld [vmem:[%s708 + $0x91] sm:$0xff]
      %v722 = vld [vmem:[%s708 + $0x99] sm:$0xff]
      %v723 = vld [vmem:[%s708 + $0xa9] sm:$0xff]
      %v724 = vld [vmem:[%s708 + $0xb1] sm:$0xff]
      %v725 = vld [vmem:[%s708 + $0xc1] sm:$0xff]
      %v726 = vld [vmem:[%s708 + $0xc9] sm:$0xff]
      %v727 = vld [vmem:[%s708 + $0xd9] sm:$0xff]
      %v728 = vld [vmem:[%s708 + $0xe1] sm:$0xff]
      %v729 = vld [vmem:[%s708 + $0xf1] sm:$0xff]
      %v730 = vld [vmem:[%s708 + $0xf9] sm:$0xff]
      %v731 = vld [vmem:[%s708 + $0x109] sm:$0xff]
      %v732 = vld [vmem:[%s708 + $0x111] sm:$0xff]
      %v733 = vld [vmem:[%s708 + $0x121] sm:$0xff]
      %v734 = vld [vmem:[%s708 + $0x129] sm:$0xff]
      %v735 = vld [vmem:[%s708 + $0x139] sm:$0xff]
      %v736 = vld [vmem:[%s708 + $0x141] sm:$0xff]
      %v737 = vld [vmem:[%s708 + $0x151] sm:$0xff]
      %v738 = vld [vmem:[%s708 + $0x159] sm:$0xff]
      %v739 = vld [vmem:[%s708 + $0x169] sm:$0xff]
      %v740 = vld [vmem:[%s708 + $0x171] sm:$0xff]
      %v741 = vpack.c.bf16 %v710, %v709
      %v742 = vpack.c.bf16 %v712, %v711
      %v743 = vpack.c.bf16 %v714, %v713
      %v744 = vpack.c.bf16 %v716, %v715
      %v745 = vpack.c.bf16 %v718, %v717
      %v746 = vpack.c.bf16 %v720, %v719
      %v747 = vpack.c.bf16 %v722, %v721
      %v748 = vpack.c.bf16 %v724, %v723
      %v749 = vpack.c.bf16 %v726, %v725
      %v750 = vpack.c.bf16 %v728, %v727
      %v751 = vpack.c.bf16 %v730, %v729
      %v752 = vpack.c.bf16 %v732, %v731
      %v753 = vpack.c.bf16 %v734, %v733
      %v754 = vpack.c.bf16 %v736, %v735
      %v755 = vpack.c.bf16 %v738, %v737
      %v756 = vpack.c.bf16 %v740, %v739
      %s757 = scalar_lea.vmem %s1, 64
      %v758 = vld [vmem:[%s757] sm:$0xf]
      %v759 = vld [vmem:[%s757 + $0x4] sm:$0xf]
      %v760 = vld [vmem:[%s757 + $0x8] sm:$0xf]
      %v761 = vld [vmem:[%s757 + $0xc] sm:$0xf]
      %v762 = vld [vmem:[%s757 + $0x10] sm:$0xf]
      %v763 = vld [vmem:[%s757 + $0x14] sm:$0xf]
      %v764 = vld [vmem:[%s757 + $0x18] sm:$0xf]
      %v765 = vld [vmem:[%s757 + $0x1c] sm:$0xf]
      %v766 = vld [vmem:[%s757 + $0x20] sm:$0xf]
      %v767 = vld [vmem:[%s757 + $0x24] sm:$0xf]
      %v768 = vld [vmem:[%s757 + $0x28] sm:$0xf]
      %v769 = vld [vmem:[%s757 + $0x2c] sm:$0xf]
      %v770 = vld [vmem:[%s757 + $0x30] sm:$0xf]
      %v771 = vld [vmem:[%s757 + $0x34] sm:$0xf]
      %v772 = vld [vmem:[%s757 + $0x38] sm:$0xf]
      %v773 = vld [vmem:[%s757 + $0x3c] sm:$0xf]
      %v790 = vunpack.c.l.b16 %v758
      %v791 = vunpack.c.l.b16 %v759
      %v792 = vunpack.c.l.b16 %v760
      %v793 = vunpack.c.l.b16 %v761
      %v794 = vunpack.c.l.b16 %v762
      %v795 = vunpack.c.l.b16 %v763
      %v796 = vunpack.c.l.b16 %v764
      %v797 = vunpack.c.l.b16 %v765
      %v798 = vunpack.c.l.b16 %v766
      %v799 = vunpack.c.l.b16 %v767
      %v800 = vunpack.c.l.b16 %v768
      %v801 = vunpack.c.l.b16 %v769
      %v802 = vunpack.c.l.b16 %v770
      %v803 = vunpack.c.l.b16 %v771
      %v804 = vunpack.c.l.b16 %v772
      %v805 = vunpack.c.l.b16 %v773
      %v806 = vpack.c.b16 %v791, %v790
      %v807 = vpack.c.b16 %v793, %v792
      %v808 = vpack.c.b16 %v795, %v794
      %v809 = vpack.c.b16 %v797, %v796
      %v810 = vpack.c.b16 %v799, %v798
      %v811 = vpack.c.b16 %v801, %v800
      %v812 = vpack.c.b16 %v803, %v802
      %v813 = vpack.c.b16 %v805, %v804
      %822 = vmatprep.subr.bf16.mxu0 0
      %823 = vmatpush1.bf16.msra.mxu0 %v806
      %824 = vmatprep.subr.bf16.mxu0 0
      %825 = vmatpush1.bf16.msra.mxu0 %v807
      %826 = vmatprep.subr.bf16.mxu0 0
      %827 = vmatpush1.bf16.msra.mxu0 %v808
      %828 = vmatprep.subr.bf16.mxu0 0
      %829 = vmatpush1.bf16.msra.mxu0 %v809
      %830 = vmatprep.subr.bf16.mxu0 0
      %831 = vmatpush1.bf16.msra.mxu0 %v810
      %832 = vmatprep.subr.bf16.mxu0 0
      %833 = vmatpush1.bf16.msra.mxu0 %v811
      %834 = vmatprep.subr.bf16.mxu0 0
      %835 = vmatpush1.bf16.msra.mxu0 %v812
      %836 = vmatprep.subr.bf16.mxu0 0
      %837 = vmatpush1.bf16.msra.mxu0 %v813
      %838 = vmatprep.subr.bf16.mxu0 0
      %839 = vmatpush1.bf16.msra.mxu0 0
      %840 = vmatprep.subr.bf16.mxu0 0
      %841 = vmatpush1.bf16.msra.mxu0 0
      %842 = vmatprep.subr.bf16.mxu0 0
      %843 = vmatpush1.bf16.msra.mxu0 0
      %844 = vmatprep.subr.bf16.mxu0 0
      %845 = vmatpush1.bf16.msra.mxu0 0
      %846 = vmatprep.subr.bf16.mxu0 0
      %847 = vmatpush1.bf16.msra.mxu0 0
      %848 = vmatprep.subr.bf16.mxu0 0
      %849 = vmatpush1.bf16.msra.mxu0 0
      %850 = vmatprep.subr.bf16.mxu0 0
      %851 = vmatpush1.bf16.msra.mxu0 0
      %852 = vmatprep.subr.bf16.mxu0 0
      %853 = vmatpush1.bf16.msra.mxu0 0
      %854 = vmatprep.mubr.bf16.mxu0 0
      %855 = vmatmul.mubr.bf16.gmra.mrb[0].mxu0 %v741
      %v856 = vpop.f32.mrb[0].mxu0
      %v857 = vadd.f32 0.0, %v856
      %v858 = vpop.f32.mrb[0].mxu0
      %v859 = vpop.f32.mrb[0].mxu0
      %v860 = vadd.f32 0.0, %v859
      %v861 = vpop.f32.mrb[0].mxu0
      %862 = vmatprep.mubr.bf16.mxu0 0
      %863 = vmatmul.mubr.bf16.gmra.mrb[0].mxu0 %v742
      %v864 = vpop.f32.mrb[0].mxu0
      %v865 = vadd.f32 0.0, %v864
      %v866 = vpop.f32.mrb[0].mxu0
      %v867 = vpop.f32.mrb[0].mxu0
      %v868 = vadd.f32 0.0, %v867
      %v869 = vpop.f32.mrb[0].mxu0
      %870 = vmatprep.mubr.bf16.mxu0 0
      %871 = vmatmul.mubr.bf16.gmra.mrb[0].mxu0 %v743
      %v872 = vpop.f32.mrb[0].mxu0
      %v873 = vadd.f32 0.0, %v872
      %v874 = vpop.f32.mrb[0].mxu0
      %v875 = vpop.f32.mrb[0].mxu0
      %v876 = vadd.f32 0.0, %v875
      %v877 = vpop.f32.mrb[0].mxu0
      %878 = vmatprep.mubr.bf16.mxu0 0
      %879 = vmatmul.mubr.bf16.gmra.mrb[0].mxu0 %v744
      %v880 = vpop.f32.mrb[0].mxu0
      %v881 = vadd.f32 0.0, %v880
      %v882 = vpop.f32.mrb[0].mxu0
      %v883 = vpop.f32.mrb[0].mxu0
      %v884 = vadd.f32 0.0, %v883
      %v885 = vpop.f32.mrb[0].mxu0
      %886 = vmatprep.mubr.bf16.mxu0 0
      %887 = vmatmul.mubr.bf16.gmra.mrb[0].mxu0 %v745
      %v888 = vpop.f32.mrb[0].mxu0
      %v889 = vadd.f32 0.0, %v888
      %v890 = vpop.f32.mrb[0].mxu0
      %v891 = vpop.f32.mrb[0].mxu0
      %v892 = vadd.f32 0.0, %v891
      %v893 = vpop.f32.mrb[0].mxu0
      %894 = vmatprep.mubr.bf16.mxu0 0
      %895 = vmatmul.mubr.bf16.gmra.mrb[0].mxu0 %v746
      %v896 = vpop.f32.mrb[0].mxu0
      %v897 = vadd.f32 0.0, %v896
      %v898 = vpop.f32.mrb[0].mxu0
      %v899 = vpop.f32.mrb[0].mxu0
      %v900 = vadd.f32 0.0, %v899
      %v901 = vpop.f32.mrb[0].mxu0
      %902 = vmatprep.mubr.bf16.mxu0 0
      %903 = vmatmul.mubr.bf16.gmra.mrb[0].mxu0 %v747
      %v904 = vpop.f32.mrb[0].mxu0
      %v905 = vadd.f32 0.0, %v904
      %v906 = vpop.f32.mrb[0].mxu0
      %v907 = vpop.f32.mrb[0].mxu0
      %v908 = vadd.f32 0.0, %v907
      %v909 = vpop.f32.mrb[0].mxu0
      %910 = vmatprep.mubr.bf16.mxu0 0
      %911 = vmatmul.mubr.bf16.gmra.mrb[0].mxu0 %v748
      %v912 = vpop.f32.mrb[0].mxu0
      %v913 = vadd.f32 0.0, %v912
      %v914 = vpop.f32.mrb[0].mxu0
      %v915 = vpop.f32.mrb[0].mxu0
      %v916 = vadd.f32 0.0, %v915
      %v917 = vpop.f32.mrb[0].mxu0
      %918 = vmatprep.mubr.bf16.mxu0 0
      %919 = vmatmul.mubr.bf16.gmra.mrb[0].mxu0 %v749
      %v920 = vpop.f32.mrb[0].mxu0
      %v921 = vadd.f32 0.0, %v920
      %v922 = vpop.f32.mrb[0].mxu0
      %v923 = vpop.f32.mrb[0].mxu0
      %v924 = vadd.f32 0.0, %v923
      %v925 = vpop.f32.mrb[0].mxu0
      %926 = vmatprep.mubr.bf16.mxu0 0
      %927 = vmatmul.mubr.bf16.gmra.mrb[0].mxu0 %v750
      %v928 = vpop.f32.mrb[0].mxu0
      %v929 = vadd.f32 0.0, %v928
      %v930 = vpop.f32.mrb[0].mxu0
      %v931 = vpop.f32.mrb[0].mxu0
      %v932 = vadd.f32 0.0, %v931
      %v933 = vpop.f32.mrb[0].mxu0
      %934 = vmatprep.mubr.bf16.mxu0 0
      %935 = vmatmul.mubr.bf16.gmra.mrb[0].mxu0 %v751
      %v936 = vpop.f32.mrb[0].mxu0
      %v937 = vadd.f32 0.0, %v936
      %v938 = vpop.f32.mrb[0].mxu0
      %v939 = vpop.f32.mrb[0].mxu0
      %v940 = vadd.f32 0.0, %v939
      %v941 = vpop.f32.mrb[0].mxu0
      %942 = vmatprep.mubr.bf16.mxu0 0
      %943 = vmatmul.mubr.bf16.gmra.mrb[0].mxu0 %v752
      %v944 = vpop.f32.mrb[0].mxu0
      %v945 = vadd.f32 0.0, %v944
      %v946 = vpop.f32.mrb[0].mxu0
      %v947 = vpop.f32.mrb[0].mxu0
      %v948 = vadd.f32 0.0, %v947
      %v949 = vpop.f32.mrb[0].mxu0
      %950 = vmatprep.mubr.bf16.mxu0 0
      %951 = vmatmul.mubr.bf16.gmra.mrb[0].mxu0 %v753
      %v952 = vpop.f32.mrb[0].mxu0
      %v953 = vadd.f32 0.0, %v952
      %v954 = vpop.f32.mrb[0].mxu0
      %v955 = vpop.f32.mrb[0].mxu0
      %v956 = vadd.f32 0.0, %v955
      %v957 = vpop.f32.mrb[0].mxu0
      %958 = vmatprep.mubr.bf16.mxu0 0
      %959 = vmatmul.mubr.bf16.gmra.mrb[0].mxu0 %v754
      %v960 = vpop.f32.mrb[0].mxu0
      %v961 = vadd.f32 0.0, %v960
      %v962 = vpop.f32.mrb[0].mxu0
      %v963 = vpop.f32.mrb[0].mxu0
      %v964 = vadd.f32 0.0, %v963
      %v965 = vpop.f32.mrb[0].mxu0
      %966 = vmatprep.mubr.bf16.mxu0 0
      %967 = vmatmul.mubr.bf16.gmra.mrb[0].mxu0 %v755
      %v968 = vpop.f32.mrb[0].mxu0
      %v969 = vadd.f32 0.0, %v968
      %v970 = vpop.f32.mrb[0].mxu0
      %v971 = vpop.f32.mrb[0].mxu0
      %v972 = vadd.f32 0.0, %v971
      %v973 = vpop.f32.mrb[0].mxu0
      %974 = vmatprep.mubr.bf16.mxu0 0
      %975 = vmatmul.mubr.bf16.gmra.mrb[0].mxu0 %v756
      %v976 = vpop.f32.mrb[0].mxu0
      %v977 = vadd.f32 0.0, %v976
      %v978 = vpop.f32.mrb[0].mxu0
      %v979 = vpop.f32.mrb[0].mxu0
      %v980 = vadd.f32 0.0, %v979
      %v981 = vpop.f32.mrb[0].mxu0
      %982 = vdwg.mxu0
      %v999 = vunpack.c.l.b16 %v692
      %v1000 = vunpack.c.l.b16 %v693
      %v1001 = vunpack.c.l.b16 %v694
      %v1002 = vunpack.c.l.b16 %v695
      %v1003 = vunpack.c.l.b16 %v696
      %v1004 = vunpack.c.l.b16 %v697
      %v1005 = vunpack.c.l.b16 %v698
      %v1006 = vunpack.c.l.b16 %v699
      %v1007 = vunpack.c.l.b16 %v700
      %v1008 = vunpack.c.l.b16 %v701
      %v1009 = vunpack.c.l.b16 %v702
      %v1010 = vunpack.c.l.b16 %v703
      %v1011 = vunpack.c.l.b16 %v704
      %v1012 = vunpack.c.l.b16 %v705
      %v1013 = vunpack.c.l.b16 %v706
      %v1014 = vunpack.c.l.b16 %v707
      %v1015 = vpack.c.b16 %v1000, %v999
      %v1016 = vpack.c.b16 %v1002, %v1001
      %v1017 = vpack.c.b16 %v1004, %v1003
      %v1018 = vpack.c.b16 %v1006, %v1005
      %v1019 = vpack.c.b16 %v1008, %v1007
      %v1020 = vpack.c.b16 %v1010, %v1009
      %v1021 = vpack.c.b16 %v1012, %v1011
      %v1022 = vpack.c.b16 %v1014, %v1013
      %1031 = vmatprep.subr.bf16.mxu0 0
      %1032 = vmatpush1.bf16.msra.mxu0 %v1015
      %1033 = vmatprep.subr.bf16.mxu0 0
      %1034 = vmatpush1.bf16.msra.mxu0 %v1016
      %1035 = vmatprep.subr.bf16.mxu0 0
      %1036 = vmatpush1.bf16.msra.mxu0 %v1017
      %1037 = vmatprep.subr.bf16.mxu0 0
      %1038 = vmatpush1.bf16.msra.mxu0 %v1018
      %1039 = vmatprep.subr.bf16.mxu0 0
      %1040 = vmatpush1.bf16.msra.mxu0 %v1019
      %1041 = vmatprep.subr.bf16.mxu0 0
      %1042 = vmatpush1.bf16.msra.mxu0 %v1020
      %1043 = vmatprep.subr.bf16.mxu0 0
      %1044 = vmatpush1.bf16.msra.mxu0 %v1021
      %1045 = vmatprep.subr.bf16.mxu0 0
      %1046 = vmatpush1.bf16.msra.mxu0 %v1022
      %1047 = vmatprep.subr.bf16.mxu0 0
      %1048 = vmatpush1.bf16.msra.mxu0 0
      %1049 = vmatprep.subr.bf16.mxu0 0
      %1050 = vmatpush1.bf16.msra.mxu0 0
      %1051 = vmatprep.subr.bf16.mxu0 0
      %1052 = vmatpush1.bf16.msra.mxu0 0
      %1053 = vmatprep.subr.bf16.mxu0 0
      %1054 = vmatpush1.bf16.msra.mxu0 0
      %1055 = vmatprep.subr.bf16.mxu0 0
      %1056 = vmatpush1.bf16.msra.mxu0 0
      %1057 = vmatprep.subr.bf16.mxu0 0
      %1058 = vmatpush1.bf16.msra.mxu0 0
      %1059 = vmatprep.subr.bf16.mxu0 0
      %1060 = vmatpush1.bf16.msra.mxu0 0
      %1061 = vmatprep.subr.bf16.mxu0 0
      %1062 = vmatpush1.bf16.msra.mxu0 0
      %1063 = vmatprep.mubr.bf16.mxu0 0
      %1064 = vmatmul.mubr.bf16.gmra.mrb[0].mxu0 %v676
      %v1065 = vpop.f32.mrb[0].mxu0
      %v1066 = vadd.f32 %v857, %v1065
      %v1067 = vpop.f32.mrb[0].mxu0
      %v1068 = vpop.f32.mrb[0].mxu0
      %v1069 = vadd.f32 %v860, %v1068
      %v1070 = vpop.f32.mrb[0].mxu0
      %1071 = vmatprep.mubr.bf16.mxu0 0
      %1072 = vmatmul.mubr.bf16.gmra.mrb[0].mxu0 %v677
      %v1073 = vpop.f32.mrb[0].mxu0
      %v1074 = vadd.f32 %v865, %v1073
      %v1075 = vpop.f32.mrb[0].mxu0
      %v1076 = vpop.f32.mrb[0].mxu0
      %v1077 = vadd.f32 %v868, %v1076
      %v1078 = vpop.f32.mrb[0].mxu0
      %1079 = vmatprep.mubr.bf16.mxu0 0
      %1080 = vmatmul.mubr.bf16.gmra.mrb[0].mxu0 %v678
      %v1081 = vpop.f32.mrb[0].mxu0
      %v1082 = vadd.f32 %v873, %v1081
      %v1083 = vpop.f32.mrb[0].mxu0
      %v1084 = vpop.f32.mrb[0].mxu0
      %v1085 = vadd.f32 %v876, %v1084
      %v1086 = vpop.f32.mrb[0].mxu0
      %1087 = vmatprep.mubr.bf16.mxu0 0
      %1088 = vmatmul.mubr.bf16.gmra.mrb[0].mxu0 %v679
      %v1089 = vpop.f32.mrb[0].mxu0
      %v1090 = vadd.f32 %v881, %v1089
      %v1091 = vpop.f32.mrb[0].mxu0
      %v1092 = vpop.f32.mrb[0].mxu0
      %v1093 = vadd.f32 %v884, %v1092
      %v1094 = vpop.f32.mrb[0].mxu0
      %1095 = vmatprep.mubr.bf16.mxu0 0
      %1096 = vmatmul.mubr.bf16.gmra.mrb[0].mxu0 %v680
      %v1097 = vpop.f32.mrb[0].mxu0
      %v1098 = vadd.f32 %v889, %v1097
      %v1099 = vpop.f32.mrb[0].mxu0
      %v1100 = vpop.f32.mrb[0].mxu0
      %v1101 = vadd.f32 %v892, %v1100
      %v1102 = vpop.f32.mrb[0].mxu0
      %1103 = vmatprep.mubr.bf16.mxu0 0
      %1104 = vmatmul.mubr.bf16.gmra.mrb[0].mxu0 %v681
      %v1105 = vpop.f32.mrb[0].mxu0
      %v1106 = vadd.f32 %v897, %v1105
      %v1107 = vpop.f32.mrb[0].mxu0
      %v1108 = vpop.f32.mrb[0].mxu0
      %v1109 = vadd.f32 %v900, %v1108
      %v1110 = vpop.f32.mrb[0].mxu0
      %1111 = vmatprep.mubr.bf16.mxu0 0
      %1112 = vmatmul.mubr.bf16.gmra.mrb[0].mxu0 %v682
      %v1113 = vpop.f32.mrb[0].mxu0
      %v1114 = vadd.f32 %v905, %v1113
      %v1115 = vpop.f32.mrb[0].mxu0
      %v1116 = vpop.f32.mrb[0].mxu0
      %v1117 = vadd.f32 %v908, %v1116
      %v1118 = vpop.f32.mrb[0].mxu0
      %1119 = vmatprep.mubr.bf16.mxu0 0
      %1120 = vmatmul.mubr.bf16.gmra.mrb[0].mxu0 %v683
      %v1121 = vpop.f32.mrb[0].mxu0
      %v1122 = vadd.f32 %v913, %v1121
      %v1123 = vpop.f32.mrb[0].mxu0
      %v1124 = vpop.f32.mrb[0].mxu0
      %v1125 = vadd.f32 %v916, %v1124
      %v1126 = vpop.f32.mrb[0].mxu0
      %1127 = vmatprep.mubr.bf16.mxu0 0
      %1128 = vmatmul.mubr.bf16.gmra.mrb[0].mxu0 %v684
      %v1129 = vpop.f32.mrb[0].mxu0
      %v1130 = vadd.f32 %v921, %v1129
      %v1131 = vpop.f32.mrb[0].mxu0
      %v1132 = vpop.f32.mrb[0].mxu0
      %v1133 = vadd.f32 %v924, %v1132
      %v1134 = vpop.f32.mrb[0].mxu0
      %1135 = vmatprep.mubr.bf16.mxu0 0
      %1136 = vmatmul.mubr.bf16.gmra.mrb[0].mxu0 %v685
      %v1137 = vpop.f32.mrb[0].mxu0
      %v1138 = vadd.f32 %v929, %v1137
      %v1139 = vpop.f32.mrb[0].mxu0
      %v1140 = vpop.f32.mrb[0].mxu0
      %v1141 = vadd.f32 %v932, %v1140
      %v1142 = vpop.f32.mrb[0].mxu0
      %1143 = vmatprep.mubr.bf16.mxu0 0
      %1144 = vmatmul.mubr.bf16.gmra.mrb[0].mxu0 %v686
      %v1145 = vpop.f32.mrb[0].mxu0
      %v1146 = vadd.f32 %v937, %v1145
      %v1147 = vpop.f32.mrb[0].mxu0
      %v1148 = vpop.f32.mrb[0].mxu0
      %v1149 = vadd.f32 %v940, %v1148
      %v1150 = vpop.f32.mrb[0].mxu0
      %1151 = vmatprep.mubr.bf16.mxu0 0
      %1152 = vmatmul.mubr.bf16.gmra.mrb[0].mxu0 %v687
      %v1153 = vpop.f32.mrb[0].mxu0
      %v1154 = vadd.f32 %v945, %v1153
      %v1155 = vpop.f32.mrb[0].mxu0
      %v1156 = vpop.f32.mrb[0].mxu0
      %v1157 = vadd.f32 %v948, %v1156
      %v1158 = vpop.f32.mrb[0].mxu0
      %1159 = vmatprep.mubr.bf16.mxu0 0
      %1160 = vmatmul.mubr.bf16.gmra.mrb[0].mxu0 %v688
      %v1161 = vpop.f32.mrb[0].mxu0
      %v1162 = vadd.f32 %v953, %v1161
      %v1163 = vpop.f32.mrb[0].mxu0
      %v1164 = vpop.f32.mrb[0].mxu0
      %v1165 = vadd.f32 %v956, %v1164
      %v1166 = vpop.f32.mrb[0].mxu0
      %1167 = vmatprep.mubr.bf16.mxu0 0
      %1168 = vmatmul.mubr.bf16.gmra.mrb[0].mxu0 %v689
      %v1169 = vpop.f32.mrb[0].mxu0
      %v1170 = vadd.f32 %v961, %v1169
      %v1171 = vpop.f32.mrb[0].mxu0
      %v1172 = vpop.f32.mrb[0].mxu0
      %v1173 = vadd.f32 %v964, %v1172
      %v1174 = vpop.f32.mrb[0].mxu0
      %1175 = vmatprep.mubr.bf16.mxu0 0
      %1176 = vmatmul.mubr.bf16.gmra.mrb[0].mxu0 %v690
      %v1177 = vpop.f32.mrb[0].mxu0
      %v1178 = vadd.f32 %v969, %v1177
      %v1179 = vpop.f32.mrb[0].mxu0
      %v1180 = vpop.f32.mrb[0].mxu0
      %v1181 = vadd.f32 %v972, %v1180
      %v1182 = vpop.f32.mrb[0].mxu0
      %1183 = vmatprep.mubr.bf16.mxu0 0
      %1184 = vmatmul.mubr.bf16.gmra.mrb[0].mxu0 %v691
      %v1185 = vpop.f32.mrb[0].mxu0
      %v1186 = vadd.f32 %v977, %v1185
      %v1187 = vpop.f32.mrb[0].mxu0
      %v1188 = vpop.f32.mrb[0].mxu0
      %v1189 = vadd.f32 %v980, %v1188
      %v1190 = vpop.f32.mrb[0].mxu0
      %1191 = vdwg.mxu0
      %v1192 = vld [vmem:[%s643 + $0x1] sm:$0xff]
      %v1193 = vld [vmem:[%s643 + $0x9] sm:$0xff]
      %v1194 = vld [vmem:[%s643 + $0x19] sm:$0xff]
      %v1195 = vld [vmem:[%s643 + $0x21] sm:$0xff]
      %v1196 = vld [vmem:[%s643 + $0x31] sm:$0xff]
      %v1197 = vld [vmem:[%s643 + $0x39] sm:$0xff]
      %v1198 = vld [vmem:[%s643 + $0x49] sm:$0xff]
      %v1199 = vld [vmem:[%s643 + $0x51] sm:$0xff]
      %v1200 = vld [vmem:[%s643 + $0x61] sm:$0xff]
      %v1201 = vld [vmem:[%s643 + $0x69] sm:$0xff]
      %v1202 = vld [vmem:[%s643 + $0x79] sm:$0xff]
      %v1203 = vld [vmem:[%s643 + $0x81] sm:$0xff]
      %v1204 = vld [vmem:[%s643 + $0x91] sm:$0xff]
      %v1205 = vld [vmem:[%s643 + $0x99] sm:$0xff]
      %v1206 = vld [vmem:[%s643 + $0xa9] sm:$0xff]
      %v1207 = vld [vmem:[%s643 + $0xb1] sm:$0xff]
      %v1208 = vld [vmem:[%s643 + $0xc1] sm:$0xff]
      %v1209 = vld [vmem:[%s643 + $0xc9] sm:$0xff]
      %v1210 = vld [vmem:[%s643 + $0xd9] sm:$0xff]
      %v1211 = vld [vmem:[%s643 + $0xe1] sm:$0xff]
      %v1212 = vld [vmem:[%s643 + $0xf1] sm:$0xff]
      %v1213 = vld [vmem:[%s643 + $0xf9] sm:$0xff]
      %v1214 = vld [vmem:[%s643 + $0x109] sm:$0xff]
      %v1215 = vld [vmem:[%s643 + $0x111] sm:$0xff]
      %v1216 = vld [vmem:[%s643 + $0x121] sm:$0xff]
      %v1217 = vld [vmem:[%s643 + $0x129] sm:$0xff]
      %v1218 = vld [vmem:[%s643 + $0x139] sm:$0xff]
      %v1219 = vld [vmem:[%s643 + $0x141] sm:$0xff]
      %v1220 = vld [vmem:[%s643 + $0x151] sm:$0xff]
      %v1221 = vld [vmem:[%s643 + $0x159] sm:$0xff]
      %v1222 = vld [vmem:[%s643 + $0x169] sm:$0xff]
      %v1223 = vld [vmem:[%s643 + $0x171] sm:$0xff]
      %v1224 = vpack.c.bf16 %v1193, %v1192
      %v1225 = vpack.c.bf16 %v1195, %v1194
      %v1226 = vpack.c.bf16 %v1197, %v1196
      %v1227 = vpack.c.bf16 %v1199, %v1198
      %v1228 = vpack.c.bf16 %v1201, %v1200
      %v1229 = vpack.c.bf16 %v1203, %v1202
      %v1230 = vpack.c.bf16 %v1205, %v1204
      %v1231 = vpack.c.bf16 %v1207, %v1206
      %v1232 = vpack.c.bf16 %v1209, %v1208
      %v1233 = vpack.c.bf16 %v1211, %v1210
      %v1234 = vpack.c.bf16 %v1213, %v1212
      %v1235 = vpack.c.bf16 %v1215, %v1214
      %v1236 = vpack.c.bf16 %v1217, %v1216
      %v1237 = vpack.c.bf16 %v1219, %v1218
      %v1238 = vpack.c.bf16 %v1221, %v1220
      %v1239 = vpack.c.bf16 %v1223, %v1222
      %s1240 = scalar_lea.vmem %s1, 128
      %v1241 = vld [vmem:[%s1240] sm:$0xf]
      %v1242 = vld [vmem:[%s1240 + $0x4] sm:$0xf]
      %v1243 = vld [vmem:[%s1240 + $0x8] sm:$0xf]
      %v1244 = vld [vmem:[%s1240 + $0xc] sm:$0xf]
      %v1245 = vld [vmem:[%s1240 + $0x10] sm:$0xf]
      %v1246 = vld [vmem:[%s1240 + $0x14] sm:$0xf]
      %v1247 = vld [vmem:[%s1240 + $0x18] sm:$0xf]
      %v1248 = vld [vmem:[%s1240 + $0x1c] sm:$0xf]
      %v1249 = vld [vmem:[%s1240 + $0x20] sm:$0xf]
      %v1250 = vld [vmem:[%s1240 + $0x24] sm:$0xf]
      %v1251 = vld [vmem:[%s1240 + $0x28] sm:$0xf]
      %v1252 = vld [vmem:[%s1240 + $0x2c] sm:$0xf]
      %v1253 = vld [vmem:[%s1240 + $0x30] sm:$0xf]
      %v1254 = vld [vmem:[%s1240 + $0x34] sm:$0xf]
      %v1255 = vld [vmem:[%s1240 + $0x38] sm:$0xf]
      %v1256 = vld [vmem:[%s1240 + $0x3c] sm:$0xf]
      %v1273 = vunpack.c.l.b16 %v1241
      %v1274 = vunpack.c.l.b16 %v1242
      %v1275 = vunpack.c.l.b16 %v1243
      %v1276 = vunpack.c.l.b16 %v1244
      %v1277 = vunpack.c.l.b16 %v1245
      %v1278 = vunpack.c.l.b16 %v1246
      %v1279 = vunpack.c.l.b16 %v1247
      %v1280 = vunpack.c.l.b16 %v1248
      %v1281 = vunpack.c.l.b16 %v1249
      %v1282 = vunpack.c.l.b16 %v1250
      %v1283 = vunpack.c.l.b16 %v1251
      %v1284 = vunpack.c.l.b16 %v1252
      %v1285 = vunpack.c.l.b16 %v1253
      %v1286 = vunpack.c.l.b16 %v1254
      %v1287 = vunpack.c.l.b16 %v1255
      %v1288 = vunpack.c.l.b16 %v1256
      %v1289 = vpack.c.b16 %v1274, %v1273
      %v1290 = vpack.c.b16 %v1276, %v1275
      %v1291 = vpack.c.b16 %v1278, %v1277
      %v1292 = vpack.c.b16 %v1280, %v1279
      %v1293 = vpack.c.b16 %v1282, %v1281
      %v1294 = vpack.c.b16 %v1284, %v1283
      %v1295 = vpack.c.b16 %v1286, %v1285
      %v1296 = vpack.c.b16 %v1288, %v1287
      %1305 = vmatprep.subr.bf16.mxu0 0
      %1306 = vmatpush1.bf16.msra.mxu0 %v1289
      %1307 = vmatprep.subr.bf16.mxu0 0
      %1308 = vmatpush1.bf16.msra.mxu0 %v1290
      %1309 = vmatprep.subr.bf16.mxu0 0
      %1310 = vmatpush1.bf16.msra.mxu0 %v1291
      %1311 = vmatprep.subr.bf16.mxu0 0
      %1312 = vmatpush1.bf16.msra.mxu0 %v1292
      %1313 = vmatprep.subr.bf16.mxu0 0
      %1314 = vmatpush1.bf16.msra.mxu0 %v1293
      %1315 = vmatprep.subr.bf16.mxu0 0
      %1316 = vmatpush1.bf16.msra.mxu0 %v1294
      %1317 = vmatprep.subr.bf16.mxu0 0
      %1318 = vmatpush1.bf16.msra.mxu0 %v1295
      %1319 = vmatprep.subr.bf16.mxu0 0
      %1320 = vmatpush1.bf16.msra.mxu0 %v1296
      %1321 = vmatprep.subr.bf16.mxu0 0
      %1322 = vmatpush1.bf16.msra.mxu0 0
      %1323 = vmatprep.subr.bf16.mxu0 0
      %1324 = vmatpush1.bf16.msra.mxu0 0
      %1325 = vmatprep.subr.bf16.mxu0 0
      %1326 = vmatpush1.bf16.msra.mxu0 0
      %1327 = vmatprep.subr.bf16.mxu0 0
      %1328 = vmatpush1.bf16.msra.mxu0 0
      %1329 = vmatprep.subr.bf16.mxu0 0
      %1330 = vmatpush1.bf16.msra.mxu0 0
      %1331 = vmatprep.subr.bf16.mxu0 0
      %1332 = vmatpush1.bf16.msra.mxu0 0
      %1333 = vmatprep.subr.bf16.mxu0 0
      %1334 = vmatpush1.bf16.msra.mxu0 0
      %1335 = vmatprep.subr.bf16.mxu0 0
      %1336 = vmatpush1.bf16.msra.mxu0 0
      %1337 = vmatprep.mubr.bf16.mxu0 0
      %1338 = vmatmul.mubr.bf16.gmra.mrb[0].mxu0 %v1224
      %v1339 = vpop.f32.mrb[0].mxu0
      %v1340 = vadd.f32 0.0, %v1339
      %v1341 = vpop.f32.mrb[0].mxu0
      %v1342 = vpop.f32.mrb[0].mxu0
      %v1343 = vadd.f32 0.0, %v1342
      %v1344 = vpop.f32.mrb[0].mxu0
      %1345 = vmatprep.mubr.bf16.mxu0 0
      %1346 = vmatmul.mubr.bf16.gmra.mrb[0].mxu0 %v1225
      %v1347 = vpop.f32.mrb[0].mxu0
      %v1348 = vadd.f32 0.0, %v1347
      %v1349 = vpop.f32.mrb[0].mxu0
      %v1350 = vpop.f32.mrb[0].mxu0
      %v1351 = vadd.f32 0.0, %v1350
      %v1352 = vpop.f32.mrb[0].mxu0
      %1353 = vmatprep.mubr.bf16.mxu0 0
      %1354 = vmatmul.mubr.bf16.gmra.mrb[0].mxu0 %v1226
      %v1355 = vpop.f32.mrb[0].mxu0
      %v1356 = vadd.f32 0.0, %v1355
      %v1357 = vpop.f32.mrb[0].mxu0
      %v1358 = vpop.f32.mrb[0].mxu0
      %v1359 = vadd.f32 0.0, %v1358
      %v1360 = vpop.f32.mrb[0].mxu0
      %1361 = vmatprep.mubr.bf16.mxu0 0
      %1362 = vmatmul.mubr.bf16.gmra.mrb[0].mxu0 %v1227
      %v1363 = vpop.f32.mrb[0].mxu0
      %v1364 = vadd.f32 0.0, %v1363
      %v1365 = vpop.f32.mrb[0].mxu0
      %v1366 = vpop.f32.mrb[0].mxu0
      %v1367 = vadd.f32 0.0, %v1366
      %v1368 = vpop.f32.mrb[0].mxu0
      %1369 = vmatprep.mubr.bf16.mxu0 0
      %1370 = vmatmul.mubr.bf16.gmra.mrb[0].mxu0 %v1228
      %v1371 = vpop.f32.mrb[0].mxu0
      %v1372 = vadd.f32 0.0, %v1371
      %v1373 = vpop.f32.mrb[0].mxu0
      %v1374 = vpop.f32.mrb[0].mxu0
      %v1375 = vadd.f32 0.0, %v1374
      %v1376 = vpop.f32.mrb[0].mxu0
      %1377 = vmatprep.mubr.bf16.mxu0 0
      %1378 = vmatmul.mubr.bf16.gmra.mrb[0].mxu0 %v1229
      %v1379 = vpop.f32.mrb[0].mxu0
      %v1380 = vadd.f32 0.0, %v1379
      %v1381 = vpop.f32.mrb[0].mxu0
      %v1382 = vpop.f32.mrb[0].mxu0
      %v1383 = vadd.f32 0.0, %v1382
      %v1384 = vpop.f32.mrb[0].mxu0
      %1385 = vmatprep.mubr.bf16.mxu0 0
      %1386 = vmatmul.mubr.bf16.gmra.mrb[0].mxu0 %v1230
      %v1387 = vpop.f32.mrb[0].mxu0
      %v1388 = vadd.f32 0.0, %v1387
      %v1389 = vpop.f32.mrb[0].mxu0
      %v1390 = vpop.f32.mrb[0].mxu0
      %v1391 = vadd.f32 0.0, %v1390
      %v1392 = vpop.f32.mrb[0].mxu0
      %1393 = vmatprep.mubr.bf16.mxu0 0
      %1394 = vmatmul.mubr.bf16.gmra.mrb[0].mxu0 %v1231
      %v1395 = vpop.f32.mrb[0].mxu0
      %v1396 = vadd.f32 0.0, %v1395
      %v1397 = vpop.f32.mrb[0].mxu0
      %v1398 = vpop.f32.mrb[0].mxu0
      %v1399 = vadd.f32 0.0, %v1398
      %v1400 = vpop.f32.mrb[0].mxu0
      %1401 = vmatprep.mubr.bf16.mxu0 0
      %1402 = vmatmul.mubr.bf16.gmra.mrb[0].mxu0 %v1232
      %v1403 = vpop.f32.mrb[0].mxu0
      %v1404 = vadd.f32 0.0, %v1403
      %v1405 = vpop.f32.mrb[0].mxu0
      %v1406 = vpop.f32.mrb[0].mxu0
      %v1407 = vadd.f32 0.0, %v1406
      %v1408 = vpop.f32.mrb[0].mxu0
      %1409 = vmatprep.mubr.bf16.mxu0 0
      %1410 = vmatmul.mubr.bf16.gmra.mrb[0].mxu0 %v1233
      %v1411 = vpop.f32.mrb[0].mxu0
      %v1412 = vadd.f32 0.0, %v1411
      %v1413 = vpop.f32.mrb[0].mxu0
      %v1414 = vpop.f32.mrb[0].mxu0
      %v1415 = vadd.f32 0.0, %v1414
      %v1416 = vpop.f32.mrb[0].mxu0
      %1417 = vmatprep.mubr.bf16.mxu0 0
      %1418 = vmatmul.mubr.bf16.gmra.mrb[0].mxu0 %v1234
      %v1419 = vpop.f32.mrb[0].mxu0
      %v1420 = vadd.f32 0.0, %v1419
      %v1421 = vpop.f32.mrb[0].mxu0
      %v1422 = vpop.f32.mrb[0].mxu0
      %v1423 = vadd.f32 0.0, %v1422
      %v1424 = vpop.f32.mrb[0].mxu0
      %1425 = vmatprep.mubr.bf16.mxu0 0
      %1426 = vmatmul.mubr.bf16.gmra.mrb[0].mxu0 %v1235
      %v1427 = vpop.f32.mrb[0].mxu0
      %v1428 = vadd.f32 0.0, %v1427
      %v1429 = vpop.f32.mrb[0].mxu0
      %v1430 = vpop.f32.mrb[0].mxu0
      %v1431 = vadd.f32 0.0, %v1430
      %v1432 = vpop.f32.mrb[0].mxu0
      %1433 = vmatprep.mubr.bf16.mxu0 0
      %1434 = vmatmul.mubr.bf16.gmra.mrb[0].mxu0 %v1236
      %v1435 = vpop.f32.mrb[0].mxu0
      %v1436 = vadd.f32 0.0, %v1435
      %v1437 = vpop.f32.mrb[0].mxu0
      %v1438 = vpop.f32.mrb[0].mxu0
      %v1439 = vadd.f32 0.0, %v1438
      %v1440 = vpop.f32.mrb[0].mxu0
      %1441 = vmatprep.mubr.bf16.mxu0 0
      %1442 = vmatmul.mubr.bf16.gmra.mrb[0].mxu0 %v1237
      %v1443 = vpop.f32.mrb[0].mxu0
      %v1444 = vadd.f32 0.0, %v1443
      %v1445 = vpop.f32.mrb[0].mxu0
      %v1446 = vpop.f32.mrb[0].mxu0
      %v1447 = vadd.f32 0.0, %v1446
      %v1448 = vpop.f32.mrb[0].mxu0
      %1449 = vmatprep.mubr.bf16.mxu0 0
      %1450 = vmatmul.mubr.bf16.gmra.mrb[0].mxu0 %v1238
      %v1451 = vpop.f32.mrb[0].mxu0
      %v1452 = vadd.f32 0.0, %v1451
      %v1453 = vpop.f32.mrb[0].mxu0
      %v1454 = vpop.f32.mrb[0].mxu0
      %v1455 = vadd.f32 0.0, %v1454
      %v1456 = vpop.f32.mrb[0].mxu0
      %1457 = vmatprep.mubr.bf16.mxu0 0
      %1458 = vmatmul.mubr.bf16.gmra.mrb[0].mxu0 %v1239
      %v1459 = vpop.f32.mrb[0].mxu0
      %v1460 = vadd.f32 0.0, %v1459
      %v1461 = vpop.f32.mrb[0].mxu0
      %v1462 = vpop.f32.mrb[0].mxu0
      %v1463 = vadd.f32 0.0, %v1462
      %v1464 = vpop.f32.mrb[0].mxu0
      %1465 = vdwg.mxu0
      %v1466 = vadd.f32 %v1066, %v1340
      %v1467 = vadd.f32 %v1069, %v1343
      %v1468 = vadd.f32 %v1074, %v1348
      %v1469 = vadd.f32 %v1077, %v1351
      %v1470 = vadd.f32 %v1082, %v1356
      %v1471 = vadd.f32 %v1085, %v1359
      %v1472 = vadd.f32 %v1090, %v1364
      %v1473 = vadd.f32 %v1093, %v1367
      %v1474 = vadd.f32 %v1098, %v1372
      %v1475 = vadd.f32 %v1101, %v1375
      %v1476 = vadd.f32 %v1106, %v1380
      %v1477 = vadd.f32 %v1109, %v1383
      %v1478 = vadd.f32 %v1114, %v1388
      %v1479 = vadd.f32 %v1117, %v1391
      %v1480 = vadd.f32 %v1122, %v1396
      %v1481 = vadd.f32 %v1125, %v1399
      %v1482 = vadd.f32 %v1130, %v1404
      %v1483 = vadd.f32 %v1133, %v1407
      %v1484 = vadd.f32 %v1138, %v1412
      %v1485 = vadd.f32 %v1141, %v1415
      %v1486 = vadd.f32 %v1146, %v1420
      %v1487 = vadd.f32 %v1149, %v1423
      %v1488 = vadd.f32 %v1154, %v1428
      %v1489 = vadd.f32 %v1157, %v1431
      %v1490 = vadd.f32 %v1162, %v1436
      %v1491 = vadd.f32 %v1165, %v1439
      %v1492 = vadd.f32 %v1170, %v1444
      %v1493 = vadd.f32 %v1173, %v1447
      %v1494 = vadd.f32 %v1178, %v1452
      %v1495 = vadd.f32 %v1181, %v1455
      %v1496 = vadd.f32 %v1186, %v1460
      %v1497 = vadd.f32 %v1189, %v1463
      %v1498 = vld [vmem:[%s414] sm:$0xff]
      %v1499 = vld [vmem:[%s414 + $0x8] sm:$0xff]
      %v1500 = vld [vmem:[%s414 + $0x18] sm:$0xff]
      %v1501 = vld [vmem:[%s414 + $0x20] sm:$0xff]
      %v1502 = vld [vmem:[%s414 + $0x30] sm:$0xff]
      %v1503 = vld [vmem:[%s414 + $0x38] sm:$0xff]
      %v1504 = vld [vmem:[%s414 + $0x48] sm:$0xff]
      %v1505 = vld [vmem:[%s414 + $0x50] sm:$0xff]
      %v1506 = vld [vmem:[%s414 + $0x60] sm:$0xff]
      %v1507 = vld [vmem:[%s414 + $0x68] sm:$0xff]
      %v1508 = vld [vmem:[%s414 + $0x78] sm:$0xff]
      %v1509 = vld [vmem:[%s414 + $0x80] sm:$0xff]
      %v1510 = vld [vmem:[%s414 + $0x90] sm:$0xff]
      %v1511 = vld [vmem:[%s414 + $0x98] sm:$0xff]
      %v1512 = vld [vmem:[%s414 + $0xa8] sm:$0xff]
      %v1513 = vld [vmem:[%s414 + $0xb0] sm:$0xff]
      %v1514 = vld [vmem:[%s414 + $0xc0] sm:$0xff]
      %v1515 = vld [vmem:[%s414 + $0xc8] sm:$0xff]
      %v1516 = vld [vmem:[%s414 + $0xd8] sm:$0xff]
      %v1517 = vld [vmem:[%s414 + $0xe0] sm:$0xff]
      %v1518 = vld [vmem:[%s414 + $0xf0] sm:$0xff]
      %v1519 = vld [vmem:[%s414 + $0xf8] sm:$0xff]
      %v1520 = vld [vmem:[%s414 + $0x108] sm:$0xff]
      %v1521 = vld [vmem:[%s414 + $0x110] sm:$0xff]
      %v1522 = vld [vmem:[%s414 + $0x120] sm:$0xff]
      %v1523 = vld [vmem:[%s414 + $0x128] sm:$0xff]
      %v1524 = vld [vmem:[%s414 + $0x138] sm:$0xff]
      %v1525 = vld [vmem:[%s414 + $0x140] sm:$0xff]
      %v1526 = vld [vmem:[%s414 + $0x150] sm:$0xff]
      %v1527 = vld [vmem:[%s414 + $0x158] sm:$0xff]
      %v1528 = vld [vmem:[%s414 + $0x168] sm:$0xff]
      %v1529 = vld [vmem:[%s414 + $0x170] sm:$0xff]
      %v1530 = vpack.c.bf16 %v1499, %v1498
      %v1531 = vpack.c.bf16 %v1501, %v1500
      %v1532 = vpack.c.bf16 %v1503, %v1502
      %v1533 = vpack.c.bf16 %v1505, %v1504
      %v1534 = vpack.c.bf16 %v1507, %v1506
      %v1535 = vpack.c.bf16 %v1509, %v1508
      %v1536 = vpack.c.bf16 %v1511, %v1510
      %v1537 = vpack.c.bf16 %v1513, %v1512
      %v1538 = vpack.c.bf16 %v1515, %v1514
      %v1539 = vpack.c.bf16 %v1517, %v1516
      %v1540 = vpack.c.bf16 %v1519, %v1518
      %v1541 = vpack.c.bf16 %v1521, %v1520
      %v1542 = vpack.c.bf16 %v1523, %v1522
      %v1543 = vpack.c.bf16 %v1525, %v1524
      %v1544 = vpack.c.bf16 %v1527, %v1526
      %v1545 = vpack.c.bf16 %v1529, %v1528
      %s1546 = scalar_lea.vmem %s1, 192
      %v1547 = vld [vmem:[%s1546] sm:$0xf]
      %v1548 = vld [vmem:[%s1546 + $0x4] sm:$0xf]
      %v1549 = vld [vmem:[%s1546 + $0x8] sm:$0xf]
      %v1550 = vld [vmem:[%s1546 + $0xc] sm:$0xf]
      %v1551 = vld [vmem:[%s1546 + $0x10] sm:$0xf]
      %v1552 = vld [vmem:[%s1546 + $0x14] sm:$0xf]
      %v1553 = vld [vmem:[%s1546 + $0x18] sm:$0xf]
      %v1554 = vld [vmem:[%s1546 + $0x1c] sm:$0xf]
      %v1555 = vld [vmem:[%s1546 + $0x20] sm:$0xf]
      %v1556 = vld [vmem:[%s1546 + $0x24] sm:$0xf]
      %v1557 = vld [vmem:[%s1546 + $0x28] sm:$0xf]
      %v1558 = vld [vmem:[%s1546 + $0x2c] sm:$0xf]
      %v1559 = vld [vmem:[%s1546 + $0x30] sm:$0xf]
      %v1560 = vld [vmem:[%s1546 + $0x34] sm:$0xf]
      %v1561 = vld [vmem:[%s1546 + $0x38] sm:$0xf]
      %v1562 = vld [vmem:[%s1546 + $0x3c] sm:$0xf]
      %v1579 = vunpack.c.l.b16 %v1547
      %v1580 = vunpack.c.l.b16 %v1548
      %v1581 = vunpack.c.l.b16 %v1549
      %v1582 = vunpack.c.l.b16 %v1550
      %v1583 = vunpack.c.l.b16 %v1551
      %v1584 = vunpack.c.l.b16 %v1552
      %v1585 = vunpack.c.l.b16 %v1553
      %v1586 = vunpack.c.l.b16 %v1554
      %v1587 = vunpack.c.l.b16 %v1555
      %v1588 = vunpack.c.l.b16 %v1556
      %v1589 = vunpack.c.l.b16 %v1557
      %v1590 = vunpack.c.l.b16 %v1558
      %v1591 = vunpack.c.l.b16 %v1559
      %v1592 = vunpack.c.l.b16 %v1560
      %v1593 = vunpack.c.l.b16 %v1561
      %v1594 = vunpack.c.l.b16 %v1562
      %v1595 = vpack.c.b16 %v1580, %v1579
      %v1596 = vpack.c.b16 %v1582, %v1581
      %v1597 = vpack.c.b16 %v1584, %v1583
      %v1598 = vpack.c.b16 %v1586, %v1585
      %v1599 = vpack.c.b16 %v1588, %v1587
      %v1600 = vpack.c.b16 %v1590, %v1589
      %v1601 = vpack.c.b16 %v1592, %v1591
      %v1602 = vpack.c.b16 %v1594, %v1593
      %1611 = vmatprep.subr.bf16.mxu0 0
      %1612 = vmatpush1.bf16.msra.mxu0 %v1595
      %1613 = vmatprep.subr.bf16.mxu0 0
      %1614 = vmatpush1.bf16.msra.mxu0 %v1596
      %1615 = vmatprep.subr.bf16.mxu0 0
      %1616 = vmatpush1.bf16.msra.mxu0 %v1597
      %1617 = vmatprep.subr.bf16.mxu0 0
      %1618 = vmatpush1.bf16.msra.mxu0 %v1598
      %1619 = vmatprep.subr.bf16.mxu0 0
      %1620 = vmatpush1.bf16.msra.mxu0 %v1599
      %1621 = vmatprep.subr.bf16.mxu0 0
      %1622 = vmatpush1.bf16.msra.mxu0 %v1600
      %1623 = vmatprep.subr.bf16.mxu0 0
      %1624 = vmatpush1.bf16.msra.mxu0 %v1601
      %1625 = vmatprep.subr.bf16.mxu0 0
      %1626 = vmatpush1.bf16.msra.mxu0 %v1602
      %1627 = vmatprep.subr.bf16.mxu0 0
      %1628 = vmatpush1.bf16.msra.mxu0 0
      %1629 = vmatprep.subr.bf16.mxu0 0
      %1630 = vmatpush1.bf16.msra.mxu0 0
      %1631 = vmatprep.subr.bf16.mxu0 0
      %1632 = vmatpush1.bf16.msra.mxu0 0
      %1633 = vmatprep.subr.bf16.mxu0 0
      %1634 = vmatpush1.bf16.msra.mxu0 0
      %1635 = vmatprep.subr.bf16.mxu0 0
      %1636 = vmatpush1.bf16.msra.mxu0 0
      %1637 = vmatprep.subr.bf16.mxu0 0
      %1638 = vmatpush1.bf16.msra.mxu0 0
      %1639 = vmatprep.subr.bf16.mxu0 0
      %1640 = vmatpush1.bf16.msra.mxu0 0
      %1641 = vmatprep.subr.bf16.mxu0 0
      %1642 = vmatpush1.bf16.msra.mxu0 0
      %1643 = vmatprep.mubr.bf16.mxu0 0
      %1644 = vmatmul.mubr.bf16.gmra.mrb[0].mxu0 %v1530
      %v1645 = vpop.f32.mrb[0].mxu0
      %v1646 = vadd.f32 0.0, %v1645
      %v1647 = vpop.f32.mrb[0].mxu0
      %v1648 = vpop.f32.mrb[0].mxu0
      %v1649 = vadd.f32 0.0, %v1648
      %v1650 = vpop.f32.mrb[0].mxu0
      %1651 = vmatprep.mubr.bf16.mxu0 0
      %1652 = vmatmul.mubr.bf16.gmra.mrb[0].mxu0 %v1531
      %v1653 = vpop.f32.mrb[0].mxu0
      %v1654 = vadd.f32 0.0, %v1653
      %v1655 = vpop.f32.mrb[0].mxu0
      %v1656 = vpop.f32.mrb[0].mxu0
      %v1657 = vadd.f32 0.0, %v1656
      %v1658 = vpop.f32.mrb[0].mxu0
      %1659 = vmatprep.mubr.bf16.mxu0 0
      %1660 = vmatmul.mubr.bf16.gmra.mrb[0].mxu0 %v1532
      %v1661 = vpop.f32.mrb[0].mxu0
      %v1662 = vadd.f32 0.0, %v1661
      %v1663 = vpop.f32.mrb[0].mxu0
      %v1664 = vpop.f32.mrb[0].mxu0
      %v1665 = vadd.f32 0.0, %v1664
      %v1666 = vpop.f32.mrb[0].mxu0
      %1667 = vmatprep.mubr.bf16.mxu0 0
      %1668 = vmatmul.mubr.bf16.gmra.mrb[0].mxu0 %v1533
      %v1669 = vpop.f32.mrb[0].mxu0
      %v1670 = vadd.f32 0.0, %v1669
      %v1671 = vpop.f32.mrb[0].mxu0
      %v1672 = vpop.f32.mrb[0].mxu0
      %v1673 = vadd.f32 0.0, %v1672
      %v1674 = vpop.f32.mrb[0].mxu0
      %1675 = vmatprep.mubr.bf16.mxu0 0
      %1676 = vmatmul.mubr.bf16.gmra.mrb[0].mxu0 %v1534
      %v1677 = vpop.f32.mrb[0].mxu0
      %v1678 = vadd.f32 0.0, %v1677
      %v1679 = vpop.f32.mrb[0].mxu0
      %v1680 = vpop.f32.mrb[0].mxu0
      %v1681 = vadd.f32 0.0, %v1680
      %v1682 = vpop.f32.mrb[0].mxu0
      %1683 = vmatprep.mubr.bf16.mxu0 0
      %1684 = vmatmul.mubr.bf16.gmra.mrb[0].mxu0 %v1535
      %v1685 = vpop.f32.mrb[0].mxu0
      %v1686 = vadd.f32 0.0, %v1685
      %v1687 = vpop.f32.mrb[0].mxu0
      %v1688 = vpop.f32.mrb[0].mxu0
      %v1689 = vadd.f32 0.0, %v1688
      %v1690 = vpop.f32.mrb[0].mxu0
      %1691 = vmatprep.mubr.bf16.mxu0 0
      %1692 = vmatmul.mubr.bf16.gmra.mrb[0].mxu0 %v1536
      %v1693 = vpop.f32.mrb[0].mxu0
      %v1694 = vadd.f32 0.0, %v1693
      %v1695 = vpop.f32.mrb[0].mxu0
      %v1696 = vpop.f32.mrb[0].mxu0
      %v1697 = vadd.f32 0.0, %v1696
      %v1698 = vpop.f32.mrb[0].mxu0
      %1699 = vmatprep.mubr.bf16.mxu0 0
      %1700 = vmatmul.mubr.bf16.gmra.mrb[0].mxu0 %v1537
      %v1701 = vpop.f32.mrb[0].mxu0
      %v1702 = vadd.f32 0.0, %v1701
      %v1703 = vpop.f32.mrb[0].mxu0
      %v1704 = vpop.f32.mrb[0].mxu0
      %v1705 = vadd.f32 0.0, %v1704
      %v1706 = vpop.f32.mrb[0].mxu0
      %1707 = vmatprep.mubr.bf16.mxu0 0
      %1708 = vmatmul.mubr.bf16.gmra.mrb[0].mxu0 %v1538
      %v1709 = vpop.f32.mrb[0].mxu0
      %v1710 = vadd.f32 0.0, %v1709
      %v1711 = vpop.f32.mrb[0].mxu0
      %v1712 = vpop.f32.mrb[0].mxu0
      %v1713 = vadd.f32 0.0, %v1712
      %v1714 = vpop.f32.mrb[0].mxu0
      %1715 = vmatprep.mubr.bf16.mxu0 0
      %1716 = vmatmul.mubr.bf16.gmra.mrb[0].mxu0 %v1539
      %v1717 = vpop.f32.mrb[0].mxu0
      %v1718 = vadd.f32 0.0, %v1717
      %v1719 = vpop.f32.mrb[0].mxu0
      %v1720 = vpop.f32.mrb[0].mxu0
      %v1721 = vadd.f32 0.0, %v1720
      %v1722 = vpop.f32.mrb[0].mxu0
      %1723 = vmatprep.mubr.bf16.mxu0 0
      %1724 = vmatmul.mubr.bf16.gmra.mrb[0].mxu0 %v1540
      %v1725 = vpop.f32.mrb[0].mxu0
      %v1726 = vadd.f32 0.0, %v1725
      %v1727 = vpop.f32.mrb[0].mxu0
      %v1728 = vpop.f32.mrb[0].mxu0
      %v1729 = vadd.f32 0.0, %v1728
      %v1730 = vpop.f32.mrb[0].mxu0
      %1731 = vmatprep.mubr.bf16.mxu0 0
      %1732 = vmatmul.mubr.bf16.gmra.mrb[0].mxu0 %v1541
      %v1733 = vpop.f32.mrb[0].mxu0
      %v1734 = vadd.f32 0.0, %v1733
      %v1735 = vpop.f32.mrb[0].mxu0
      %v1736 = vpop.f32.mrb[0].mxu0
      %v1737 = vadd.f32 0.0, %v1736
      %v1738 = vpop.f32.mrb[0].mxu0
      %1739 = vmatprep.mubr.bf16.mxu0 0
      %1740 = vmatmul.mubr.bf16.gmra.mrb[0].mxu0 %v1542
      %v1741 = vpop.f32.mrb[0].mxu0
      %v1742 = vadd.f32 0.0, %v1741
      %v1743 = vpop.f32.mrb[0].mxu0
      %v1744 = vpop.f32.mrb[0].mxu0
      %v1745 = vadd.f32 0.0, %v1744
      %v1746 = vpop.f32.mrb[0].mxu0
      %1747 = vmatprep.mubr.bf16.mxu0 0
      %1748 = vmatmul.mubr.bf16.gmra.mrb[0].mxu0 %v1543
      %v1749 = vpop.f32.mrb[0].mxu0
      %v1750 = vadd.f32 0.0, %v1749
      %v1751 = vpop.f32.mrb[0].mxu0
      %v1752 = vpop.f32.mrb[0].mxu0
      %v1753 = vadd.f32 0.0, %v1752
      %v1754 = vpop.f32.mrb[0].mxu0
      %1755 = vmatprep.mubr.bf16.mxu0 0
      %1756 = vmatmul.mubr.bf16.gmra.mrb[0].mxu0 %v1544
      %v1757 = vpop.f32.mrb[0].mxu0
      %v1758 = vadd.f32 0.0, %v1757
      %v1759 = vpop.f32.mrb[0].mxu0
      %v1760 = vpop.f32.mrb[0].mxu0
      %v1761 = vadd.f32 0.0, %v1760
      %v1762 = vpop.f32.mrb[0].mxu0
      %1763 = vmatprep.mubr.bf16.mxu0 0
      %1764 = vmatmul.mubr.bf16.gmra.mrb[0].mxu0 %v1545
      %v1765 = vpop.f32.mrb[0].mxu0
      %v1766 = vadd.f32 0.0, %v1765
      %v1767 = vpop.f32.mrb[0].mxu0
      %v1768 = vpop.f32.mrb[0].mxu0
      %v1769 = vadd.f32 0.0, %v1768
      %v1770 = vpop.f32.mrb[0].mxu0
      %1771 = vdwg.mxu0
      %v1772 = vadd.f32 %v1466, %v1646
      %v1773 = vadd.f32 %v1467, %v1649
      %v1774 = vadd.f32 %v1468, %v1654
      %v1775 = vadd.f32 %v1469, %v1657
      %v1776 = vadd.f32 %v1470, %v1662
      %v1777 = vadd.f32 %v1471, %v1665
      %v1778 = vadd.f32 %v1472, %v1670
      %v1779 = vadd.f32 %v1473, %v1673
      %v1780 = vadd.f32 %v1474, %v1678
      %v1781 = vadd.f32 %v1475, %v1681
      %v1782 = vadd.f32 %v1476, %v1686
      %v1783 = vadd.f32 %v1477, %v1689
      %v1784 = vadd.f32 %v1478, %v1694
      %v1785 = vadd.f32 %v1479, %v1697
      %v1786 = vadd.f32 %v1480, %v1702
      %v1787 = vadd.f32 %v1481, %v1705
      %v1788 = vadd.f32 %v1482, %v1710
      %v1789 = vadd.f32 %v1483, %v1713
      %v1790 = vadd.f32 %v1484, %v1718
      %v1791 = vadd.f32 %v1485, %v1721
      %v1792 = vadd.f32 %v1486, %v1726
      %v1793 = vadd.f32 %v1487, %v1729
      %v1794 = vadd.f32 %v1488, %v1734
      %v1795 = vadd.f32 %v1489, %v1737
      %v1796 = vadd.f32 %v1490, %v1742
      %v1797 = vadd.f32 %v1491, %v1745
      %v1798 = vadd.f32 %v1492, %v1750
      %v1799 = vadd.f32 %v1493, %v1753
      %v1800 = vadd.f32 %v1494, %v1758
      %v1801 = vadd.f32 %v1495, %v1761
      %v1802 = vadd.f32 %v1496, %v1766
      %v1803 = vadd.f32 %v1497, %v1769
      %v1804 = vld [vmem:[%s316 + $0x1] sm:$0xff]
      %v1805 = vld [vmem:[%s316 + $0x9] sm:$0xff]
      %v1806 = vld [vmem:[%s316 + $0x19] sm:$0xff]
      %v1807 = vld [vmem:[%s316 + $0x21] sm:$0xff]
      %v1808 = vld [vmem:[%s316 + $0x31] sm:$0xff]
      %v1809 = vld [vmem:[%s316 + $0x39] sm:$0xff]
      %v1810 = vld [vmem:[%s316 + $0x49] sm:$0xff]
      %v1811 = vld [vmem:[%s316 + $0x51] sm:$0xff]
      %v1812 = vld [vmem:[%s316 + $0x61] sm:$0xff]
      %v1813 = vld [vmem:[%s316 + $0x69] sm:$0xff]
      %v1814 = vld [vmem:[%s316 + $0x79] sm:$0xff]
      %v1815 = vld [vmem:[%s316 + $0x81] sm:$0xff]
      %v1816 = vld [vmem:[%s316 + $0x91] sm:$0xff]
      %v1817 = vld [vmem:[%s316 + $0x99] sm:$0xff]
      %v1818 = vld [vmem:[%s316 + $0xa9] sm:$0xff]
      %v1819 = vld [vmem:[%s316 + $0xb1] sm:$0xff]
      %v1820 = vld [vmem:[%s316 + $0xc1] sm:$0xff]
      %v1821 = vld [vmem:[%s316 + $0xc9] sm:$0xff]
      %v1822 = vld [vmem:[%s316 + $0xd9] sm:$0xff]
      %v1823 = vld [vmem:[%s316 + $0xe1] sm:$0xff]
      %v1824 = vld [vmem:[%s316 + $0xf1] sm:$0xff]
      %v1825 = vld [vmem:[%s316 + $0xf9] sm:$0xff]
      %v1826 = vld [vmem:[%s316 + $0x109] sm:$0xff]
      %v1827 = vld [vmem:[%s316 + $0x111] sm:$0xff]
      %v1828 = vld [vmem:[%s316 + $0x121] sm:$0xff]
      %v1829 = vld [vmem:[%s316 + $0x129] sm:$0xff]
      %v1830 = vld [vmem:[%s316 + $0x139] sm:$0xff]
      %v1831 = vld [vmem:[%s316 + $0x141] sm:$0xff]
      %v1832 = vld [vmem:[%s316 + $0x151] sm:$0xff]
      %v1833 = vld [vmem:[%s316 + $0x159] sm:$0xff]
      %v1834 = vld [vmem:[%s316 + $0x169] sm:$0xff]
      %v1835 = vld [vmem:[%s316 + $0x171] sm:$0xff]
      %v1836 = vpack.c.bf16 %v1805, %v1804
      %v1837 = vpack.c.bf16 %v1807, %v1806
      %v1838 = vpack.c.bf16 %v1809, %v1808
      %v1839 = vpack.c.bf16 %v1811, %v1810
      %v1840 = vpack.c.bf16 %v1813, %v1812
      %v1841 = vpack.c.bf16 %v1815, %v1814
      %v1842 = vpack.c.bf16 %v1817, %v1816
      %v1843 = vpack.c.bf16 %v1819, %v1818
      %v1844 = vpack.c.bf16 %v1821, %v1820
      %v1845 = vpack.c.bf16 %v1823, %v1822
      %v1846 = vpack.c.bf16 %v1825, %v1824
      %v1847 = vpack.c.bf16 %v1827, %v1826
      %v1848 = vpack.c.bf16 %v1829, %v1828
      %v1849 = vpack.c.bf16 %v1831, %v1830
      %v1850 = vpack.c.bf16 %v1833, %v1832
      %v1851 = vpack.c.bf16 %v1835, %v1834
      %s1852 = scalar_lea.vmem %s1, 256
      %v1853 = vld [vmem:[%s1852] sm:$0xf]
      %v1854 = vld [vmem:[%s1852 + $0x4] sm:$0xf]
      %v1855 = vld [vmem:[%s1852 + $0x8] sm:$0xf]
      %v1856 = vld [vmem:[%s1852 + $0xc] sm:$0xf]
      %v1857 = vld [vmem:[%s1852 + $0x10] sm:$0xf]
      %v1858 = vld [vmem:[%s1852 + $0x14] sm:$0xf]
      %v1859 = vld [vmem:[%s1852 + $0x18] sm:$0xf]
      %v1860 = vld [vmem:[%s1852 + $0x1c] sm:$0xf]
      %v1861 = vld [vmem:[%s1852 + $0x20] sm:$0xf]
      %v1862 = vld [vmem:[%s1852 + $0x24] sm:$0xf]
      %v1863 = vld [vmem:[%s1852 + $0x28] sm:$0xf]
      %v1864 = vld [vmem:[%s1852 + $0x2c] sm:$0xf]
      %v1865 = vld [vmem:[%s1852 + $0x30] sm:$0xf]
      %v1866 = vld [vmem:[%s1852 + $0x34] sm:$0xf]
      %v1867 = vld [vmem:[%s1852 + $0x38] sm:$0xf]
      %v1868 = vld [vmem:[%s1852 + $0x3c] sm:$0xf]
      %v1885 = vunpack.c.l.b16 %v1853
      %v1886 = vunpack.c.l.b16 %v1854
      %v1887 = vunpack.c.l.b16 %v1855
      %v1888 = vunpack.c.l.b16 %v1856
      %v1889 = vunpack.c.l.b16 %v1857
      %v1890 = vunpack.c.l.b16 %v1858
      %v1891 = vunpack.c.l.b16 %v1859
      %v1892 = vunpack.c.l.b16 %v1860
      %v1893 = vunpack.c.l.b16 %v1861
      %v1894 = vunpack.c.l.b16 %v1862
      %v1895 = vunpack.c.l.b16 %v1863
      %v1896 = vunpack.c.l.b16 %v1864
      %v1897 = vunpack.c.l.b16 %v1865
      %v1898 = vunpack.c.l.b16 %v1866
      %v1899 = vunpack.c.l.b16 %v1867
      %v1900 = vunpack.c.l.b16 %v1868
      %v1901 = vpack.c.b16 %v1886, %v1885
      %v1902 = vpack.c.b16 %v1888, %v1887
      %v1903 = vpack.c.b16 %v1890, %v1889
      %v1904 = vpack.c.b16 %v1892, %v1891
      %v1905 = vpack.c.b16 %v1894, %v1893
      %v1906 = vpack.c.b16 %v1896, %v1895
      %v1907 = vpack.c.b16 %v1898, %v1897
      %v1908 = vpack.c.b16 %v1900, %v1899
      %1917 = vmatprep.subr.bf16.mxu0 0
      %1918 = vmatpush1.bf16.msra.mxu0 %v1901
      %1919 = vmatprep.subr.bf16.mxu0 0
      %1920 = vmatpush1.bf16.msra.mxu0 %v1902
      %1921 = vmatprep.subr.bf16.mxu0 0
      %1922 = vmatpush1.bf16.msra.mxu0 %v1903
      %1923 = vmatprep.subr.bf16.mxu0 0
      %1924 = vmatpush1.bf16.msra.mxu0 %v1904
      %1925 = vmatprep.subr.bf16.mxu0 0
      %1926 = vmatpush1.bf16.msra.mxu0 %v1905
      %1927 = vmatprep.subr.bf16.mxu0 0
      %1928 = vmatpush1.bf16.msra.mxu0 %v1906
      %1929 = vmatprep.subr.bf16.mxu0 0
      %1930 = vmatpush1.bf16.msra.mxu0 %v1907
      %1931 = vmatprep.subr.bf16.mxu0 0
      %1932 = vmatpush1.bf16.msra.mxu0 %v1908
      %1933 = vmatprep.subr.bf16.mxu0 0
      %1934 = vmatpush1.bf16.msra.mxu0 0
      %1935 = vmatprep.subr.bf16.mxu0 0
      %1936 = vmatpush1.bf16.msra.mxu0 0
      %1937 = vmatprep.subr.bf16.mxu0 0
      %1938 = vmatpush1.bf16.msra.mxu0 0
      %1939 = vmatprep.subr.bf16.mxu0 0
      %1940 = vmatpush1.bf16.msra.mxu0 0
      %1941 = vmatprep.subr.bf16.mxu0 0
      %1942 = vmatpush1.bf16.msra.mxu0 0
      %1943 = vmatprep.subr.bf16.mxu0 0
      %1944 = vmatpush1.bf16.msra.mxu0 0
      %1945 = vmatprep.subr.bf16.mxu0 0
      %1946 = vmatpush1.bf16.msra.mxu0 0
      %1947 = vmatprep.subr.bf16.mxu0 0
      %1948 = vmatpush1.bf16.msra.mxu0 0
      %1949 = vmatprep.mubr.bf16.mxu0 0
      %1950 = vmatmul.mubr.bf16.gmra.mrb[0].mxu0 %v1836
      %v1951 = vpop.f32.mrb[0].mxu0
      %v1952 = vadd.f32 0.0, %v1951
      %v1953 = vpop.f32.mrb[0].mxu0
      %v1954 = vpop.f32.mrb[0].mxu0
      %v1955 = vadd.f32 0.0, %v1954
      %v1956 = vpop.f32.mrb[0].mxu0
      %1957 = vmatprep.mubr.bf16.mxu0 0
      %1958 = vmatmul.mubr.bf16.gmra.mrb[0].mxu0 %v1837
      %v1959 = vpop.f32.mrb[0].mxu0
      %v1960 = vadd.f32 0.0, %v1959
      %v1961 = vpop.f32.mrb[0].mxu0
      %v1962 = vpop.f32.mrb[0].mxu0
      %v1963 = vadd.f32 0.0, %v1962
      %v1964 = vpop.f32.mrb[0].mxu0
      %1965 = vmatprep.mubr.bf16.mxu0 0
      %1966 = vmatmul.mubr.bf16.gmra.mrb[0].mxu0 %v1838
      %v1967 = vpop.f32.mrb[0].mxu0
      %v1968 = vadd.f32 0.0, %v1967
      %v1969 = vpop.f32.mrb[0].mxu0
      %v1970 = vpop.f32.mrb[0].mxu0
      %v1971 = vadd.f32 0.0, %v1970
      %v1972 = vpop.f32.mrb[0].mxu0
      %1973 = vmatprep.mubr.bf16.mxu0 0
      %1974 = vmatmul.mubr.bf16.gmra.mrb[0].mxu0 %v1839
      %v1975 = vpop.f32.mrb[0].mxu0
      %v1976 = vadd.f32 0.0, %v1975
      %v1977 = vpop.f32.mrb[0].mxu0
      %v1978 = vpop.f32.mrb[0].mxu0
      %v1979 = vadd.f32 0.0, %v1978
      %v1980 = vpop.f32.mrb[0].mxu0
      %1981 = vmatprep.mubr.bf16.mxu0 0
      %1982 = vmatmul.mubr.bf16.gmra.mrb[0].mxu0 %v1840
      %v1983 = vpop.f32.mrb[0].mxu0
      %v1984 = vadd.f32 0.0, %v1983
      %v1985 = vpop.f32.mrb[0].mxu0
      %v1986 = vpop.f32.mrb[0].mxu0
      %v1987 = vadd.f32 0.0, %v1986
      %v1988 = vpop.f32.mrb[0].mxu0
      %1989 = vmatprep.mubr.bf16.mxu0 0
      %1990 = vmatmul.mubr.bf16.gmra.mrb[0].mxu0 %v1841
      %v1991 = vpop.f32.mrb[0].mxu0
      %v1992 = vadd.f32 0.0, %v1991
      %v1993 = vpop.f32.mrb[0].mxu0
      %v1994 = vpop.f32.mrb[0].mxu0
      %v1995 = vadd.f32 0.0, %v1994
      %v1996 = vpop.f32.mrb[0].mxu0
      %1997 = vmatprep.mubr.bf16.mxu0 0
      %1998 = vmatmul.mubr.bf16.gmra.mrb[0].mxu0 %v1842
      %v1999 = vpop.f32.mrb[0].mxu0
      %v2000 = vadd.f32 0.0, %v1999
      %v2001 = vpop.f32.mrb[0].mxu0
      %v2002 = vpop.f32.mrb[0].mxu0
      %v2003 = vadd.f32 0.0, %v2002
      %v2004 = vpop.f32.mrb[0].mxu0
      %2005 = vmatprep.mubr.bf16.mxu0 0
      %2006 = vmatmul.mubr.bf16.gmra.mrb[0].mxu0 %v1843
      %v2007 = vpop.f32.mrb[0].mxu0
      %v2008 = vadd.f32 0.0, %v2007
      %v2009 = vpop.f32.mrb[0].mxu0
      %v2010 = vpop.f32.mrb[0].mxu0
      %v2011 = vadd.f32 0.0, %v2010
      %v2012 = vpop.f32.mrb[0].mxu0
      %2013 = vmatprep.mubr.bf16.mxu0 0
      %2014 = vmatmul.mubr.bf16.gmra.mrb[0].mxu0 %v1844
      %v2015 = vpop.f32.mrb[0].mxu0
      %v2016 = vadd.f32 0.0, %v2015
      %v2017 = vpop.f32.mrb[0].mxu0
      %v2018 = vpop.f32.mrb[0].mxu0
      %v2019 = vadd.f32 0.0, %v2018
      %v2020 = vpop.f32.mrb[0].mxu0
      %2021 = vmatprep.mubr.bf16.mxu0 0
      %2022 = vmatmul.mubr.bf16.gmra.mrb[0].mxu0 %v1845
      %v2023 = vpop.f32.mrb[0].mxu0
      %v2024 = vadd.f32 0.0, %v2023
      %v2025 = vpop.f32.mrb[0].mxu0
      %v2026 = vpop.f32.mrb[0].mxu0
      %v2027 = vadd.f32 0.0, %v2026
      %v2028 = vpop.f32.mrb[0].mxu0
      %2029 = vmatprep.mubr.bf16.mxu0 0
      %2030 = vmatmul.mubr.bf16.gmra.mrb[0].mxu0 %v1846
      %v2031 = vpop.f32.mrb[0].mxu0
      %v2032 = vadd.f32 0.0, %v2031
      %v2033 = vpop.f32.mrb[0].mxu0
      %v2034 = vpop.f32.mrb[0].mxu0
      %v2035 = vadd.f32 0.0, %v2034
      %v2036 = vpop.f32.mrb[0].mxu0
      %2037 = vmatprep.mubr.bf16.mxu0 0
      %2038 = vmatmul.mubr.bf16.gmra.mrb[0].mxu0 %v1847
      %v2039 = vpop.f32.mrb[0].mxu0
      %v2040 = vadd.f32 0.0, %v2039
      %v2041 = vpop.f32.mrb[0].mxu0
      %v2042 = vpop.f32.mrb[0].mxu0
      %v2043 = vadd.f32 0.0, %v2042
      %v2044 = vpop.f32.mrb[0].mxu0
      %2045 = vmatprep.mubr.bf16.mxu0 0
      %2046 = vmatmul.mubr.bf16.gmra.mrb[0].mxu0 %v1848
      %v2047 = vpop.f32.mrb[0].mxu0
      %v2048 = vadd.f32 0.0, %v2047
      %v2049 = vpop.f32.mrb[0].mxu0
      %v2050 = vpop.f32.mrb[0].mxu0
      %v2051 = vadd.f32 0.0, %v2050
      %v2052 = vpop.f32.mrb[0].mxu0
      %2053 = vmatprep.mubr.bf16.mxu0 0
      %2054 = vmatmul.mubr.bf16.gmra.mrb[0].mxu0 %v1849
      %v2055 = vpop.f32.mrb[0].mxu0
      %v2056 = vadd.f32 0.0, %v2055
      %v2057 = vpop.f32.mrb[0].mxu0
      %v2058 = vpop.f32.mrb[0].mxu0
      %v2059 = vadd.f32 0.0, %v2058
      %v2060 = vpop.f32.mrb[0].mxu0
      %2061 = vmatprep.mubr.bf16.mxu0 0
      %2062 = vmatmul.mubr.bf16.gmra.mrb[0].mxu0 %v1850
      %v2063 = vpop.f32.mrb[0].mxu0
      %v2064 = vadd.f32 0.0, %v2063
      %v2065 = vpop.f32.mrb[0].mxu0
      %v2066 = vpop.f32.mrb[0].mxu0
      %v2067 = vadd.f32 0.0, %v2066
      %v2068 = vpop.f32.mrb[0].mxu0
      %2069 = vmatprep.mubr.bf16.mxu0 0
      %2070 = vmatmul.mubr.bf16.gmra.mrb[0].mxu0 %v1851
      %v2071 = vpop.f32.mrb[0].mxu0
      %v2072 = vadd.f32 0.0, %v2071
      %v2073 = vpop.f32.mrb[0].mxu0
      %v2074 = vpop.f32.mrb[0].mxu0
      %v2075 = vadd.f32 0.0, %v2074
      %v2076 = vpop.f32.mrb[0].mxu0
      %2077 = vdwg.mxu0
      %v2078 = vadd.f32 %v1772, %v1952
      %v2079 = vadd.f32 %v1773, %v1955
      %v2080 = vadd.f32 %v1774, %v1960
      %v2081 = vadd.f32 %v1775, %v1963
      %v2082 = vadd.f32 %v1776, %v1968
      %v2083 = vadd.f32 %v1777, %v1971
      %v2084 = vadd.f32 %v1778, %v1976
      %v2085 = vadd.f32 %v1779, %v1979
      %v2086 = vadd.f32 %v1780, %v1984
      %v2087 = vadd.f32 %v1781, %v1987
      %v2088 = vadd.f32 %v1782, %v1992
      %v2089 = vadd.f32 %v1783, %v1995
      %v2090 = vadd.f32 %v1784, %v2000
      %v2091 = vadd.f32 %v1785, %v2003
      %v2092 = vadd.f32 %v1786, %v2008
      %v2093 = vadd.f32 %v1787, %v2011
      %v2094 = vadd.f32 %v1788, %v2016
      %v2095 = vadd.f32 %v1789, %v2019
      %v2096 = vadd.f32 %v1790, %v2024
      %v2097 = vadd.f32 %v1791, %v2027
      %v2098 = vadd.f32 %v1792, %v2032
      %v2099 = vadd.f32 %v1793, %v2035
      %v2100 = vadd.f32 %v1794, %v2040
      %v2101 = vadd.f32 %v1795, %v2043
      %v2102 = vadd.f32 %v1796, %v2048
      %v2103 = vadd.f32 %v1797, %v2051
      %v2104 = vadd.f32 %v1798, %v2056
      %v2105 = vadd.f32 %v1799, %v2059
      %v2106 = vadd.f32 %v1800, %v2064
      %v2107 = vadd.f32 %v1801, %v2067
      %v2108 = vadd.f32 %v1802, %v2072
      %v2109 = vadd.f32 %v1803, %v2075
      %v2110 = vld [vmem:[%s414 + $0x1] sm:$0xff]
      %v2111 = vld [vmem:[%s414 + $0x9] sm:$0xff]
      %v2112 = vld [vmem:[%s414 + $0x19] sm:$0xff]
      %v2113 = vld [vmem:[%s414 + $0x21] sm:$0xff]
      %v2114 = vld [vmem:[%s414 + $0x31] sm:$0xff]
      %v2115 = vld [vmem:[%s414 + $0x39] sm:$0xff]
      %v2116 = vld [vmem:[%s414 + $0x49] sm:$0xff]
      %v2117 = vld [vmem:[%s414 + $0x51] sm:$0xff]
      %v2118 = vld [vmem:[%s414 + $0x61] sm:$0xff]
      %v2119 = vld [vmem:[%s414 + $0x69] sm:$0xff]
      %v2120 = vld [vmem:[%s414 + $0x79] sm:$0xff]
      %v2121 = vld [vmem:[%s414 + $0x81] sm:$0xff]
      %v2122 = vld [vmem:[%s414 + $0x91] sm:$0xff]
      %v2123 = vld [vmem:[%s414 + $0x99] sm:$0xff]
      %v2124 = vld [vmem:[%s414 + $0xa9] sm:$0xff]
      %v2125 = vld [vmem:[%s414 + $0xb1] sm:$0xff]
      %v2126 = vld [vmem:[%s414 + $0xc1] sm:$0xff]
      %v2127 = vld [vmem:[%s414 + $0xc9] sm:$0xff]
      %v2128 = vld [vmem:[%s414 + $0xd9] sm:$0xff]
      %v2129 = vld [vmem:[%s414 + $0xe1] sm:$0xff]
      %v2130 = vld [vmem:[%s414 + $0xf1] sm:$0xff]
      %v2131 = vld [vmem:[%s414 + $0xf9] sm:$0xff]
      %v2132 = vld [vmem:[%s414 + $0x109] sm:$0xff]
      %v2133 = vld [vmem:[%s414 + $0x111] sm:$0xff]
      %v2134 = vld [vmem:[%s414 + $0x121] sm:$0xff]
      %v2135 = vld [vmem:[%s414 + $0x129] sm:$0xff]
      %v2136 = vld [vmem:[%s414 + $0x139] sm:$0xff]
      %v2137 = vld [vmem:[%s414 + $0x141] sm:$0xff]
      %v2138 = vld [vmem:[%s414 + $0x151] sm:$0xff]
      %v2139 = vld [vmem:[%s414 + $0x159] sm:$0xff]
      %v2140 = vld [vmem:[%s414 + $0x169] sm:$0xff]
      %v2141 = vld [vmem:[%s414 + $0x171] sm:$0xff]
      %v2142 = vpack.c.bf16 %v2111, %v2110
      %v2143 = vpack.c.bf16 %v2113, %v2112
      %v2144 = vpack.c.bf16 %v2115, %v2114
      %v2145 = vpack.c.bf16 %v2117, %v2116
      %v2146 = vpack.c.bf16 %v2119, %v2118
      %v2147 = vpack.c.bf16 %v2121, %v2120
      %v2148 = vpack.c.bf16 %v2123, %v2122
      %v2149 = vpack.c.bf16 %v2125, %v2124
      %v2150 = vpack.c.bf16 %v2127, %v2126
      %v2151 = vpack.c.bf16 %v2129, %v2128
      %v2152 = vpack.c.bf16 %v2131, %v2130
      %v2153 = vpack.c.bf16 %v2133, %v2132
      %v2154 = vpack.c.bf16 %v2135, %v2134
      %v2155 = vpack.c.bf16 %v2137, %v2136
      %v2156 = vpack.c.bf16 %v2139, %v2138
      %v2157 = vpack.c.bf16 %v2141, %v2140
      %s2158 = scalar_lea.vmem %s1, 320
      %v2159 = vld [vmem:[%s2158] sm:$0xf]
      %v2160 = vld [vmem:[%s2158 + $0x4] sm:$0xf]
      %v2161 = vld [vmem:[%s2158 + $0x8] sm:$0xf]
      %v2162 = vld [vmem:[%s2158 + $0xc] sm:$0xf]
      %v2163 = vld [vmem:[%s2158 + $0x10] sm:$0xf]
      %v2164 = vld [vmem:[%s2158 + $0x14] sm:$0xf]
      %v2165 = vld [vmem:[%s2158 + $0x18] sm:$0xf]
      %v2166 = vld [vmem:[%s2158 + $0x1c] sm:$0xf]
      %v2167 = vld [vmem:[%s2158 + $0x20] sm:$0xf]
      %v2168 = vld [vmem:[%s2158 + $0x24] sm:$0xf]
      %v2169 = vld [vmem:[%s2158 + $0x28] sm:$0xf]
      %v2170 = vld [vmem:[%s2158 + $0x2c] sm:$0xf]
      %v2171 = vld [vmem:[%s2158 + $0x30] sm:$0xf]
      %v2172 = vld [vmem:[%s2158 + $0x34] sm:$0xf]
      %v2173 = vld [vmem:[%s2158 + $0x38] sm:$0xf]
      %v2174 = vld [vmem:[%s2158 + $0x3c] sm:$0xf]
      %v2191 = vunpack.c.l.b16 %v2159
      %v2192 = vunpack.c.l.b16 %v2160
      %v2193 = vunpack.c.l.b16 %v2161
      %v2194 = vunpack.c.l.b16 %v2162
      %v2195 = vunpack.c.l.b16 %v2163
      %v2196 = vunpack.c.l.b16 %v2164
      %v2197 = vunpack.c.l.b16 %v2165
      %v2198 = vunpack.c.l.b16 %v2166
      %v2199 = vunpack.c.l.b16 %v2167
      %v2200 = vunpack.c.l.b16 %v2168
      %v2201 = vunpack.c.l.b16 %v2169
      %v2202 = vunpack.c.l.b16 %v2170
      %v2203 = vunpack.c.l.b16 %v2171
      %v2204 = vunpack.c.l.b16 %v2172
      %v2205 = vunpack.c.l.b16 %v2173
      %v2206 = vunpack.c.l.b16 %v2174
      %v2207 = vpack.c.b16 %v2192, %v2191
      %v2208 = vpack.c.b16 %v2194, %v2193
      %v2209 = vpack.c.b16 %v2196, %v2195
      %v2210 = vpack.c.b16 %v2198, %v2197
      %v2211 = vpack.c.b16 %v2200, %v2199
      %v2212 = vpack.c.b16 %v2202, %v2201
      %v2213 = vpack.c.b16 %v2204, %v2203
      %v2214 = vpack.c.b16 %v2206, %v2205
      %2223 = vmatprep.subr.bf16.mxu0 0
      %2224 = vmatpush1.bf16.msra.mxu0 %v2207
      %2225 = vmatprep.subr.bf16.mxu0 0
      %2226 = vmatpush1.bf16.msra.mxu0 %v2208
      %2227 = vmatprep.subr.bf16.mxu0 0
      %2228 = vmatpush1.bf16.msra.mxu0 %v2209
      %2229 = vmatprep.subr.bf16.mxu0 0
      %2230 = vmatpush1.bf16.msra.mxu0 %v2210
      %2231 = vmatprep.subr.bf16.mxu0 0
      %2232 = vmatpush1.bf16.msra.mxu0 %v2211
      %2233 = vmatprep.subr.bf16.mxu0 0
      %2234 = vmatpush1.bf16.msra.mxu0 %v2212
      %2235 = vmatprep.subr.bf16.mxu0 0
      %2236 = vmatpush1.bf16.msra.mxu0 %v2213
      %2237 = vmatprep.subr.bf16.mxu0 0
      %2238 = vmatpush1.bf16.msra.mxu0 %v2214
      %2239 = vmatprep.subr.bf16.mxu0 0
      %2240 = vmatpush1.bf16.msra.mxu0 0
      %2241 = vmatprep.subr.bf16.mxu0 0
      %2242 = vmatpush1.bf16.msra.mxu0 0
      %2243 = vmatprep.subr.bf16.mxu0 0
      %2244 = vmatpush1.bf16.msra.mxu0 0
      %2245 = vmatprep.subr.bf16.mxu0 0
      %2246 = vmatpush1.bf16.msra.mxu0 0
      %2247 = vmatprep.subr.bf16.mxu0 0
      %2248 = vmatpush1.bf16.msra.mxu0 0
      %2249 = vmatprep.subr.bf16.mxu0 0
      %2250 = vmatpush1.bf16.msra.mxu0 0
      %2251 = vmatprep.subr.bf16.mxu0 0
      %2252 = vmatpush1.bf16.msra.mxu0 0
      %2253 = vmatprep.subr.bf16.mxu0 0
      %2254 = vmatpush1.bf16.msra.mxu0 0
      %2255 = vmatprep.mubr.bf16.mxu0 0
      %2256 = vmatmul.mubr.bf16.gmra.mrb[0].mxu0 %v2142
      %v2257 = vpop.f32.mrb[0].mxu0
      %v2258 = vadd.f32 0.0, %v2257
      %v2259 = vpop.f32.mrb[0].mxu0
      %v2260 = vpop.f32.mrb[0].mxu0
      %v2261 = vadd.f32 0.0, %v2260
      %v2262 = vpop.f32.mrb[0].mxu0
      %2263 = vmatprep.mubr.bf16.mxu0 0
      %2264 = vmatmul.mubr.bf16.gmra.mrb[0].mxu0 %v2143
      %v2265 = vpop.f32.mrb[0].mxu0
      %v2266 = vadd.f32 0.0, %v2265
      %v2267 = vpop.f32.mrb[0].mxu0
      %v2268 = vpop.f32.mrb[0].mxu0
      %v2269 = vadd.f32 0.0, %v2268
      %v2270 = vpop.f32.mrb[0].mxu0
      %2271 = vmatprep.mubr.bf16.mxu0 0
      %2272 = vmatmul.mubr.bf16.gmra.mrb[0].mxu0 %v2144
      %v2273 = vpop.f32.mrb[0].mxu0
      %v2274 = vadd.f32 0.0, %v2273
      %v2275 = vpop.f32.mrb[0].mxu0
      %v2276 = vpop.f32.mrb[0].mxu0
      %v2277 = vadd.f32 0.0, %v2276
      %v2278 = vpop.f32.mrb[0].mxu0
      %2279 = vmatprep.mubr.bf16.mxu0 0
      %2280 = vmatmul.mubr.bf16.gmra.mrb[0].mxu0 %v2145
      %v2281 = vpop.f32.mrb[0].mxu0
      %v2282 = vadd.f32 0.0, %v2281
      %v2283 = vpop.f32.mrb[0].mxu0
      %v2284 = vpop.f32.mrb[0].mxu0
      %v2285 = vadd.f32 0.0, %v2284
      %v2286 = vpop.f32.mrb[0].mxu0
      %2287 = vmatprep.mubr.bf16.mxu0 0
      %2288 = vmatmul.mubr.bf16.gmra.mrb[0].mxu0 %v2146
      %v2289 = vpop.f32.mrb[0].mxu0
      %v2290 = vadd.f32 0.0, %v2289
      %v2291 = vpop.f32.mrb[0].mxu0
      %v2292 = vpop.f32.mrb[0].mxu0
      %v2293 = vadd.f32 0.0, %v2292
      %v2294 = vpop.f32.mrb[0].mxu0
      %2295 = vmatprep.mubr.bf16.mxu0 0
      %2296 = vmatmul.mubr.bf16.gmra.mrb[0].mxu0 %v2147
      %v2297 = vpop.f32.mrb[0].mxu0
      %v2298 = vadd.f32 0.0, %v2297
      %v2299 = vpop.f32.mrb[0].mxu0
      %v2300 = vpop.f32.mrb[0].mxu0
      %v2301 = vadd.f32 0.0, %v2300
      %v2302 = vpop.f32.mrb[0].mxu0
      %2303 = vmatprep.mubr.bf16.mxu0 0
      %2304 = vmatmul.mubr.bf16.gmra.mrb[0].mxu0 %v2148
      %v2305 = vpop.f32.mrb[0].mxu0
      %v2306 = vadd.f32 0.0, %v2305
      %v2307 = vpop.f32.mrb[0].mxu0
      %v2308 = vpop.f32.mrb[0].mxu0
      %v2309 = vadd.f32 0.0, %v2308
      %v2310 = vpop.f32.mrb[0].mxu0
      %2311 = vmatprep.mubr.bf16.mxu0 0
      %2312 = vmatmul.mubr.bf16.gmra.mrb[0].mxu0 %v2149
      %v2313 = vpop.f32.mrb[0].mxu0
      %v2314 = vadd.f32 0.0, %v2313
      %v2315 = vpop.f32.mrb[0].mxu0
      %v2316 = vpop.f32.mrb[0].mxu0
      %v2317 = vadd.f32 0.0, %v2316
      %v2318 = vpop.f32.mrb[0].mxu0
      %2319 = vmatprep.mubr.bf16.mxu0 0
      %2320 = vmatmul.mubr.bf16.gmra.mrb[0].mxu0 %v2150
      %v2321 = vpop.f32.mrb[0].mxu0
      %v2322 = vadd.f32 0.0, %v2321
      %v2323 = vpop.f32.mrb[0].mxu0
      %v2324 = vpop.f32.mrb[0].mxu0
      %v2325 = vadd.f32 0.0, %v2324
      %v2326 = vpop.f32.mrb[0].mxu0
      %2327 = vmatprep.mubr.bf16.mxu0 0
      %2328 = vmatmul.mubr.bf16.gmra.mrb[0].mxu0 %v2151
      %v2329 = vpop.f32.mrb[0].mxu0
      %v2330 = vadd.f32 0.0, %v2329
      %v2331 = vpop.f32.mrb[0].mxu0
      %v2332 = vpop.f32.mrb[0].mxu0
      %v2333 = vadd.f32 0.0, %v2332
      %v2334 = vpop.f32.mrb[0].mxu0
      %2335 = vmatprep.mubr.bf16.mxu0 0
      %2336 = vmatmul.mubr.bf16.gmra.mrb[0].mxu0 %v2152
      %v2337 = vpop.f32.mrb[0].mxu0
      %v2338 = vadd.f32 0.0, %v2337
      %v2339 = vpop.f32.mrb[0].mxu0
      %v2340 = vpop.f32.mrb[0].mxu0
      %v2341 = vadd.f32 0.0, %v2340
      %v2342 = vpop.f32.mrb[0].mxu0
      %2343 = vmatprep.mubr.bf16.mxu0 0
      %2344 = vmatmul.mubr.bf16.gmra.mrb[0].mxu0 %v2153
      %v2345 = vpop.f32.mrb[0].mxu0
      %v2346 = vadd.f32 0.0, %v2345
      %v2347 = vpop.f32.mrb[0].mxu0
      %v2348 = vpop.f32.mrb[0].mxu0
      %v2349 = vadd.f32 0.0, %v2348
      %v2350 = vpop.f32.mrb[0].mxu0
      %2351 = vmatprep.mubr.bf16.mxu0 0
      %2352 = vmatmul.mubr.bf16.gmra.mrb[0].mxu0 %v2154
      %v2353 = vpop.f32.mrb[0].mxu0
      %v2354 = vadd.f32 0.0, %v2353
      %v2355 = vpop.f32.mrb[0].mxu0
      %v2356 = vpop.f32.mrb[0].mxu0
      %v2357 = vadd.f32 0.0, %v2356
      %v2358 = vpop.f32.mrb[0].mxu0
      %2359 = vmatprep.mubr.bf16.mxu0 0
      %2360 = vmatmul.mubr.bf16.gmra.mrb[0].mxu0 %v2155
      %v2361 = vpop.f32.mrb[0].mxu0
      %v2362 = vadd.f32 0.0, %v2361
      %v2363 = vpop.f32.mrb[0].mxu0
      %v2364 = vpop.f32.mrb[0].mxu0
      %v2365 = vadd.f32 0.0, %v2364
      %v2366 = vpop.f32.mrb[0].mxu0
      %2367 = vmatprep.mubr.bf16.mxu0 0
      %2368 = vmatmul.mubr.bf16.gmra.mrb[0].mxu0 %v2156
      %v2369 = vpop.f32.mrb[0].mxu0
      %v2370 = vadd.f32 0.0, %v2369
      %v2371 = vpop.f32.mrb[0].mxu0
      %v2372 = vpop.f32.mrb[0].mxu0
      %v2373 = vadd.f32 0.0, %v2372
      %v2374 = vpop.f32.mrb[0].mxu0
      %2375 = vmatprep.mubr.bf16.mxu0 0
      %2376 = vmatmul.mubr.bf16.gmra.mrb[0].mxu0 %v2157
      %v2377 = vpop.f32.mrb[0].mxu0
      %v2378 = vadd.f32 0.0, %v2377
      %v2379 = vpop.f32.mrb[0].mxu0
      %v2380 = vpop.f32.mrb[0].mxu0
      %v2381 = vadd.f32 0.0, %v2380
      %v2382 = vpop.f32.mrb[0].mxu0
      %2383 = vdwg.mxu0
      %v2384 = vadd.f32 %v2078, %v2258
      %v2385 = vadd.f32 %v2079, %v2261
      %v2386 = vadd.f32 %v2080, %v2266
      %v2387 = vadd.f32 %v2081, %v2269
      %v2388 = vadd.f32 %v2082, %v2274
      %v2389 = vadd.f32 %v2083, %v2277
      %v2390 = vadd.f32 %v2084, %v2282
      %v2391 = vadd.f32 %v2085, %v2285
      %v2392 = vadd.f32 %v2086, %v2290
      %v2393 = vadd.f32 %v2087, %v2293
      %v2394 = vadd.f32 %v2088, %v2298
      %v2395 = vadd.f32 %v2089, %v2301
      %v2396 = vadd.f32 %v2090, %v2306
      %v2397 = vadd.f32 %v2091, %v2309
      %v2398 = vadd.f32 %v2092, %v2314
      %v2399 = vadd.f32 %v2093, %v2317
      %v2400 = vadd.f32 %v2094, %v2322
      %v2401 = vadd.f32 %v2095, %v2325
      %v2402 = vadd.f32 %v2096, %v2330
      %v2403 = vadd.f32 %v2097, %v2333
      %v2404 = vadd.f32 %v2098, %v2338
      %v2405 = vadd.f32 %v2099, %v2341
      %v2406 = vadd.f32 %v2100, %v2346
      %v2407 = vadd.f32 %v2101, %v2349
      %v2408 = vadd.f32 %v2102, %v2354
      %v2409 = vadd.f32 %v2103, %v2357
      %v2410 = vadd.f32 %v2104, %v2362
      %v2411 = vadd.f32 %v2105, %v2365
      %v2412 = vadd.f32 %v2106, %v2370
      %v2413 = vadd.f32 %v2107, %v2373
      %v2414 = vadd.f32 %v2108, %v2378
      %v2415 = vadd.f32 %v2109, %v2381
      %v2416 = vld [vmem:[%s610] sm:$0xff]
      %v2417 = vld [vmem:[%s610 + $0x8] sm:$0xff]
      %v2418 = vld [vmem:[%s610 + $0x18] sm:$0xff]
      %v2419 = vld [vmem:[%s610 + $0x20] sm:$0xff]
      %v2420 = vld [vmem:[%s610 + $0x30] sm:$0xff]
      %v2421 = vld [vmem:[%s610 + $0x38] sm:$0xff]
      %v2422 = vld [vmem:[%s610 + $0x48] sm:$0xff]
      %v2423 = vld [vmem:[%s610 + $0x50] sm:$0xff]
      %v2424 = vld [vmem:[%s610 + $0x60] sm:$0xff]
      %v2425 = vld [vmem:[%s610 + $0x68] sm:$0xff]
      %v2426 = vld [vmem:[%s610 + $0x78] sm:$0xff]
      %v2427 = vld [vmem:[%s610 + $0x80] sm:$0xff]
      %v2428 = vld [vmem:[%s610 + $0x90] sm:$0xff]
      %v2429 = vld [vmem:[%s610 + $0x98] sm:$0xff]
      %v2430 = vld [vmem:[%s610 + $0xa8] sm:$0xff]
      %v2431 = vld [vmem:[%s610 + $0xb0] sm:$0xff]
      %v2432 = vld [vmem:[%s610 + $0xc0] sm:$0xff]
      %v2433 = vld [vmem:[%s610 + $0xc8] sm:$0xff]
      %v2434 = vld [vmem:[%s610 + $0xd8] sm:$0xff]
      %v2435 = vld [vmem:[%s610 + $0xe0] sm:$0xff]
      %v2436 = vld [vmem:[%s610 + $0xf0] sm:$0xff]
      %v2437 = vld [vmem:[%s610 + $0xf8] sm:$0xff]
      %v2438 = vld [vmem:[%s610 + $0x108] sm:$0xff]
      %v2439 = vld [vmem:[%s610 + $0x110] sm:$0xff]
      %v2440 = vld [vmem:[%s610 + $0x120] sm:$0xff]
      %v2441 = vld [vmem:[%s610 + $0x128] sm:$0xff]
      %v2442 = vld [vmem:[%s610 + $0x138] sm:$0xff]
      %v2443 = vld [vmem:[%s610 + $0x140] sm:$0xff]
      %v2444 = vld [vmem:[%s610 + $0x150] sm:$0xff]
      %v2445 = vld [vmem:[%s610 + $0x158] sm:$0xff]
      %v2446 = vld [vmem:[%s610 + $0x168] sm:$0xff]
      %v2447 = vld [vmem:[%s610 + $0x170] sm:$0xff]
      %v2448 = vpack.c.bf16 %v2417, %v2416
      %v2449 = vpack.c.bf16 %v2419, %v2418
      %v2450 = vpack.c.bf16 %v2421, %v2420
      %v2451 = vpack.c.bf16 %v2423, %v2422
      %v2452 = vpack.c.bf16 %v2425, %v2424
      %v2453 = vpack.c.bf16 %v2427, %v2426
      %v2454 = vpack.c.bf16 %v2429, %v2428
      %v2455 = vpack.c.bf16 %v2431, %v2430
      %v2456 = vpack.c.bf16 %v2433, %v2432
      %v2457 = vpack.c.bf16 %v2435, %v2434
      %v2458 = vpack.c.bf16 %v2437, %v2436
      %v2459 = vpack.c.bf16 %v2439, %v2438
      %v2460 = vpack.c.bf16 %v2441, %v2440
      %v2461 = vpack.c.bf16 %v2443, %v2442
      %v2462 = vpack.c.bf16 %v2445, %v2444
      %v2463 = vpack.c.bf16 %v2447, %v2446
      %s2464 = scalar_lea.vmem %s1, 384
      %v2465 = vld [vmem:[%s2464] sm:$0xf]
      %v2466 = vld [vmem:[%s2464 + $0x4] sm:$0xf]
      %v2467 = vld [vmem:[%s2464 + $0x8] sm:$0xf]
      %v2468 = vld [vmem:[%s2464 + $0xc] sm:$0xf]
      %v2469 = vld [vmem:[%s2464 + $0x10] sm:$0xf]
      %v2470 = vld [vmem:[%s2464 + $0x14] sm:$0xf]
      %v2471 = vld [vmem:[%s2464 + $0x18] sm:$0xf]
      %v2472 = vld [vmem:[%s2464 + $0x1c] sm:$0xf]
      %v2473 = vld [vmem:[%s2464 + $0x20] sm:$0xf]
      %v2474 = vld [vmem:[%s2464 + $0x24] sm:$0xf]
      %v2475 = vld [vmem:[%s2464 + $0x28] sm:$0xf]
      %v2476 = vld [vmem:[%s2464 + $0x2c] sm:$0xf]
      %v2477 = vld [vmem:[%s2464 + $0x30] sm:$0xf]
      %v2478 = vld [vmem:[%s2464 + $0x34] sm:$0xf]
      %v2479 = vld [vmem:[%s2464 + $0x38] sm:$0xf]
      %v2480 = vld [vmem:[%s2464 + $0x3c] sm:$0xf]
      %v2497 = vunpack.c.l.b16 %v2465
      %v2498 = vunpack.c.l.b16 %v2466
      %v2499 = vunpack.c.l.b16 %v2467
      %v2500 = vunpack.c.l.b16 %v2468
      %v2501 = vunpack.c.l.b16 %v2469
      %v2502 = vunpack.c.l.b16 %v2470
      %v2503 = vunpack.c.l.b16 %v2471
      %v2504 = vunpack.c.l.b16 %v2472
      %v2505 = vunpack.c.l.b16 %v2473
      %v2506 = vunpack.c.l.b16 %v2474
      %v2507 = vunpack.c.l.b16 %v2475
      %v2508 = vunpack.c.l.b16 %v2476
      %v2509 = vunpack.c.l.b16 %v2477
      %v2510 = vunpack.c.l.b16 %v2478
      %v2511 = vunpack.c.l.b16 %v2479
      %v2512 = vunpack.c.l.b16 %v2480
      %v2513 = vpack.c.b16 %v2498, %v2497
      %v2514 = vpack.c.b16 %v2500, %v2499
      %v2515 = vpack.c.b16 %v2502, %v2501
      %v2516 = vpack.c.b16 %v2504, %v2503
      %v2517 = vpack.c.b16 %v2506, %v2505
      %v2518 = vpack.c.b16 %v2508, %v2507
      %v2519 = vpack.c.b16 %v2510, %v2509
      %v2520 = vpack.c.b16 %v2512, %v2511
      %2529 = vmatprep.subr.bf16.mxu0 0
      %2530 = vmatpush1.bf16.msra.mxu0 %v2513
      %2531 = vmatprep.subr.bf16.mxu0 0
      %2532 = vmatpush1.bf16.msra.mxu0 %v2514
      %2533 = vmatprep.subr.bf16.mxu0 0
      %2534 = vmatpush1.bf16.msra.mxu0 %v2515
      %2535 = vmatprep.subr.bf16.mxu0 0
      %2536 = vmatpush1.bf16.msra.mxu0 %v2516
      %2537 = vmatprep.subr.bf16.mxu0 0
      %2538 = vmatpush1.bf16.msra.mxu0 %v2517
      %2539 = vmatprep.subr.bf16.mxu0 0
      %2540 = vmatpush1.bf16.msra.mxu0 %v2518
      %2541 = vmatprep.subr.bf16.mxu0 0
      %2542 = vmatpush1.bf16.msra.mxu0 %v2519
      %2543 = vmatprep.subr.bf16.mxu0 0
      %2544 = vmatpush1.bf16.msra.mxu0 %v2520
      %2545 = vmatprep.subr.bf16.mxu0 0
      %2546 = vmatpush1.bf16.msra.mxu0 0
      %2547 = vmatprep.subr.bf16.mxu0 0
      %2548 = vmatpush1.bf16.msra.mxu0 0
      %2549 = vmatprep.subr.bf16.mxu0 0
      %2550 = vmatpush1.bf16.msra.mxu0 0
      %2551 = vmatprep.subr.bf16.mxu0 0
      %2552 = vmatpush1.bf16.msra.mxu0 0
      %2553 = vmatprep.subr.bf16.mxu0 0
      %2554 = vmatpush1.bf16.msra.mxu0 0
      %2555 = vmatprep.subr.bf16.mxu0 0
      %2556 = vmatpush1.bf16.msra.mxu0 0
      %2557 = vmatprep.subr.bf16.mxu0 0
      %2558 = vmatpush1.bf16.msra.mxu0 0
      %2559 = vmatprep.subr.bf16.mxu0 0
      %2560 = vmatpush1.bf16.msra.mxu0 0
      %2561 = vmatprep.mubr.bf16.mxu0 0
      %2562 = vmatmul.mubr.bf16.gmra.mrb[0].mxu0 %v2448
      %v2563 = vpop.f32.mrb[0].mxu0
      %v2564 = vadd.f32 0.0, %v2563
      %v2565 = vpop.f32.mrb[0].mxu0
      %v2566 = vpop.f32.mrb[0].mxu0
      %v2567 = vadd.f32 0.0, %v2566
      %v2568 = vpop.f32.mrb[0].mxu0
      %2569 = vmatprep.mubr.bf16.mxu0 0
      %2570 = vmatmul.mubr.bf16.gmra.mrb[0].mxu0 %v2449
      %v2571 = vpop.f32.mrb[0].mxu0
      %v2572 = vadd.f32 0.0, %v2571
      %v2573 = vpop.f32.mrb[0].mxu0
      %v2574 = vpop.f32.mrb[0].mxu0
      %v2575 = vadd.f32 0.0, %v2574
      %v2576 = vpop.f32.mrb[0].mxu0
      %2577 = vmatprep.mubr.bf16.mxu0 0
      %2578 = vmatmul.mubr.bf16.gmra.mrb[0].mxu0 %v2450
      %v2579 = vpop.f32.mrb[0].mxu0
      %v2580 = vadd.f32 0.0, %v2579
      %v2581 = vpop.f32.mrb[0].mxu0
      %v2582 = vpop.f32.mrb[0].mxu0
      %v2583 = vadd.f32 0.0, %v2582
      %v2584 = vpop.f32.mrb[0].mxu0
      %2585 = vmatprep.mubr.bf16.mxu0 0
      %2586 = vmatmul.mubr.bf16.gmra.mrb[0].mxu0 %v2451
      %v2587 = vpop.f32.mrb[0].mxu0
      %v2588 = vadd.f32 0.0, %v2587
      %v2589 = vpop.f32.mrb[0].mxu0
      %v2590 = vpop.f32.mrb[0].mxu0
      %v2591 = vadd.f32 0.0, %v2590
      %v2592 = vpop.f32.mrb[0].mxu0
      %2593 = vmatprep.mubr.bf16.mxu0 0
      %2594 = vmatmul.mubr.bf16.gmra.mrb[0].mxu0 %v2452
      %v2595 = vpop.f32.mrb[0].mxu0
      %v2596 = vadd.f32 0.0, %v2595
      %v2597 = vpop.f32.mrb[0].mxu0
      %v2598 = vpop.f32.mrb[0].mxu0
      %v2599 = vadd.f32 0.0, %v2598
      %v2600 = vpop.f32.mrb[0].mxu0
      %2601 = vmatprep.mubr.bf16.mxu0 0
      %2602 = vmatmul.mubr.bf16.gmra.mrb[0].mxu0 %v2453
      %v2603 = vpop.f32.mrb[0].mxu0
      %v2604 = vadd.f32 0.0, %v2603
      %v2605 = vpop.f32.mrb[0].mxu0
      %v2606 = vpop.f32.mrb[0].mxu0
      %v2607 = vadd.f32 0.0, %v2606
      %v2608 = vpop.f32.mrb[0].mxu0
      %2609 = vmatprep.mubr.bf16.mxu0 0
      %2610 = vmatmul.mubr.bf16.gmra.mrb[0].mxu0 %v2454
      %v2611 = vpop.f32.mrb[0].mxu0
      %v2612 = vadd.f32 0.0, %v2611
      %v2613 = vpop.f32.mrb[0].mxu0
      %v2614 = vpop.f32.mrb[0].mxu0
      %v2615 = vadd.f32 0.0, %v2614
      %v2616 = vpop.f32.mrb[0].mxu0
      %2617 = vmatprep.mubr.bf16.mxu0 0
      %2618 = vmatmul.mubr.bf16.gmra.mrb[0].mxu0 %v2455
      %v2619 = vpop.f32.mrb[0].mxu0
      %v2620 = vadd.f32 0.0, %v2619
      %v2621 = vpop.f32.mrb[0].mxu0
      %v2622 = vpop.f32.mrb[0].mxu0
      %v2623 = vadd.f32 0.0, %v2622
      %v2624 = vpop.f32.mrb[0].mxu0
      %2625 = vmatprep.mubr.bf16.mxu0 0
      %2626 = vmatmul.mubr.bf16.gmra.mrb[0].mxu0 %v2456
      %v2627 = vpop.f32.mrb[0].mxu0
      %v2628 = vadd.f32 0.0, %v2627
      %v2629 = vpop.f32.mrb[0].mxu0
      %v2630 = vpop.f32.mrb[0].mxu0
      %v2631 = vadd.f32 0.0, %v2630
      %v2632 = vpop.f32.mrb[0].mxu0
      %2633 = vmatprep.mubr.bf16.mxu0 0
      %2634 = vmatmul.mubr.bf16.gmra.mrb[0].mxu0 %v2457
      %v2635 = vpop.f32.mrb[0].mxu0
      %v2636 = vadd.f32 0.0, %v2635
      %v2637 = vpop.f32.mrb[0].mxu0
      %v2638 = vpop.f32.mrb[0].mxu0
      %v2639 = vadd.f32 0.0, %v2638
      %v2640 = vpop.f32.mrb[0].mxu0
      %2641 = vmatprep.mubr.bf16.mxu0 0
      %2642 = vmatmul.mubr.bf16.gmra.mrb[0].mxu0 %v2458
      %v2643 = vpop.f32.mrb[0].mxu0
      %v2644 = vadd.f32 0.0, %v2643
      %v2645 = vpop.f32.mrb[0].mxu0
      %v2646 = vpop.f32.mrb[0].mxu0
      %v2647 = vadd.f32 0.0, %v2646
      %v2648 = vpop.f32.mrb[0].mxu0
      %2649 = vmatprep.mubr.bf16.mxu0 0
      %2650 = vmatmul.mubr.bf16.gmra.mrb[0].mxu0 %v2459
      %v2651 = vpop.f32.mrb[0].mxu0
      %v2652 = vadd.f32 0.0, %v2651
      %v2653 = vpop.f32.mrb[0].mxu0
      %v2654 = vpop.f32.mrb[0].mxu0
      %v2655 = vadd.f32 0.0, %v2654
      %v2656 = vpop.f32.mrb[0].mxu0
      %2657 = vmatprep.mubr.bf16.mxu0 0
      %2658 = vmatmul.mubr.bf16.gmra.mrb[0].mxu0 %v2460
      %v2659 = vpop.f32.mrb[0].mxu0
      %v2660 = vadd.f32 0.0, %v2659
      %v2661 = vpop.f32.mrb[0].mxu0
      %v2662 = vpop.f32.mrb[0].mxu0
      %v2663 = vadd.f32 0.0, %v2662
      %v2664 = vpop.f32.mrb[0].mxu0
      %2665 = vmatprep.mubr.bf16.mxu0 0
      %2666 = vmatmul.mubr.bf16.gmra.mrb[0].mxu0 %v2461
      %v2667 = vpop.f32.mrb[0].mxu0
      %v2668 = vadd.f32 0.0, %v2667
      %v2669 = vpop.f32.mrb[0].mxu0
      %v2670 = vpop.f32.mrb[0].mxu0
      %v2671 = vadd.f32 0.0, %v2670
      %v2672 = vpop.f32.mrb[0].mxu0
      %2673 = vmatprep.mubr.bf16.mxu0 0
      %2674 = vmatmul.mubr.bf16.gmra.mrb[0].mxu0 %v2462
      %v2675 = vpop.f32.mrb[0].mxu0
      %v2676 = vadd.f32 0.0, %v2675
      %v2677 = vpop.f32.mrb[0].mxu0
      %v2678 = vpop.f32.mrb[0].mxu0
      %v2679 = vadd.f32 0.0, %v2678
      %v2680 = vpop.f32.mrb[0].mxu0
      %2681 = vmatprep.mubr.bf16.mxu0 0
      %2682 = vmatmul.mubr.bf16.gmra.mrb[0].mxu0 %v2463
      %v2683 = vpop.f32.mrb[0].mxu0
      %v2684 = vadd.f32 0.0, %v2683
      %v2685 = vpop.f32.mrb[0].mxu0
      %v2686 = vpop.f32.mrb[0].mxu0
      %v2687 = vadd.f32 0.0, %v2686
      %v2688 = vpop.f32.mrb[0].mxu0
      %2689 = vdwg.mxu0
      %v2690 = vadd.f32 %v2384, %v2564
      %v2691 = vadd.f32 %v2385, %v2567
      %v2692 = vadd.f32 %v2386, %v2572
      %v2693 = vadd.f32 %v2387, %v2575
      %v2694 = vadd.f32 %v2388, %v2580
      %v2695 = vadd.f32 %v2389, %v2583
      %v2696 = vadd.f32 %v2390, %v2588
      %v2697 = vadd.f32 %v2391, %v2591
      %v2698 = vadd.f32 %v2392, %v2596
      %v2699 = vadd.f32 %v2393, %v2599
      %v2700 = vadd.f32 %v2394, %v2604
      %v2701 = vadd.f32 %v2395, %v2607
      %v2702 = vadd.f32 %v2396, %v2612
      %v2703 = vadd.f32 %v2397, %v2615
      %v2704 = vadd.f32 %v2398, %v2620
      %v2705 = vadd.f32 %v2399, %v2623
      %v2706 = vadd.f32 %v2400, %v2628
      %v2707 = vadd.f32 %v2401, %v2631
      %v2708 = vadd.f32 %v2402, %v2636
      %v2709 = vadd.f32 %v2403, %v2639
      %v2710 = vadd.f32 %v2404, %v2644
      %v2711 = vadd.f32 %v2405, %v2647
      %v2712 = vadd.f32 %v2406, %v2652
      %v2713 = vadd.f32 %v2407, %v2655
      %v2714 = vadd.f32 %v2408, %v2660
      %v2715 = vadd.f32 %v2409, %v2663
      %v2716 = vadd.f32 %v2410, %v2668
      %v2717 = vadd.f32 %v2411, %v2671
      %v2718 = vadd.f32 %v2412, %v2676
      %v2719 = vadd.f32 %v2413, %v2679
      %v2720 = vadd.f32 %v2414, %v2684
      %v2721 = vadd.f32 %v2415, %v2687
      %v2722 = vld [vmem:[%s512 + $0x1] sm:$0xff]
      %v2723 = vld [vmem:[%s512 + $0x9] sm:$0xff]
      %v2724 = vld [vmem:[%s512 + $0x19] sm:$0xff]
      %v2725 = vld [vmem:[%s512 + $0x21] sm:$0xff]
      %v2726 = vld [vmem:[%s512 + $0x31] sm:$0xff]
      %v2727 = vld [vmem:[%s512 + $0x39] sm:$0xff]
      %v2728 = vld [vmem:[%s512 + $0x49] sm:$0xff]
      %v2729 = vld [vmem:[%s512 + $0x51] sm:$0xff]
      %v2730 = vld [vmem:[%s512 + $0x61] sm:$0xff]
      %v2731 = vld [vmem:[%s512 + $0x69] sm:$0xff]
      %v2732 = vld [vmem:[%s512 + $0x79] sm:$0xff]
      %v2733 = vld [vmem:[%s512 + $0x81] sm:$0xff]
      %v2734 = vld [vmem:[%s512 + $0x91] sm:$0xff]
      %v2735 = vld [vmem:[%s512 + $0x99] sm:$0xff]
      %v2736 = vld [vmem:[%s512 + $0xa9] sm:$0xff]
      %v2737 = vld [vmem:[%s512 + $0xb1] sm:$0xff]
      %v2738 = vld [vmem:[%s512 + $0xc1] sm:$0xff]
      %v2739 = vld [vmem:[%s512 + $0xc9] sm:$0xff]
      %v2740 = vld [vmem:[%s512 + $0xd9] sm:$0xff]
      %v2741 = vld [vmem:[%s512 + $0xe1] sm:$0xff]
      %v2742 = vld [vmem:[%s512 + $0xf1] sm:$0xff]
      %v2743 = vld [vmem:[%s512 + $0xf9] sm:$0xff]
      %v2744 = vld [vmem:[%s512 + $0x109] sm:$0xff]
      %v2745 = vld [vmem:[%s512 + $0x111] sm:$0xff]
      %v2746 = vld [vmem:[%s512 + $0x121] sm:$0xff]
      %v2747 = vld [vmem:[%s512 + $0x129] sm:$0xff]
      %v2748 = vld [vmem:[%s512 + $0x139] sm:$0xff]
      %v2749 = vld [vmem:[%s512 + $0x141] sm:$0xff]
      %v2750 = vld [vmem:[%s512 + $0x151] sm:$0xff]
      %v2751 = vld [vmem:[%s512 + $0x159] sm:$0xff]
      %v2752 = vld [vmem:[%s512 + $0x169] sm:$0xff]
      %v2753 = vld [vmem:[%s512 + $0x171] sm:$0xff]
      %v2754 = vpack.c.bf16 %v2723, %v2722
      %v2755 = vpack.c.bf16 %v2725, %v2724
      %v2756 = vpack.c.bf16 %v2727, %v2726
      %v2757 = vpack.c.bf16 %v2729, %v2728
      %v2758 = vpack.c.bf16 %v2731, %v2730
      %v2759 = vpack.c.bf16 %v2733, %v2732
      %v2760 = vpack.c.bf16 %v2735, %v2734
      %v2761 = vpack.c.bf16 %v2737, %v2736
      %v2762 = vpack.c.bf16 %v2739, %v2738
      %v2763 = vpack.c.bf16 %v2741, %v2740
      %v2764 = vpack.c.bf16 %v2743, %v2742
      %v2765 = vpack.c.bf16 %v2745, %v2744
      %v2766 = vpack.c.bf16 %v2747, %v2746
      %v2767 = vpack.c.bf16 %v2749, %v2748
      %v2768 = vpack.c.bf16 %v2751, %v2750
      %v2769 = vpack.c.bf16 %v2753, %v2752
      %s2770 = scalar_lea.vmem %s1, 448
      %v2771 = vld [vmem:[%s2770] sm:$0xf]
      %v2772 = vld [vmem:[%s2770 + $0x4] sm:$0xf]
      %v2773 = vld [vmem:[%s2770 + $0x8] sm:$0xf]
      %v2774 = vld [vmem:[%s2770 + $0xc] sm:$0xf]
      %v2775 = vld [vmem:[%s2770 + $0x10] sm:$0xf]
      %v2776 = vld [vmem:[%s2770 + $0x14] sm:$0xf]
      %v2777 = vld [vmem:[%s2770 + $0x18] sm:$0xf]
      %v2778 = vld [vmem:[%s2770 + $0x1c] sm:$0xf]
      %v2779 = vld [vmem:[%s2770 + $0x20] sm:$0xf]
      %v2780 = vld [vmem:[%s2770 + $0x24] sm:$0xf]
      %v2781 = vld [vmem:[%s2770 + $0x28] sm:$0xf]
      %v2782 = vld [vmem:[%s2770 + $0x2c] sm:$0xf]
      %v2783 = vld [vmem:[%s2770 + $0x30] sm:$0xf]
      %v2784 = vld [vmem:[%s2770 + $0x34] sm:$0xf]
      %v2785 = vld [vmem:[%s2770 + $0x38] sm:$0xf]
      %v2786 = vld [vmem:[%s2770 + $0x3c] sm:$0xf]
      %v2803 = vunpack.c.l.b16 %v2771
      %v2804 = vunpack.c.l.b16 %v2772
      %v2805 = vunpack.c.l.b16 %v2773
      %v2806 = vunpack.c.l.b16 %v2774
      %v2807 = vunpack.c.l.b16 %v2775
      %v2808 = vunpack.c.l.b16 %v2776
      %v2809 = vunpack.c.l.b16 %v2777
      %v2810 = vunpack.c.l.b16 %v2778
      %v2811 = vunpack.c.l.b16 %v2779
      %v2812 = vunpack.c.l.b16 %v2780
      %v2813 = vunpack.c.l.b16 %v2781
      %v2814 = vunpack.c.l.b16 %v2782
      %v2815 = vunpack.c.l.b16 %v2783
      %v2816 = vunpack.c.l.b16 %v2784
      %v2817 = vunpack.c.l.b16 %v2785
      %v2818 = vunpack.c.l.b16 %v2786
      %v2819 = vpack.c.b16 %v2804, %v2803
      %v2820 = vpack.c.b16 %v2806, %v2805
      %v2821 = vpack.c.b16 %v2808, %v2807
      %v2822 = vpack.c.b16 %v2810, %v2809
      %v2823 = vpack.c.b16 %v2812, %v2811
      %v2824 = vpack.c.b16 %v2814, %v2813
      %v2825 = vpack.c.b16 %v2816, %v2815
      %v2826 = vpack.c.b16 %v2818, %v2817
      %2835 = vmatprep.subr.bf16.mxu0 0
      %2836 = vmatpush1.bf16.msra.mxu0 %v2819
      %2837 = vmatprep.subr.bf16.mxu0 0
      %2838 = vmatpush1.bf16.msra.mxu0 %v2820
      %2839 = vmatprep.subr.bf16.mxu0 0
      %2840 = vmatpush1.bf16.msra.mxu0 %v2821
      %2841 = vmatprep.subr.bf16.mxu0 0
      %2842 = vmatpush1.bf16.msra.mxu0 %v2822
      %2843 = vmatprep.subr.bf16.mxu0 0
      %2844 = vmatpush1.bf16.msra.mxu0 %v2823
      %2845 = vmatprep.subr.bf16.mxu0 0
      %2846 = vmatpush1.bf16.msra.mxu0 %v2824
      %2847 = vmatprep.subr.bf16.mxu0 0
      %2848 = vmatpush1.bf16.msra.mxu0 %v2825
      %2849 = vmatprep.subr.bf16.mxu0 0
      %2850 = vmatpush1.bf16.msra.mxu0 %v2826
      %2851 = vmatprep.subr.bf16.mxu0 0
      %2852 = vmatpush1.bf16.msra.mxu0 0
      %2853 = vmatprep.subr.bf16.mxu0 0
      %2854 = vmatpush1.bf16.msra.mxu0 0
      %2855 = vmatprep.subr.bf16.mxu0 0
      %2856 = vmatpush1.bf16.msra.mxu0 0
      %2857 = vmatprep.subr.bf16.mxu0 0
      %2858 = vmatpush1.bf16.msra.mxu0 0
      %2859 = vmatprep.subr.bf16.mxu0 0
      %2860 = vmatpush1.bf16.msra.mxu0 0
      %2861 = vmatprep.subr.bf16.mxu0 0
      %2862 = vmatpush1.bf16.msra.mxu0 0
      %2863 = vmatprep.subr.bf16.mxu0 0
      %2864 = vmatpush1.bf16.msra.mxu0 0
      %2865 = vmatprep.subr.bf16.mxu0 0
      %2866 = vmatpush1.bf16.msra.mxu0 0
      %2867 = vmatprep.mubr.bf16.mxu0 0
      %2868 = vmatmul.mubr.bf16.gmra.mrb[0].mxu0 %v2754
      %v2869 = vpop.f32.mrb[0].mxu0
      %v2870 = vadd.f32 0.0, %v2869
      %v2871 = vpop.f32.mrb[0].mxu0
      %v2872 = vpop.f32.mrb[0].mxu0
      %v2873 = vadd.f32 0.0, %v2872
      %v2874 = vpop.f32.mrb[0].mxu0
      %2875 = vmatprep.mubr.bf16.mxu0 0
      %2876 = vmatmul.mubr.bf16.gmra.mrb[0].mxu0 %v2755
      %v2877 = vpop.f32.mrb[0].mxu0
      %v2878 = vadd.f32 0.0, %v2877
      %v2879 = vpop.f32.mrb[0].mxu0
      %v2880 = vpop.f32.mrb[0].mxu0
      %v2881 = vadd.f32 0.0, %v2880
      %v2882 = vpop.f32.mrb[0].mxu0
      %2883 = vmatprep.mubr.bf16.mxu0 0
      %2884 = vmatmul.mubr.bf16.gmra.mrb[0].mxu0 %v2756
      %v2885 = vpop.f32.mrb[0].mxu0
      %v2886 = vadd.f32 0.0, %v2885
      %v2887 = vpop.f32.mrb[0].mxu0
      %v2888 = vpop.f32.mrb[0].mxu0
      %v2889 = vadd.f32 0.0, %v2888
      %v2890 = vpop.f32.mrb[0].mxu0
      %2891 = vmatprep.mubr.bf16.mxu0 0
      %2892 = vmatmul.mubr.bf16.gmra.mrb[0].mxu0 %v2757
      %v2893 = vpop.f32.mrb[0].mxu0
      %v2894 = vadd.f32 0.0, %v2893
      %v2895 = vpop.f32.mrb[0].mxu0
      %v2896 = vpop.f32.mrb[0].mxu0
      %v2897 = vadd.f32 0.0, %v2896
      %v2898 = vpop.f32.mrb[0].mxu0
      %2899 = vmatprep.mubr.bf16.mxu0 0
      %2900 = vmatmul.mubr.bf16.gmra.mrb[0].mxu0 %v2758
      %v2901 = vpop.f32.mrb[0].mxu0
      %v2902 = vadd.f32 0.0, %v2901
      %v2903 = vpop.f32.mrb[0].mxu0
      %v2904 = vpop.f32.mrb[0].mxu0
      %v2905 = vadd.f32 0.0, %v2904
      %v2906 = vpop.f32.mrb[0].mxu0
      %2907 = vmatprep.mubr.bf16.mxu0 0
      %2908 = vmatmul.mubr.bf16.gmra.mrb[0].mxu0 %v2759
      %v2909 = vpop.f32.mrb[0].mxu0
      %v2910 = vadd.f32 0.0, %v2909
      %v2911 = vpop.f32.mrb[0].mxu0
      %v2912 = vpop.f32.mrb[0].mxu0
      %v2913 = vadd.f32 0.0, %v2912
      %v2914 = vpop.f32.mrb[0].mxu0
      %2915 = vmatprep.mubr.bf16.mxu0 0
      %2916 = vmatmul.mubr.bf16.gmra.mrb[0].mxu0 %v2760
      %v2917 = vpop.f32.mrb[0].mxu0
      %v2918 = vadd.f32 0.0, %v2917
      %v2919 = vpop.f32.mrb[0].mxu0
      %v2920 = vpop.f32.mrb[0].mxu0
      %v2921 = vadd.f32 0.0, %v2920
      %v2922 = vpop.f32.mrb[0].mxu0
      %2923 = vmatprep.mubr.bf16.mxu0 0
      %2924 = vmatmul.mubr.bf16.gmra.mrb[0].mxu0 %v2761
      %v2925 = vpop.f32.mrb[0].mxu0
      %v2926 = vadd.f32 0.0, %v2925
      %v2927 = vpop.f32.mrb[0].mxu0
      %v2928 = vpop.f32.mrb[0].mxu0
      %v2929 = vadd.f32 0.0, %v2928
      %v2930 = vpop.f32.mrb[0].mxu0
      %2931 = vmatprep.mubr.bf16.mxu0 0
      %2932 = vmatmul.mubr.bf16.gmra.mrb[0].mxu0 %v2762
      %v2933 = vpop.f32.mrb[0].mxu0
      %v2934 = vadd.f32 0.0, %v2933
      %v2935 = vpop.f32.mrb[0].mxu0
      %v2936 = vpop.f32.mrb[0].mxu0
      %v2937 = vadd.f32 0.0, %v2936
      %v2938 = vpop.f32.mrb[0].mxu0
      %2939 = vmatprep.mubr.bf16.mxu0 0
      %2940 = vmatmul.mubr.bf16.gmra.mrb[0].mxu0 %v2763
      %v2941 = vpop.f32.mrb[0].mxu0
      %v2942 = vadd.f32 0.0, %v2941
      %v2943 = vpop.f32.mrb[0].mxu0
      %v2944 = vpop.f32.mrb[0].mxu0
      %v2945 = vadd.f32 0.0, %v2944
      %v2946 = vpop.f32.mrb[0].mxu0
      %2947 = vmatprep.mubr.bf16.mxu0 0
      %2948 = vmatmul.mubr.bf16.gmra.mrb[0].mxu0 %v2764
      %v2949 = vpop.f32.mrb[0].mxu0
      %v2950 = vadd.f32 0.0, %v2949
      %v2951 = vpop.f32.mrb[0].mxu0
      %v2952 = vpop.f32.mrb[0].mxu0
      %v2953 = vadd.f32 0.0, %v2952
      %v2954 = vpop.f32.mrb[0].mxu0
      %2955 = vmatprep.mubr.bf16.mxu0 0
      %2956 = vmatmul.mubr.bf16.gmra.mrb[0].mxu0 %v2765
      %v2957 = vpop.f32.mrb[0].mxu0
      %v2958 = vadd.f32 0.0, %v2957
      %v2959 = vpop.f32.mrb[0].mxu0
      %v2960 = vpop.f32.mrb[0].mxu0
      %v2961 = vadd.f32 0.0, %v2960
      %v2962 = vpop.f32.mrb[0].mxu0
      %2963 = vmatprep.mubr.bf16.mxu0 0
      %2964 = vmatmul.mubr.bf16.gmra.mrb[0].mxu0 %v2766
      %v2965 = vpop.f32.mrb[0].mxu0
      %v2966 = vadd.f32 0.0, %v2965
      %v2967 = vpop.f32.mrb[0].mxu0
      %v2968 = vpop.f32.mrb[0].mxu0
      %v2969 = vadd.f32 0.0, %v2968
      %v2970 = vpop.f32.mrb[0].mxu0
      %2971 = vmatprep.mubr.bf16.mxu0 0
      %2972 = vmatmul.mubr.bf16.gmra.mrb[0].mxu0 %v2767
      %v2973 = vpop.f32.mrb[0].mxu0
      %v2974 = vadd.f32 0.0, %v2973
      %v2975 = vpop.f32.mrb[0].mxu0
      %v2976 = vpop.f32.mrb[0].mxu0
      %v2977 = vadd.f32 0.0, %v2976
      %v2978 = vpop.f32.mrb[0].mxu0
      %2979 = vmatprep.mubr.bf16.mxu0 0
      %2980 = vmatmul.mubr.bf16.gmra.mrb[0].mxu0 %v2768
      %v2981 = vpop.f32.mrb[0].mxu0
      %v2982 = vadd.f32 0.0, %v2981
      %v2983 = vpop.f32.mrb[0].mxu0
      %v2984 = vpop.f32.mrb[0].mxu0
      %v2985 = vadd.f32 0.0, %v2984
      %v2986 = vpop.f32.mrb[0].mxu0
      %2987 = vmatprep.mubr.bf16.mxu0 0
      %2988 = vmatmul.mubr.bf16.gmra.mrb[0].mxu0 %v2769
      %v2989 = vpop.f32.mrb[0].mxu0
      %v2990 = vadd.f32 0.0, %v2989
      %v2991 = vpop.f32.mrb[0].mxu0
      %v2992 = vpop.f32.mrb[0].mxu0
      %v2993 = vadd.f32 0.0, %v2992
      %v2994 = vpop.f32.mrb[0].mxu0
      %2995 = vdwg.mxu0
      %v2996 = vadd.f32 %v2690, %v2870
      %v2997 = vadd.f32 %v2691, %v2873
      %v2998 = vadd.f32 %v2692, %v2878
      %v2999 = vadd.f32 %v2693, %v2881
      %v3000 = vadd.f32 %v2694, %v2886
      %v3001 = vadd.f32 %v2695, %v2889
      %v3002 = vadd.f32 %v2696, %v2894
      %v3003 = vadd.f32 %v2697, %v2897
      %v3004 = vadd.f32 %v2698, %v2902
      %v3005 = vadd.f32 %v2699, %v2905
      %v3006 = vadd.f32 %v2700, %v2910
      %v3007 = vadd.f32 %v2701, %v2913
      %v3008 = vadd.f32 %v2702, %v2918
      %v3009 = vadd.f32 %v2703, %v2921
      %v3010 = vadd.f32 %v2704, %v2926
      %v3011 = vadd.f32 %v2705, %v2929
      %v3012 = vadd.f32 %v2706, %v2934
      %v3013 = vadd.f32 %v2707, %v2937
      %v3014 = vadd.f32 %v2708, %v2942
      %v3015 = vadd.f32 %v2709, %v2945
      %v3016 = vadd.f32 %v2710, %v2950
      %v3017 = vadd.f32 %v2711, %v2953
      %v3018 = vadd.f32 %v2712, %v2958
      %v3019 = vadd.f32 %v2713, %v2961
      %v3020 = vadd.f32 %v2714, %v2966
      %v3021 = vadd.f32 %v2715, %v2969
      %v3022 = vadd.f32 %v2716, %v2974
      %v3023 = vadd.f32 %v2717, %v2977
      %v3024 = vadd.f32 %v2718, %v2982
      %v3025 = vadd.f32 %v2719, %v2985
      %v3026 = vadd.f32 %v2720, %v2990
      %v3027 = vadd.f32 %v2721, %v2993
      %v3028 = vld [vmem:[%s610 + $0x1] sm:$0xff]
      %v3029 = vld [vmem:[%s610 + $0x9] sm:$0xff]
      %v3030 = vld [vmem:[%s610 + $0x19] sm:$0xff]
      %v3031 = vld [vmem:[%s610 + $0x21] sm:$0xff]
      %v3032 = vld [vmem:[%s610 + $0x31] sm:$0xff]
      %v3033 = vld [vmem:[%s610 + $0x39] sm:$0xff]
      %v3034 = vld [vmem:[%s610 + $0x49] sm:$0xff]
      %v3035 = vld [vmem:[%s610 + $0x51] sm:$0xff]
      %v3036 = vld [vmem:[%s610 + $0x61] sm:$0xff]
      %v3037 = vld [vmem:[%s610 + $0x69] sm:$0xff]
      %v3038 = vld [vmem:[%s610 + $0x79] sm:$0xff]
      %v3039 = vld [vmem:[%s610 + $0x81] sm:$0xff]
      %v3040 = vld [vmem:[%s610 + $0x91] sm:$0xff]
      %v3041 = vld [vmem:[%s610 + $0x99] sm:$0xff]
      %v3042 = vld [vmem:[%s610 + $0xa9] sm:$0xff]
      %v3043 = vld [vmem:[%s610 + $0xb1] sm:$0xff]
      %v3044 = vld [vmem:[%s610 + $0xc1] sm:$0xff]
      %v3045 = vld [vmem:[%s610 + $0xc9] sm:$0xff]
      %v3046 = vld [vmem:[%s610 + $0xd9] sm:$0xff]
      %v3047 = vld [vmem:[%s610 + $0xe1] sm:$0xff]
      %v3048 = vld [vmem:[%s610 + $0xf1] sm:$0xff]
      %v3049 = vld [vmem:[%s610 + $0xf9] sm:$0xff]
      %v3050 = vld [vmem:[%s610 + $0x109] sm:$0xff]
      %v3051 = vld [vmem:[%s610 + $0x111] sm:$0xff]
      %v3052 = vld [vmem:[%s610 + $0x121] sm:$0xff]
      %v3053 = vld [vmem:[%s610 + $0x129] sm:$0xff]
      %v3054 = vld [vmem:[%s610 + $0x139] sm:$0xff]
      %v3055 = vld [vmem:[%s610 + $0x141] sm:$0xff]
      %v3056 = vld [vmem:[%s610 + $0x151] sm:$0xff]
      %v3057 = vld [vmem:[%s610 + $0x159] sm:$0xff]
      %v3058 = vld [vmem:[%s610 + $0x169] sm:$0xff]
      %v3059 = vld [vmem:[%s610 + $0x171] sm:$0xff]
      %v3060 = vpack.c.bf16 %v3029, %v3028
      %v3061 = vpack.c.bf16 %v3031, %v3030
      %v3062 = vpack.c.bf16 %v3033, %v3032
      %v3063 = vpack.c.bf16 %v3035, %v3034
      %v3064 = vpack.c.bf16 %v3037, %v3036
      %v3065 = vpack.c.bf16 %v3039, %v3038
      %v3066 = vpack.c.bf16 %v3041, %v3040
      %v3067 = vpack.c.bf16 %v3043, %v3042
      %v3068 = vpack.c.bf16 %v3045, %v3044
      %v3069 = vpack.c.bf16 %v3047, %v3046
      %v3070 = vpack.c.bf16 %v3049, %v3048
      %v3071 = vpack.c.bf16 %v3051, %v3050
      %v3072 = vpack.c.bf16 %v3053, %v3052
      %v3073 = vpack.c.bf16 %v3055, %v3054
      %v3074 = vpack.c.bf16 %v3057, %v3056
      %v3075 = vpack.c.bf16 %v3059, %v3058
      %s3076 = scalar_lea.vmem %s1, 512
      %v3077 = vld [vmem:[%s3076] sm:$0xf]
      %v3078 = vld [vmem:[%s3076 + $0x4] sm:$0xf]
      %v3079 = vld [vmem:[%s3076 + $0x8] sm:$0xf]
      %v3080 = vld [vmem:[%s3076 + $0xc] sm:$0xf]
      %v3081 = vld [vmem:[%s3076 + $0x10] sm:$0xf]
      %v3082 = vld [vmem:[%s3076 + $0x14] sm:$0xf]
      %v3083 = vld [vmem:[%s3076 + $0x18] sm:$0xf]
      %v3084 = vld [vmem:[%s3076 + $0x1c] sm:$0xf]
      %v3085 = vld [vmem:[%s3076 + $0x20] sm:$0xf]
      %v3086 = vld [vmem:[%s3076 + $0x24] sm:$0xf]
      %v3087 = vld [vmem:[%s3076 + $0x28] sm:$0xf]
      %v3088 = vld [vmem:[%s3076 + $0x2c] sm:$0xf]
      %v3089 = vld [vmem:[%s3076 + $0x30] sm:$0xf]
      %v3090 = vld [vmem:[%s3076 + $0x34] sm:$0xf]
      %v3091 = vld [vmem:[%s3076 + $0x38] sm:$0xf]
      %v3092 = vld [vmem:[%s3076 + $0x3c] sm:$0xf]
      %v3109 = vunpack.c.l.b16 %v3077
      %v3110 = vunpack.c.l.b16 %v3078
      %v3111 = vunpack.c.l.b16 %v3079
      %v3112 = vunpack.c.l.b16 %v3080
      %v3113 = vunpack.c.l.b16 %v3081
      %v3114 = vunpack.c.l.b16 %v3082
      %v3115 = vunpack.c.l.b16 %v3083
      %v3116 = vunpack.c.l.b16 %v3084
      %v3117 = vunpack.c.l.b16 %v3085
      %v3118 = vunpack.c.l.b16 %v3086
      %v3119 = vunpack.c.l.b16 %v3087
      %v3120 = vunpack.c.l.b16 %v3088
      %v3121 = vunpack.c.l.b16 %v3089
      %v3122 = vunpack.c.l.b16 %v3090
      %v3123 = vunpack.c.l.b16 %v3091
      %v3124 = vunpack.c.l.b16 %v3092
      %v3125 = vpack.c.b16 %v3110, %v3109
      %v3126 = vpack.c.b16 %v3112, %v3111
      %v3127 = vpack.c.b16 %v3114, %v3113
      %v3128 = vpack.c.b16 %v3116, %v3115
      %v3129 = vpack.c.b16 %v3118, %v3117
      %v3130 = vpack.c.b16 %v3120, %v3119
      %v3131 = vpack.c.b16 %v3122, %v3121
      %v3132 = vpack.c.b16 %v3124, %v3123
      %3141 = vmatprep.subr.bf16.mxu0 0
      %3142 = vmatpush1.bf16.msra.mxu0 %v3125
      %3143 = vmatprep.subr.bf16.mxu0 0
      %3144 = vmatpush1.bf16.msra.mxu0 %v3126
      %3145 = vmatprep.subr.bf16.mxu0 0
      %3146 = vmatpush1.bf16.msra.mxu0 %v3127
      %3147 = vmatprep.subr.bf16.mxu0 0
      %3148 = vmatpush1.bf16.msra.mxu0 %v3128
      %3149 = vmatprep.subr.bf16.mxu0 0
      %3150 = vmatpush1.bf16.msra.mxu0 %v3129
      %3151 = vmatprep.subr.bf16.mxu0 0
      %3152 = vmatpush1.bf16.msra.mxu0 %v3130
      %3153 = vmatprep.subr.bf16.mxu0 0
      %3154 = vmatpush1.bf16.msra.mxu0 %v3131
      %3155 = vmatprep.subr.bf16.mxu0 0
      %3156 = vmatpush1.bf16.msra.mxu0 %v3132
      %3157 = vmatprep.subr.bf16.mxu0 0
      %3158 = vmatpush1.bf16.msra.mxu0 0
      %3159 = vmatprep.subr.bf16.mxu0 0
      %3160 = vmatpush1.bf16.msra.mxu0 0
      %3161 = vmatprep.subr.bf16.mxu0 0
      %3162 = vmatpush1.bf16.msra.mxu0 0
      %3163 = vmatprep.subr.bf16.mxu0 0
      %3164 = vmatpush1.bf16.msra.mxu0 0
      %3165 = vmatprep.subr.bf16.mxu0 0
      %3166 = vmatpush1.bf16.msra.mxu0 0
      %3167 = vmatprep.subr.bf16.mxu0 0
      %3168 = vmatpush1.bf16.msra.mxu0 0
      %3169 = vmatprep.subr.bf16.mxu0 0
      %3170 = vmatpush1.bf16.msra.mxu0 0
      %3171 = vmatprep.subr.bf16.mxu0 0
      %3172 = vmatpush1.bf16.msra.mxu0 0
      %3173 = vmatprep.mubr.bf16.mxu0 0
      %3174 = vmatmul.mubr.bf16.gmra.mrb[0].mxu0 %v3060
      %v3175 = vpop.f32.mrb[0].mxu0
      %v3176 = vadd.f32 0.0, %v3175
      %v3177 = vpop.f32.mrb[0].mxu0
      %v3178 = vpop.f32.mrb[0].mxu0
      %v3179 = vadd.f32 0.0, %v3178
      %v3180 = vpop.f32.mrb[0].mxu0
      %3181 = vmatprep.mubr.bf16.mxu0 0
      %3182 = vmatmul.mubr.bf16.gmra.mrb[0].mxu0 %v3061
      %v3183 = vpop.f32.mrb[0].mxu0
      %v3184 = vadd.f32 0.0, %v3183
      %v3185 = vpop.f32.mrb[0].mxu0
      %v3186 = vpop.f32.mrb[0].mxu0
      %v3187 = vadd.f32 0.0, %v3186
      %v3188 = vpop.f32.mrb[0].mxu0
      %3189 = vmatprep.mubr.bf16.mxu0 0
      %3190 = vmatmul.mubr.bf16.gmra.mrb[0].mxu0 %v3062
      %v3191 = vpop.f32.mrb[0].mxu0
      %v3192 = vadd.f32 0.0, %v3191
      %v3193 = vpop.f32.mrb[0].mxu0
      %v3194 = vpop.f32.mrb[0].mxu0
      %v3195 = vadd.f32 0.0, %v3194
      %v3196 = vpop.f32.mrb[0].mxu0
      %3197 = vmatprep.mubr.bf16.mxu0 0
      %3198 = vmatmul.mubr.bf16.gmra.mrb[0].mxu0 %v3063
      %v3199 = vpop.f32.mrb[0].mxu0
      %v3200 = vadd.f32 0.0, %v3199
      %v3201 = vpop.f32.mrb[0].mxu0
      %v3202 = vpop.f32.mrb[0].mxu0
      %v3203 = vadd.f32 0.0, %v3202
      %v3204 = vpop.f32.mrb[0].mxu0
      %3205 = vmatprep.mubr.bf16.mxu0 0
      %3206 = vmatmul.mubr.bf16.gmra.mrb[0].mxu0 %v3064
      %v3207 = vpop.f32.mrb[0].mxu0
      %v3208 = vadd.f32 0.0, %v3207
      %v3209 = vpop.f32.mrb[0].mxu0
      %v3210 = vpop.f32.mrb[0].mxu0
      %v3211 = vadd.f32 0.0, %v3210
      %v3212 = vpop.f32.mrb[0].mxu0
      %3213 = vmatprep.mubr.bf16.mxu0 0
      %3214 = vmatmul.mubr.bf16.gmra.mrb[0].mxu0 %v3065
      %v3215 = vpop.f32.mrb[0].mxu0
      %v3216 = vadd.f32 0.0, %v3215
      %v3217 = vpop.f32.mrb[0].mxu0
      %v3218 = vpop.f32.mrb[0].mxu0
      %v3219 = vadd.f32 0.0, %v3218
      %v3220 = vpop.f32.mrb[0].mxu0
      %3221 = vmatprep.mubr.bf16.mxu0 0
      %3222 = vmatmul.mubr.bf16.gmra.mrb[0].mxu0 %v3066
      %v3223 = vpop.f32.mrb[0].mxu0
      %v3224 = vadd.f32 0.0, %v3223
      %v3225 = vpop.f32.mrb[0].mxu0
      %v3226 = vpop.f32.mrb[0].mxu0
      %v3227 = vadd.f32 0.0, %v3226
      %v3228 = vpop.f32.mrb[0].mxu0
      %3229 = vmatprep.mubr.bf16.mxu0 0
      %3230 = vmatmul.mubr.bf16.gmra.mrb[0].mxu0 %v3067
      %v3231 = vpop.f32.mrb[0].mxu0
      %v3232 = vadd.f32 0.0, %v3231
      %v3233 = vpop.f32.mrb[0].mxu0
      %v3234 = vpop.f32.mrb[0].mxu0
      %v3235 = vadd.f32 0.0, %v3234
      %v3236 = vpop.f32.mrb[0].mxu0
      %3237 = vmatprep.mubr.bf16.mxu0 0
      %3238 = vmatmul.mubr.bf16.gmra.mrb[0].mxu0 %v3068
      %v3239 = vpop.f32.mrb[0].mxu0
      %v3240 = vadd.f32 0.0, %v3239
      %v3241 = vpop.f32.mrb[0].mxu0
      %v3242 = vpop.f32.mrb[0].mxu0
      %v3243 = vadd.f32 0.0, %v3242
      %v3244 = vpop.f32.mrb[0].mxu0
      %3245 = vmatprep.mubr.bf16.mxu0 0
      %3246 = vmatmul.mubr.bf16.gmra.mrb[0].mxu0 %v3069
      %v3247 = vpop.f32.mrb[0].mxu0
      %v3248 = vadd.f32 0.0, %v3247
      %v3249 = vpop.f32.mrb[0].mxu0
      %v3250 = vpop.f32.mrb[0].mxu0
      %v3251 = vadd.f32 0.0, %v3250
      %v3252 = vpop.f32.mrb[0].mxu0
      %3253 = vmatprep.mubr.bf16.mxu0 0
      %3254 = vmatmul.mubr.bf16.gmra.mrb[0].mxu0 %v3070
      %v3255 = vpop.f32.mrb[0].mxu0
      %v3256 = vadd.f32 0.0, %v3255
      %v3257 = vpop.f32.mrb[0].mxu0
      %v3258 = vpop.f32.mrb[0].mxu0
      %v3259 = vadd.f32 0.0, %v3258
      %v3260 = vpop.f32.mrb[0].mxu0
      %3261 = vmatprep.mubr.bf16.mxu0 0
      %3262 = vmatmul.mubr.bf16.gmra.mrb[0].mxu0 %v3071
      %v3263 = vpop.f32.mrb[0].mxu0
      %v3264 = vadd.f32 0.0, %v3263
      %v3265 = vpop.f32.mrb[0].mxu0
      %v3266 = vpop.f32.mrb[0].mxu0
      %v3267 = vadd.f32 0.0, %v3266
      %v3268 = vpop.f32.mrb[0].mxu0
      %3269 = vmatprep.mubr.bf16.mxu0 0
      %3270 = vmatmul.mubr.bf16.gmra.mrb[0].mxu0 %v3072
      %v3271 = vpop.f32.mrb[0].mxu0
      %v3272 = vadd.f32 0.0, %v3271
      %v3273 = vpop.f32.mrb[0].mxu0
      %v3274 = vpop.f32.mrb[0].mxu0
      %v3275 = vadd.f32 0.0, %v3274
      %v3276 = vpop.f32.mrb[0].mxu0
      %3277 = vmatprep.mubr.bf16.mxu0 0
      %3278 = vmatmul.mubr.bf16.gmra.mrb[0].mxu0 %v3073
      %v3279 = vpop.f32.mrb[0].mxu0
      %v3280 = vadd.f32 0.0, %v3279
      %v3281 = vpop.f32.mrb[0].mxu0
      %v3282 = vpop.f32.mrb[0].mxu0
      %v3283 = vadd.f32 0.0, %v3282
      %v3284 = vpop.f32.mrb[0].mxu0
      %3285 = vmatprep.mubr.bf16.mxu0 0
      %3286 = vmatmul.mubr.bf16.gmra.mrb[0].mxu0 %v3074
      %v3287 = vpop.f32.mrb[0].mxu0
      %v3288 = vadd.f32 0.0, %v3287
      %v3289 = vpop.f32.mrb[0].mxu0
      %v3290 = vpop.f32.mrb[0].mxu0
      %v3291 = vadd.f32 0.0, %v3290
      %v3292 = vpop.f32.mrb[0].mxu0
      %3293 = vmatprep.mubr.bf16.mxu0 0
      %3294 = vmatmul.mubr.bf16.gmra.mrb[0].mxu0 %v3075
      %v3295 = vpop.f32.mrb[0].mxu0
      %v3296 = vadd.f32 0.0, %v3295
      %v3297 = vpop.f32.mrb[0].mxu0
      %v3298 = vpop.f32.mrb[0].mxu0
      %v3299 = vadd.f32 0.0, %v3298
      %v3300 = vpop.f32.mrb[0].mxu0
      %3301 = vdwg.mxu0
      %v3302 = vadd.f32 %v2996, %v3176
      %v3303 = vadd.f32 %v2997, %v3179
      %v3304 = vadd.f32 %v2998, %v3184
      %v3305 = vadd.f32 %v2999, %v3187
      %v3306 = vadd.f32 %v3000, %v3192
      %v3307 = vadd.f32 %v3001, %v3195
      %v3308 = vadd.f32 %v3002, %v3200
      %v3309 = vadd.f32 %v3003, %v3203
      %v3310 = vadd.f32 %v3004, %v3208
      %v3311 = vadd.f32 %v3005, %v3211
      %v3312 = vadd.f32 %v3006, %v3216
      %v3313 = vadd.f32 %v3007, %v3219
      %v3314 = vadd.f32 %v3008, %v3224
      %v3315 = vadd.f32 %v3009, %v3227
      %v3316 = vadd.f32 %v3010, %v3232
      %v3317 = vadd.f32 %v3011, %v3235
      %v3318 = vadd.f32 %v3012, %v3240
      %v3319 = vadd.f32 %v3013, %v3243
      %v3320 = vadd.f32 %v3014, %v3248
      %v3321 = vadd.f32 %v3015, %v3251
      %v3322 = vadd.f32 %v3016, %v3256
      %v3323 = vadd.f32 %v3017, %v3259
      %v3324 = vadd.f32 %v3018, %v3264
      %v3325 = vadd.f32 %v3019, %v3267
      %v3326 = vadd.f32 %v3020, %v3272
      %v3327 = vadd.f32 %v3021, %v3275
      %v3328 = vadd.f32 %v3022, %v3280
      %v3329 = vadd.f32 %v3023, %v3283
      %v3330 = vadd.f32 %v3024, %v3288
      %v3331 = vadd.f32 %v3025, %v3291
      %v3332 = vadd.f32 %v3026, %v3296
      %v3333 = vadd.f32 %v3027, %v3299
      %v3334 = vld [vmem:[%s2] sm:$0x1]
      %v3336 = vlaneseq
      %v3337 = vshrl.u32 %v3336, 7
      %v3338 = vsub.s32 0, %v3337
      %v3339 = vrot.slane %v3334, %v3338
      %v3341 = vadd.f32 %v3302, %v3339
      %v3342 = vadd.f32 %v3303, %v3339
      %v3343 = vadd.f32 %v3304, %v3339
      %v3344 = vadd.f32 %v3305, %v3339
      %v3345 = vadd.f32 %v3306, %v3339
      %v3346 = vadd.f32 %v3307, %v3339
      %v3347 = vadd.f32 %v3308, %v3339
      %v3348 = vadd.f32 %v3309, %v3339
      %v3349 = vadd.f32 %v3310, %v3339
      %v3350 = vadd.f32 %v3311, %v3339
      %v3351 = vadd.f32 %v3312, %v3339
      %v3352 = vadd.f32 %v3313, %v3339
      %v3353 = vadd.f32 %v3314, %v3339
      %v3354 = vadd.f32 %v3315, %v3339
      %v3355 = vadd.f32 %v3316, %v3339
      %v3356 = vadd.f32 %v3317, %v3339
      %v3357 = vadd.f32 %v3318, %v3339
      %v3358 = vadd.f32 %v3319, %v3339
      %v3359 = vadd.f32 %v3320, %v3339
      %v3360 = vadd.f32 %v3321, %v3339
      %v3361 = vadd.f32 %v3322, %v3339
      %v3362 = vadd.f32 %v3323, %v3339
      %v3363 = vadd.f32 %v3324, %v3339
      %v3364 = vadd.f32 %v3325, %v3339
      %v3365 = vadd.f32 %v3326, %v3339
      %v3366 = vadd.f32 %v3327, %v3339
      %v3367 = vadd.f32 %v3328, %v3339
      %v3368 = vadd.f32 %v3329, %v3339
      %v3369 = vadd.f32 %v3330, %v3339
      %v3370 = vadd.f32 %v3331, %v3339
      %v3371 = vadd.f32 %v3332, %v3339
      %v3372 = vadd.f32 %v3333, %v3339
      %v3373 = vmax.f32 %v3341, 0.0
      %v3374 = vmax.f32 %v3342, 0.0
      %v3375 = vmax.f32 %v3343, 0.0
      %v3376 = vmax.f32 %v3344, 0.0
      %v3377 = vmax.f32 %v3345, 0.0
      %v3378 = vmax.f32 %v3346, 0.0
      %v3379 = vmax.f32 %v3347, 0.0
      %v3380 = vmax.f32 %v3348, 0.0
      %v3381 = vmax.f32 %v3349, 0.0
      %v3382 = vmax.f32 %v3350, 0.0
      %v3383 = vmax.f32 %v3351, 0.0
      %v3384 = vmax.f32 %v3352, 0.0
      %v3385 = vmax.f32 %v3353, 0.0
      %v3386 = vmax.f32 %v3354, 0.0
      %v3387 = vmax.f32 %v3355, 0.0
      %v3388 = vmax.f32 %v3356, 0.0
      %v3389 = vmax.f32 %v3357, 0.0
      %v3390 = vmax.f32 %v3358, 0.0
      %v3391 = vmax.f32 %v3359, 0.0
      %v3392 = vmax.f32 %v3360, 0.0
      %v3393 = vmax.f32 %v3361, 0.0
      %v3394 = vmax.f32 %v3362, 0.0
      %v3395 = vmax.f32 %v3363, 0.0
      %v3396 = vmax.f32 %v3364, 0.0
      %v3397 = vmax.f32 %v3365, 0.0
      %v3398 = vmax.f32 %v3366, 0.0
      %v3399 = vmax.f32 %v3367, 0.0
      %v3400 = vmax.f32 %v3368, 0.0
      %v3401 = vmax.f32 %v3369, 0.0
      %v3402 = vmax.f32 %v3370, 0.0
      %v3403 = vmax.f32 %v3371, 0.0
      %v3404 = vmax.f32 %v3372, 0.0
      %v3405 = vpack.c.bf16 %v3374, %v3373
      %v3406 = vpack.c.bf16 %v3376, %v3375
      %v3407 = vpack.c.bf16 %v3378, %v3377
      %v3408 = vpack.c.bf16 %v3380, %v3379
      %v3409 = vpack.c.bf16 %v3382, %v3381
      %v3410 = vpack.c.bf16 %v3384, %v3383
      %v3411 = vpack.c.bf16 %v3386, %v3385
      %v3412 = vpack.c.bf16 %v3388, %v3387
      %v3413 = vpack.c.bf16 %v3390, %v3389
      %v3414 = vpack.c.bf16 %v3392, %v3391
      %v3415 = vpack.c.bf16 %v3394, %v3393
      %v3416 = vpack.c.bf16 %v3396, %v3395
      %v3417 = vpack.c.bf16 %v3398, %v3397
      %v3418 = vpack.c.bf16 %v3400, %v3399
      %v3419 = vpack.c.bf16 %v3402, %v3401
      %v3420 = vpack.c.bf16 %v3404, %v3403
      %v3437 = vunpack.c.l.b16 %v3405
      %v3438 = vunpack.c.h.b16 %v3405
      %v3439 = vunpack.c.l.b16 %v3406
      %v3440 = vunpack.c.h.b16 %v3406
      %v3441 = vunpack.c.l.b16 %v3407
      %v3442 = vunpack.c.h.b16 %v3407
      %v3443 = vunpack.c.l.b16 %v3408
      %v3444 = vunpack.c.h.b16 %v3408
      %v3445 = vunpack.c.l.b16 %v3409
      %v3446 = vunpack.c.h.b16 %v3409
      %v3447 = vunpack.c.l.b16 %v3410
      %v3448 = vunpack.c.h.b16 %v3410
      %v3449 = vunpack.c.l.b16 %v3411
      %v3450 = vunpack.c.h.b16 %v3411
      %v3451 = vunpack.c.l.b16 %v3412
      %v3452 = vunpack.c.h.b16 %v3412
      %v3453 = vunpack.c.l.b16 %v3413
      %v3454 = vunpack.c.h.b16 %v3413
      %v3455 = vunpack.c.l.b16 %v3414
      %v3456 = vunpack.c.h.b16 %v3414
      %v3457 = vunpack.c.l.b16 %v3415
      %v3458 = vunpack.c.h.b16 %v3415
      %v3459 = vunpack.c.l.b16 %v3416
      %v3460 = vunpack.c.h.b16 %v3416
      %v3461 = vunpack.c.l.b16 %v3417
      %v3462 = vunpack.c.h.b16 %v3417
      %v3463 = vunpack.c.l.b16 %v3418
      %v3464 = vunpack.c.h.b16 %v3418
      %v3465 = vunpack.c.l.b16 %v3419
      %v3466 = vunpack.c.h.b16 %v3419
      %v3467 = vunpack.c.l.b16 %v3420
      %v3468 = vunpack.c.h.b16 %v3420
      %v3469 = vpack.c.b16 %v3437, %v3437
      %v3470 = vpack.c.b16 %v3438, %v3438
      %v3471 = vpack.c.b16 %v3439, %v3439
      %v3472 = vpack.c.b16 %v3440, %v3440
      %v3473 = vpack.c.b16 %v3441, %v3441
      %v3474 = vpack.c.b16 %v3442, %v3442
      %v3475 = vpack.c.b16 %v3443, %v3443
      %v3476 = vpack.c.b16 %v3444, %v3444
      %v3477 = vpack.c.b16 %v3445, %v3445
      %v3478 = vpack.c.b16 %v3446, %v3446
      %v3479 = vpack.c.b16 %v3447, %v3447
      %v3480 = vpack.c.b16 %v3448, %v3448
      %v3481 = vpack.c.b16 %v3449, %v3449
      %v3482 = vpack.c.b16 %v3450, %v3450
      %v3483 = vpack.c.b16 %v3451, %v3451
      %v3484 = vpack.c.b16 %v3452, %v3452
      %v3485 = vpack.c.b16 %v3453, %v3453
      %v3486 = vpack.c.b16 %v3454, %v3454
      %v3487 = vpack.c.b16 %v3455, %v3455
      %v3488 = vpack.c.b16 %v3456, %v3456
      %v3489 = vpack.c.b16 %v3457, %v3457
      %v3490 = vpack.c.b16 %v3458, %v3458
      %v3491 = vpack.c.b16 %v3459, %v3459
      %v3492 = vpack.c.b16 %v3460, %v3460
      %v3493 = vpack.c.b16 %v3461, %v3461
      %v3494 = vpack.c.b16 %v3462, %v3462
      %v3495 = vpack.c.b16 %v3463, %v3463
      %v3496 = vpack.c.b16 %v3464, %v3464
      %v3497 = vpack.c.b16 %v3465, %v3465
      %v3498 = vpack.c.b16 %v3466, %v3466
      %v3499 = vpack.c.b16 %v3467, %v3467
      %v3500 = vpack.c.b16 %v3468, %v3468
      %vm3533 = vcmask 257024
      %3534 = vst.msk [vmem:[%s170] sm:$0xf] %vm3533, %v3469
      %3535 = vst.msk [vmem:[%s170 + $0x4] sm:$0xf] %vm3533, %v3470
      %3536 = vst.msk [vmem:[%s170 + $0x8] sm:$0xf] %vm3533, %v3471
      %3537 = vst.msk [vmem:[%s170 + $0xc] sm:$0xf] %vm3533, %v3472
      %3538 = vst.msk [vmem:[%s170 + $0x10] sm:$0xf] %vm3533, %v3473
      %3539 = vst.msk [vmem:[%s170 + $0x14] sm:$0xf] %vm3533, %v3474
      %3540 = vst.msk [vmem:[%s170 + $0x18] sm:$0xf] %vm3533, %v3475
      %3541 = vst.msk [vmem:[%s170 + $0x1c] sm:$0xf] %vm3533, %v3476
      %3542 = vst.msk [vmem:[%s170 + $0x20] sm:$0xf] %vm3533, %v3477
      %3543 = vst.msk [vmem:[%s170 + $0x24] sm:$0xf] %vm3533, %v3478
      %3544 = vst.msk [vmem:[%s170 + $0x28] sm:$0xf] %vm3533, %v3479
      %3545 = vst.msk [vmem:[%s170 + $0x2c] sm:$0xf] %vm3533, %v3480
      %3546 = vst.msk [vmem:[%s170 + $0x30] sm:$0xf] %vm3533, %v3481
      %3547 = vst.msk [vmem:[%s170 + $0x34] sm:$0xf] %vm3533, %v3482
      %3548 = vst.msk [vmem:[%s170 + $0x38] sm:$0xf] %vm3533, %v3483
      %3549 = vst.msk [vmem:[%s170 + $0x3c] sm:$0xf] %vm3533, %v3484
      %3550 = vst.msk [vmem:[%s170 + $0x40] sm:$0xf] %vm3533, %v3485
      %3551 = vst.msk [vmem:[%s170 + $0x44] sm:$0xf] %vm3533, %v3486
      %3552 = vst.msk [vmem:[%s170 + $0x48] sm:$0xf] %vm3533, %v3487
      %3553 = vst.msk [vmem:[%s170 + $0x4c] sm:$0xf] %vm3533, %v3488
      %3554 = vst.msk [vmem:[%s170 + $0x50] sm:$0xf] %vm3533, %v3489
      %3555 = vst.msk [vmem:[%s170 + $0x54] sm:$0xf] %vm3533, %v3490
      %3556 = vst.msk [vmem:[%s170 + $0x58] sm:$0xf] %vm3533, %v3491
      %3557 = vst.msk [vmem:[%s170 + $0x5c] sm:$0xf] %vm3533, %v3492
      %3558 = vst.msk [vmem:[%s170 + $0x60] sm:$0xf] %vm3533, %v3493
      %3559 = vst.msk [vmem:[%s170 + $0x64] sm:$0xf] %vm3533, %v3494
      %3560 = vst.msk [vmem:[%s170 + $0x68] sm:$0xf] %vm3533, %v3495
      %3561 = vst.msk [vmem:[%s170 + $0x6c] sm:$0xf] %vm3533, %v3496
      %3562 = vst.msk [vmem:[%s170 + $0x70] sm:$0xf] %vm3533, %v3497
      %3563 = vst.msk [vmem:[%s170 + $0x74] sm:$0xf] %vm3533, %v3498
      %3564 = vst.msk [vmem:[%s170 + $0x78] sm:$0xf] %vm3533, %v3499
      %3565 = vst.msk [vmem:[%s170 + $0x7c] sm:$0xf] %vm3533, %v3500
      %p3566 = scmp.lt.s32.totalorder %s14, 1
      %s3567 = scalar_select %p3566, %s14, 1
      %s3568 = smul.addr %s3567, 32
      %s3569 = smul.addr %s3568, 4
      %s3570 = scalar_lea.vmem %s3, %s3569
      // Predicated region
      $region33: #{reward_network_forward.4} parent=31 // pred_check
        %p3571 = pneg %p100
      $region34: #{reward_network_forward.4} parent=31 // pred_check_branch
        %3573 = sbr.rel (%p3571) target = $region36
      $region35: #{reward_network_forward.4} parent=31 // pred_region
        _
      $region36: #{reward_network_forward.4} parent=31 // pred_fallthru
        _
    $region32: #{reward_network_forward.4} parent=5 // pred_fallthru
      _
    %p3574 = scmp.le.s32.totalorder 2, %s9
    // Predicated region
    $region37: #{reward_network_forward.4} parent=5 // pred_check
      %p3575 = pneg %p3574
    $region38: #{reward_network_forward.4} parent=5 // pred_check_branch
      %3577 = sbr.rel (%p3575) target = $region40
    $region39: #{reward_network_forward.4} parent=5 // pred_region
      %s3578 = ssub.s32 %s9, 2
      // Predicated region
      $region41: #{reward_network_forward.4} parent=39 // pred_check
        %p3579 = pneg %p106
      $region42: #{reward_network_forward.4} parent=39 // pred_check_branch
        %3581 = sbr.rel (%p3579) target = $region44
      $region43: #{reward_network_forward.4} parent=39 // pred_region
        %p3582 = scmp.lt.s32.totalorder %s15, 1
        %s3583 = scalar_select %p3582, %s15, 1
        %s3584 = smul.addr %s3583, 32
        %s3585 = smul.addr %s3584, 4
        %s3586 = scalar_lea.vmem %s3, %s3585
      $region44: #{reward_network_forward.4} parent=39 // pred_fallthru
        _
    $region40: #{reward_network_forward.4} parent=5 // pred_fallthru
      _
  $region6: #{reward_network_forward.4} parent=0 // loop_footer
    %s13 = sadd.s32 1, %s9
  $region7: #{reward_network_forward.4} parent=0 // loop_footer_branch
    %8 = sbr.rel target = $region3
  $region8: #{reward_network_forward.4} parent=0 // loop_exit
    _

// kernel: reward_network_forward.5
$region0: #{reward_network_forward.5}
  #allocation0 [shape = 'u32[]', space=smem, size = 0x4, offset = 0x4, fixed_abs, tag = 'smem constant byte address 0x4 - core index']
  #allocation1 [shape = 'u32[144,128]{1,0:T(1,128)}', space=vmem, size = 0x12000, scoped, tag = 'internal scratch']
  #allocation2 [shape = 'f32[2,128]{1,0:T(2,128)}', space=vmem, size = 0x400, scoped, tag = 'scratch operand']
  %s0 = inlined_call_operand.vmem [shape: bf16[2,8192], index: 0, kind: input, shape index: {}]
  %s1 = inlined_call_operand.vmem [shape: f32[2,4], index: 1, kind: input, shape index: {}]
  %s2 = inlined_call_operand.vmem [shape: bf16[8192,128], index: 2, kind: input, shape index: {}]
  %s3 = inlined_call_operand.vmem [shape: bf16[32,128], index: 3, kind: input, shape index: {}]
  %s4 = inlined_call_operand.vmem [shape: f32[1,128], index: 4, kind: input, shape index: {}]
  %s5 = inlined_call_operand.vmem [shape: bf16[4,32], index: 5, kind: input, shape index: {}]
  %s6 = inlined_call_operand.vmem [shape: f32[1,32], index: 6, kind: input, shape index: {}]
  %s7 = inlined_call_operand.vmem [shape: bf16[128,128], index: 7, kind: input, shape index: {}]
  %s8 = inlined_call_operand.vmem [shape: f32[1,128], index: 8, kind: input, shape index: {}]
  %s9 = inlined_call_operand.vmem [shape: f32[2,128], index: 9, kind: output, shape index: {}]
  %s10 = sld [smem:[#allocation0]]
  $region77: #{reward_network_forward.5} parent=0
    _
  %s12 = ssub.s32 1, %s10
  %s13 = scalar_select 0, %s12, %s10
  loop: start=0, step=1, limit=4
  $region2: #{reward_network_forward.5} parent=0 // loop_pre_header
    _
  $region3: #{reward_network_forward.5} parent=0 // loop_header
    %s15 = sphi 0, %s19
    %p16 = scmp.ge.s32.totalorder %s15, 4
    %s25 = sphi 0, %s27
    %s28 = sphi 0, %s25
    %s29 = sphi 0, %s28
    %s45 = sphi 0, %s29
    %s49 = sphi 0, %s49
    %s51 = sphi 0, %s49
    %s52 = sphi 0, %s51
    %s66 = sphi 0, %s52
    %s72 = sphi 0, %s74
    %s75 = sphi 0, %s72
    %s76 = sphi 0, %s75
    %s92 = sphi 0, %s76
    %s96 = sphi 0, %s96
    %s98 = sphi 0, %s96
    %s99 = sphi 0, %s98
    %s113 = sphi 0, %s99
    %s117 = sphi 0, %s117
    %s119 = sphi 0, %s117
    %s120 = sphi 0, %s119
    %s134 = sphi 0, %s120
    %s138 = sphi 0, %s138
    %s140 = sphi 0, %s138
    %s141 = sphi 0, %s140
    %s155 = sphi 0, %s141
    %s159 = sphi 0, %s159
    %s161 = sphi 0, %s159
    %s162 = sphi 0, %s161
    %s176 = sphi 0, %s162
    %s180 = sphi 0, %s180
    %s182 = sphi 0, %s180
    %s183 = sphi 0, %s182
    %s197 = sphi 0, %s183
    %s201 = sphi 0, %s201
    %s203 = sphi 0, %s201
    %s204 = sphi 0, %s203
    %s218 = sphi 0, %s204
    %s222 = sphi 0, %s222
    %s224 = sphi 0, %s222
    %s225 = sphi 0, %s224
    %s239 = sphi 0, %s225
  $region4: #{reward_network_forward.5} parent=0 // loop_header_branch
    %18 = sbr.rel (%p16) target = $region8
  $region5: #{reward_network_forward.5} parent=0 // loop_body
    %s20 = ssub.s32 %s15, 1
    %s21 = ssub.s32 %s15, 2
    %s22 = sadd.s32 %s15, 1
    %s23 = ssub.s32 %s15, %s22
    %p24 = scmp.eq.s32.totalorder %s23, 0
    %s26 = sadd.s32 %s25, 1
    %s27 = scalar_select %p24, %s25, %s26
    %p30 = pneg %p24
    %p31 = scmp.eq.s32.totalorder %s15, 1
    %p32 = por %p30, %p31
    %p33 = scmp.ne.s32.totalorder %s25, %s28
    %p34 = scmp.eq.s32.totalorder %s15, 0
    %p35 = por %p33, %p34
    %p36 = scmp.ne.s32.totalorder %s25, %s28
    %p37 = scmp.eq.s32.totalorder %s20, 1
    %p38 = por %p36, %p37
    %p39 = scmp.ne.s32.totalorder %s28, %s29
    %p40 = scmp.eq.s32.totalorder %s20, 0
    %p41 = por %p39, %p40
    %p42 = scmp.ne.s32.totalorder %s28, %s29
    %p43 = scmp.eq.s32.totalorder %s21, 1
    %p44 = por %p42, %p43
    %p46 = scmp.ne.s32.totalorder %s29, %s45
    %p47 = scmp.eq.s32.totalorder %s21, 0
    %p48 = por %p46, %p47
    %s50 = sadd.s32 %s49, 1
    %p53 = scmp.eq.s32.totalorder %s15, 1
    %p54 = scmp.ne.s32.totalorder %s49, %s51
    %p55 = scmp.eq.s32.totalorder %s15, 0
    %p56 = por %p54, %p55
    %p57 = scmp.ne.s32.totalorder %s49, %s51
    %p58 = scmp.eq.s32.totalorder %s20, 1
    %p59 = por %p57, %p58
    %p60 = scmp.ne.s32.totalorder %s51, %s52
    %p61 = scmp.eq.s32.totalorder %s20, 0
    %p62 = por %p60, %p61
    %p63 = scmp.ne.s32.totalorder %s51, %s52
    %p64 = scmp.eq.s32.totalorder %s21, 1
    %p65 = por %p63, %p64
    %p67 = scmp.ne.s32.totalorder %s52, %s66
    %p68 = scmp.eq.s32.totalorder %s21, 0
    %p69 = por %p67, %p68
    %s70 = ssub.s32 %s15, %s22
    %p71 = scmp.eq.s32.totalorder %s70, 0
    %s73 = sadd.s32 %s72, 1
    %s74 = scalar_select %p71, %s72, %s73
    %p77 = pneg %p71
    %p78 = scmp.eq.s32.totalorder %s15, 1
    %p79 = por %p77, %p78
    %p80 = scmp.ne.s32.totalorder %s72, %s75
    %p81 = scmp.eq.s32.totalorder %s15, 0
    %p82 = por %p80, %p81
    %p83 = scmp.ne.s32.totalorder %s72, %s75
    %p84 = scmp.eq.s32.totalorder %s20, 1
    %p85 = por %p83, %p84
    %p86 = scmp.ne.s32.totalorder %s75, %s76
    %p87 = scmp.eq.s32.totalorder %s20, 0
    %p88 = por %p86, %p87
    %p89 = scmp.ne.s32.totalorder %s75, %s76
    %p90 = scmp.eq.s32.totalorder %s21, 1
    %p91 = por %p89, %p90
    %p93 = scmp.ne.s32.totalorder %s76, %s92
    %p94 = scmp.eq.s32.totalorder %s21, 0
    %p95 = por %p93, %p94
    %s97 = sadd.s32 %s96, 1
    %p100 = scmp.eq.s32.totalorder %s15, 1
    %p101 = scmp.ne.s32.totalorder %s96, %s98
    %p102 = scmp.eq.s32.totalorder %s15, 0
    %p103 = por %p101, %p102
    %p104 = scmp.ne.s32.totalorder %s96, %s98
    %p105 = scmp.eq.s32.totalorder %s20, 1
    %p106 = por %p104, %p105
    %p107 = scmp.ne.s32.totalorder %s98, %s99
    %p108 = scmp.eq.s32.totalorder %s20, 0
    %p109 = por %p107, %p108
    %p110 = scmp.ne.s32.totalorder %s98, %s99
    %p111 = scmp.eq.s32.totalorder %s21, 1
    %p112 = por %p110, %p111
    %p114 = scmp.ne.s32.totalorder %s99, %s113
    %p115 = scmp.eq.s32.totalorder %s21, 0
    %p116 = por %p114, %p115
    %s118 = sadd.s32 %s117, 1
    %p121 = scmp.eq.s32.totalorder %s15, 1
    %p122 = scmp.ne.s32.totalorder %s117, %s119
    %p123 = scmp.eq.s32.totalorder %s15, 0
    %p124 = por %p122, %p123
    %p125 = scmp.ne.s32.totalorder %s117, %s119
    %p126 = scmp.eq.s32.totalorder %s20, 1
    %p127 = por %p125, %p126
    %p128 = scmp.ne.s32.totalorder %s119, %s120
    %p129 = scmp.eq.s32.totalorder %s20, 0
    %p130 = por %p128, %p129
    %p131 = scmp.ne.s32.totalorder %s119, %s120
    %p132 = scmp.eq.s32.totalorder %s21, 1
    %p133 = por %p131, %p132
    %p135 = scmp.ne.s32.totalorder %s120, %s134
    %p136 = scmp.eq.s32.totalorder %s21, 0
    %p137 = por %p135, %p136
    %s139 = sadd.s32 %s138, 1
    %p142 = scmp.eq.s32.totalorder %s15, 1
    %p143 = scmp.ne.s32.totalorder %s138, %s140
    %p144 = scmp.eq.s32.totalorder %s15, 0
    %p145 = por %p143, %p144
    %p146 = scmp.ne.s32.totalorder %s138, %s140
    %p147 = scmp.eq.s32.totalorder %s20, 1
    %p148 = por %p146, %p147
    %p149 = scmp.ne.s32.totalorder %s140, %s141
    %p150 = scmp.eq.s32.totalorder %s20, 0
    %p151 = por %p149, %p150
    %p152 = scmp.ne.s32.totalorder %s140, %s141
    %p153 = scmp.eq.s32.totalorder %s21, 1
    %p154 = por %p152, %p153
    %p156 = scmp.ne.s32.totalorder %s141, %s155
    %p157 = scmp.eq.s32.totalorder %s21, 0
    %p158 = por %p156, %p157
    %s160 = sadd.s32 %s159, 1
    %p163 = scmp.eq.s32.totalorder %s15, 1
    %p164 = scmp.ne.s32.totalorder %s159, %s161
    %p165 = scmp.eq.s32.totalorder %s15, 0
    %p166 = por %p164, %p165
    %p167 = scmp.ne.s32.totalorder %s159, %s161
    %p168 = scmp.eq.s32.totalorder %s20, 1
    %p169 = por %p167, %p168
    %p170 = scmp.ne.s32.totalorder %s161, %s162
    %p171 = scmp.eq.s32.totalorder %s20, 0
    %p172 = por %p170, %p171
    %p173 = scmp.ne.s32.totalorder %s161, %s162
    %p174 = scmp.eq.s32.totalorder %s21, 1
    %p175 = por %p173, %p174
    %p177 = scmp.ne.s32.totalorder %s162, %s176
    %p178 = scmp.eq.s32.totalorder %s21, 0
    %p179 = por %p177, %p178
    %s181 = sadd.s32 %s180, 1
    %p184 = scmp.eq.s32.totalorder %s15, 1
    %p185 = scmp.ne.s32.totalorder %s180, %s182
    %p186 = scmp.eq.s32.totalorder %s15, 0
    %p187 = por %p185, %p186
    %p188 = scmp.ne.s32.totalorder %s180, %s182
    %p189 = scmp.eq.s32.totalorder %s20, 1
    %p190 = por %p188, %p189
    %p191 = scmp.ne.s32.totalorder %s182, %s183
    %p192 = scmp.eq.s32.totalorder %s20, 0
    %p193 = por %p191, %p192
    %p194 = scmp.ne.s32.totalorder %s182, %s183
    %p195 = scmp.eq.s32.totalorder %s21, 1
    %p196 = por %p194, %p195
    %p198 = scmp.ne.s32.totalorder %s183, %s197
    %p199 = scmp.eq.s32.totalorder %s21, 0
    %p200 = por %p198, %p199
    %s202 = sadd.s32 %s201, 1
    %p205 = scmp.eq.s32.totalorder %s15, 1
    %p206 = scmp.ne.s32.totalorder %s201, %s203
    %p207 = scmp.eq.s32.totalorder %s15, 0
    %p208 = por %p206, %p207
    %p209 = scmp.ne.s32.totalorder %s201, %s203
    %p210 = scmp.eq.s32.totalorder %s20, 1
    %p211 = por %p209, %p210
    %p212 = scmp.ne.s32.totalorder %s203, %s204
    %p213 = scmp.eq.s32.totalorder %s20, 0
    %p214 = por %p212, %p213
    %p215 = scmp.ne.s32.totalorder %s203, %s204
    %p216 = scmp.eq.s32.totalorder %s21, 1
    %p217 = por %p215, %p216
    %p219 = scmp.ne.s32.totalorder %s204, %s218
    %p220 = scmp.eq.s32.totalorder %s21, 0
    %p221 = por %p219, %p220
    %s223 = sadd.s32 %s222, 1
    %p226 = scmp.eq.s32.totalorder %s15, 1
    %p227 = scmp.ne.s32.totalorder %s222, %s224
    %p228 = scmp.eq.s32.totalorder %s15, 0
    %p229 = por %p227, %p228
    %p230 = scmp.ne.s32.totalorder %s222, %s224
    %p231 = scmp.eq.s32.totalorder %s20, 1
    %p232 = por %p230, %p231
    %p233 = scmp.ne.s32.totalorder %s224, %s225
    %p234 = scmp.eq.s32.totalorder %s20, 0
    %p235 = por %p233, %p234
    %p236 = scmp.ne.s32.totalorder %s224, %s225
    %p237 = scmp.eq.s32.totalorder %s21, 1
    %p238 = por %p236, %p237
    %p240 = scmp.ne.s32.totalorder %s225, %s239
    %p241 = scmp.eq.s32.totalorder %s21, 0
    %p242 = por %p240, %p241
    %p243 = scmp.le.s32.totalorder 1, %s15
    %p244 = scmp.lt.s32.totalorder %s15, 3
    %p245 = pnand %p243, %p244
    %p246 = pneg %p245
    // Predicated region
    $region9: #{reward_network_forward.5} parent=5 // pred_check
      _
    $region10: #{reward_network_forward.5} parent=5 // pred_check_branch
      %248 = sbr.rel (%p245) target = $region12
    $region11: #{reward_network_forward.5} parent=5 // pred_region
      %s249 = ssub.s32 %s15, 1
      // Predicated region
      $region13: #{reward_network_forward.5} parent=11 // pred_check
        %p250 = pneg %p62
      $region14: #{reward_network_forward.5} parent=11 // pred_check_branch
        %252 = sbr.rel (%p250) target = $region16
      $region15: #{reward_network_forward.5} parent=11 // pred_region
        _
      $region16: #{reward_network_forward.5} parent=11 // pred_fallthru
        _
      // Predicated region
      $region17: #{reward_network_forward.5} parent=11 // pred_check
        %p253 = pneg %p109
      $region18: #{reward_network_forward.5} parent=11 // pred_check_branch
        %255 = sbr.rel (%p253) target = $region20
      $region19: #{reward_network_forward.5} parent=11 // pred_region
        _
      $region20: #{reward_network_forward.5} parent=11 // pred_fallthru
        _
      // Predicated region
      $region21: #{reward_network_forward.5} parent=11 // pred_check
        %p256 = pneg %p130
      $region22: #{reward_network_forward.5} parent=11 // pred_check_branch
        %258 = sbr.rel (%p256) target = $region24
      $region23: #{reward_network_forward.5} parent=11 // pred_region
        _
      $region24: #{reward_network_forward.5} parent=11 // pred_fallthru
        _
      // Predicated region
      $region25: #{reward_network_forward.5} parent=11 // pred_check
        %p259 = pneg %p151
      $region26: #{reward_network_forward.5} parent=11 // pred_check_branch
        %261 = sbr.rel (%p259) target = $region28
      $region27: #{reward_network_forward.5} parent=11 // pred_region
        _
      $region28: #{reward_network_forward.5} parent=11 // pred_fallthru
        _
      // Predicated region
      $region29: #{reward_network_forward.5} parent=11 // pred_check
        %p262 = pneg %p172
      $region30: #{reward_network_forward.5} parent=11 // pred_check_branch
        %264 = sbr.rel (%p262) target = $region32
      $region31: #{reward_network_forward.5} parent=11 // pred_region
        _
      $region32: #{reward_network_forward.5} parent=11 // pred_fallthru
        _
      // Predicated region
      $region33: #{reward_network_forward.5} parent=11 // pred_check
        %p265 = pneg %p193
      $region34: #{reward_network_forward.5} parent=11 // pred_check_branch
        %267 = sbr.rel (%p265) target = $region36
      $region35: #{reward_network_forward.5} parent=11 // pred_region
        _
      $region36: #{reward_network_forward.5} parent=11 // pred_fallthru
        _
      // Predicated region
      $region37: #{reward_network_forward.5} parent=11 // pred_check
        %p268 = pneg %p214
      $region38: #{reward_network_forward.5} parent=11 // pred_check_branch
        %270 = sbr.rel (%p268) target = $region40
      $region39: #{reward_network_forward.5} parent=11 // pred_region
        _
      $region40: #{reward_network_forward.5} parent=11 // pred_fallthru
        _
    $region12: #{reward_network_forward.5} parent=5 // pred_fallthru
      _
    %p271 = scmp.lt.s32.totalorder %s15, 2
    // Predicated region
    $region41: #{reward_network_forward.5} parent=5 // pred_check
      %p272 = pneg %p271
    $region42: #{reward_network_forward.5} parent=5 // pred_check_branch
      %274 = sbr.rel (%p272) target = $region44
    $region43: #{reward_network_forward.5} parent=5 // pred_region
      // Predicated region
      $region45: #{reward_network_forward.5} parent=43 // pred_check
        %p275 = pneg %p35
      $region46: #{reward_network_forward.5} parent=43 // pred_check_branch
        %277 = sbr.rel (%p275) target = $region48
      $region47: #{reward_network_forward.5} parent=43 // pred_region
        %s278 = smul.u32 32, %s15
        %p279 = scmp.lt.s32.totalorder %s278, 63
        %s280 = scalar_select %p279, %s278, 63
        %s281 = scalar_lea.vmem %s0, %s280
        %s282 = smul.u32 32, %s15
      $region48: #{reward_network_forward.5} parent=43 // pred_fallthru
        _
      // Predicated region
      $region49: #{reward_network_forward.5} parent=43 // pred_check
        %p283 = pneg %p82
      $region50: #{reward_network_forward.5} parent=43 // pred_check_branch
        %285 = sbr.rel (%p283) target = $region52
      $region51: #{reward_network_forward.5} parent=43 // pred_region
        %s286 = smul.u32 512, %s15
        %p287 = scmp.lt.s32.totalorder %s286, 1023
        %s288 = scalar_select %p287, %s286, 1023
        %s289 = smul.addr %s288, 4
        %s290 = scalar_lea.vmem %s2, %s289
        %s291 = smul.u32 512, %s15
      $region52: #{reward_network_forward.5} parent=43 // pred_fallthru
        _
    $region44: #{reward_network_forward.5} parent=5 // pred_fallthru
      _
    %p292 = scmp.le.s32.totalorder 1, %s15
    %p293 = scmp.lt.s32.totalorder %s15, 3
    %p294 = pnand %p292, %p293
    %p295 = pneg %p294
    // Predicated region
    $region53: #{reward_network_forward.5} parent=5 // pred_check
      _
    $region54: #{reward_network_forward.5} parent=5 // pred_check_branch
      %297 = sbr.rel (%p294) target = $region56
    $region55: #{reward_network_forward.5} parent=5 // pred_region
      %s298 = ssub.s32 %s15, 1
      %s299 = smul.u32 32, %s20
      %p300 = scmp.lt.s32.totalorder %s299, 63
      %s301 = scalar_select %p300, %s299, 63
      %s302 = scalar_lea.vmem %s0, %s301
      %p303 = pneg %p41
      %p304 = pneg %p38
      %p305 = pneg %p62
      %p306 = pneg %p59
      %s307 = smul.u32 512, %s20
      %p308 = scmp.lt.s32.totalorder %s307, 1023
      %s309 = scalar_select %p308, %s307, 1023
      %s310 = smul.addr %s309, 4
      %s311 = scalar_lea.vmem %s2, %s310
      %p312 = pneg %p88
      %p313 = pneg %p85
      %p314 = pneg %p109
      %p315 = pneg %p106
      %p316 = pneg %p130
      %p317 = pneg %p127
      %p318 = pneg %p151
      %p319 = pneg %p148
      %p320 = pneg %p172
      %p321 = pneg %p169
      %p322 = pneg %p193
      %p323 = pneg %p190
      %p324 = pneg %p214
      %p325 = pneg %p211
      %p326 = pneg %p235
      %p327 = pneg %p232
      %s328 = smul.u32 32, %s20
      %p329 = scmp.lt.s32.totalorder %s328, 63
      %s330 = scalar_select %p329, %s328, 63
      %s331 = scalar_lea.vmem %s0, %s330
      %s332 = smul.u32 32, %s20
      %s333 = smul.u32 512, %s20
      %p334 = scmp.lt.s32.totalorder %s333, 1023
      %s335 = scalar_select %p334, %s333, 1023
      %s336 = smul.addr %s335, 4
      %s337 = scalar_lea.vmem %s2, %s336
      %s338 = smul.u32 512, %s20
      %p340 = scmp.eq.s32.totalorder %s20, 0
      // Predicated region
      $region57: #{reward_network_forward.5} parent=55 // pred_check
        %p341 = pneg %p340
      $region58: #{reward_network_forward.5} parent=55 // pred_check_branch
        %343 = sbr.rel (%p341) target = $region60
      $region59: #{reward_network_forward.5} parent=55 // pred_region
        %v344 = vld [vmem:[%s1] sm:$0x3]
        %v345 = vpack.c.bf16 %v344, %v344
        %v346 = vld [vmem:[%s5] sm:$0x3]
        %v347 = vld [vmem:[%s6] sm:$0x1]
        %v349 = vlaneseq
        %v350 = vshrl.u32 %v349, 7
        %v351 = vsub.s32 0, %v350
        %v352 = vrot.slane %v347, %v351
        %vm354 = vcmask 31744
        %v356 = vsel %vm354, %v345, 0
        %vm358 = vcmask 1041408
        %v360 = vsel %vm358, %v346, 0
        %362 = vmatprep.subr.bf16.mxu0 0
        %363 = vmatpush1.bf16.msra.mxu0 %v360
        %364 = vmatprep.subr.bf16.mxu0 0
        %365 = vmatpush1.bf16.msra.mxu0 0
        %366 = vmatprep.subr.bf16.mxu0 0
        %367 = vmatpush1.bf16.msra.mxu0 0
        %368 = vmatprep.subr.bf16.mxu0 0
        %369 = vmatpush1.bf16.msra.mxu0 0
        %370 = vmatprep.subr.bf16.mxu0 0
        %371 = vmatpush1.bf16.msra.mxu0 0
        %372 = vmatprep.subr.bf16.mxu0 0
        %373 = vmatpush1.bf16.msra.mxu0 0
        %374 = vmatprep.subr.bf16.mxu0 0
        %375 = vmatpush1.bf16.msra.mxu0 0
        %376 = vmatprep.subr.bf16.mxu0 0
        %377 = vmatpush1.bf16.msra.mxu0 0
        %378 = vmatprep.subr.bf16.mxu0 0
        %379 = vmatpush1.bf16.msra.mxu0 0
        %380 = vmatprep.subr.bf16.mxu0 0
        %381 = vmatpush1.bf16.msra.mxu0 0
        %382 = vmatprep.subr.bf16.mxu0 0
        %383 = vmatpush1.bf16.msra.mxu0 0
        %384 = vmatprep.subr.bf16.mxu0 0
        %385 = vmatpush1.bf16.msra.mxu0 0
        %386 = vmatprep.subr.bf16.mxu0 0
        %387 = vmatpush1.bf16.msra.mxu0 0
        %388 = vmatprep.subr.bf16.mxu0 0
        %389 = vmatpush1.bf16.msra.mxu0 0
        %390 = vmatprep.subr.bf16.mxu0 0
        %391 = vmatpush1.bf16.msra.mxu0 0
        %392 = vmatprep.subr.bf16.mxu0 0
        %393 = vmatpush1.bf16.msra.mxu0 0
        %394 = vmatprep.mubr.bf16.mxu0 0
        %395 = vmatmul.mubr.bf16.gmra.mrb[0].mxu0 %v356
        %v396 = vpop.f32.mrb[0].mxu0
        %v397 = vadd.f32 %v352, %v396
        %v398 = vpop.f32.mrb[0].mxu0
        %v399 = vpop.f32.mrb[0].mxu0
        %v400 = vpop.f32.mrb[0].mxu0
        %401 = vdwg.mxu0
        %v402 = vmax.f32 %v397, 0.0
        %v403 = vpack.c.bf16 %v402, %v402
        %v404 = vld [vmem:[%s3] sm:$0xf]
        %v405 = vld [vmem:[%s3 + $0x4] sm:$0xf]
        %v406 = vld [vmem:[%s3 + $0x8] sm:$0xf]
        %v407 = vld [vmem:[%s3 + $0xc] sm:$0xf]
        %v408 = vld [vmem:[%s4] sm:$0x1]
        %v410 = vlaneseq
        %v411 = vshrl.u32 %v410, 7
        %v412 = vsub.s32 0, %v411
        %v413 = vrot.slane %v408, %v412
        %v419 = vunpack.c.l.b16 %v404
        %v420 = vunpack.c.l.b16 %v405
        %v421 = vunpack.c.l.b16 %v406
        %v422 = vunpack.c.l.b16 %v407
        %v423 = vpack.c.b16 %v420, %v419
        %v424 = vpack.c.b16 %v422, %v421
        %vm427 = vcmask 261120
        %v429 = vsel %vm427, %v403, 0
        %431 = vmatprep.subr.bf16.mxu0 0
        %432 = vmatpush1.bf16.msra.mxu0 %v423
        %433 = vmatprep.subr.bf16.mxu0 0
        %434 = vmatpush1.bf16.msra.mxu0 %v424
        %435 = vmatprep.subr.bf16.mxu0 0
        %436 = vmatpush1.bf16.msra.mxu0 0
        %437 = vmatprep.subr.bf16.mxu0 0
        %438 = vmatpush1.bf16.msra.mxu0 0
        %439 = vmatprep.subr.bf16.mxu0 0
        %440 = vmatpush1.bf16.msra.mxu0 0
        %441 = vmatprep.subr.bf16.mxu0 0
        %442 = vmatpush1.bf16.msra.mxu0 0
        %443 = vmatprep.subr.bf16.mxu0 0
        %444 = vmatpush1.bf16.msra.mxu0 0
        %445 = vmatprep.subr.bf16.mxu0 0
        %446 = vmatpush1.bf16.msra.mxu0 0
        %447 = vmatprep.subr.bf16.mxu0 0
        %448 = vmatpush1.bf16.msra.mxu0 0
        %449 = vmatprep.subr.bf16.mxu0 0
        %450 = vmatpush1.bf16.msra.mxu0 0
        %451 = vmatprep.subr.bf16.mxu0 0
        %452 = vmatpush1.bf16.msra.mxu0 0
        %453 = vmatprep.subr.bf16.mxu0 0
        %454 = vmatpush1.bf16.msra.mxu0 0
        %455 = vmatprep.subr.bf16.mxu0 0
        %456 = vmatpush1.bf16.msra.mxu0 0
        %457 = vmatprep.subr.bf16.mxu0 0
        %458 = vmatpush1.bf16.msra.mxu0 0
        %459 = vmatprep.subr.bf16.mxu0 0
        %460 = vmatpush1.bf16.msra.mxu0 0
        %461 = vmatprep.subr.bf16.mxu0 0
        %462 = vmatpush1.bf16.msra.mxu0 0
        %463 = vmatprep.mubr.bf16.mxu0 0
        %464 = vmatmul.mubr.bf16.gmra.mrb[0].mxu0 %v429
        %v465 = vpop.f32.mrb[0].mxu0
        %v466 = vadd.f32 %v413, %v465
        %v467 = vpop.f32.mrb[0].mxu0
        %v468 = vpop.f32.mrb[0].mxu0
        %v469 = vpop.f32.mrb[0].mxu0
        %470 = vdwg.mxu0
        %471 = vst [vmem:[#allocation2] sm:$0x3] %v466
      $region60: #{reward_network_forward.5} parent=55 // pred_fallthru
        _
      %v472 = vld [vmem:[#allocation2] sm:$0x3]
      %v473 = vld [vmem:[%s331] sm:$0xff]
      %v474 = vld [vmem:[%s331 + $0x8] sm:$0xff]
      %v475 = vld [vmem:[%s331 + $0x10] sm:$0xff]
      %v476 = vld [vmem:[%s331 + $0x18] sm:$0xff]
      %v477 = vld [vmem:[%s337] sm:$0xf]
      %v478 = vld [vmem:[%s337 + $0x4] sm:$0xf]
      %v479 = vld [vmem:[%s337 + $0x8] sm:$0xf]
      %v480 = vld [vmem:[%s337 + $0xc] sm:$0xf]
      %v481 = vld [vmem:[%s337 + $0x10] sm:$0xf]
      %v482 = vld [vmem:[%s337 + $0x14] sm:$0xf]
      %v483 = vld [vmem:[%s337 + $0x18] sm:$0xf]
      %v484 = vld [vmem:[%s337 + $0x1c] sm:$0xf]
      %v485 = vld [vmem:[%s337 + $0x20] sm:$0xf]
      %v486 = vld [vmem:[%s337 + $0x24] sm:$0xf]
      %v487 = vld [vmem:[%s337 + $0x28] sm:$0xf]
      %v488 = vld [vmem:[%s337 + $0x2c] sm:$0xf]
      %v489 = vld [vmem:[%s337 + $0x30] sm:$0xf]
      %v490 = vld [vmem:[%s337 + $0x34] sm:$0xf]
      %v491 = vld [vmem:[%s337 + $0x38] sm:$0xf]
      %v492 = vld [vmem:[%s337 + $0x3c] sm:$0xf]
      %v493 = vld [vmem:[%s337 + $0x40] sm:$0xf]
      %v494 = vld [vmem:[%s337 + $0x44] sm:$0xf]
      %v495 = vld [vmem:[%s337 + $0x48] sm:$0xf]
      %v496 = vld [vmem:[%s337 + $0x4c] sm:$0xf]
      %v497 = vld [vmem:[%s337 + $0x50] sm:$0xf]
      %v498 = vld [vmem:[%s337 + $0x54] sm:$0xf]
      %v499 = vld [vmem:[%s337 + $0x58] sm:$0xf]
      %v500 = vld [vmem:[%s337 + $0x5c] sm:$0xf]
      %v501 = vld [vmem:[%s337 + $0x60] sm:$0xf]
      %v502 = vld [vmem:[%s337 + $0x64] sm:$0xf]
      %v503 = vld [vmem:[%s337 + $0x68] sm:$0xf]
      %v504 = vld [vmem:[%s337 + $0x6c] sm:$0xf]
      %v505 = vld [vmem:[%s337 + $0x70] sm:$0xf]
      %v506 = vld [vmem:[%s337 + $0x74] sm:$0xf]
      %v507 = vld [vmem:[%s337 + $0x78] sm:$0xf]
      %v508 = vld [vmem:[%s337 + $0x7c] sm:$0xf]
      %v509 = vld [vmem:[%s337 + $0x80] sm:$0xf]
      %v510 = vld [vmem:[%s337 + $0x84] sm:$0xf]
      %v511 = vld [vmem:[%s337 + $0x88] sm:$0xf]
      %v512 = vld [vmem:[%s337 + $0x8c] sm:$0xf]
      %v513 = vld [vmem:[%s337 + $0x90] sm:$0xf]
      %v514 = vld [vmem:[%s337 + $0x94] sm:$0xf]
      %v515 = vld [vmem:[%s337 + $0x98] sm:$0xf]
      %v516 = vld [vmem:[%s337 + $0x9c] sm:$0xf]
      %v517 = vld [vmem:[%s337 + $0xa0] sm:$0xf]
      %v518 = vld [vmem:[%s337 + $0xa4] sm:$0xf]
      %v519 = vld [vmem:[%s337 + $0xa8] sm:$0xf]
      %v520 = vld [vmem:[%s337 + $0xac] sm:$0xf]
      %v521 = vld [vmem:[%s337 + $0xb0] sm:$0xf]
      %v522 = vld [vmem:[%s337 + $0xb4] sm:$0xf]
      %v523 = vld [vmem:[%s337 + $0xb8] sm:$0xf]
      %v524 = vld [vmem:[%s337 + $0xbc] sm:$0xf]
      %v525 = vld [vmem:[%s337 + $0xc0] sm:$0xf]
      %v526 = vld [vmem:[%s337 + $0xc4] sm:$0xf]
      %v527 = vld [vmem:[%s337 + $0xc8] sm:$0xf]
      %v528 = vld [vmem:[%s337 + $0xcc] sm:$0xf]
      %v529 = vld [vmem:[%s337 + $0xd0] sm:$0xf]
      %v530 = vld [vmem:[%s337 + $0xd4] sm:$0xf]
      %v531 = vld [vmem:[%s337 + $0xd8] sm:$0xf]
      %v532 = vld [vmem:[%s337 + $0xdc] sm:$0xf]
      %v533 = vld [vmem:[%s337 + $0xe0] sm:$0xf]
      %v534 = vld [vmem:[%s337 + $0xe4] sm:$0xf]
      %v535 = vld [vmem:[%s337 + $0xe8] sm:$0xf]
      %v536 = vld [vmem:[%s337 + $0xec] sm:$0xf]
      %v537 = vld [vmem:[%s337 + $0xf0] sm:$0xf]
      %v538 = vld [vmem:[%s337 + $0xf4] sm:$0xf]
      %v539 = vld [vmem:[%s337 + $0xf8] sm:$0xf]
      %v540 = vld [vmem:[%s337 + $0xfc] sm:$0xf]
      %v541 = vld [vmem:[%s337 + $0x100] sm:$0xf]
      %v542 = vld [vmem:[%s337 + $0x104] sm:$0xf]
      %v543 = vld [vmem:[%s337 + $0x108] sm:$0xf]
      %v544 = vld [vmem:[%s337 + $0x10c] sm:$0xf]
      %v545 = vld [vmem:[%s337 + $0x110] sm:$0xf]
      %v546 = vld [vmem:[%s337 + $0x114] sm:$0xf]
      %v547 = vld [vmem:[%s337 + $0x118] sm:$0xf]
      %v548 = vld [vmem:[%s337 + $0x11c] sm:$0xf]
      %v549 = vld [vmem:[%s337 + $0x120] sm:$0xf]
      %v550 = vld [vmem:[%s337 + $0x124] sm:$0xf]
      %v551 = vld [vmem:[%s337 + $0x128] sm:$0xf]
      %v552 = vld [vmem:[%s337 + $0x12c] sm:$0xf]
      %v553 = vld [vmem:[%s337 + $0x130] sm:$0xf]
      %v554 = vld [vmem:[%s337 + $0x134] sm:$0xf]
      %v555 = vld [vmem:[%s337 + $0x138] sm:$0xf]
      %v556 = vld [vmem:[%s337 + $0x13c] sm:$0xf]
      %v557 = vld [vmem:[%s337 + $0x140] sm:$0xf]
      %v558 = vld [vmem:[%s337 + $0x144] sm:$0xf]
      %v559 = vld [vmem:[%s337 + $0x148] sm:$0xf]
      %v560 = vld [vmem:[%s337 + $0x14c] sm:$0xf]
      %v561 = vld [vmem:[%s337 + $0x150] sm:$0xf]
      %v562 = vld [vmem:[%s337 + $0x154] sm:$0xf]
      %v563 = vld [vmem:[%s337 + $0x158] sm:$0xf]
      %v564 = vld [vmem:[%s337 + $0x15c] sm:$0xf]
      %v565 = vld [vmem:[%s337 + $0x160] sm:$0xf]
      %v566 = vld [vmem:[%s337 + $0x164] sm:$0xf]
      %v567 = vld [vmem:[%s337 + $0x168] sm:$0xf]
      %v568 = vld [vmem:[%s337 + $0x16c] sm:$0xf]
      %v569 = vld [vmem:[%s337 + $0x170] sm:$0xf]
      %v570 = vld [vmem:[%s337 + $0x174] sm:$0xf]
      %v571 = vld [vmem:[%s337 + $0x178] sm:$0xf]
      %v572 = vld [vmem:[%s337 + $0x17c] sm:$0xf]
      %v573 = vld [vmem:[%s337 + $0x180] sm:$0xf]
      %v574 = vld [vmem:[%s337 + $0x184] sm:$0xf]
      %v575 = vld [vmem:[%s337 + $0x188] sm:$0xf]
      %v576 = vld [vmem:[%s337 + $0x18c] sm:$0xf]
      %v577 = vld [vmem:[%s337 + $0x190] sm:$0xf]
      %v578 = vld [vmem:[%s337 + $0x194] sm:$0xf]
      %v579 = vld [vmem:[%s337 + $0x198] sm:$0xf]
      %v580 = vld [vmem:[%s337 + $0x19c] sm:$0xf]
      %v581 = vld [vmem:[%s337 + $0x1a0] sm:$0xf]
      %v582 = vld [vmem:[%s337 + $0x1a4] sm:$0xf]
      %v583 = vld [vmem:[%s337 + $0x1a8] sm:$0xf]
      %v584 = vld [vmem:[%s337 + $0x1ac] sm:$0xf]
      %v585 = vld [vmem:[%s337 + $0x1b0] sm:$0xf]
      %v586 = vld [vmem:[%s337 + $0x1b4] sm:$0xf]
      %v587 = vld [vmem:[%s337 + $0x1b8] sm:$0xf]
      %v588 = vld [vmem:[%s337 + $0x1bc] sm:$0xf]
      %v589 = vld [vmem:[%s337 + $0x1c0] sm:$0xf]
      %v590 = vld [vmem:[%s337 + $0x1c4] sm:$0xf]
      %v591 = vld [vmem:[%s337 + $0x1c8] sm:$0xf]
      %v592 = vld [vmem:[%s337 + $0x1cc] sm:$0xf]
      %v593 = vld [vmem:[%s337 + $0x1d0] sm:$0xf]
      %v594 = vld [vmem:[%s337 + $0x1d4] sm:$0xf]
      %v595 = vld [vmem:[%s337 + $0x1d8] sm:$0xf]
      %v596 = vld [vmem:[%s337 + $0x1dc] sm:$0xf]
      %v597 = vld [vmem:[%s337 + $0x1e0] sm:$0xf]
      %v598 = vld [vmem:[%s337 + $0x1e4] sm:$0xf]
      %v599 = vld [vmem:[%s337 + $0x1e8] sm:$0xf]
      %v600 = vld [vmem:[%s337 + $0x1ec] sm:$0xf]
      %v601 = vld [vmem:[%s337 + $0x1f0] sm:$0xf]
      %v602 = vld [vmem:[%s337 + $0x1f4] sm:$0xf]
      %v603 = vld [vmem:[%s337 + $0x1f8] sm:$0xf]
      %v604 = vld [vmem:[%s337 + $0x1fc] sm:$0xf]
      %v605 = vld [vmem:[%s337 + $0x200] sm:$0xf]
      %v606 = vld [vmem:[%s337 + $0x204] sm:$0xf]
      %v607 = vld [vmem:[%s337 + $0x208] sm:$0xf]
      %v608 = vld [vmem:[%s337 + $0x20c] sm:$0xf]
      %v609 = vld [vmem:[%s337 + $0x210] sm:$0xf]
      %v610 = vld [vmem:[%s337 + $0x214] sm:$0xf]
      %v611 = vld [vmem:[%s337 + $0x218] sm:$0xf]
      %v612 = vld [vmem:[%s337 + $0x21c] sm:$0xf]
      %v613 = vld [vmem:[%s337 + $0x220] sm:$0xf]
      %v614 = vld [vmem:[%s337 + $0x224] sm:$0xf]
      %v615 = vld [vmem:[%s337 + $0x228] sm:$0xf]
      %v616 = vld [vmem:[%s337 + $0x22c] sm:$0xf]
      %v617 = vld [vmem:[%s337 + $0x230] sm:$0xf]
      %v618 = vld [vmem:[%s337 + $0x234] sm:$0xf]
      %v619 = vld [vmem:[%s337 + $0x238] sm:$0xf]
      %v620 = vld [vmem:[%s337 + $0x23c] sm:$0xf]
      %v621 = vld [vmem:[%s337 + $0x240] sm:$0xf]
      %v622 = vld [vmem:[%s337 + $0x244] sm:$0xf]
      %v623 = vld [vmem:[%s337 + $0x248] sm:$0xf]
      %v624 = vld [vmem:[%s337 + $0x24c] sm:$0xf]
      %v625 = vld [vmem:[%s337 + $0x250] sm:$0xf]
      %v626 = vld [vmem:[%s337 + $0x254] sm:$0xf]
      %v627 = vld [vmem:[%s337 + $0x258] sm:$0xf]
      %v628 = vld [vmem:[%s337 + $0x25c] sm:$0xf]
      %v629 = vld [vmem:[%s337 + $0x260] sm:$0xf]
      %v630 = vld [vmem:[%s337 + $0x264] sm:$0xf]
      %v631 = vld [vmem:[%s337 + $0x268] sm:$0xf]
      %v632 = vld [vmem:[%s337 + $0x26c] sm:$0xf]
      %v633 = vld [vmem:[%s337 + $0x270] sm:$0xf]
      %v634 = vld [vmem:[%s337 + $0x274] sm:$0xf]
      %v635 = vld [vmem:[%s337 + $0x278] sm:$0xf]
      %v636 = vld [vmem:[%s337 + $0x27c] sm:$0xf]
      %v637 = vld [vmem:[%s337 + $0x280] sm:$0xf]
      %v638 = vld [vmem:[%s337 + $0x284] sm:$0xf]
      %v639 = vld [vmem:[%s337 + $0x288] sm:$0xf]
      %v640 = vld [vmem:[%s337 + $0x28c] sm:$0xf]
      %v641 = vld [vmem:[%s337 + $0x290] sm:$0xf]
      %v642 = vld [vmem:[%s337 + $0x294] sm:$0xf]
      %v643 = vld [vmem:[%s337 + $0x298] sm:$0xf]
      %v644 = vld [vmem:[%s337 + $0x29c] sm:$0xf]
      %v645 = vld [vmem:[%s337 + $0x2a0] sm:$0xf]
      %v646 = vld [vmem:[%s337 + $0x2a4] sm:$0xf]
      %v647 = vld [vmem:[%s337 + $0x2a8] sm:$0xf]
      %v648 = vld [vmem:[%s337 + $0x2ac] sm:$0xf]
      %v649 = vld [vmem:[%s337 + $0x2b0] sm:$0xf]
      %v650 = vld [vmem:[%s337 + $0x2b4] sm:$0xf]
      %v651 = vld [vmem:[%s337 + $0x2b8] sm:$0xf]
      %v652 = vld [vmem:[%s337 + $0x2bc] sm:$0xf]
      %v653 = vld [vmem:[%s337 + $0x2c0] sm:$0xf]
      %v654 = vld [vmem:[%s337 + $0x2c4] sm:$0xf]
      %v655 = vld [vmem:[%s337 + $0x2c8] sm:$0xf]
      %v656 = vld [vmem:[%s337 + $0x2cc] sm:$0xf]
      %v657 = vld [vmem:[%s337 + $0x2d0] sm:$0xf]
      %v658 = vld [vmem:[%s337 + $0x2d4] sm:$0xf]
      %v659 = vld [vmem:[%s337 + $0x2d8] sm:$0xf]
      %v660 = vld [vmem:[%s337 + $0x2dc] sm:$0xf]
      %v661 = vld [vmem:[%s337 + $0x2e0] sm:$0xf]
      %v662 = vld [vmem:[%s337 + $0x2e4] sm:$0xf]
      %v663 = vld [vmem:[%s337 + $0x2e8] sm:$0xf]
      %v664 = vld [vmem:[%s337 + $0x2ec] sm:$0xf]
      %v665 = vld [vmem:[%s337 + $0x2f0] sm:$0xf]
      %v666 = vld [vmem:[%s337 + $0x2f4] sm:$0xf]
      %v667 = vld [vmem:[%s337 + $0x2f8] sm:$0xf]
      %v668 = vld [vmem:[%s337 + $0x2fc] sm:$0xf]
      %v669 = vld [vmem:[%s337 + $0x300] sm:$0xf]
      %v670 = vld [vmem:[%s337 + $0x304] sm:$0xf]
      %v671 = vld [vmem:[%s337 + $0x308] sm:$0xf]
      %v672 = vld [vmem:[%s337 + $0x30c] sm:$0xf]
      %v673 = vld [vmem:[%s337 + $0x310] sm:$0xf]
      %v674 = vld [vmem:[%s337 + $0x314] sm:$0xf]
      %v675 = vld [vmem:[%s337 + $0x318] sm:$0xf]
      %v676 = vld [vmem:[%s337 + $0x31c] sm:$0xf]
      %v677 = vld [vmem:[%s337 + $0x320] sm:$0xf]
      %v678 = vld [vmem:[%s337 + $0x324] sm:$0xf]
      %v679 = vld [vmem:[%s337 + $0x328] sm:$0xf]
      %v680 = vld [vmem:[%s337 + $0x32c] sm:$0xf]
      %v681 = vld [vmem:[%s337 + $0x330] sm:$0xf]
      %v682 = vld [vmem:[%s337 + $0x334] sm:$0xf]
      %v683 = vld [vmem:[%s337 + $0x338] sm:$0xf]
      %v684 = vld [vmem:[%s337 + $0x33c] sm:$0xf]
      %v685 = vld [vmem:[%s337 + $0x340] sm:$0xf]
      %v686 = vld [vmem:[%s337 + $0x344] sm:$0xf]
      %v687 = vld [vmem:[%s337 + $0x348] sm:$0xf]
      %v688 = vld [vmem:[%s337 + $0x34c] sm:$0xf]
      %v689 = vld [vmem:[%s337 + $0x350] sm:$0xf]
      %v690 = vld [vmem:[%s337 + $0x354] sm:$0xf]
      %v691 = vld [vmem:[%s337 + $0x358] sm:$0xf]
      %v692 = vld [vmem:[%s337 + $0x35c] sm:$0xf]
      %v693 = vld [vmem:[%s337 + $0x360] sm:$0xf]
      %v694 = vld [vmem:[%s337 + $0x364] sm:$0xf]
      %v695 = vld [vmem:[%s337 + $0x368] sm:$0xf]
      %v696 = vld [vmem:[%s337 + $0x36c] sm:$0xf]
      %v697 = vld [vmem:[%s337 + $0x370] sm:$0xf]
      %v698 = vld [vmem:[%s337 + $0x374] sm:$0xf]
      %v699 = vld [vmem:[%s337 + $0x378] sm:$0xf]
      %v700 = vld [vmem:[%s337 + $0x37c] sm:$0xf]
      %v701 = vld [vmem:[%s337 + $0x380] sm:$0xf]
      %v702 = vld [vmem:[%s337 + $0x384] sm:$0xf]
      %v703 = vld [vmem:[%s337 + $0x388] sm:$0xf]
      %v704 = vld [vmem:[%s337 + $0x38c] sm:$0xf]
      %v705 = vld [vmem:[%s337 + $0x390] sm:$0xf]
      %v706 = vld [vmem:[%s337 + $0x394] sm:$0xf]
      %v707 = vld [vmem:[%s337 + $0x398] sm:$0xf]
      %v708 = vld [vmem:[%s337 + $0x39c] sm:$0xf]
      %v709 = vld [vmem:[%s337 + $0x3a0] sm:$0xf]
      %v710 = vld [vmem:[%s337 + $0x3a4] sm:$0xf]
      %v711 = vld [vmem:[%s337 + $0x3a8] sm:$0xf]
      %v712 = vld [vmem:[%s337 + $0x3ac] sm:$0xf]
      %v713 = vld [vmem:[%s337 + $0x3b0] sm:$0xf]
      %v714 = vld [vmem:[%s337 + $0x3b4] sm:$0xf]
      %v715 = vld [vmem:[%s337 + $0x3b8] sm:$0xf]
      %v716 = vld [vmem:[%s337 + $0x3bc] sm:$0xf]
      %v717 = vld [vmem:[%s337 + $0x3c0] sm:$0xf]
      %v718 = vld [vmem:[%s337 + $0x3c4] sm:$0xf]
      %v719 = vld [vmem:[%s337 + $0x3c8] sm:$0xf]
      %v720 = vld [vmem:[%s337 + $0x3cc] sm:$0xf]
      %v721 = vld [vmem:[%s337 + $0x3d0] sm:$0xf]
      %v722 = vld [vmem:[%s337 + $0x3d4] sm:$0xf]
      %v723 = vld [vmem:[%s337 + $0x3d8] sm:$0xf]
      %v724 = vld [vmem:[%s337 + $0x3dc] sm:$0xf]
      %v725 = vld [vmem:[%s337 + $0x3e0] sm:$0xf]
      %v726 = vld [vmem:[%s337 + $0x3e4] sm:$0xf]
      %v727 = vld [vmem:[%s337 + $0x3e8] sm:$0xf]
      %v728 = vld [vmem:[%s337 + $0x3ec] sm:$0xf]
      %v729 = vld [vmem:[%s337 + $0x3f0] sm:$0xf]
      %v730 = vld [vmem:[%s337 + $0x3f4] sm:$0xf]
      %v731 = vld [vmem:[%s337 + $0x3f8] sm:$0xf]
      %v732 = vld [vmem:[%s337 + $0x3fc] sm:$0xf]
      %v733 = vld [vmem:[%s337 + $0x400] sm:$0xf]
      %v734 = vld [vmem:[%s337 + $0x404] sm:$0xf]
      %v735 = vld [vmem:[%s337 + $0x408] sm:$0xf]
      %v736 = vld [vmem:[%s337 + $0x40c] sm:$0xf]
      %v737 = vld [vmem:[%s337 + $0x410] sm:$0xf]
      %v738 = vld [vmem:[%s337 + $0x414] sm:$0xf]
      %v739 = vld [vmem:[%s337 + $0x418] sm:$0xf]
      %v740 = vld [vmem:[%s337 + $0x41c] sm:$0xf]
      %v741 = vld [vmem:[%s337 + $0x420] sm:$0xf]
      %v742 = vld [vmem:[%s337 + $0x424] sm:$0xf]
      %v743 = vld [vmem:[%s337 + $0x428] sm:$0xf]
      %v744 = vld [vmem:[%s337 + $0x42c] sm:$0xf]
      %v745 = vld [vmem:[%s337 + $0x430] sm:$0xf]
      %v746 = vld [vmem:[%s337 + $0x434] sm:$0xf]
      %v747 = vld [vmem:[%s337 + $0x438] sm:$0xf]
      %v748 = vld [vmem:[%s337 + $0x43c] sm:$0xf]
      %v749 = vld [vmem:[%s337 + $0x440] sm:$0xf]
      %v750 = vld [vmem:[%s337 + $0x444] sm:$0xf]
      %v751 = vld [vmem:[%s337 + $0x448] sm:$0xf]
      %v752 = vld [vmem:[%s337 + $0x44c] sm:$0xf]
      %v753 = vld [vmem:[%s337 + $0x450] sm:$0xf]
      %v754 = vld [vmem:[%s337 + $0x454] sm:$0xf]
      %v755 = vld [vmem:[%s337 + $0x458] sm:$0xf]
      %v756 = vld [vmem:[%s337 + $0x45c] sm:$0xf]
      %v757 = vld [vmem:[%s337 + $0x460] sm:$0xf]
      %v758 = vld [vmem:[%s337 + $0x464] sm:$0xf]
      %v759 = vld [vmem:[%s337 + $0x468] sm:$0xf]
      %v760 = vld [vmem:[%s337 + $0x46c] sm:$0xf]
      %v761 = vld [vmem:[%s337 + $0x470] sm:$0xf]
      %v762 = vld [vmem:[%s337 + $0x474] sm:$0xf]
      %v763 = vld [vmem:[%s337 + $0x478] sm:$0xf]
      %v764 = vld [vmem:[%s337 + $0x47c] sm:$0xf]
      %v765 = vld [vmem:[%s337 + $0x480] sm:$0xf]
      %v766 = vld [vmem:[%s337 + $0x484] sm:$0xf]
      %v767 = vld [vmem:[%s337 + $0x488] sm:$0xf]
      %v768 = vld [vmem:[%s337 + $0x48c] sm:$0xf]
      %v769 = vld [vmem:[%s337 + $0x490] sm:$0xf]
      %v770 = vld [vmem:[%s337 + $0x494] sm:$0xf]
      %v771 = vld [vmem:[%s337 + $0x498] sm:$0xf]
      %v772 = vld [vmem:[%s337 + $0x49c] sm:$0xf]
      %v773 = vld [vmem:[%s337 + $0x4a0] sm:$0xf]
      %v774 = vld [vmem:[%s337 + $0x4a4] sm:$0xf]
      %v775 = vld [vmem:[%s337 + $0x4a8] sm:$0xf]
      %v776 = vld [vmem:[%s337 + $0x4ac] sm:$0xf]
      %v777 = vld [vmem:[%s337 + $0x4b0] sm:$0xf]
      %v778 = vld [vmem:[%s337 + $0x4b4] sm:$0xf]
      %v779 = vld [vmem:[%s337 + $0x4b8] sm:$0xf]
      %v780 = vld [vmem:[%s337 + $0x4bc] sm:$0xf]
      %v781 = vld [vmem:[%s337 + $0x4c0] sm:$0xf]
      %v782 = vld [vmem:[%s337 + $0x4c4] sm:$0xf]
      %v783 = vld [vmem:[%s337 + $0x4c8] sm:$0xf]
      %v784 = vld [vmem:[%s337 + $0x4cc] sm:$0xf]
      %v785 = vld [vmem:[%s337 + $0x4d0] sm:$0xf]
      %v786 = vld [vmem:[%s337 + $0x4d4] sm:$0xf]
      %v787 = vld [vmem:[%s337 + $0x4d8] sm:$0xf]
      %v788 = vld [vmem:[%s337 + $0x4dc] sm:$0xf]
      %v789 = vld [vmem:[%s337 + $0x4e0] sm:$0xf]
      %v790 = vld [vmem:[%s337 + $0x4e4] sm:$0xf]
      %v791 = vld [vmem:[%s337 + $0x4e8] sm:$0xf]
      %v792 = vld [vmem:[%s337 + $0x4ec] sm:$0xf]
      %v793 = vld [vmem:[%s337 + $0x4f0] sm:$0xf]
      %v794 = vld [vmem:[%s337 + $0x4f4] sm:$0xf]
      %v795 = vld [vmem:[%s337 + $0x4f8] sm:$0xf]
      %v796 = vld [vmem:[%s337 + $0x4fc] sm:$0xf]
      %v797 = vld [vmem:[%s337 + $0x500] sm:$0xf]
      %v798 = vld [vmem:[%s337 + $0x504] sm:$0xf]
      %v799 = vld [vmem:[%s337 + $0x508] sm:$0xf]
      %v800 = vld [vmem:[%s337 + $0x50c] sm:$0xf]
      %v801 = vld [vmem:[%s337 + $0x510] sm:$0xf]
      %v802 = vld [vmem:[%s337 + $0x514] sm:$0xf]
      %v803 = vld [vmem:[%s337 + $0x518] sm:$0xf]
      %v804 = vld [vmem:[%s337 + $0x51c] sm:$0xf]
      %v805 = vld [vmem:[%s337 + $0x520] sm:$0xf]
      %v806 = vld [vmem:[%s337 + $0x524] sm:$0xf]
      %v807 = vld [vmem:[%s337 + $0x528] sm:$0xf]
      %v808 = vld [vmem:[%s337 + $0x52c] sm:$0xf]
      %v809 = vld [vmem:[%s337 + $0x530] sm:$0xf]
      %v810 = vld [vmem:[%s337 + $0x534] sm:$0xf]
      %v811 = vld [vmem:[%s337 + $0x538] sm:$0xf]
      %v812 = vld [vmem:[%s337 + $0x53c] sm:$0xf]
      %v813 = vld [vmem:[%s337 + $0x540] sm:$0xf]
      %v814 = vld [vmem:[%s337 + $0x544] sm:$0xf]
      %v815 = vld [vmem:[%s337 + $0x548] sm:$0xf]
      %v816 = vld [vmem:[%s337 + $0x54c] sm:$0xf]
      %v817 = vld [vmem:[%s337 + $0x550] sm:$0xf]
      %v818 = vld [vmem:[%s337 + $0x554] sm:$0xf]
      %v819 = vld [vmem:[%s337 + $0x558] sm:$0xf]
      %v820 = vld [vmem:[%s337 + $0x55c] sm:$0xf]
      %v821 = vld [vmem:[%s337 + $0x560] sm:$0xf]
      %v822 = vld [vmem:[%s337 + $0x564] sm:$0xf]
      %v823 = vld [vmem:[%s337 + $0x568] sm:$0xf]
      %v824 = vld [vmem:[%s337 + $0x56c] sm:$0xf]
      %v825 = vld [vmem:[%s337 + $0x570] sm:$0xf]
      %v826 = vld [vmem:[%s337 + $0x574] sm:$0xf]
      %v827 = vld [vmem:[%s337 + $0x578] sm:$0xf]
      %v828 = vld [vmem:[%s337 + $0x57c] sm:$0xf]
      %v829 = vld [vmem:[%s337 + $0x580] sm:$0xf]
      %v830 = vld [vmem:[%s337 + $0x584] sm:$0xf]
      %v831 = vld [vmem:[%s337 + $0x588] sm:$0xf]
      %v832 = vld [vmem:[%s337 + $0x58c] sm:$0xf]
      %v833 = vld [vmem:[%s337 + $0x590] sm:$0xf]
      %v834 = vld [vmem:[%s337 + $0x594] sm:$0xf]
      %v835 = vld [vmem:[%s337 + $0x598] sm:$0xf]
      %v836 = vld [vmem:[%s337 + $0x59c] sm:$0xf]
      %v837 = vld [vmem:[%s337 + $0x5a0] sm:$0xf]
      %v838 = vld [vmem:[%s337 + $0x5a4] sm:$0xf]
      %v839 = vld [vmem:[%s337 + $0x5a8] sm:$0xf]
      %v840 = vld [vmem:[%s337 + $0x5ac] sm:$0xf]
      %v841 = vld [vmem:[%s337 + $0x5b0] sm:$0xf]
      %v842 = vld [vmem:[%s337 + $0x5b4] sm:$0xf]
      %v843 = vld [vmem:[%s337 + $0x5b8] sm:$0xf]
      %v844 = vld [vmem:[%s337 + $0x5bc] sm:$0xf]
      %v845 = vld [vmem:[%s337 + $0x5c0] sm:$0xf]
      %v846 = vld [vmem:[%s337 + $0x5c4] sm:$0xf]
      %v847 = vld [vmem:[%s337 + $0x5c8] sm:$0xf]
      %v848 = vld [vmem:[%s337 + $0x5cc] sm:$0xf]
      %v849 = vld [vmem:[%s337 + $0x5d0] sm:$0xf]
      %v850 = vld [vmem:[%s337 + $0x5d4] sm:$0xf]
      %v851 = vld [vmem:[%s337 + $0x5d8] sm:$0xf]
      %v852 = vld [vmem:[%s337 + $0x5dc] sm:$0xf]
      %v853 = vld [vmem:[%s337 + $0x5e0] sm:$0xf]
      %v854 = vld [vmem:[%s337 + $0x5e4] sm:$0xf]
      %v855 = vld [vmem:[%s337 + $0x5e8] sm:$0xf]
      %v856 = vld [vmem:[%s337 + $0x5ec] sm:$0xf]
      %v857 = vld [vmem:[%s337 + $0x5f0] sm:$0xf]
      %v858 = vld [vmem:[%s337 + $0x5f4] sm:$0xf]
      %v859 = vld [vmem:[%s337 + $0x5f8] sm:$0xf]
      %v860 = vld [vmem:[%s337 + $0x5fc] sm:$0xf]
      %v861 = vld [vmem:[%s337 + $0x600] sm:$0xf]
      %v862 = vld [vmem:[%s337 + $0x604] sm:$0xf]
      %v863 = vld [vmem:[%s337 + $0x608] sm:$0xf]
      %v864 = vld [vmem:[%s337 + $0x60c] sm:$0xf]
      %v865 = vld [vmem:[%s337 + $0x610] sm:$0xf]
      %v866 = vld [vmem:[%s337 + $0x614] sm:$0xf]
      %v867 = vld [vmem:[%s337 + $0x618] sm:$0xf]
      %v868 = vld [vmem:[%s337 + $0x61c] sm:$0xf]
      %v869 = vld [vmem:[%s337 + $0x620] sm:$0xf]
      %v870 = vld [vmem:[%s337 + $0x624] sm:$0xf]
      %v871 = vld [vmem:[%s337 + $0x628] sm:$0xf]
      %v872 = vld [vmem:[%s337 + $0x62c] sm:$0xf]
      %v873 = vld [vmem:[%s337 + $0x630] sm:$0xf]
      %v874 = vld [vmem:[%s337 + $0x634] sm:$0xf]
      %v875 = vld [vmem:[%s337 + $0x638] sm:$0xf]
      %v876 = vld [vmem:[%s337 + $0x63c] sm:$0xf]
      %v877 = vld [vmem:[%s337 + $0x640] sm:$0xf]
      %v878 = vld [vmem:[%s337 + $0x644] sm:$0xf]
      %v879 = vld [vmem:[%s337 + $0x648] sm:$0xf]
      %v880 = vld [vmem:[%s337 + $0x64c] sm:$0xf]
      %v881 = vld [vmem:[%s337 + $0x650] sm:$0xf]
      %v882 = vld [vmem:[%s337 + $0x654] sm:$0xf]
      %v883 = vld [vmem:[%s337 + $0x658] sm:$0xf]
      %v884 = vld [vmem:[%s337 + $0x65c] sm:$0xf]
      %v885 = vld [vmem:[%s337 + $0x660] sm:$0xf]
      %v886 = vld [vmem:[%s337 + $0x664] sm:$0xf]
      %v887 = vld [vmem:[%s337 + $0x668] sm:$0xf]
      %v888 = vld [vmem:[%s337 + $0x66c] sm:$0xf]
      %v889 = vld [vmem:[%s337 + $0x670] sm:$0xf]
      %v890 = vld [vmem:[%s337 + $0x674] sm:$0xf]
      %v891 = vld [vmem:[%s337 + $0x678] sm:$0xf]
      %v892 = vld [vmem:[%s337 + $0x67c] sm:$0xf]
      %v893 = vld [vmem:[%s337 + $0x680] sm:$0xf]
      %v894 = vld [vmem:[%s337 + $0x684] sm:$0xf]
      %v895 = vld [vmem:[%s337 + $0x688] sm:$0xf]
      %v896 = vld [vmem:[%s337 + $0x68c] sm:$0xf]
      %v897 = vld [vmem:[%s337 + $0x690] sm:$0xf]
      %v898 = vld [vmem:[%s337 + $0x694] sm:$0xf]
      %v899 = vld [vmem:[%s337 + $0x698] sm:$0xf]
      %v900 = vld [vmem:[%s337 + $0x69c] sm:$0xf]
      %v901 = vld [vmem:[%s337 + $0x6a0] sm:$0xf]
      %v902 = vld [vmem:[%s337 + $0x6a4] sm:$0xf]
      %v903 = vld [vmem:[%s337 + $0x6a8] sm:$0xf]
      %v904 = vld [vmem:[%s337 + $0x6ac] sm:$0xf]
      %v905 = vld [vmem:[%s337 + $0x6b0] sm:$0xf]
      %v906 = vld [vmem:[%s337 + $0x6b4] sm:$0xf]
      %v907 = vld [vmem:[%s337 + $0x6b8] sm:$0xf]
      %v908 = vld [vmem:[%s337 + $0x6bc] sm:$0xf]
      %v909 = vld [vmem:[%s337 + $0x6c0] sm:$0xf]
      %v910 = vld [vmem:[%s337 + $0x6c4] sm:$0xf]
      %v911 = vld [vmem:[%s337 + $0x6c8] sm:$0xf]
      %v912 = vld [vmem:[%s337 + $0x6cc] sm:$0xf]
      %v913 = vld [vmem:[%s337 + $0x6d0] sm:$0xf]
      %v914 = vld [vmem:[%s337 + $0x6d4] sm:$0xf]
      %v915 = vld [vmem:[%s337 + $0x6d8] sm:$0xf]
      %v916 = vld [vmem:[%s337 + $0x6dc] sm:$0xf]
      %v917 = vld [vmem:[%s337 + $0x6e0] sm:$0xf]
      %v918 = vld [vmem:[%s337 + $0x6e4] sm:$0xf]
      %v919 = vld [vmem:[%s337 + $0x6e8] sm:$0xf]
      %v920 = vld [vmem:[%s337 + $0x6ec] sm:$0xf]
      %v921 = vld [vmem:[%s337 + $0x6f0] sm:$0xf]
      %v922 = vld [vmem:[%s337 + $0x6f4] sm:$0xf]
      %v923 = vld [vmem:[%s337 + $0x6f8] sm:$0xf]
      %v924 = vld [vmem:[%s337 + $0x6fc] sm:$0xf]
      %v925 = vld [vmem:[%s337 + $0x700] sm:$0xf]
      %v926 = vld [vmem:[%s337 + $0x704] sm:$0xf]
      %v927 = vld [vmem:[%s337 + $0x708] sm:$0xf]
      %v928 = vld [vmem:[%s337 + $0x70c] sm:$0xf]
      %v929 = vld [vmem:[%s337 + $0x710] sm:$0xf]
      %v930 = vld [vmem:[%s337 + $0x714] sm:$0xf]
      %v931 = vld [vmem:[%s337 + $0x718] sm:$0xf]
      %v932 = vld [vmem:[%s337 + $0x71c] sm:$0xf]
      %v933 = vld [vmem:[%s337 + $0x720] sm:$0xf]
      %v934 = vld [vmem:[%s337 + $0x724] sm:$0xf]
      %v935 = vld [vmem:[%s337 + $0x728] sm:$0xf]
      %v936 = vld [vmem:[%s337 + $0x72c] sm:$0xf]
      %v937 = vld [vmem:[%s337 + $0x730] sm:$0xf]
      %v938 = vld [vmem:[%s337 + $0x734] sm:$0xf]
      %v939 = vld [vmem:[%s337 + $0x738] sm:$0xf]
      %v940 = vld [vmem:[%s337 + $0x73c] sm:$0xf]
      %v941 = vld [vmem:[%s337 + $0x740] sm:$0xf]
      %v942 = vld [vmem:[%s337 + $0x744] sm:$0xf]
      %v943 = vld [vmem:[%s337 + $0x748] sm:$0xf]
      %v944 = vld [vmem:[%s337 + $0x74c] sm:$0xf]
      %v945 = vld [vmem:[%s337 + $0x750] sm:$0xf]
      %v946 = vld [vmem:[%s337 + $0x754] sm:$0xf]
      %v947 = vld [vmem:[%s337 + $0x758] sm:$0xf]
      %v948 = vld [vmem:[%s337 + $0x75c] sm:$0xf]
      %v949 = vld [vmem:[%s337 + $0x760] sm:$0xf]
      %v950 = vld [vmem:[%s337 + $0x764] sm:$0xf]
      %v951 = vld [vmem:[%s337 + $0x768] sm:$0xf]
      %v952 = vld [vmem:[%s337 + $0x76c] sm:$0xf]
      %v953 = vld [vmem:[%s337 + $0x770] sm:$0xf]
      %v954 = vld [vmem:[%s337 + $0x774] sm:$0xf]
      %v955 = vld [vmem:[%s337 + $0x778] sm:$0xf]
      %v956 = vld [vmem:[%s337 + $0x77c] sm:$0xf]
      %v957 = vld [vmem:[%s337 + $0x780] sm:$0xf]
      %v958 = vld [vmem:[%s337 + $0x784] sm:$0xf]
      %v959 = vld [vmem:[%s337 + $0x788] sm:$0xf]
      %v960 = vld [vmem:[%s337 + $0x78c] sm:$0xf]
      %v961 = vld [vmem:[%s337 + $0x790] sm:$0xf]
      %v962 = vld [vmem:[%s337 + $0x794] sm:$0xf]
      %v963 = vld [vmem:[%s337 + $0x798] sm:$0xf]
      %v964 = vld [vmem:[%s337 + $0x79c] sm:$0xf]
      %v965 = vld [vmem:[%s337 + $0x7a0] sm:$0xf]
      %v966 = vld [vmem:[%s337 + $0x7a4] sm:$0xf]
      %v967 = vld [vmem:[%s337 + $0x7a8] sm:$0xf]
      %v968 = vld [vmem:[%s337 + $0x7ac] sm:$0xf]
      %v969 = vld [vmem:[%s337 + $0x7b0] sm:$0xf]
      %v970 = vld [vmem:[%s337 + $0x7b4] sm:$0xf]
      %v971 = vld [vmem:[%s337 + $0x7b8] sm:$0xf]
      %v972 = vld [vmem:[%s337 + $0x7bc] sm:$0xf]
      %v973 = vld [vmem:[%s337 + $0x7c0] sm:$0xf]
      %v974 = vld [vmem:[%s337 + $0x7c4] sm:$0xf]
      %v975 = vld [vmem:[%s337 + $0x7c8] sm:$0xf]
      %v976 = vld [vmem:[%s337 + $0x7cc] sm:$0xf]
      %v977 = vld [vmem:[%s337 + $0x7d0] sm:$0xf]
      %v978 = vld [vmem:[%s337 + $0x7d4] sm:$0xf]
      %v979 = vld [vmem:[%s337 + $0x7d8] sm:$0xf]
      %v980 = vld [vmem:[%s337 + $0x7dc] sm:$0xf]
      %v981 = vld [vmem:[%s337 + $0x7e0] sm:$0xf]
      %v982 = vld [vmem:[%s337 + $0x7e4] sm:$0xf]
      %v983 = vld [vmem:[%s337 + $0x7e8] sm:$0xf]
      %v984 = vld [vmem:[%s337 + $0x7ec] sm:$0xf]
      %v985 = vld [vmem:[%s337 + $0x7f0] sm:$0xf]
      %v986 = vld [vmem:[%s337 + $0x7f4] sm:$0xf]
      %v987 = vld [vmem:[%s337 + $0x7f8] sm:$0xf]
      %v988 = vld [vmem:[%s337 + $0x7fc] sm:$0xf]
      %v993 = vcombine.high %v473, %v473
      %v995 = vunpack.c.l.s4 1966171168
      %v996 = vunpack.c.0.s8 %v995
      %v997 = vlaneseq
      %v998 = vshrl.u32 %v997, 7
      %v999 = vsub.s32 %v996, %v998
      %v1000 = vrot.slane %v473, %v999
      %v1002 = vunpack.c.l.s4 1966171168
      %v1003 = vunpack.c.0.s8 %v1002
      %v1004 = vlaneseq
      %v1005 = vshrl.u32 %v1004, 7
      %v1006 = vsub.s32 %v1003, %v1005
      %v1007 = vrot.slane %v993, %v1006
      %v1008 = vcombine.high %v1000, %v1000
      %v1009 = vcombine.high %v1007, %v1007
      %v1011 = vunpack.c.l.s4 1966171168
      %v1012 = vunpack.c.0.s8 %v1011
      %v1013 = vlaneseq
      %v1014 = vshrl.u32 %v1013, 7
      %v1015 = vsub.s32 %v1012, %v1014
      %v1016 = vrot.slane %v1000, %v1015
      %v1018 = vunpack.c.l.s4 1966171168
      %v1019 = vunpack.c.0.s8 %v1018
      %v1020 = vlaneseq
      %v1021 = vshrl.u32 %v1020, 7
      %v1022 = vsub.s32 %v1019, %v1021
      %v1023 = vrot.slane %v1007, %v1022
      %v1025 = vunpack.c.l.s4 1966171168
      %v1026 = vunpack.c.0.s8 %v1025
      %v1027 = vlaneseq
      %v1028 = vshrl.u32 %v1027, 7
      %v1029 = vsub.s32 %v1026, %v1028
      %v1030 = vrot.slane %v1008, %v1029
      %v1032 = vunpack.c.l.s4 1966171168
      %v1033 = vunpack.c.0.s8 %v1032
      %v1034 = vlaneseq
      %v1035 = vshrl.u32 %v1034, 7
      %v1036 = vsub.s32 %v1033, %v1035
      %v1037 = vrot.slane %v1009, %v1036
      %v1038 = vcombine.high %v1016, %v1016
      %v1039 = vcombine.high %v1023, %v1023
      %v1040 = vcombine.high %v1030, %v1030
      %v1041 = vcombine.high %v1037, %v1037
      %v1042 = vcombine.high %v474, %v474
      %v1044 = vunpack.c.l.s4 1966171168
      %v1045 = vunpack.c.0.s8 %v1044
      %v1046 = vlaneseq
      %v1047 = vshrl.u32 %v1046, 7
      %v1048 = vsub.s32 %v1045, %v1047
      %v1049 = vrot.slane %v474, %v1048
      %v1051 = vunpack.c.l.s4 1966171168
      %v1052 = vunpack.c.0.s8 %v1051
      %v1053 = vlaneseq
      %v1054 = vshrl.u32 %v1053, 7
      %v1055 = vsub.s32 %v1052, %v1054
      %v1056 = vrot.slane %v1042, %v1055
      %v1057 = vcombine.high %v1049, %v1049
      %v1058 = vcombine.high %v1056, %v1056
      %v1060 = vunpack.c.l.s4 1966171168
      %v1061 = vunpack.c.0.s8 %v1060
      %v1062 = vlaneseq
      %v1063 = vshrl.u32 %v1062, 7
      %v1064 = vsub.s32 %v1061, %v1063
      %v1065 = vrot.slane %v1049, %v1064
      %v1067 = vunpack.c.l.s4 1966171168
      %v1068 = vunpack.c.0.s8 %v1067
      %v1069 = vlaneseq
      %v1070 = vshrl.u32 %v1069, 7
      %v1071 = vsub.s32 %v1068, %v1070
      %v1072 = vrot.slane %v1056, %v1071
      %v1074 = vunpack.c.l.s4 1966171168
      %v1075 = vunpack.c.0.s8 %v1074
      %v1076 = vlaneseq
      %v1077 = vshrl.u32 %v1076, 7
      %v1078 = vsub.s32 %v1075, %v1077
      %v1079 = vrot.slane %v1057, %v1078
      %v1081 = vunpack.c.l.s4 1966171168
      %v1082 = vunpack.c.0.s8 %v1081
      %v1083 = vlaneseq
      %v1084 = vshrl.u32 %v1083, 7
      %v1085 = vsub.s32 %v1082, %v1084
      %v1086 = vrot.slane %v1058, %v1085
      %v1087 = vcombine.high %v1065, %v1065
      %v1088 = vcombine.high %v1072, %v1072
      %v1089 = vcombine.high %v1079, %v1079
      %v1090 = vcombine.high %v1086, %v1086
      %v1091 = vcombine.high %v475, %v475
      %v1093 = vunpack.c.l.s4 1966171168
      %v1094 = vunpack.c.0.s8 %v1093
      %v1095 = vlaneseq
      %v1096 = vshrl.u32 %v1095, 7
      %v1097 = vsub.s32 %v1094, %v1096
      %v1098 = vrot.slane %v475, %v1097
      %v1100 = vunpack.c.l.s4 1966171168
      %v1101 = vunpack.c.0.s8 %v1100
      %v1102 = vlaneseq
      %v1103 = vshrl.u32 %v1102, 7
      %v1104 = vsub.s32 %v1101, %v1103
      %v1105 = vrot.slane %v1091, %v1104
      %v1106 = vcombine.high %v1098, %v1098
      %v1107 = vcombine.high %v1105, %v1105
      %v1109 = vunpack.c.l.s4 1966171168
      %v1110 = vunpack.c.0.s8 %v1109
      %v1111 = vlaneseq
      %v1112 = vshrl.u32 %v1111, 7
      %v1113 = vsub.s32 %v1110, %v1112
      %v1114 = vrot.slane %v1098, %v1113
      %v1116 = vunpack.c.l.s4 1966171168
      %v1117 = vunpack.c.0.s8 %v1116
      %v1118 = vlaneseq
      %v1119 = vshrl.u32 %v1118, 7
      %v1120 = vsub.s32 %v1117, %v1119
      %v1121 = vrot.slane %v1105, %v1120
      %v1123 = vunpack.c.l.s4 1966171168
      %v1124 = vunpack.c.0.s8 %v1123
      %v1125 = vlaneseq
      %v1126 = vshrl.u32 %v1125, 7
      %v1127 = vsub.s32 %v1124, %v1126
      %v1128 = vrot.slane %v1106, %v1127
      %v1130 = vunpack.c.l.s4 1966171168
      %v1131 = vunpack.c.0.s8 %v1130
      %v1132 = vlaneseq
      %v1133 = vshrl.u32 %v1132, 7
      %v1134 = vsub.s32 %v1131, %v1133
      %v1135 = vrot.slane %v1107, %v1134
      %v1136 = vcombine.high %v1114, %v1114
      %v1137 = vcombine.high %v1121, %v1121
      %v1138 = vcombine.high %v1128, %v1128
      %v1139 = vcombine.high %v1135, %v1135
      %v1140 = vcombine.high %v476, %v476
      %v1142 = vunpack.c.l.s4 1966171168
      %v1143 = vunpack.c.0.s8 %v1142
      %v1144 = vlaneseq
      %v1145 = vshrl.u32 %v1144, 7
      %v1146 = vsub.s32 %v1143, %v1145
      %v1147 = vrot.slane %v476, %v1146
      %v1149 = vunpack.c.l.s4 1966171168
      %v1150 = vunpack.c.0.s8 %v1149
      %v1151 = vlaneseq
      %v1152 = vshrl.u32 %v1151, 7
      %v1153 = vsub.s32 %v1150, %v1152
      %v1154 = vrot.slane %v1140, %v1153
      %v1155 = vcombine.high %v1147, %v1147
      %v1156 = vcombine.high %v1154, %v1154
      %v1158 = vunpack.c.l.s4 1966171168
      %v1159 = vunpack.c.0.s8 %v1158
      %v1160 = vlaneseq
      %v1161 = vshrl.u32 %v1160, 7
      %v1162 = vsub.s32 %v1159, %v1161
      %v1163 = vrot.slane %v1147, %v1162
      %v1165 = vunpack.c.l.s4 1966171168
      %v1166 = vunpack.c.0.s8 %v1165
      %v1167 = vlaneseq
      %v1168 = vshrl.u32 %v1167, 7
      %v1169 = vsub.s32 %v1166, %v1168
      %v1170 = vrot.slane %v1154, %v1169
      %v1172 = vunpack.c.l.s4 1966171168
      %v1173 = vunpack.c.0.s8 %v1172
      %v1174 = vlaneseq
      %v1175 = vshrl.u32 %v1174, 7
      %v1176 = vsub.s32 %v1173, %v1175
      %v1177 = vrot.slane %v1155, %v1176
      %v1179 = vunpack.c.l.s4 1966171168
      %v1180 = vunpack.c.0.s8 %v1179
      %v1181 = vlaneseq
      %v1182 = vshrl.u32 %v1181, 7
      %v1183 = vsub.s32 %v1180, %v1182
      %v1184 = vrot.slane %v1156, %v1183
      %v1185 = vcombine.high %v1163, %v1163
      %v1186 = vcombine.high %v1170, %v1170
      %v1187 = vcombine.high %v1177, %v1177
      %v1188 = vcombine.high %v1184, %v1184
      %v1733 = vunpack.c.l.b16 %v477
      %v1734 = vunpack.c.l.b16 %v478
      %v1735 = vunpack.c.l.b16 %v479
      %v1736 = vunpack.c.l.b16 %v480
      %v1737 = vunpack.c.l.b16 %v481
      %v1738 = vunpack.c.l.b16 %v482
      %v1739 = vunpack.c.l.b16 %v483
      %v1740 = vunpack.c.l.b16 %v484
      %v1741 = vunpack.c.l.b16 %v485
      %v1742 = vunpack.c.l.b16 %v486
      %v1743 = vunpack.c.l.b16 %v487
      %v1744 = vunpack.c.l.b16 %v488
      %v1745 = vunpack.c.l.b16 %v489
      %v1746 = vunpack.c.l.b16 %v490
      %v1747 = vunpack.c.l.b16 %v491
      %v1748 = vunpack.c.l.b16 %v492
      %v1749 = vunpack.c.l.b16 %v493
      %v1750 = vunpack.c.l.b16 %v494
      %v1751 = vunpack.c.l.b16 %v495
      %v1752 = vunpack.c.l.b16 %v496
      %v1753 = vunpack.c.l.b16 %v497
      %v1754 = vunpack.c.l.b16 %v498
      %v1755 = vunpack.c.l.b16 %v499
      %v1756 = vunpack.c.l.b16 %v500
      %v1757 = vunpack.c.l.b16 %v501
      %v1758 = vunpack.c.l.b16 %v502
      %v1759 = vunpack.c.l.b16 %v503
      %v1760 = vunpack.c.l.b16 %v504
      %v1761 = vunpack.c.l.b16 %v505
      %v1762 = vunpack.c.l.b16 %v506
      %v1763 = vunpack.c.l.b16 %v507
      %v1764 = vunpack.c.l.b16 %v508
      %v1765 = vunpack.c.l.b16 %v509
      %v1766 = vunpack.c.l.b16 %v510
      %v1767 = vunpack.c.l.b16 %v511
      %v1768 = vunpack.c.l.b16 %v512
      %v1769 = vunpack.c.l.b16 %v513
      %v1770 = vunpack.c.l.b16 %v514
      %v1771 = vunpack.c.l.b16 %v515
      %v1772 = vunpack.c.l.b16 %v516
      %v1773 = vunpack.c.l.b16 %v517
      %v1774 = vunpack.c.l.b16 %v518
      %v1775 = vunpack.c.l.b16 %v519
      %v1776 = vunpack.c.l.b16 %v520
      %v1777 = vunpack.c.l.b16 %v521
      %v1778 = vunpack.c.l.b16 %v522
      %v1779 = vunpack.c.l.b16 %v523
      %v1780 = vunpack.c.l.b16 %v524
      %v1781 = vunpack.c.l.b16 %v525
      %v1782 = vunpack.c.l.b16 %v526
      %v1783 = vunpack.c.l.b16 %v527
      %v1784 = vunpack.c.l.b16 %v528
      %v1785 = vunpack.c.l.b16 %v529
      %v1786 = vunpack.c.l.b16 %v530
      %v1787 = vunpack.c.l.b16 %v531
      %v1788 = vunpack.c.l.b16 %v532
      %v1789 = vunpack.c.l.b16 %v533
      %v1790 = vunpack.c.l.b16 %v534
      %v1791 = vunpack.c.l.b16 %v535
      %v1792 = vunpack.c.l.b16 %v536
      %v1793 = vunpack.c.l.b16 %v537
      %v1794 = vunpack.c.l.b16 %v538
      %v1795 = vunpack.c.l.b16 %v539
      %v1796 = vunpack.c.l.b16 %v540
      %v1797 = vunpack.c.l.b16 %v541
      %v1798 = vunpack.c.l.b16 %v542
      %v1799 = vunpack.c.l.b16 %v543
      %v1800 = vunpack.c.l.b16 %v544
      %v1801 = vunpack.c.l.b16 %v545
      %v1802 = vunpack.c.l.b16 %v546
      %v1803 = vunpack.c.l.b16 %v547
      %v1804 = vunpack.c.l.b16 %v548
      %v1805 = vunpack.c.l.b16 %v549
      %v1806 = vunpack.c.l.b16 %v550
      %v1807 = vunpack.c.l.b16 %v551
      %v1808 = vunpack.c.l.b16 %v552
      %v1809 = vunpack.c.l.b16 %v553
      %v1810 = vunpack.c.l.b16 %v554
      %v1811 = vunpack.c.l.b16 %v555
      %v1812 = vunpack.c.l.b16 %v556
      %v1813 = vunpack.c.l.b16 %v557
      %v1814 = vunpack.c.l.b16 %v558
      %v1815 = vunpack.c.l.b16 %v559
      %v1816 = vunpack.c.l.b16 %v560
      %v1817 = vunpack.c.l.b16 %v561
      %v1818 = vunpack.c.l.b16 %v562
      %v1819 = vunpack.c.l.b16 %v563
      %v1820 = vunpack.c.l.b16 %v564
      %v1821 = vunpack.c.l.b16 %v565
      %v1822 = vunpack.c.l.b16 %v566
      %v1823 = vunpack.c.l.b16 %v567
      %v1824 = vunpack.c.l.b16 %v568
      %v1825 = vunpack.c.l.b16 %v569
      %v1826 = vunpack.c.l.b16 %v570
      %v1827 = vunpack.c.l.b16 %v571
      %v1828 = vunpack.c.l.b16 %v572
      %v1829 = vunpack.c.l.b16 %v573
      %v1830 = vunpack.c.l.b16 %v574
      %v1831 = vunpack.c.l.b16 %v575
      %v1832 = vunpack.c.l.b16 %v576
      %v1833 = vunpack.c.l.b16 %v577
      %v1834 = vunpack.c.l.b16 %v578
      %v1835 = vunpack.c.l.b16 %v579
      %v1836 = vunpack.c.l.b16 %v580
      %v1837 = vunpack.c.l.b16 %v581
      %v1838 = vunpack.c.l.b16 %v582
      %v1839 = vunpack.c.l.b16 %v583
      %v1840 = vunpack.c.l.b16 %v584
      %v1841 = vunpack.c.l.b16 %v585
      %v1842 = vunpack.c.l.b16 %v586
      %v1843 = vunpack.c.l.b16 %v587
      %v1844 = vunpack.c.l.b16 %v588
      %v1845 = vunpack.c.l.b16 %v589
      %v1846 = vunpack.c.l.b16 %v590
      %v1847 = vunpack.c.l.b16 %v591
      %v1848 = vunpack.c.l.b16 %v592
      %v1849 = vunpack.c.l.b16 %v593
      %v1850 = vunpack.c.l.b16 %v594
      %v1851 = vunpack.c.l.b16 %v595
      %v1852 = vunpack.c.l.b16 %v596
      %v1853 = vunpack.c.l.b16 %v597
      %v1854 = vunpack.c.l.b16 %v598
      %v1855 = vunpack.c.l.b16 %v599
      %v1856 = vunpack.c.l.b16 %v600
      %v1857 = vunpack.c.l.b16 %v601
      %v1858 = vunpack.c.l.b16 %v602
      %v1859 = vunpack.c.l.b16 %v603
      %v1860 = vunpack.c.l.b16 %v604
      %v1861 = vunpack.c.l.b16 %v605
      %v1862 = vunpack.c.l.b16 %v606
      %v1863 = vunpack.c.l.b16 %v607
      %v1864 = vunpack.c.l.b16 %v608
      %v1865 = vunpack.c.l.b16 %v609
      %v1866 = vunpack.c.l.b16 %v610
      %v1867 = vunpack.c.l.b16 %v611
      %v1868 = vunpack.c.l.b16 %v612
      %v1869 = vunpack.c.l.b16 %v613
      %v1870 = vunpack.c.l.b16 %v614
      %v1871 = vunpack.c.l.b16 %v615
      %v1872 = vunpack.c.l.b16 %v616
      %v1873 = vunpack.c.l.b16 %v617
      %v1874 = vunpack.c.l.b16 %v618
      %v1875 = vunpack.c.l.b16 %v619
      %v1876 = vunpack.c.l.b16 %v620
      %v1877 = vunpack.c.l.b16 %v621
      %v1878 = vunpack.c.l.b16 %v622
      %v1879 = vunpack.c.l.b16 %v623
      %v1880 = vunpack.c.l.b16 %v624
      %v1881 = vunpack.c.l.b16 %v625
      %v1882 = vunpack.c.l.b16 %v626
      %v1883 = vunpack.c.l.b16 %v627
      %v1884 = vunpack.c.l.b16 %v628
      %v1885 = vunpack.c.l.b16 %v629
      %v1886 = vunpack.c.l.b16 %v630
      %v1887 = vunpack.c.l.b16 %v631
      %v1888 = vunpack.c.l.b16 %v632
      %v1889 = vunpack.c.l.b16 %v633
      %v1890 = vunpack.c.l.b16 %v634
      %v1891 = vunpack.c.l.b16 %v635
      %v1892 = vunpack.c.l.b16 %v636
      %v1893 = vunpack.c.l.b16 %v637
      %v1894 = vunpack.c.l.b16 %v638
      %v1895 = vunpack.c.l.b16 %v639
      %v1896 = vunpack.c.l.b16 %v640
      %v1897 = vunpack.c.l.b16 %v641
      %v1898 = vunpack.c.l.b16 %v642
      %v1899 = vunpack.c.l.b16 %v643
      %v1900 = vunpack.c.l.b16 %v644
      %v1901 = vunpack.c.l.b16 %v645
      %v1902 = vunpack.c.l.b16 %v646
      %v1903 = vunpack.c.l.b16 %v647
      %v1904 = vunpack.c.l.b16 %v648
      %v1905 = vunpack.c.l.b16 %v649
      %v1906 = vunpack.c.l.b16 %v650
      %v1907 = vunpack.c.l.b16 %v651
      %v1908 = vunpack.c.l.b16 %v652
      %v1909 = vunpack.c.l.b16 %v653
      %v1910 = vunpack.c.l.b16 %v654
      %v1911 = vunpack.c.l.b16 %v655
      %v1912 = vunpack.c.l.b16 %v656
      %v1913 = vunpack.c.l.b16 %v657
      %v1914 = vunpack.c.l.b16 %v658
      %v1915 = vunpack.c.l.b16 %v659
      %v1916 = vunpack.c.l.b16 %v660
      %v1917 = vunpack.c.l.b16 %v661
      %v1918 = vunpack.c.l.b16 %v662
      %v1919 = vunpack.c.l.b16 %v663
      %v1920 = vunpack.c.l.b16 %v664
      %v1921 = vunpack.c.l.b16 %v665
      %v1922 = vunpack.c.l.b16 %v666
      %v1923 = vunpack.c.l.b16 %v667
      %v1924 = vunpack.c.l.b16 %v668
      %v1925 = vunpack.c.l.b16 %v669
      %v1926 = vunpack.c.l.b16 %v670
      %v1927 = vunpack.c.l.b16 %v671
      %v1928 = vunpack.c.l.b16 %v672
      %v1929 = vunpack.c.l.b16 %v673
      %v1930 = vunpack.c.l.b16 %v674
      %v1931 = vunpack.c.l.b16 %v675
      %v1932 = vunpack.c.l.b16 %v676
      %v1933 = vunpack.c.l.b16 %v677
      %v1934 = vunpack.c.l.b16 %v678
      %v1935 = vunpack.c.l.b16 %v679
      %v1936 = vunpack.c.l.b16 %v680
      %v1937 = vunpack.c.l.b16 %v681
      %v1938 = vunpack.c.l.b16 %v682
      %v1939 = vunpack.c.l.b16 %v683
      %v1940 = vunpack.c.l.b16 %v684
      %v1941 = vunpack.c.l.b16 %v685
      %v1942 = vunpack.c.l.b16 %v686
      %v1943 = vunpack.c.l.b16 %v687
      %v1944 = vunpack.c.l.b16 %v688
      %v1945 = vunpack.c.l.b16 %v689
      %v1946 = vunpack.c.l.b16 %v690
      %v1947 = vunpack.c.l.b16 %v691
      %v1948 = vunpack.c.l.b16 %v692
      %v1949 = vunpack.c.l.b16 %v693
      %v1950 = vunpack.c.l.b16 %v694
      %v1951 = vunpack.c.l.b16 %v695
      %v1952 = vunpack.c.l.b16 %v696
      %v1953 = vunpack.c.l.b16 %v697
      %v1954 = vunpack.c.l.b16 %v698
      %v1955 = vunpack.c.l.b16 %v699
      %v1956 = vunpack.c.l.b16 %v700
      %v1957 = vunpack.c.l.b16 %v701
      %v1958 = vunpack.c.l.b16 %v702
      %v1959 = vunpack.c.l.b16 %v703
      %v1960 = vunpack.c.l.b16 %v704
      %v1961 = vunpack.c.l.b16 %v705
      %v1962 = vunpack.c.l.b16 %v706
      %v1963 = vunpack.c.l.b16 %v707
      %v1964 = vunpack.c.l.b16 %v708
      %v1965 = vunpack.c.l.b16 %v709
      %v1966 = vunpack.c.l.b16 %v710
      %v1967 = vunpack.c.l.b16 %v711
      %v1968 = vunpack.c.l.b16 %v712
      %v1969 = vunpack.c.l.b16 %v713
      %v1970 = vunpack.c.l.b16 %v714
      %v1971 = vunpack.c.l.b16 %v715
      %v1972 = vunpack.c.l.b16 %v716
      %v1973 = vunpack.c.l.b16 %v717
      %v1974 = vunpack.c.l.b16 %v718
      %v1975 = vunpack.c.l.b16 %v719
      %v1976 = vunpack.c.l.b16 %v720
      %v1977 = vunpack.c.l.b16 %v721
      %v1978 = vunpack.c.l.b16 %v722
      %v1979 = vunpack.c.l.b16 %v723
      %v1980 = vunpack.c.l.b16 %v724
      %v1981 = vunpack.c.l.b16 %v725
      %v1982 = vunpack.c.l.b16 %v726
      %v1983 = vunpack.c.l.b16 %v727
      %v1984 = vunpack.c.l.b16 %v728
      %v1985 = vunpack.c.l.b16 %v729
      %v1986 = vunpack.c.l.b16 %v730
      %v1987 = vunpack.c.l.b16 %v731
      %v1988 = vunpack.c.l.b16 %v732
      %v1989 = vunpack.c.l.b16 %v733
      %v1990 = vunpack.c.l.b16 %v734
      %v1991 = vunpack.c.l.b16 %v735
      %v1992 = vunpack.c.l.b16 %v736
      %v1993 = vunpack.c.l.b16 %v737
      %v1994 = vunpack.c.l.b16 %v738
      %v1995 = vunpack.c.l.b16 %v739
      %v1996 = vunpack.c.l.b16 %v740
      %v1997 = vunpack.c.l.b16 %v741
      %v1998 = vunpack.c.l.b16 %v742
      %v1999 = vunpack.c.l.b16 %v743
      %v2000 = vunpack.c.l.b16 %v744
      %v2001 = vunpack.c.l.b16 %v745
      %v2002 = vunpack.c.l.b16 %v746
      %v2003 = vunpack.c.l.b16 %v747
      %v2004 = vunpack.c.l.b16 %v748
      %v2005 = vunpack.c.l.b16 %v749
      %v2006 = vunpack.c.l.b16 %v750
      %v2007 = vunpack.c.l.b16 %v751
      %v2008 = vunpack.c.l.b16 %v752
      %v2009 = vunpack.c.l.b16 %v753
      %v2010 = vunpack.c.l.b16 %v754
      %v2011 = vunpack.c.l.b16 %v755
      %v2012 = vunpack.c.l.b16 %v756
      %v2013 = vunpack.c.l.b16 %v757
      %v2014 = vunpack.c.l.b16 %v758
      %v2015 = vunpack.c.l.b16 %v759
      %v2016 = vunpack.c.l.b16 %v760
      %v2017 = vunpack.c.l.b16 %v761
      %v2018 = vunpack.c.l.b16 %v762
      %v2019 = vunpack.c.l.b16 %v763
      %v2020 = vunpack.c.l.b16 %v764
      %v2021 = vunpack.c.l.b16 %v765
      %v2022 = vunpack.c.l.b16 %v766
      %v2023 = vunpack.c.l.b16 %v767
      %v2024 = vunpack.c.l.b16 %v768
      %v2025 = vunpack.c.l.b16 %v769
      %v2026 = vunpack.c.l.b16 %v770
      %v2027 = vunpack.c.l.b16 %v771
      %v2028 = vunpack.c.l.b16 %v772
      %v2029 = vunpack.c.l.b16 %v773
      %v2030 = vunpack.c.l.b16 %v774
      %v2031 = vunpack.c.l.b16 %v775
      %v2032 = vunpack.c.l.b16 %v776
      %v2033 = vunpack.c.l.b16 %v777
      %v2034 = vunpack.c.l.b16 %v778
      %v2035 = vunpack.c.l.b16 %v779
      %v2036 = vunpack.c.l.b16 %v780
      %v2037 = vunpack.c.l.b16 %v781
      %v2038 = vunpack.c.l.b16 %v782
      %v2039 = vunpack.c.l.b16 %v783
      %v2040 = vunpack.c.l.b16 %v784
      %v2041 = vunpack.c.l.b16 %v785
      %v2042 = vunpack.c.l.b16 %v786
      %v2043 = vunpack.c.l.b16 %v787
      %v2044 = vunpack.c.l.b16 %v788
      %v2045 = vunpack.c.l.b16 %v789
      %v2046 = vunpack.c.l.b16 %v790
      %v2047 = vunpack.c.l.b16 %v791
      %v2048 = vunpack.c.l.b16 %v792
      %v2049 = vunpack.c.l.b16 %v793
      %v2050 = vunpack.c.l.b16 %v794
      %v2051 = vunpack.c.l.b16 %v795
      %v2052 = vunpack.c.l.b16 %v796
      %v2053 = vunpack.c.l.b16 %v797
      %v2054 = vunpack.c.l.b16 %v798
      %v2055 = vunpack.c.l.b16 %v799
      %v2056 = vunpack.c.l.b16 %v800
      %v2057 = vunpack.c.l.b16 %v801
      %v2058 = vunpack.c.l.b16 %v802
      %v2059 = vunpack.c.l.b16 %v803
      %v2060 = vunpack.c.l.b16 %v804
      %v2061 = vunpack.c.l.b16 %v805
      %v2062 = vunpack.c.l.b16 %v806
      %v2063 = vunpack.c.l.b16 %v807
      %v2064 = vunpack.c.l.b16 %v808
      %v2065 = vunpack.c.l.b16 %v809
      %v2066 = vunpack.c.l.b16 %v810
      %v2067 = vunpack.c.l.b16 %v811
      %v2068 = vunpack.c.l.b16 %v812
      %v2069 = vunpack.c.l.b16 %v813
      %v2070 = vunpack.c.l.b16 %v814
      %v2071 = vunpack.c.l.b16 %v815
      %v2072 = vunpack.c.l.b16 %v816
      %v2073 = vunpack.c.l.b16 %v817
      %v2074 = vunpack.c.l.b16 %v818
      %v2075 = vunpack.c.l.b16 %v819
      %v2076 = vunpack.c.l.b16 %v820
      %v2077 = vunpack.c.l.b16 %v821
      %v2078 = vunpack.c.l.b16 %v822
      %v2079 = vunpack.c.l.b16 %v823
      %v2080 = vunpack.c.l.b16 %v824
      %v2081 = vunpack.c.l.b16 %v825
      %v2082 = vunpack.c.l.b16 %v826
      %v2083 = vunpack.c.l.b16 %v827
      %v2084 = vunpack.c.l.b16 %v828
      %v2085 = vunpack.c.l.b16 %v829
      %v2086 = vunpack.c.l.b16 %v830
      %v2087 = vunpack.c.l.b16 %v831
      %v2088 = vunpack.c.l.b16 %v832
      %v2089 = vunpack.c.l.b16 %v833
      %v2090 = vunpack.c.l.b16 %v834
      %v2091 = vunpack.c.l.b16 %v835
      %v2092 = vunpack.c.l.b16 %v836
      %v2093 = vunpack.c.l.b16 %v837
      %v2094 = vunpack.c.l.b16 %v838
      %v2095 = vunpack.c.l.b16 %v839
      %v2096 = vunpack.c.l.b16 %v840
      %v2097 = vunpack.c.l.b16 %v841
      %v2098 = vunpack.c.l.b16 %v842
      %v2099 = vunpack.c.l.b16 %v843
      %v2100 = vunpack.c.l.b16 %v844
      %v2101 = vunpack.c.l.b16 %v845
      %v2102 = vunpack.c.l.b16 %v846
      %v2103 = vunpack.c.l.b16 %v847
      %v2104 = vunpack.c.l.b16 %v848
      %v2105 = vunpack.c.l.b16 %v849
      %v2106 = vunpack.c.l.b16 %v850
      %v2107 = vunpack.c.l.b16 %v851
      %v2108 = vunpack.c.l.b16 %v852
      %v2109 = vunpack.c.l.b16 %v853
      %v2110 = vunpack.c.l.b16 %v854
      %v2111 = vunpack.c.l.b16 %v855
      %v2112 = vunpack.c.l.b16 %v856
      %v2113 = vunpack.c.l.b16 %v857
      %v2114 = vunpack.c.l.b16 %v858
      %v2115 = vunpack.c.l.b16 %v859
      %v2116 = vunpack.c.l.b16 %v860
      %v2117 = vunpack.c.l.b16 %v861
      %v2118 = vunpack.c.l.b16 %v862
      %v2119 = vunpack.c.l.b16 %v863
      %v2120 = vunpack.c.l.b16 %v864
      %v2121 = vunpack.c.l.b16 %v865
      %v2122 = vunpack.c.l.b16 %v866
      %v2123 = vunpack.c.l.b16 %v867
      %v2124 = vunpack.c.l.b16 %v868
      %v2125 = vunpack.c.l.b16 %v869
      %v2126 = vunpack.c.l.b16 %v870
      %v2127 = vunpack.c.l.b16 %v871
      %v2128 = vunpack.c.l.b16 %v872
      %v2129 = vunpack.c.l.b16 %v873
      %v2130 = vunpack.c.l.b16 %v874
      %v2131 = vunpack.c.l.b16 %v875
      %v2132 = vunpack.c.l.b16 %v876
      %v2133 = vunpack.c.l.b16 %v877
      %v2134 = vunpack.c.l.b16 %v878
      %v2135 = vunpack.c.l.b16 %v879
      %v2136 = vunpack.c.l.b16 %v880
      %v2137 = vunpack.c.l.b16 %v881
      %v2138 = vunpack.c.l.b16 %v882
      %v2139 = vunpack.c.l.b16 %v883
      %v2140 = vunpack.c.l.b16 %v884
      %v2141 = vunpack.c.l.b16 %v885
      %v2142 = vunpack.c.l.b16 %v886
      %v2143 = vunpack.c.l.b16 %v887
      %v2144 = vunpack.c.l.b16 %v888
      %v2145 = vunpack.c.l.b16 %v889
      %v2146 = vunpack.c.l.b16 %v890
      %v2147 = vunpack.c.l.b16 %v891
      %v2148 = vunpack.c.l.b16 %v892
      %v2149 = vunpack.c.l.b16 %v893
      %v2150 = vunpack.c.l.b16 %v894
      %v2151 = vunpack.c.l.b16 %v895
      %v2152 = vunpack.c.l.b16 %v896
      %v2153 = vunpack.c.l.b16 %v897
      %v2154 = vunpack.c.l.b16 %v898
      %v2155 = vunpack.c.l.b16 %v899
      %v2156 = vunpack.c.l.b16 %v900
      %v2157 = vunpack.c.l.b16 %v901
      %v2158 = vunpack.c.l.b16 %v902
      %v2159 = vunpack.c.l.b16 %v903
      %v2160 = vunpack.c.l.b16 %v904
      %v2161 = vunpack.c.l.b16 %v905
      %v2162 = vunpack.c.l.b16 %v906
      %v2163 = vunpack.c.l.b16 %v907
      %v2164 = vunpack.c.l.b16 %v908
      %v2165 = vunpack.c.l.b16 %v909
      %v2166 = vunpack.c.l.b16 %v910
      %v2167 = vunpack.c.l.b16 %v911
      %v2168 = vunpack.c.l.b16 %v912
      %v2169 = vunpack.c.l.b16 %v913
      %v2170 = vunpack.c.l.b16 %v914
      %v2171 = vunpack.c.l.b16 %v915
      %v2172 = vunpack.c.l.b16 %v916
      %v2173 = vunpack.c.l.b16 %v917
      %v2174 = vunpack.c.l.b16 %v918
      %v2175 = vunpack.c.l.b16 %v919
      %v2176 = vunpack.c.l.b16 %v920
      %v2177 = vunpack.c.l.b16 %v921
      %v2178 = vunpack.c.l.b16 %v922
      %v2179 = vunpack.c.l.b16 %v923
      %v2180 = vunpack.c.l.b16 %v924
      %v2181 = vunpack.c.l.b16 %v925
      %v2182 = vunpack.c.l.b16 %v926
      %v2183 = vunpack.c.l.b16 %v927
      %v2184 = vunpack.c.l.b16 %v928
      %v2185 = vunpack.c.l.b16 %v929
      %v2186 = vunpack.c.l.b16 %v930
      %v2187 = vunpack.c.l.b16 %v931
      %v2188 = vunpack.c.l.b16 %v932
      %v2189 = vunpack.c.l.b16 %v933
      %v2190 = vunpack.c.l.b16 %v934
      %v2191 = vunpack.c.l.b16 %v935
      %v2192 = vunpack.c.l.b16 %v936
      %v2193 = vunpack.c.l.b16 %v937
      %v2194 = vunpack.c.l.b16 %v938
      %v2195 = vunpack.c.l.b16 %v939
      %v2196 = vunpack.c.l.b16 %v940
      %v2197 = vunpack.c.l.b16 %v941
      %v2198 = vunpack.c.l.b16 %v942
      %v2199 = vunpack.c.l.b16 %v943
      %v2200 = vunpack.c.l.b16 %v944
      %v2201 = vunpack.c.l.b16 %v945
      %v2202 = vunpack.c.l.b16 %v946
      %v2203 = vunpack.c.l.b16 %v947
      %v2204 = vunpack.c.l.b16 %v948
      %v2205 = vunpack.c.l.b16 %v949
      %v2206 = vunpack.c.l.b16 %v950
      %v2207 = vunpack.c.l.b16 %v951
      %v2208 = vunpack.c.l.b16 %v952
      %v2209 = vunpack.c.l.b16 %v953
      %v2210 = vunpack.c.l.b16 %v954
      %v2211 = vunpack.c.l.b16 %v955
      %v2212 = vunpack.c.l.b16 %v956
      %v2213 = vunpack.c.l.b16 %v957
      %v2214 = vunpack.c.l.b16 %v958
      %v2215 = vunpack.c.l.b16 %v959
      %v2216 = vunpack.c.l.b16 %v960
      %v2217 = vunpack.c.l.b16 %v961
      %v2218 = vunpack.c.l.b16 %v962
      %v2219 = vunpack.c.l.b16 %v963
      %v2220 = vunpack.c.l.b16 %v964
      %v2221 = vunpack.c.l.b16 %v965
      %v2222 = vunpack.c.l.b16 %v966
      %v2223 = vunpack.c.l.b16 %v967
      %v2224 = vunpack.c.l.b16 %v968
      %v2225 = vunpack.c.l.b16 %v969
      %v2226 = vunpack.c.l.b16 %v970
      %v2227 = vunpack.c.l.b16 %v971
      %v2228 = vunpack.c.l.b16 %v972
      %v2229 = vunpack.c.l.b16 %v973
      %v2230 = vunpack.c.l.b16 %v974
      %v2231 = vunpack.c.l.b16 %v975
      %v2232 = vunpack.c.l.b16 %v976
      %v2233 = vunpack.c.l.b16 %v977
      %v2234 = vunpack.c.l.b16 %v978
      %v2235 = vunpack.c.l.b16 %v979
      %v2236 = vunpack.c.l.b16 %v980
      %v2237 = vunpack.c.l.b16 %v981
      %v2238 = vunpack.c.l.b16 %v982
      %v2239 = vunpack.c.l.b16 %v983
      %v2240 = vunpack.c.l.b16 %v984
      %v2241 = vunpack.c.l.b16 %v985
      %v2242 = vunpack.c.l.b16 %v986
      %v2243 = vunpack.c.l.b16 %v987
      %v2244 = vunpack.c.l.b16 %v988
      %v2245 = vpack.c.b16 %v1734, %v1733
      %v2246 = vpack.c.b16 %v1736, %v1735
      %v2247 = vpack.c.b16 %v1738, %v1737
      %v2248 = vpack.c.b16 %v1740, %v1739
      %v2249 = vpack.c.b16 %v1742, %v1741
      %v2250 = vpack.c.b16 %v1744, %v1743
      %v2251 = vpack.c.b16 %v1746, %v1745
      %v2252 = vpack.c.b16 %v1748, %v1747
      %v2253 = vpack.c.b16 %v1750, %v1749
      %v2254 = vpack.c.b16 %v1752, %v1751
      %v2255 = vpack.c.b16 %v1754, %v1753
      %v2256 = vpack.c.b16 %v1756, %v1755
      %v2257 = vpack.c.b16 %v1758, %v1757
      %v2258 = vpack.c.b16 %v1760, %v1759
      %v2259 = vpack.c.b16 %v1762, %v1761
      %v2260 = vpack.c.b16 %v1764, %v1763
      %v2261 = vpack.c.b16 %v1766, %v1765
      %v2262 = vpack.c.b16 %v1768, %v1767
      %v2263 = vpack.c.b16 %v1770, %v1769
      %v2264 = vpack.c.b16 %v1772, %v1771
      %v2265 = vpack.c.b16 %v1774, %v1773
      %v2266 = vpack.c.b16 %v1776, %v1775
      %v2267 = vpack.c.b16 %v1778, %v1777
      %v2268 = vpack.c.b16 %v1780, %v1779
      %v2269 = vpack.c.b16 %v1782, %v1781
      %v2270 = vpack.c.b16 %v1784, %v1783
      %v2271 = vpack.c.b16 %v1786, %v1785
      %v2272 = vpack.c.b16 %v1788, %v1787
      %v2273 = vpack.c.b16 %v1790, %v1789
      %v2274 = vpack.c.b16 %v1792, %v1791
      %v2275 = vpack.c.b16 %v1794, %v1793
      %v2276 = vpack.c.b16 %v1796, %v1795
      %v2277 = vpack.c.b16 %v1798, %v1797
      %v2278 = vpack.c.b16 %v1800, %v1799
      %v2279 = vpack.c.b16 %v1802, %v1801
      %v2280 = vpack.c.b16 %v1804, %v1803
      %v2281 = vpack.c.b16 %v1806, %v1805
      %v2282 = vpack.c.b16 %v1808, %v1807
      %v2283 = vpack.c.b16 %v1810, %v1809
      %v2284 = vpack.c.b16 %v1812, %v1811
      %v2285 = vpack.c.b16 %v1814, %v1813
      %v2286 = vpack.c.b16 %v1816, %v1815
      %v2287 = vpack.c.b16 %v1818, %v1817
      %v2288 = vpack.c.b16 %v1820, %v1819
      %v2289 = vpack.c.b16 %v1822, %v1821
      %v2290 = vpack.c.b16 %v1824, %v1823
      %v2291 = vpack.c.b16 %v1826, %v1825
      %v2292 = vpack.c.b16 %v1828, %v1827
      %v2293 = vpack.c.b16 %v1830, %v1829
      %v2294 = vpack.c.b16 %v1832, %v1831
      %v2295 = vpack.c.b16 %v1834, %v1833
      %v2296 = vpack.c.b16 %v1836, %v1835
      %v2297 = vpack.c.b16 %v1838, %v1837
      %v2298 = vpack.c.b16 %v1840, %v1839
      %v2299 = vpack.c.b16 %v1842, %v1841
      %v2300 = vpack.c.b16 %v1844, %v1843
      %v2301 = vpack.c.b16 %v1846, %v1845
      %v2302 = vpack.c.b16 %v1848, %v1847
      %v2303 = vpack.c.b16 %v1850, %v1849
      %v2304 = vpack.c.b16 %v1852, %v1851
      %v2305 = vpack.c.b16 %v1854, %v1853
      %v2306 = vpack.c.b16 %v1856, %v1855
      %v2307 = vpack.c.b16 %v1858, %v1857
      %v2308 = vpack.c.b16 %v1860, %v1859
      %v2309 = vpack.c.b16 %v1862, %v1861
      %v2310 = vpack.c.b16 %v1864, %v1863
      %v2311 = vpack.c.b16 %v1866, %v1865
      %v2312 = vpack.c.b16 %v1868, %v1867
      %v2313 = vpack.c.b16 %v1870, %v1869
      %v2314 = vpack.c.b16 %v1872, %v1871
      %v2315 = vpack.c.b16 %v1874, %v1873
      %v2316 = vpack.c.b16 %v1876, %v1875
      %v2317 = vpack.c.b16 %v1878, %v1877
      %v2318 = vpack.c.b16 %v1880, %v1879
      %v2319 = vpack.c.b16 %v1882, %v1881
      %v2320 = vpack.c.b16 %v1884, %v1883
      %v2321 = vpack.c.b16 %v1886, %v1885
      %v2322 = vpack.c.b16 %v1888, %v1887
      %v2323 = vpack.c.b16 %v1890, %v1889
      %v2324 = vpack.c.b16 %v1892, %v1891
      %v2325 = vpack.c.b16 %v1894, %v1893
      %v2326 = vpack.c.b16 %v1896, %v1895
      %v2327 = vpack.c.b16 %v1898, %v1897
      %v2328 = vpack.c.b16 %v1900, %v1899
      %v2329 = vpack.c.b16 %v1902, %v1901
      %v2330 = vpack.c.b16 %v1904, %v1903
      %v2331 = vpack.c.b16 %v1906, %v1905
      %v2332 = vpack.c.b16 %v1908, %v1907
      %v2333 = vpack.c.b16 %v1910, %v1909
      %v2334 = vpack.c.b16 %v1912, %v1911
      %v2335 = vpack.c.b16 %v1914, %v1913
      %v2336 = vpack.c.b16 %v1916, %v1915
      %v2337 = vpack.c.b16 %v1918, %v1917
      %v2338 = vpack.c.b16 %v1920, %v1919
      %v2339 = vpack.c.b16 %v1922, %v1921
      %v2340 = vpack.c.b16 %v1924, %v1923
      %v2341 = vpack.c.b16 %v1926, %v1925
      %v2342 = vpack.c.b16 %v1928, %v1927
      %v2343 = vpack.c.b16 %v1930, %v1929
      %v2344 = vpack.c.b16 %v1932, %v1931
      %v2345 = vpack.c.b16 %v1934, %v1933
      %v2346 = vpack.c.b16 %v1936, %v1935
      %v2347 = vpack.c.b16 %v1938, %v1937
      %v2348 = vpack.c.b16 %v1940, %v1939
      %v2349 = vpack.c.b16 %v1942, %v1941
      %v2350 = vpack.c.b16 %v1944, %v1943
      %v2351 = vpack.c.b16 %v1946, %v1945
      %v2352 = vpack.c.b16 %v1948, %v1947
      %v2353 = vpack.c.b16 %v1950, %v1949
      %v2354 = vpack.c.b16 %v1952, %v1951
      %v2355 = vpack.c.b16 %v1954, %v1953
      %v2356 = vpack.c.b16 %v1956, %v1955
      %v2357 = vpack.c.b16 %v1958, %v1957
      %v2358 = vpack.c.b16 %v1960, %v1959
      %v2359 = vpack.c.b16 %v1962, %v1961
      %v2360 = vpack.c.b16 %v1964, %v1963
      %v2361 = vpack.c.b16 %v1966, %v1965
      %v2362 = vpack.c.b16 %v1968, %v1967
      %v2363 = vpack.c.b16 %v1970, %v1969
      %v2364 = vpack.c.b16 %v1972, %v1971
      %v2365 = vpack.c.b16 %v1974, %v1973
      %v2366 = vpack.c.b16 %v1976, %v1975
      %v2367 = vpack.c.b16 %v1978, %v1977
      %v2368 = vpack.c.b16 %v1980, %v1979
      %v2369 = vpack.c.b16 %v1982, %v1981
      %v2370 = vpack.c.b16 %v1984, %v1983
      %v2371 = vpack.c.b16 %v1986, %v1985
      %v2372 = vpack.c.b16 %v1988, %v1987
      %v2373 = vpack.c.b16 %v1990, %v1989
      %v2374 = vpack.c.b16 %v1992, %v1991
      %v2375 = vpack.c.b16 %v1994, %v1993
      %v2376 = vpack.c.b16 %v1996, %v1995
      %v2377 = vpack.c.b16 %v1998, %v1997
      %v2378 = vpack.c.b16 %v2000, %v1999
      %v2379 = vpack.c.b16 %v2002, %v2001
      %v2380 = vpack.c.b16 %v2004, %v2003
      %v2381 = vpack.c.b16 %v2006, %v2005
      %v2382 = vpack.c.b16 %v2008, %v2007
      %v2383 = vpack.c.b16 %v2010, %v2009
      %v2384 = vpack.c.b16 %v2012, %v2011
      %v2385 = vpack.c.b16 %v2014, %v2013
      %v2386 = vpack.c.b16 %v2016, %v2015
      %v2387 = vpack.c.b16 %v2018, %v2017
      %v2388 = vpack.c.b16 %v2020, %v2019
      %v2389 = vpack.c.b16 %v2022, %v2021
      %v2390 = vpack.c.b16 %v2024, %v2023
      %v2391 = vpack.c.b16 %v2026, %v2025
      %v2392 = vpack.c.b16 %v2028, %v2027
      %v2393 = vpack.c.b16 %v2030, %v2029
      %v2394 = vpack.c.b16 %v2032, %v2031
      %v2395 = vpack.c.b16 %v2034, %v2033
      %v2396 = vpack.c.b16 %v2036, %v2035
      %v2397 = vpack.c.b16 %v2038, %v2037
      %v2398 = vpack.c.b16 %v2040, %v2039
      %v2399 = vpack.c.b16 %v2042, %v2041
      %v2400 = vpack.c.b16 %v2044, %v2043
      %v2401 = vpack.c.b16 %v2046, %v2045
      %v2402 = vpack.c.b16 %v2048, %v2047
      %v2403 = vpack.c.b16 %v2050, %v2049
      %v2404 = vpack.c.b16 %v2052, %v2051
      %v2405 = vpack.c.b16 %v2054, %v2053
      %v2406 = vpack.c.b16 %v2056, %v2055
      %v2407 = vpack.c.b16 %v2058, %v2057
      %v2408 = vpack.c.b16 %v2060, %v2059
      %v2409 = vpack.c.b16 %v2062, %v2061
      %v2410 = vpack.c.b16 %v2064, %v2063
      %v2411 = vpack.c.b16 %v2066, %v2065
      %v2412 = vpack.c.b16 %v2068, %v2067
      %v2413 = vpack.c.b16 %v2070, %v2069
      %v2414 = vpack.c.b16 %v2072, %v2071
      %v2415 = vpack.c.b16 %v2074, %v2073
      %v2416 = vpack.c.b16 %v2076, %v2075
      %v2417 = vpack.c.b16 %v2078, %v2077
      %v2418 = vpack.c.b16 %v2080, %v2079
      %v2419 = vpack.c.b16 %v2082, %v2081
      %v2420 = vpack.c.b16 %v2084, %v2083
      %v2421 = vpack.c.b16 %v2086, %v2085
      %v2422 = vpack.c.b16 %v2088, %v2087
      %v2423 = vpack.c.b16 %v2090, %v2089
      %v2424 = vpack.c.b16 %v2092, %v2091
      %v2425 = vpack.c.b16 %v2094, %v2093
      %v2426 = vpack.c.b16 %v2096, %v2095
      %v2427 = vpack.c.b16 %v2098, %v2097
      %v2428 = vpack.c.b16 %v2100, %v2099
      %v2429 = vpack.c.b16 %v2102, %v2101
      %v2430 = vpack.c.b16 %v2104, %v2103
      %v2431 = vpack.c.b16 %v2106, %v2105
      %v2432 = vpack.c.b16 %v2108, %v2107
      %v2433 = vpack.c.b16 %v2110, %v2109
      %v2434 = vpack.c.b16 %v2112, %v2111
      %v2435 = vpack.c.b16 %v2114, %v2113
      %v2436 = vpack.c.b16 %v2116, %v2115
      %v2437 = vpack.c.b16 %v2118, %v2117
      %v2438 = vpack.c.b16 %v2120, %v2119
      %v2439 = vpack.c.b16 %v2122, %v2121
      %v2440 = vpack.c.b16 %v2124, %v2123
      %v2441 = vpack.c.b16 %v2126, %v2125
      %v2442 = vpack.c.b16 %v2128, %v2127
      %v2443 = vpack.c.b16 %v2130, %v2129
      %v2444 = vpack.c.b16 %v2132, %v2131
      %v2445 = vpack.c.b16 %v2134, %v2133
      %v2446 = vpack.c.b16 %v2136, %v2135
      %v2447 = vpack.c.b16 %v2138, %v2137
      %v2448 = vpack.c.b16 %v2140, %v2139
      %v2449 = vpack.c.b16 %v2142, %v2141
      %v2450 = vpack.c.b16 %v2144, %v2143
      %v2451 = vpack.c.b16 %v2146, %v2145
      %v2452 = vpack.c.b16 %v2148, %v2147
      %v2453 = vpack.c.b16 %v2150, %v2149
      %v2454 = vpack.c.b16 %v2152, %v2151
      %v2455 = vpack.c.b16 %v2154, %v2153
      %v2456 = vpack.c.b16 %v2156, %v2155
      %v2457 = vpack.c.b16 %v2158, %v2157
      %v2458 = vpack.c.b16 %v2160, %v2159
      %v2459 = vpack.c.b16 %v2162, %v2161
      %v2460 = vpack.c.b16 %v2164, %v2163
      %v2461 = vpack.c.b16 %v2166, %v2165
      %v2462 = vpack.c.b16 %v2168, %v2167
      %v2463 = vpack.c.b16 %v2170, %v2169
      %v2464 = vpack.c.b16 %v2172, %v2171
      %v2465 = vpack.c.b16 %v2174, %v2173
      %v2466 = vpack.c.b16 %v2176, %v2175
      %v2467 = vpack.c.b16 %v2178, %v2177
      %v2468 = vpack.c.b16 %v2180, %v2179
      %v2469 = vpack.c.b16 %v2182, %v2181
      %v2470 = vpack.c.b16 %v2184, %v2183
      %v2471 = vpack.c.b16 %v2186, %v2185
      %v2472 = vpack.c.b16 %v2188, %v2187
      %v2473 = vpack.c.b16 %v2190, %v2189
      %v2474 = vpack.c.b16 %v2192, %v2191
      %v2475 = vpack.c.b16 %v2194, %v2193
      %v2476 = vpack.c.b16 %v2196, %v2195
      %v2477 = vpack.c.b16 %v2198, %v2197
      %v2478 = vpack.c.b16 %v2200, %v2199
      %v2479 = vpack.c.b16 %v2202, %v2201
      %v2480 = vpack.c.b16 %v2204, %v2203
      %v2481 = vpack.c.b16 %v2206, %v2205
      %v2482 = vpack.c.b16 %v2208, %v2207
      %v2483 = vpack.c.b16 %v2210, %v2209
      %v2484 = vpack.c.b16 %v2212, %v2211
      %v2485 = vpack.c.b16 %v2214, %v2213
      %v2486 = vpack.c.b16 %v2216, %v2215
      %v2487 = vpack.c.b16 %v2218, %v2217
      %v2488 = vpack.c.b16 %v2220, %v2219
      %v2489 = vpack.c.b16 %v2222, %v2221
      %v2490 = vpack.c.b16 %v2224, %v2223
      %v2491 = vpack.c.b16 %v2226, %v2225
      %v2492 = vpack.c.b16 %v2228, %v2227
      %v2493 = vpack.c.b16 %v2230, %v2229
      %v2494 = vpack.c.b16 %v2232, %v2231
      %v2495 = vpack.c.b16 %v2234, %v2233
      %v2496 = vpack.c.b16 %v2236, %v2235
      %v2497 = vpack.c.b16 %v2238, %v2237
      %v2498 = vpack.c.b16 %v2240, %v2239
      %v2499 = vpack.c.b16 %v2242, %v2241
      %v2500 = vpack.c.b16 %v2244, %v2243
      %2757 = vmatprep.subr.bf16.mxu0 0
      %2758 = vmatpush1.bf16.msra.mxu0 %v2245
      %2759 = vmatprep.subr.bf16.mxu0 0
      %2760 = vmatpush1.bf16.msra.mxu0 %v2246
      %2761 = vmatprep.subr.bf16.mxu0 0
      %2762 = vmatpush1.bf16.msra.mxu0 %v2247
      %2763 = vmatprep.subr.bf16.mxu0 0
      %2764 = vmatpush1.bf16.msra.mxu0 %v2248
      %2765 = vmatprep.subr.bf16.mxu0 0
      %2766 = vmatpush1.bf16.msra.mxu0 %v2249
      %2767 = vmatprep.subr.bf16.mxu0 0
      %2768 = vmatpush1.bf16.msra.mxu0 %v2250
      %2769 = vmatprep.subr.bf16.mxu0 0
      %2770 = vmatpush1.bf16.msra.mxu0 %v2251
      %2771 = vmatprep.subr.bf16.mxu0 0
      %2772 = vmatpush1.bf16.msra.mxu0 %v2252
      %2773 = vmatprep.subr.bf16.mxu0 0
      %2774 = vmatpush1.bf16.msra.mxu0 %v2253
      %2775 = vmatprep.subr.bf16.mxu0 0
      %2776 = vmatpush1.bf16.msra.mxu0 %v2254
      %2777 = vmatprep.subr.bf16.mxu0 0
      %2778 = vmatpush1.bf16.msra.mxu0 %v2255
      %2779 = vmatprep.subr.bf16.mxu0 0
      %2780 = vmatpush1.bf16.msra.mxu0 %v2256
      %2781 = vmatprep.subr.bf16.mxu0 0
      %2782 = vmatpush1.bf16.msra.mxu0 %v2257
      %2783 = vmatprep.subr.bf16.mxu0 0
      %2784 = vmatpush1.bf16.msra.mxu0 %v2258
      %2785 = vmatprep.subr.bf16.mxu0 0
      %2786 = vmatpush1.bf16.msra.mxu0 %v2259
      %2787 = vmatprep.subr.bf16.mxu0 0
      %2788 = vmatpush1.bf16.msra.mxu0 %v2260
      %2789 = vmatprep.mubr.bf16.mxu0 %v1030
      %2790 = vmatmul.mubr.bf16.gmra.mrb[0].mxu0 %v1016
      %v2791 = vpop.f32.mrb[0].mxu0
      %v2792 = vadd.f32 0.0, %v2791
      %v2793 = vpop.f32.mrb[0].mxu0
      %v2794 = vpop.f32.mrb[0].mxu0
      %v2795 = vpop.f32.mrb[0].mxu0
      %2796 = vdwg.mxu0
      %2797 = vmatprep.subr.bf16.mxu0 0
      %2798 = vmatpush1.bf16.msra.mxu0 %v2261
      %2799 = vmatprep.subr.bf16.mxu0 0
      %2800 = vmatpush1.bf16.msra.mxu0 %v2262
      %2801 = vmatprep.subr.bf16.mxu0 0
      %2802 = vmatpush1.bf16.msra.mxu0 %v2263
      %2803 = vmatprep.subr.bf16.mxu0 0
      %2804 = vmatpush1.bf16.msra.mxu0 %v2264
      %2805 = vmatprep.subr.bf16.mxu0 0
      %2806 = vmatpush1.bf16.msra.mxu0 %v2265
      %2807 = vmatprep.subr.bf16.mxu0 0
      %2808 = vmatpush1.bf16.msra.mxu0 %v2266
      %2809 = vmatprep.subr.bf16.mxu0 0
      %2810 = vmatpush1.bf16.msra.mxu0 %v2267
      %2811 = vmatprep.subr.bf16.mxu0 0
      %2812 = vmatpush1.bf16.msra.mxu0 %v2268
      %2813 = vmatprep.subr.bf16.mxu0 0
      %2814 = vmatpush1.bf16.msra.mxu0 %v2269
      %2815 = vmatprep.subr.bf16.mxu0 0
      %2816 = vmatpush1.bf16.msra.mxu0 %v2270
      %2817 = vmatprep.subr.bf16.mxu0 0
      %2818 = vmatpush1.bf16.msra.mxu0 %v2271
      %2819 = vmatprep.subr.bf16.mxu0 0
      %2820 = vmatpush1.bf16.msra.mxu0 %v2272
      %2821 = vmatprep.subr.bf16.mxu0 0
      %2822 = vmatpush1.bf16.msra.mxu0 %v2273
      %2823 = vmatprep.subr.bf16.mxu0 0
      %2824 = vmatpush1.bf16.msra.mxu0 %v2274
      %2825 = vmatprep.subr.bf16.mxu0 0
      %2826 = vmatpush1.bf16.msra.mxu0 %v2275
      %2827 = vmatprep.subr.bf16.mxu0 0
      %2828 = vmatpush1.bf16.msra.mxu0 %v2276
      %2829 = vmatprep.mubr.bf16.mxu0 %v1040
      %2830 = vmatmul.mubr.bf16.gmra.mrb[0].mxu0 %v1038
      %v2831 = vpop.f32.mrb[0].mxu0
      %v2832 = vadd.f32 %v2792, %v2831
      %v2833 = vpop.f32.mrb[0].mxu0
      %v2834 = vpop.f32.mrb[0].mxu0
      %v2835 = vpop.f32.mrb[0].mxu0
      %2836 = vdwg.mxu0
      %2837 = vmatprep.subr.bf16.mxu0 0
      %2838 = vmatpush1.bf16.msra.mxu0 %v2277
      %2839 = vmatprep.subr.bf16.mxu0 0
      %2840 = vmatpush1.bf16.msra.mxu0 %v2278
      %2841 = vmatprep.subr.bf16.mxu0 0
      %2842 = vmatpush1.bf16.msra.mxu0 %v2279
      %2843 = vmatprep.subr.bf16.mxu0 0
      %2844 = vmatpush1.bf16.msra.mxu0 %v2280
      %2845 = vmatprep.subr.bf16.mxu0 0
      %2846 = vmatpush1.bf16.msra.mxu0 %v2281
      %2847 = vmatprep.subr.bf16.mxu0 0
      %2848 = vmatpush1.bf16.msra.mxu0 %v2282
      %2849 = vmatprep.subr.bf16.mxu0 0
      %2850 = vmatpush1.bf16.msra.mxu0 %v2283
      %2851 = vmatprep.subr.bf16.mxu0 0
      %2852 = vmatpush1.bf16.msra.mxu0 %v2284
      %2853 = vmatprep.subr.bf16.mxu0 0
      %2854 = vmatpush1.bf16.msra.mxu0 %v2285
      %2855 = vmatprep.subr.bf16.mxu0 0
      %2856 = vmatpush1.bf16.msra.mxu0 %v2286
      %2857 = vmatprep.subr.bf16.mxu0 0
      %2858 = vmatpush1.bf16.msra.mxu0 %v2287
      %2859 = vmatprep.subr.bf16.mxu0 0
      %2860 = vmatpush1.bf16.msra.mxu0 %v2288
      %2861 = vmatprep.subr.bf16.mxu0 0
      %2862 = vmatpush1.bf16.msra.mxu0 %v2289
      %2863 = vmatprep.subr.bf16.mxu0 0
      %2864 = vmatpush1.bf16.msra.mxu0 %v2290
      %2865 = vmatprep.subr.bf16.mxu0 0
      %2866 = vmatpush1.bf16.msra.mxu0 %v2291
      %2867 = vmatprep.subr.bf16.mxu0 0
      %2868 = vmatpush1.bf16.msra.mxu0 %v2292
      %2869 = vmatprep.mubr.bf16.mxu0 %v1037
      %2870 = vmatmul.mubr.bf16.gmra.mrb[0].mxu0 %v1023
      %v2871 = vpop.f32.mrb[0].mxu0
      %v2872 = vadd.f32 %v2832, %v2871
      %v2873 = vpop.f32.mrb[0].mxu0
      %v2874 = vpop.f32.mrb[0].mxu0
      %v2875 = vpop.f32.mrb[0].mxu0
      %2876 = vdwg.mxu0
      %2877 = vmatprep.subr.bf16.mxu0 0
      %2878 = vmatpush1.bf16.msra.mxu0 %v2293
      %2879 = vmatprep.subr.bf16.mxu0 0
      %2880 = vmatpush1.bf16.msra.mxu0 %v2294
      %2881 = vmatprep.subr.bf16.mxu0 0
      %2882 = vmatpush1.bf16.msra.mxu0 %v2295
      %2883 = vmatprep.subr.bf16.mxu0 0
      %2884 = vmatpush1.bf16.msra.mxu0 %v2296
      %2885 = vmatprep.subr.bf16.mxu0 0
      %2886 = vmatpush1.bf16.msra.mxu0 %v2297
      %2887 = vmatprep.subr.bf16.mxu0 0
      %2888 = vmatpush1.bf16.msra.mxu0 %v2298
      %2889 = vmatprep.subr.bf16.mxu0 0
      %2890 = vmatpush1.bf16.msra.mxu0 %v2299
      %2891 = vmatprep.subr.bf16.mxu0 0
      %2892 = vmatpush1.bf16.msra.mxu0 %v2300
      %2893 = vmatprep.subr.bf16.mxu0 0
      %2894 = vmatpush1.bf16.msra.mxu0 %v2301
      %2895 = vmatprep.subr.bf16.mxu0 0
      %2896 = vmatpush1.bf16.msra.mxu0 %v2302
      %2897 = vmatprep.subr.bf16.mxu0 0
      %2898 = vmatpush1.bf16.msra.mxu0 %v2303
      %2899 = vmatprep.subr.bf16.mxu0 0
      %2900 = vmatpush1.bf16.msra.mxu0 %v2304
      %2901 = vmatprep.subr.bf16.mxu0 0
      %2902 = vmatpush1.bf16.msra.mxu0 %v2305
      %2903 = vmatprep.subr.bf16.mxu0 0
      %2904 = vmatpush1.bf16.msra.mxu0 %v2306
      %2905 = vmatprep.subr.bf16.mxu0 0
      %2906 = vmatpush1.bf16.msra.mxu0 %v2307
      %2907 = vmatprep.subr.bf16.mxu0 0
      %2908 = vmatpush1.bf16.msra.mxu0 %v2308
      %2909 = vmatprep.mubr.bf16.mxu0 %v1041
      %2910 = vmatmul.mubr.bf16.gmra.mrb[0].mxu0 %v1039
      %v2911 = vpop.f32.mrb[0].mxu0
      %v2912 = vadd.f32 %v2872, %v2911
      %v2913 = vpop.f32.mrb[0].mxu0
      %v2914 = vpop.f32.mrb[0].mxu0
      %v2915 = vpop.f32.mrb[0].mxu0
      %2916 = vdwg.mxu0
      %2917 = vmatprep.subr.bf16.mxu0 0
      %2918 = vmatpush1.bf16.msra.mxu0 %v2309
      %2919 = vmatprep.subr.bf16.mxu0 0
      %2920 = vmatpush1.bf16.msra.mxu0 %v2310
      %2921 = vmatprep.subr.bf16.mxu0 0
      %2922 = vmatpush1.bf16.msra.mxu0 %v2311
      %2923 = vmatprep.subr.bf16.mxu0 0
      %2924 = vmatpush1.bf16.msra.mxu0 %v2312
      %2925 = vmatprep.subr.bf16.mxu0 0
      %2926 = vmatpush1.bf16.msra.mxu0 %v2313
      %2927 = vmatprep.subr.bf16.mxu0 0
      %2928 = vmatpush1.bf16.msra.mxu0 %v2314
      %2929 = vmatprep.subr.bf16.mxu0 0
      %2930 = vmatpush1.bf16.msra.mxu0 %v2315
      %2931 = vmatprep.subr.bf16.mxu0 0
      %2932 = vmatpush1.bf16.msra.mxu0 %v2316
      %2933 = vmatprep.subr.bf16.mxu0 0
      %2934 = vmatpush1.bf16.msra.mxu0 %v2317
      %2935 = vmatprep.subr.bf16.mxu0 0
      %2936 = vmatpush1.bf16.msra.mxu0 %v2318
      %2937 = vmatprep.subr.bf16.mxu0 0
      %2938 = vmatpush1.bf16.msra.mxu0 %v2319
      %2939 = vmatprep.subr.bf16.mxu0 0
      %2940 = vmatpush1.bf16.msra.mxu0 %v2320
      %2941 = vmatprep.subr.bf16.mxu0 0
      %2942 = vmatpush1.bf16.msra.mxu0 %v2321
      %2943 = vmatprep.subr.bf16.mxu0 0
      %2944 = vmatpush1.bf16.msra.mxu0 %v2322
      %2945 = vmatprep.subr.bf16.mxu0 0
      %2946 = vmatpush1.bf16.msra.mxu0 %v2323
      %2947 = vmatprep.subr.bf16.mxu0 0
      %2948 = vmatpush1.bf16.msra.mxu0 %v2324
      %2949 = vmatprep.mubr.bf16.mxu0 %v1079
      %2950 = vmatmul.mubr.bf16.gmra.mrb[0].mxu0 %v1065
      %v2951 = vpop.f32.mrb[0].mxu0
      %v2952 = vadd.f32 %v2912, %v2951
      %v2953 = vpop.f32.mrb[0].mxu0
      %v2954 = vpop.f32.mrb[0].mxu0
      %v2955 = vpop.f32.mrb[0].mxu0
      %2956 = vdwg.mxu0
      %2957 = vmatprep.subr.bf16.mxu0 0
      %2958 = vmatpush1.bf16.msra.mxu0 %v2325
      %2959 = vmatprep.subr.bf16.mxu0 0
      %2960 = vmatpush1.bf16.msra.mxu0 %v2326
      %2961 = vmatprep.subr.bf16.mxu0 0
      %2962 = vmatpush1.bf16.msra.mxu0 %v2327
      %2963 = vmatprep.subr.bf16.mxu0 0
      %2964 = vmatpush1.bf16.msra.mxu0 %v2328
      %2965 = vmatprep.subr.bf16.mxu0 0
      %2966 = vmatpush1.bf16.msra.mxu0 %v2329
      %2967 = vmatprep.subr.bf16.mxu0 0
      %2968 = vmatpush1.bf16.msra.mxu0 %v2330
      %2969 = vmatprep.subr.bf16.mxu0 0
      %2970 = vmatpush1.bf16.msra.mxu0 %v2331
      %2971 = vmatprep.subr.bf16.mxu0 0
      %2972 = vmatpush1.bf16.msra.mxu0 %v2332
      %2973 = vmatprep.subr.bf16.mxu0 0
      %2974 = vmatpush1.bf16.msra.mxu0 %v2333
      %2975 = vmatprep.subr.bf16.mxu0 0
      %2976 = vmatpush1.bf16.msra.mxu0 %v2334
      %2977 = vmatprep.subr.bf16.mxu0 0
      %2978 = vmatpush1.bf16.msra.mxu0 %v2335
      %2979 = vmatprep.subr.bf16.mxu0 0
      %2980 = vmatpush1.bf16.msra.mxu0 %v2336
      %2981 = vmatprep.subr.bf16.mxu0 0
      %2982 = vmatpush1.bf16.msra.mxu0 %v2337
      %2983 = vmatprep.subr.bf16.mxu0 0
      %2984 = vmatpush1.bf16.msra.mxu0 %v2338
      %2985 = vmatprep.subr.bf16.mxu0 0
      %2986 = vmatpush1.bf16.msra.mxu0 %v2339
      %2987 = vmatprep.subr.bf16.mxu0 0
      %2988 = vmatpush1.bf16.msra.mxu0 %v2340
      %2989 = vmatprep.mubr.bf16.mxu0 %v1089
      %2990 = vmatmul.mubr.bf16.gmra.mrb[0].mxu0 %v1087
      %v2991 = vpop.f32.mrb[0].mxu0
      %v2992 = vadd.f32 %v2952, %v2991
      %v2993 = vpop.f32.mrb[0].mxu0
      %v2994 = vpop.f32.mrb[0].mxu0
      %v2995 = vpop.f32.mrb[0].mxu0
      %2996 = vdwg.mxu0
      %2997 = vmatprep.subr.bf16.mxu0 0
      %2998 = vmatpush1.bf16.msra.mxu0 %v2341
      %2999 = vmatprep.subr.bf16.mxu0 0
      %3000 = vmatpush1.bf16.msra.mxu0 %v2342
      %3001 = vmatprep.subr.bf16.mxu0 0
      %3002 = vmatpush1.bf16.msra.mxu0 %v2343
      %3003 = vmatprep.subr.bf16.mxu0 0
      %3004 = vmatpush1.bf16.msra.mxu0 %v2344
      %3005 = vmatprep.subr.bf16.mxu0 0
      %3006 = vmatpush1.bf16.msra.mxu0 %v2345
      %3007 = vmatprep.subr.bf16.mxu0 0
      %3008 = vmatpush1.bf16.msra.mxu0 %v2346
      %3009 = vmatprep.subr.bf16.mxu0 0
      %3010 = vmatpush1.bf16.msra.mxu0 %v2347
      %3011 = vmatprep.subr.bf16.mxu0 0
      %3012 = vmatpush1.bf16.msra.mxu0 %v2348
      %3013 = vmatprep.subr.bf16.mxu0 0
      %3014 = vmatpush1.bf16.msra.mxu0 %v2349
      %3015 = vmatprep.subr.bf16.mxu0 0
      %3016 = vmatpush1.bf16.msra.mxu0 %v2350
      %3017 = vmatprep.subr.bf16.mxu0 0
      %3018 = vmatpush1.bf16.msra.mxu0 %v2351
      %3019 = vmatprep.subr.bf16.mxu0 0
      %3020 = vmatpush1.bf16.msra.mxu0 %v2352
      %3021 = vmatprep.subr.bf16.mxu0 0
      %3022 = vmatpush1.bf16.msra.mxu0 %v2353
      %3023 = vmatprep.subr.bf16.mxu0 0
      %3024 = vmatpush1.bf16.msra.mxu0 %v2354
      %3025 = vmatprep.subr.bf16.mxu0 0
      %3026 = vmatpush1.bf16.msra.mxu0 %v2355
      %3027 = vmatprep.subr.bf16.mxu0 0
      %3028 = vmatpush1.bf16.msra.mxu0 %v2356
      %3029 = vmatprep.mubr.bf16.mxu0 %v1086
      %3030 = vmatmul.mubr.bf16.gmra.mrb[0].mxu0 %v1072
      %v3031 = vpop.f32.mrb[0].mxu0
      %v3032 = vadd.f32 %v2992, %v3031
      %v3033 = vpop.f32.mrb[0].mxu0
      %v3034 = vpop.f32.mrb[0].mxu0
      %v3035 = vpop.f32.mrb[0].mxu0
      %3036 = vdwg.mxu0
      %3037 = vmatprep.subr.bf16.mxu0 0
      %3038 = vmatpush1.bf16.msra.mxu0 %v2357
      %3039 = vmatprep.subr.bf16.mxu0 0
      %3040 = vmatpush1.bf16.msra.mxu0 %v2358
      %3041 = vmatprep.subr.bf16.mxu0 0
      %3042 = vmatpush1.bf16.msra.mxu0 %v2359
      %3043 = vmatprep.subr.bf16.mxu0 0
      %3044 = vmatpush1.bf16.msra.mxu0 %v2360
      %3045 = vmatprep.subr.bf16.mxu0 0
      %3046 = vmatpush1.bf16.msra.mxu0 %v2361
      %3047 = vmatprep.subr.bf16.mxu0 0
      %3048 = vmatpush1.bf16.msra.mxu0 %v2362
      %3049 = vmatprep.subr.bf16.mxu0 0
      %3050 = vmatpush1.bf16.msra.mxu0 %v2363
      %3051 = vmatprep.subr.bf16.mxu0 0
      %3052 = vmatpush1.bf16.msra.mxu0 %v2364
      %3053 = vmatprep.subr.bf16.mxu0 0
      %3054 = vmatpush1.bf16.msra.mxu0 %v2365
      %3055 = vmatprep.subr.bf16.mxu0 0
      %3056 = vmatpush1.bf16.msra.mxu0 %v2366
      %3057 = vmatprep.subr.bf16.mxu0 0
      %3058 = vmatpush1.bf16.msra.mxu0 %v2367
      %3059 = vmatprep.subr.bf16.mxu0 0
      %3060 = vmatpush1.bf16.msra.mxu0 %v2368
      %3061 = vmatprep.subr.bf16.mxu0 0
      %3062 = vmatpush1.bf16.msra.mxu0 %v2369
      %3063 = vmatprep.subr.bf16.mxu0 0
      %3064 = vmatpush1.bf16.msra.mxu0 %v2370
      %3065 = vmatprep.subr.bf16.mxu0 0
      %3066 = vmatpush1.bf16.msra.mxu0 %v2371
      %3067 = vmatprep.subr.bf16.mxu0 0
      %3068 = vmatpush1.bf16.msra.mxu0 %v2372
      %3069 = vmatprep.mubr.bf16.mxu0 %v1090
      %3070 = vmatmul.mubr.bf16.gmra.mrb[0].mxu0 %v1088
      %v3071 = vpop.f32.mrb[0].mxu0
      %v3072 = vadd.f32 %v3032, %v3071
      %v3073 = vpop.f32.mrb[0].mxu0
      %v3074 = vpop.f32.mrb[0].mxu0
      %v3075 = vpop.f32.mrb[0].mxu0
      %3076 = vdwg.mxu0
      %3077 = vmatprep.subr.bf16.mxu0 0
      %3078 = vmatpush1.bf16.msra.mxu0 %v2373
      %3079 = vmatprep.subr.bf16.mxu0 0
      %3080 = vmatpush1.bf16.msra.mxu0 %v2374
      %3081 = vmatprep.subr.bf16.mxu0 0
      %3082 = vmatpush1.bf16.msra.mxu0 %v2375
      %3083 = vmatprep.subr.bf16.mxu0 0
      %3084 = vmatpush1.bf16.msra.mxu0 %v2376
      %3085 = vmatprep.subr.bf16.mxu0 0
      %3086 = vmatpush1.bf16.msra.mxu0 %v2377
      %3087 = vmatprep.subr.bf16.mxu0 0
      %3088 = vmatpush1.bf16.msra.mxu0 %v2378
      %3089 = vmatprep.subr.bf16.mxu0 0
      %3090 = vmatpush1.bf16.msra.mxu0 %v2379
      %3091 = vmatprep.subr.bf16.mxu0 0
      %3092 = vmatpush1.bf16.msra.mxu0 %v2380
      %3093 = vmatprep.subr.bf16.mxu0 0
      %3094 = vmatpush1.bf16.msra.mxu0 %v2381
      %3095 = vmatprep.subr.bf16.mxu0 0
      %3096 = vmatpush1.bf16.msra.mxu0 %v2382
      %3097 = vmatprep.subr.bf16.mxu0 0
      %3098 = vmatpush1.bf16.msra.mxu0 %v2383
      %3099 = vmatprep.subr.bf16.mxu0 0
      %3100 = vmatpush1.bf16.msra.mxu0 %v2384
      %3101 = vmatprep.subr.bf16.mxu0 0
      %3102 = vmatpush1.bf16.msra.mxu0 %v2385
      %3103 = vmatprep.subr.bf16.mxu0 0
      %3104 = vmatpush1.bf16.msra.mxu0 %v2386
      %3105 = vmatprep.subr.bf16.mxu0 0
      %3106 = vmatpush1.bf16.msra.mxu0 %v2387
      %3107 = vmatprep.subr.bf16.mxu0 0
      %3108 = vmatpush1.bf16.msra.mxu0 %v2388
      %3109 = vmatprep.mubr.bf16.mxu0 %v1128
      %3110 = vmatmul.mubr.bf16.gmra.mrb[0].mxu0 %v1114
      %v3111 = vpop.f32.mrb[0].mxu0
      %v3112 = vadd.f32 %v3072, %v3111
      %v3113 = vpop.f32.mrb[0].mxu0
      %v3114 = vpop.f32.mrb[0].mxu0
      %v3115 = vpop.f32.mrb[0].mxu0
      %3116 = vdwg.mxu0
      %3117 = vmatprep.subr.bf16.mxu0 0
      %3118 = vmatpush1.bf16.msra.mxu0 %v2389
      %3119 = vmatprep.subr.bf16.mxu0 0
      %3120 = vmatpush1.bf16.msra.mxu0 %v2390
      %3121 = vmatprep.subr.bf16.mxu0 0
      %3122 = vmatpush1.bf16.msra.mxu0 %v2391
      %3123 = vmatprep.subr.bf16.mxu0 0
      %3124 = vmatpush1.bf16.msra.mxu0 %v2392
      %3125 = vmatprep.subr.bf16.mxu0 0
      %3126 = vmatpush1.bf16.msra.mxu0 %v2393
      %3127 = vmatprep.subr.bf16.mxu0 0
      %3128 = vmatpush1.bf16.msra.mxu0 %v2394
      %3129 = vmatprep.subr.bf16.mxu0 0
      %3130 = vmatpush1.bf16.msra.mxu0 %v2395
      %3131 = vmatprep.subr.bf16.mxu0 0
      %3132 = vmatpush1.bf16.msra.mxu0 %v2396
      %3133 = vmatprep.subr.bf16.mxu0 0
      %3134 = vmatpush1.bf16.msra.mxu0 %v2397
      %3135 = vmatprep.subr.bf16.mxu0 0
      %3136 = vmatpush1.bf16.msra.mxu0 %v2398
      %3137 = vmatprep.subr.bf16.mxu0 0
      %3138 = vmatpush1.bf16.msra.mxu0 %v2399
      %3139 = vmatprep.subr.bf16.mxu0 0
      %3140 = vmatpush1.bf16.msra.mxu0 %v2400
      %3141 = vmatprep.subr.bf16.mxu0 0
      %3142 = vmatpush1.bf16.msra.mxu0 %v2401
      %3143 = vmatprep.subr.bf16.mxu0 0
      %3144 = vmatpush1.bf16.msra.mxu0 %v2402
      %3145 = vmatprep.subr.bf16.mxu0 0
      %3146 = vmatpush1.bf16.msra.mxu0 %v2403
      %3147 = vmatprep.subr.bf16.mxu0 0
      %3148 = vmatpush1.bf16.msra.mxu0 %v2404
      %3149 = vmatprep.mubr.bf16.mxu0 %v1138
      %3150 = vmatmul.mubr.bf16.gmra.mrb[0].mxu0 %v1136
      %v3151 = vpop.f32.mrb[0].mxu0
      %v3152 = vadd.f32 %v3112, %v3151
      %v3153 = vpop.f32.mrb[0].mxu0
      %v3154 = vpop.f32.mrb[0].mxu0
      %v3155 = vpop.f32.mrb[0].mxu0
      %3156 = vdwg.mxu0
      %3157 = vmatprep.subr.bf16.mxu0 0
      %3158 = vmatpush1.bf16.msra.mxu0 %v2405
      %3159 = vmatprep.subr.bf16.mxu0 0
      %3160 = vmatpush1.bf16.msra.mxu0 %v2406
      %3161 = vmatprep.subr.bf16.mxu0 0
      %3162 = vmatpush1.bf16.msra.mxu0 %v2407
      %3163 = vmatprep.subr.bf16.mxu0 0
      %3164 = vmatpush1.bf16.msra.mxu0 %v2408
      %3165 = vmatprep.subr.bf16.mxu0 0
      %3166 = vmatpush1.bf16.msra.mxu0 %v2409
      %3167 = vmatprep.subr.bf16.mxu0 0
      %3168 = vmatpush1.bf16.msra.mxu0 %v2410
      %3169 = vmatprep.subr.bf16.mxu0 0
      %3170 = vmatpush1.bf16.msra.mxu0 %v2411
      %3171 = vmatprep.subr.bf16.mxu0 0
      %3172 = vmatpush1.bf16.msra.mxu0 %v2412
      %3173 = vmatprep.subr.bf16.mxu0 0
      %3174 = vmatpush1.bf16.msra.mxu0 %v2413
      %3175 = vmatprep.subr.bf16.mxu0 0
      %3176 = vmatpush1.bf16.msra.mxu0 %v2414
      %3177 = vmatprep.subr.bf16.mxu0 0
      %3178 = vmatpush1.bf16.msra.mxu0 %v2415
      %3179 = vmatprep.subr.bf16.mxu0 0
      %3180 = vmatpush1.bf16.msra.mxu0 %v2416
      %3181 = vmatprep.subr.bf16.mxu0 0
      %3182 = vmatpush1.bf16.msra.mxu0 %v2417
      %3183 = vmatprep.subr.bf16.mxu0 0
      %3184 = vmatpush1.bf16.msra.mxu0 %v2418
      %3185 = vmatprep.subr.bf16.mxu0 0
      %3186 = vmatpush1.bf16.msra.mxu0 %v2419
      %3187 = vmatprep.subr.bf16.mxu0 0
      %3188 = vmatpush1.bf16.msra.mxu0 %v2420
      %3189 = vmatprep.mubr.bf16.mxu0 %v1135
      %3190 = vmatmul.mubr.bf16.gmra.mrb[0].mxu0 %v1121
      %v3191 = vpop.f32.mrb[0].mxu0
      %v3192 = vadd.f32 %v3152, %v3191
      %v3193 = vpop.f32.mrb[0].mxu0
      %v3194 = vpop.f32.mrb[0].mxu0
      %v3195 = vpop.f32.mrb[0].mxu0
      %3196 = vdwg.mxu0
      %3197 = vmatprep.subr.bf16.mxu0 0
      %3198 = vmatpush1.bf16.msra.mxu0 %v2421
      %3199 = vmatprep.subr.bf16.mxu0 0
      %3200 = vmatpush1.bf16.msra.mxu0 %v2422
      %3201 = vmatprep.subr.bf16.mxu0 0
      %3202 = vmatpush1.bf16.msra.mxu0 %v2423
      %3203 = vmatprep.subr.bf16.mxu0 0
      %3204 = vmatpush1.bf16.msra.mxu0 %v2424
      %3205 = vmatprep.subr.bf16.mxu0 0
      %3206 = vmatpush1.bf16.msra.mxu0 %v2425
      %3207 = vmatprep.subr.bf16.mxu0 0
      %3208 = vmatpush1.bf16.msra.mxu0 %v2426
      %3209 = vmatprep.subr.bf16.mxu0 0
      %3210 = vmatpush1.bf16.msra.mxu0 %v2427
      %3211 = vmatprep.subr.bf16.mxu0 0
      %3212 = vmatpush1.bf16.msra.mxu0 %v2428
      %3213 = vmatprep.subr.bf16.mxu0 0
      %3214 = vmatpush1.bf16.msra.mxu0 %v2429
      %3215 = vmatprep.subr.bf16.mxu0 0
      %3216 = vmatpush1.bf16.msra.mxu0 %v2430
      %3217 = vmatprep.subr.bf16.mxu0 0
      %3218 = vmatpush1.bf16.msra.mxu0 %v2431
      %3219 = vmatprep.subr.bf16.mxu0 0
      %3220 = vmatpush1.bf16.msra.mxu0 %v2432
      %3221 = vmatprep.subr.bf16.mxu0 0
      %3222 = vmatpush1.bf16.msra.mxu0 %v2433
      %3223 = vmatprep.subr.bf16.mxu0 0
      %3224 = vmatpush1.bf16.msra.mxu0 %v2434
      %3225 = vmatprep.subr.bf16.mxu0 0
      %3226 = vmatpush1.bf16.msra.mxu0 %v2435
      %3227 = vmatprep.subr.bf16.mxu0 0
      %3228 = vmatpush1.bf16.msra.mxu0 %v2436
      %3229 = vmatprep.mubr.bf16.mxu0 %v1139
      %3230 = vmatmul.mubr.bf16.gmra.mrb[0].mxu0 %v1137
      %v3231 = vpop.f32.mrb[0].mxu0
      %v3232 = vadd.f32 %v3192, %v3231
      %v3233 = vpop.f32.mrb[0].mxu0
      %v3234 = vpop.f32.mrb[0].mxu0
      %v3235 = vpop.f32.mrb[0].mxu0
      %3236 = vdwg.mxu0
      %3237 = vmatprep.subr.bf16.mxu0 0
      %3238 = vmatpush1.bf16.msra.mxu0 %v2437
      %3239 = vmatprep.subr.bf16.mxu0 0
      %3240 = vmatpush1.bf16.msra.mxu0 %v2438
      %3241 = vmatprep.subr.bf16.mxu0 0
      %3242 = vmatpush1.bf16.msra.mxu0 %v2439
      %3243 = vmatprep.subr.bf16.mxu0 0
      %3244 = vmatpush1.bf16.msra.mxu0 %v2440
      %3245 = vmatprep.subr.bf16.mxu0 0
      %3246 = vmatpush1.bf16.msra.mxu0 %v2441
      %3247 = vmatprep.subr.bf16.mxu0 0
      %3248 = vmatpush1.bf16.msra.mxu0 %v2442
      %3249 = vmatprep.subr.bf16.mxu0 0
      %3250 = vmatpush1.bf16.msra.mxu0 %v2443
      %3251 = vmatprep.subr.bf16.mxu0 0
      %3252 = vmatpush1.bf16.msra.mxu0 %v2444
      %3253 = vmatprep.subr.bf16.mxu0 0
      %3254 = vmatpush1.bf16.msra.mxu0 %v2445
      %3255 = vmatprep.subr.bf16.mxu0 0
      %3256 = vmatpush1.bf16.msra.mxu0 %v2446
      %3257 = vmatprep.subr.bf16.mxu0 0
      %3258 = vmatpush1.bf16.msra.mxu0 %v2447
      %3259 = vmatprep.subr.bf16.mxu0 0
      %3260 = vmatpush1.bf16.msra.mxu0 %v2448
      %3261 = vmatprep.subr.bf16.mxu0 0
      %3262 = vmatpush1.bf16.msra.mxu0 %v2449
      %3263 = vmatprep.subr.bf16.mxu0 0
      %3264 = vmatpush1.bf16.msra.mxu0 %v2450
      %3265 = vmatprep.subr.bf16.mxu0 0
      %3266 = vmatpush1.bf16.msra.mxu0 %v2451
      %3267 = vmatprep.subr.bf16.mxu0 0
      %3268 = vmatpush1.bf16.msra.mxu0 %v2452
      %3269 = vmatprep.mubr.bf16.mxu0 %v1177
      %3270 = vmatmul.mubr.bf16.gmra.mrb[0].mxu0 %v1163
      %v3271 = vpop.f32.mrb[0].mxu0
      %v3272 = vadd.f32 %v3232, %v3271
      %v3273 = vpop.f32.mrb[0].mxu0
      %v3274 = vpop.f32.mrb[0].mxu0
      %v3275 = vpop.f32.mrb[0].mxu0
      %3276 = vdwg.mxu0
      %3277 = vmatprep.subr.bf16.mxu0 0
      %3278 = vmatpush1.bf16.msra.mxu0 %v2453
      %3279 = vmatprep.subr.bf16.mxu0 0
      %3280 = vmatpush1.bf16.msra.mxu0 %v2454
      %3281 = vmatprep.subr.bf16.mxu0 0
      %3282 = vmatpush1.bf16.msra.mxu0 %v2455
      %3283 = vmatprep.subr.bf16.mxu0 0
      %3284 = vmatpush1.bf16.msra.mxu0 %v2456
      %3285 = vmatprep.subr.bf16.mxu0 0
      %3286 = vmatpush1.bf16.msra.mxu0 %v2457
      %3287 = vmatprep.subr.bf16.mxu0 0
      %3288 = vmatpush1.bf16.msra.mxu0 %v2458
      %3289 = vmatprep.subr.bf16.mxu0 0
      %3290 = vmatpush1.bf16.msra.mxu0 %v2459
      %3291 = vmatprep.subr.bf16.mxu0 0
      %3292 = vmatpush1.bf16.msra.mxu0 %v2460
      %3293 = vmatprep.subr.bf16.mxu0 0
      %3294 = vmatpush1.bf16.msra.mxu0 %v2461
      %3295 = vmatprep.subr.bf16.mxu0 0
      %3296 = vmatpush1.bf16.msra.mxu0 %v2462
      %3297 = vmatprep.subr.bf16.mxu0 0
      %3298 = vmatpush1.bf16.msra.mxu0 %v2463
      %3299 = vmatprep.subr.bf16.mxu0 0
      %3300 = vmatpush1.bf16.msra.mxu0 %v2464
      %3301 = vmatprep.subr.bf16.mxu0 0
      %3302 = vmatpush1.bf16.msra.mxu0 %v2465
      %3303 = vmatprep.subr.bf16.mxu0 0
      %3304 = vmatpush1.bf16.msra.mxu0 %v2466
      %3305 = vmatprep.subr.bf16.mxu0 0
      %3306 = vmatpush1.bf16.msra.mxu0 %v2467
      %3307 = vmatprep.subr.bf16.mxu0 0
      %3308 = vmatpush1.bf16.msra.mxu0 %v2468
      %3309 = vmatprep.mubr.bf16.mxu0 %v1187
      %3310 = vmatmul.mubr.bf16.gmra.mrb[0].mxu0 %v1185
      %v3311 = vpop.f32.mrb[0].mxu0
      %v3312 = vadd.f32 %v3272, %v3311
      %v3313 = vpop.f32.mrb[0].mxu0
      %v3314 = vpop.f32.mrb[0].mxu0
      %v3315 = vpop.f32.mrb[0].mxu0
      %3316 = vdwg.mxu0
      %3317 = vmatprep.subr.bf16.mxu0 0
      %3318 = vmatpush1.bf16.msra.mxu0 %v2469
      %3319 = vmatprep.subr.bf16.mxu0 0
      %3320 = vmatpush1.bf16.msra.mxu0 %v2470
      %3321 = vmatprep.subr.bf16.mxu0 0
      %3322 = vmatpush1.bf16.msra.mxu0 %v2471
      %3323 = vmatprep.subr.bf16.mxu0 0
      %3324 = vmatpush1.bf16.msra.mxu0 %v2472
      %3325 = vmatprep.subr.bf16.mxu0 0
      %3326 = vmatpush1.bf16.msra.mxu0 %v2473
      %3327 = vmatprep.subr.bf16.mxu0 0
      %3328 = vmatpush1.bf16.msra.mxu0 %v2474
      %3329 = vmatprep.subr.bf16.mxu0 0
      %3330 = vmatpush1.bf16.msra.mxu0 %v2475
      %3331 = vmatprep.subr.bf16.mxu0 0
      %3332 = vmatpush1.bf16.msra.mxu0 %v2476
      %3333 = vmatprep.subr.bf16.mxu0 0
      %3334 = vmatpush1.bf16.msra.mxu0 %v2477
      %3335 = vmatprep.subr.bf16.mxu0 0
      %3336 = vmatpush1.bf16.msra.mxu0 %v2478
      %3337 = vmatprep.subr.bf16.mxu0 0
      %3338 = vmatpush1.bf16.msra.mxu0 %v2479
      %3339 = vmatprep.subr.bf16.mxu0 0
      %3340 = vmatpush1.bf16.msra.mxu0 %v2480
      %3341 = vmatprep.subr.bf16.mxu0 0
      %3342 = vmatpush1.bf16.msra.mxu0 %v2481
      %3343 = vmatprep.subr.bf16.mxu0 0
      %3344 = vmatpush1.bf16.msra.mxu0 %v2482
      %3345 = vmatprep.subr.bf16.mxu0 0
      %3346 = vmatpush1.bf16.msra.mxu0 %v2483
      %3347 = vmatprep.subr.bf16.mxu0 0
      %3348 = vmatpush1.bf16.msra.mxu0 %v2484
      %3349 = vmatprep.mubr.bf16.mxu0 %v1184
      %3350 = vmatmul.mubr.bf16.gmra.mrb[0].mxu0 %v1170
      %v3351 = vpop.f32.mrb[0].mxu0
      %v3352 = vadd.f32 %v3312, %v3351
      %v3353 = vpop.f32.mrb[0].mxu0
      %v3354 = vpop.f32.mrb[0].mxu0
      %v3355 = vpop.f32.mrb[0].mxu0
      %3356 = vdwg.mxu0
      %3357 = vmatprep.subr.bf16.mxu0 0
      %3358 = vmatpush1.bf16.msra.mxu0 %v2485
      %3359 = vmatprep.subr.bf16.mxu0 0
      %3360 = vmatpush1.bf16.msra.mxu0 %v2486
      %3361 = vmatprep.subr.bf16.mxu0 0
      %3362 = vmatpush1.bf16.msra.mxu0 %v2487
      %3363 = vmatprep.subr.bf16.mxu0 0
      %3364 = vmatpush1.bf16.msra.mxu0 %v2488
      %3365 = vmatprep.subr.bf16.mxu0 0
      %3366 = vmatpush1.bf16.msra.mxu0 %v2489
      %3367 = vmatprep.subr.bf16.mxu0 0
      %3368 = vmatpush1.bf16.msra.mxu0 %v2490
      %3369 = vmatprep.subr.bf16.mxu0 0
      %3370 = vmatpush1.bf16.msra.mxu0 %v2491
      %3371 = vmatprep.subr.bf16.mxu0 0
      %3372 = vmatpush1.bf16.msra.mxu0 %v2492
      %3373 = vmatprep.subr.bf16.mxu0 0
      %3374 = vmatpush1.bf16.msra.mxu0 %v2493
      %3375 = vmatprep.subr.bf16.mxu0 0
      %3376 = vmatpush1.bf16.msra.mxu0 %v2494
      %3377 = vmatprep.subr.bf16.mxu0 0
      %3378 = vmatpush1.bf16.msra.mxu0 %v2495
      %3379 = vmatprep.subr.bf16.mxu0 0
      %3380 = vmatpush1.bf16.msra.mxu0 %v2496
      %3381 = vmatprep.subr.bf16.mxu0 0
      %3382 = vmatpush1.bf16.msra.mxu0 %v2497
      %3383 = vmatprep.subr.bf16.mxu0 0
      %3384 = vmatpush1.bf16.msra.mxu0 %v2498
      %3385 = vmatprep.subr.bf16.mxu0 0
      %3386 = vmatpush1.bf16.msra.mxu0 %v2499
      %3387 = vmatprep.subr.bf16.mxu0 0
      %3388 = vmatpush1.bf16.msra.mxu0 %v2500
      %3389 = vmatprep.mubr.bf16.mxu0 %v1188
      %3390 = vmatmul.mubr.bf16.gmra.mrb[0].mxu0 %v1186
      %v3391 = vpop.f32.mrb[0].mxu0
      %v3392 = vadd.f32 %v3352, %v3391
      %v3393 = vpop.f32.mrb[0].mxu0
      %v3394 = vpop.f32.mrb[0].mxu0
      %v3395 = vpop.f32.mrb[0].mxu0
      %3396 = vdwg.mxu0
      %v3397 = vadd.f32 %v472, %v3392
      %3398 = vst [vmem:[#allocation2] sm:$0x3] %v3397
      %p3399 = scmp.eq.s32.totalorder %s20, 1
      // Predicated region
      $region61: #{reward_network_forward.5} parent=55 // pred_check
        %p3400 = pneg %p3399
      $region62: #{reward_network_forward.5} parent=55 // pred_check_branch
        %3402 = sbr.rel (%p3400) target = $region64
      $region63: #{reward_network_forward.5} parent=55 // pred_region
        %v3403 = vld [vmem:[#allocation2] sm:$0x3]
        %v3404 = vmax.f32 %v3403, 0.0
        %v3405 = vpack.c.bf16 %v3404, %v3404
        %v3406 = vld [vmem:[%s7] sm:$0xf]
        %v3407 = vld [vmem:[%s7 + $0x4] sm:$0xf]
        %v3408 = vld [vmem:[%s7 + $0x8] sm:$0xf]
        %v3409 = vld [vmem:[%s7 + $0xc] sm:$0xf]
        %v3410 = vld [vmem:[%s7 + $0x10] sm:$0xf]
        %v3411 = vld [vmem:[%s7 + $0x14] sm:$0xf]
        %v3412 = vld [vmem:[%s7 + $0x18] sm:$0xf]
        %v3413 = vld [vmem:[%s7 + $0x1c] sm:$0xf]
        %v3414 = vld [vmem:[%s7 + $0x20] sm:$0xf]
        %v3415 = vld [vmem:[%s7 + $0x24] sm:$0xf]
        %v3416 = vld [vmem:[%s7 + $0x28] sm:$0xf]
        %v3417 = vld [vmem:[%s7 + $0x2c] sm:$0xf]
        %v3418 = vld [vmem:[%s7 + $0x30] sm:$0xf]
        %v3419 = vld [vmem:[%s7 + $0x34] sm:$0xf]
        %v3420 = vld [vmem:[%s7 + $0x38] sm:$0xf]
        %v3421 = vld [vmem:[%s7 + $0x3c] sm:$0xf]
        %v3422 = vld [vmem:[%s8] sm:$0x1]
        %v3424 = vlaneseq
        %v3425 = vshrl.u32 %v3424, 7
        %v3426 = vsub.s32 0, %v3425
        %v3427 = vrot.slane %v3422, %v3426
        %v3445 = vunpack.c.l.b16 %v3406
        %v3446 = vunpack.c.l.b16 %v3407
        %v3447 = vunpack.c.l.b16 %v3408
        %v3448 = vunpack.c.l.b16 %v3409
        %v3449 = vunpack.c.l.b16 %v3410
        %v3450 = vunpack.c.l.b16 %v3411
        %v3451 = vunpack.c.l.b16 %v3412
        %v3452 = vunpack.c.l.b16 %v3413
        %v3453 = vunpack.c.l.b16 %v3414
        %v3454 = vunpack.c.l.b16 %v3415
        %v3455 = vunpack.c.l.b16 %v3416
        %v3456 = vunpack.c.l.b16 %v3417
        %v3457 = vunpack.c.l.b16 %v3418
        %v3458 = vunpack.c.l.b16 %v3419
        %v3459 = vunpack.c.l.b16 %v3420
        %v3460 = vunpack.c.l.b16 %v3421
        %v3461 = vpack.c.b16 %v3446, %v3445
        %v3462 = vpack.c.b16 %v3448, %v3447
        %v3463 = vpack.c.b16 %v3450, %v3449
        %v3464 = vpack.c.b16 %v3452, %v3451
        %v3465 = vpack.c.b16 %v3454, %v3453
        %v3466 = vpack.c.b16 %v3456, %v3455
        %v3467 = vpack.c.b16 %v3458, %v3457
        %v3468 = vpack.c.b16 %v3460, %v3459
        %3477 = vmatprep.subr.bf16.mxu0 0
        %3478 = vmatpush1.bf16.msra.mxu0 %v3461
        %3479 = vmatprep.subr.bf16.mxu0 0
        %3480 = vmatpush1.bf16.msra.mxu0 %v3462
        %3481 = vmatprep.subr.bf16.mxu0 0
        %3482 = vmatpush1.bf16.msra.mxu0 %v3463
        %3483 = vmatprep.subr.bf16.mxu0 0
        %3484 = vmatpush1.bf16.msra.mxu0 %v3464
        %3485 = vmatprep.subr.bf16.mxu0 0
        %3486 = vmatpush1.bf16.msra.mxu0 %v3465
        %3487 = vmatprep.subr.bf16.mxu0 0
        %3488 = vmatpush1.bf16.msra.mxu0 %v3466
        %3489 = vmatprep.subr.bf16.mxu0 0
        %3490 = vmatpush1.bf16.msra.mxu0 %v3467
        %3491 = vmatprep.subr.bf16.mxu0 0
        %3492 = vmatpush1.bf16.msra.mxu0 %v3468
        %3493 = vmatprep.subr.bf16.mxu0 0
        %3494 = vmatpush1.bf16.msra.mxu0 0
        %3495 = vmatprep.subr.bf16.mxu0 0
        %3496 = vmatpush1.bf16.msra.mxu0 0
        %3497 = vmatprep.subr.bf16.mxu0 0
        %3498 = vmatpush1.bf16.msra.mxu0 0
        %3499 = vmatprep.subr.bf16.mxu0 0
        %3500 = vmatpush1.bf16.msra.mxu0 0
        %3501 = vmatprep.subr.bf16.mxu0 0
        %3502 = vmatpush1.bf16.msra.mxu0 0
        %3503 = vmatprep.subr.bf16.mxu0 0
        %3504 = vmatpush1.bf16.msra.mxu0 0
        %3505 = vmatprep.subr.bf16.mxu0 0
        %3506 = vmatpush1.bf16.msra.mxu0 0
        %3507 = vmatprep.subr.bf16.mxu0 0
        %3508 = vmatpush1.bf16.msra.mxu0 0
        %3509 = vmatprep.mubr.bf16.mxu0 0
        %3510 = vmatmul.mubr.bf16.gmra.mrb[0].mxu0 %v3405
        %v3511 = vpop.f32.mrb[0].mxu0
        %v3512 = vadd.f32 %v3427, %v3511
        %v3513 = vpop.f32.mrb[0].mxu0
        %v3514 = vpop.f32.mrb[0].mxu0
        %v3515 = vpop.f32.mrb[0].mxu0
        %3516 = vdwg.mxu0
        %3517 = vst [vmem:[%s9] sm:$0x3] %v3512
      $region64: #{reward_network_forward.5} parent=55 // pred_fallthru
        _
      // Predicated region
      $region65: #{reward_network_forward.5} parent=55 // pred_check
        %p3518 = pneg %p232
      $region66: #{reward_network_forward.5} parent=55 // pred_check_branch
        %3520 = sbr.rel (%p3518) target = $region68
      $region67: #{reward_network_forward.5} parent=55 // pred_region
        _
      $region68: #{reward_network_forward.5} parent=55 // pred_fallthru
        _
      // Predicated region
      $region69: #{reward_network_forward.5} parent=55 // pred_check
        %p3521 = pneg %p232
      $region70: #{reward_network_forward.5} parent=55 // pred_check_branch
        %3523 = sbr.rel (%p3521) target = $region72
      $region71: #{reward_network_forward.5} parent=55 // pred_region
        _
      $region72: #{reward_network_forward.5} parent=55 // pred_fallthru
        _
    $region56: #{reward_network_forward.5} parent=5 // pred_fallthru
      _
    %p3524 = scmp.le.s32.totalorder 2, %s15
    // Predicated region
    $region73: #{reward_network_forward.5} parent=5 // pred_check
      %p3525 = pneg %p3524
    $region74: #{reward_network_forward.5} parent=5 // pred_check_branch
      %3527 = sbr.rel (%p3525) target = $region76
    $region75: #{reward_network_forward.5} parent=5 // pred_region
      %s3528 = ssub.s32 %s15, 2
    $region76: #{reward_network_forward.5} parent=5 // pred_fallthru
      _
  $region6: #{reward_network_forward.5} parent=0 // loop_footer
    %s19 = sadd.s32 1, %s15
  $region7: #{reward_network_forward.5} parent=0 // loop_footer_branch
    %14 = sbr.rel target = $region3
  $region8: #{reward_network_forward.5} parent=0 // loop_exit
    _

</llo_original>
